<compile_context>
chip_gen: v5e
topology: v5e:2x2
jax: 0.10.0
libtpu: 0.0.40
codegen_flags: <defaults>
</compile_context>

<pallas_src>
import functools
import math

import jax
import jax.numpy as jnp
import numpy as np
from jax.experimental import pallas as pl
from jax.experimental.pallas import tpu as pltpu  # noqa: F401  (TPU backend)

# ----------------------------- configuration --------------------------------
HIDDEN = 32          # hidden_channels (small synthetic size)
NUM_HEADS = 4
HEAD_DIM = HIDDEN // NUM_HEADS
NUM_RBF = 16
NUM_LAYERS = 2
MAX_Z = 100
CUTOFF_LOWER = 0.0
CUTOFF_UPPER = 10.0
LN_EPS = 1e-5


def _full_specs(args):
    # All kernel operands are 2-D and consumed as full blocks (grid=(1,)).
    return [pl.BlockSpec(a.shape, lambda i: (0, 0)) for a in args]


def _head_broadcast_matrix():
    # B[c', c] = 1 iff c' and c belong to the same attention head.
    # qk @ B  ==  per-head sum of qk, broadcast back to every channel of that head.
    idx = np.arange(HIDDEN) // HEAD_DIM
    return jnp.asarray((idx[:, None] == idx[None, :]).astype(np.float32))


# ----------------------------- Pallas kernels -------------------------------
def _ne_init_kernel(x_ref, xn_ref, ea_ref, c_ref, gsrc_ref, gdstT_ref,
                    distw_ref, distb_ref, combwx_ref, combwa_ref, combb_ref,
                    o_ref, *, H):
    """NeighborEmbedding + initial state [x | vec=0] as one fused kernel."""
    W = (jnp.dot(ea_ref[...], distw_ref[...], preferred_element_type=jnp.float32)
         + distb_ref[...]) * c_ref[...]                                    # (E, H)
    xnj = jnp.dot(gsrc_ref[...], xn_ref[...],
                  preferred_element_type=jnp.float32)                      # (E, H) gather
    agg = jnp.dot(gdstT_ref[...], xnj * W,
                  preferred_element_type=jnp.float32)                      # (N, H) scatter-add
    x_out = (jnp.dot(x_ref[...], combwx_ref[...], preferred_element_type=jnp.float32)
             + jnp.dot(agg, combwa_ref[...], preferred_element_type=jnp.float32)
             + combb_ref[...])
    N = x_ref.shape[0]
    # single lane-dense (N, 4H) store: [x | vec=0]
    o_ref[...] = jnp.concatenate([x_out, jnp.zeros((N, 3 * H), jnp.float32)], axis=1)


def _attn_layer_kernel(state_ref, t_ref, f_ref, d_ref, r_ref,
                       gsrc_ref, gdst_ref, gdstT_ref, headb_ref,
                       mixwx_ref, mixwt_ref, mixb0_ref, mixw1_ref, mixb1_ref,
                       lng_ref, lnb_ref,
                       wqkv_ref, bqkv_ref, vecw_ref,
                       wdkv_ref, bdkv_ref, ow_ref, ob_ref,
                       o_ref, *, H, cutoff_upper):
    """Entire EquivariantMultiHeadAttention layer (incl. residual) in one kernel."""
    state = state_ref[...]
    x = state[:, :H]                                   # (N, H)
    vec = state[:, H:]                                 # (N, 3H)
    t = t_ref[...]                                     # (N, 1)

    # --- mixing MLP: Linear(H+1 -> H) with t as extra channel, SiLU, Linear(H -> H) ---
    h = jnp.dot(x, mixwx_ref[...], preferred_element_type=jnp.float32)
    h = h + t * mixwt_ref[...] + mixb0_ref[...]
    h = h * jax.nn.sigmoid(h)
    h = jnp.dot(h, mixw1_ref[...], preferred_element_type=jnp.float32) + mixb1_ref[...]

    # --- LayerNorm ---
    mu = jnp.mean(h, axis=-1, keepdims=True)
    hc = h - mu
    var = jnp.mean(hc * hc, axis=-1, keepdims=True)
    hn = hc * jax.lax.rsqrt(var + LN_EPS) * lng_ref[...] + lnb_ref[...]

    # --- fused q/k/v projection (single (H, 5H) matmul) ---
    qkv = jnp.dot(hn, wqkv_ref[...], preferred_element_type=jnp.float32) + bqkv_ref[...]
    q = qkv[:, :H]
    k = qkv[:, H:2 * H]
    v = qkv[:, 2 * H:]                                 # (N, 3H)

    # --- vec_proj (no bias), applied per spatial component ---
    vecw = vecw_ref[...]
    vecp = [jnp.dot(vec[:, dd * H:(dd + 1) * H], vecw,
                    preferred_element_type=jnp.float32) for dd in range(3)]  # (N, 3H) each
    vec_dot = (vecp[0][:, :H] * vecp[0][:, H:2 * H]
               + vecp[1][:, :H] * vecp[1][:, H:2 * H]
               + vecp[2][:, :H] * vecp[2][:, H:2 * H])                       # (N, H)

    # --- fused dk/dv from RBF features, SiLU (single (R, 4H) matmul) ---
    dkv = jnp.dot(f_ref[...], wdkv_ref[...], preferred_element_type=jnp.float32) + bdkv_ref[...]
    dkv = dkv * jax.nn.sigmoid(dkv)
    dk = dkv[:, :H]                                    # (E, H)
    dv = dkv[:, H:]                                    # (E, 3H)

    # --- edge gathers via one-hot matmuls (source feats gathered in one 7H-wide matmul) ---
    src_feats = jnp.concatenate([k, v, vec], axis=1)                         # (N, 7H)
    g_src = jnp.dot(gsrc_ref[...], src_feats, preferred_element_type=jnp.float32)  # (E, 7H)
    k_j = g_src[:, :H]
    v_j = g_src[:, H:4 * H]
    vec_j = g_src[:, 4 * H:]
    q_i = jnp.dot(gdst_ref[...], q, preferred_element_type=jnp.float32)     # (E, H)

    # --- per-head attention: block-diagonal headB does reduce + broadcast in one matmul ---
    qk = q_i * k_j * dk
    attn = jnp.dot(qk, headb_ref[...], preferred_element_type=jnp.float32)  # (E, H)
    attn = attn * jax.nn.sigmoid(attn)                 # SiLU (constant within each head)
    r = r_ref[...]                                     # (E, 1) squared distance (as module)
    cut = 0.5 * (jnp.cos(r * (math.pi / cutoff_upper)) + 1.0)
    cut = cut * (r < cutoff_upper).astype(jnp.float32)
    attn = attn * cut

    # --- messages: [x_msg | vec_msg] assembled as one lane-dense (E, 4H) tensor ---
    vj = v_j * dv
    x_msg = vj[:, :H] * attn
    v1 = vj[:, H:2 * H]
    v2 = vj[:, 2 * H:]
    d = d_ref[...]                                     # (E, 3)
    msg = jnp.concatenate(
        [x_msg] + [vec_j[:, dd * H:(dd + 1) * H] * v1 + v2 * d[:, dd:dd + 1]
                   for dd in range(3)], axis=1)        # (E, 4H)

    # --- fused scatter-add over destination nodes (pre-transposed one-hot, native MXU form) ---
    agg = jnp.dot(gdstT_ref[...], msg, preferred_element_type=jnp.float32)  # (N, 4H)
    x_agg = agg[:, :H]

    # --- output projection, dx / dvec, residual; single (N, 4H) store ---
    o = jnp.dot(x_agg, ow_ref[...], preferred_element_type=jnp.float32) + ob_ref[...]
    o1 = o[:, :H]
    o2 = o[:, H:2 * H]
    o3 = o[:, 2 * H:]
    dx = vec_dot * o2 + o3
    new_blocks = [x + dx]
    for dd in range(3):
        dvec_d = vecp[dd][:, 2 * H:] * o1 + agg[:, (dd + 1) * H:(dd + 2) * H]
        new_blocks.append(vec[:, dd * H:(dd + 1) * H] + dvec_d)
    o_ref[...] = jnp.concatenate(new_blocks, axis=1)   # (N, 4H)


def _output_head_kernel(state_ref, ng_ref, nb_ref, lg_ref, lb_ref,
                        g1v1_ref, g1v2_ref, g1w0x_ref, g1w0v_ref, g1b0_ref, g1w1_ref, g1b1_ref,
                        g2v1_ref, g2v2_ref, g2w0x_ref, g2w0v_ref, g2b0_ref, g2w1_ref, g2b1_ref,
                        o_ref, *, H, Hm):
    """out_norm LN + output LN + two GatedEquivariantBlocks -> per-node 3-vector."""
    state = state_ref[...]
    x = state[:, :H]
    vec = state[:, H:]                                 # (N, 3H)

    def ln(v, g, b):
        mu = jnp.mean(v, axis=-1, keepdims=True)
        vc = v - mu
        var = jnp.mean(vc * vc, axis=-1, keepdims=True)
        return vc * jax.lax.rsqrt(var + LN_EPS) * g + b

    x = ln(x, ng_ref[...], nb_ref[...])                # representation-model out_norm
    # TODO(synk): etflow's output-model LayerNorm (layer_norm=True) is assumed at
    # pre_reduce entry, i.e. back-to-back with out_norm; verify against etflow.
    x = ln(x, lg_ref[...], lb_ref[...])

    # --- GatedEquivariantBlock 1: H -> Hm, scalar SiLU on x ---
    v1 = [jnp.dot(vec[:, dd * H:(dd + 1) * H], g1v1_ref[...],
                  preferred_element_type=jnp.float32) for dd in range(3)]    # (N, H) each
    v2 = [jnp.dot(vec[:, dd * H:(dd + 1) * H], g1v2_ref[...],
                  preferred_element_type=jnp.float32) for dd in range(3)]    # (N, Hm) each
    v1n = jnp.sqrt(v1[0] * v1[0] + v1[1] * v1[1] + v1[2] * v1[2])            # (N, H)
    h = (jnp.dot(x, g1w0x_ref[...], preferred_element_type=jnp.float32)
         + jnp.dot(v1n, g1w0v_ref[...], preferred_element_type=jnp.float32)
         + g1b0_ref[...])
    h = h * jax.nn.sigmoid(h)
    h = jnp.dot(h, g1w1_ref[...], preferred_element_type=jnp.float32) + g1b1_ref[...]  # (N, 2Hm)
    x1 = h[:, :Hm]
    gate = h[:, Hm:]
    x1 = x1 * jax.nn.sigmoid(x1)                       # scalar_activation=True
    w = [gate * v2[dd] for dd in range(3)]             # (N, Hm) each

    # --- GatedEquivariantBlock 2: Hm -> 1, no scalar activation ---
    u1 = [jnp.dot(w[dd], g2v1_ref[...], preferred_element_type=jnp.float32) for dd in range(3)]
    u2 = [jnp.dot(w[dd], g2v2_ref[...], preferred_element_type=jnp.float32) for dd in range(3)]
    u1n = jnp.sqrt(u1[0] * u1[0] + u1[1] * u1[1] + u1[2] * u1[2])            # (N, Hm)
    g = (jnp.dot(x1, g2w0x_ref[...], preferred_element_type=jnp.float32)
         + jnp.dot(u1n, g2w0v_ref[...], preferred_element_type=jnp.float32)
         + g2b0_ref[...])
    g = g * jax.nn.sigmoid(g)
    g = jnp.dot(g, g2w1_ref[...], preferred_element_type=jnp.float32) + g2b1_ref[...]  # (N, 2)
    gate2 = g[:, 1:2]
    o_ref[...] = jnp.concatenate([gate2 * u2[dd] for dd in range(3)], axis=1)          # (N, 3)


# ----------------------------- kernel wrappers --------------------------------
def neighbor_embed_init(params, x, xn, edge_attr, C, Gsrc, GdstT):
    N, H = x.shape
    args = [x, xn, edge_attr, C, Gsrc, GdstT,
            params["ne_dist_w"], params["ne_dist_b"].reshape(1, H),
            params["ne_comb_w"][:H], params["ne_comb_w"][H:],
            params["ne_comb_b"].reshape(1, H)]
    args = [a.astype(jnp.float32) for a in args]
    return pl.pallas_call(
        functools.partial(_ne_init_kernel, H=H),
        grid=(1,),
        in_specs=_full_specs(args),
        out_specs=pl.BlockSpec((N, 4 * H), lambda i: (0, 0)),
        out_shape=jax.ShapeDtypeStruct((N, 4 * H), jnp.float32),
    )(*args)


def attention_layer(lp, state, t2, f_ij, d_ij, r2, Gsrc, Gdst, GdstT, headB):
    N = state.shape[0]
    H = HIDDEN
    # fused weight packing (tiny, constant-folded/fused under jit)
    mix_wx = lp["mix_w0"][:H]
    mix_wt = lp["mix_w0"][H:H + 1]
    w_qkv = jnp.concatenate([lp["q_w"], lp["k_w"], lp["v_w"]], axis=1)       # (H, 5H)
    b_qkv = jnp.concatenate([lp["q_b"], lp["k_b"], lp["v_b"]]).reshape(1, 5 * H)
    w_dkv = jnp.concatenate([lp["dk_w"], lp["dv_w"]], axis=1)                # (R, 4H)
    b_dkv = jnp.concatenate([lp["dk_b"], lp["dv_b"]]).reshape(1, 4 * H)
    args = [state, t2, f_ij, d_ij, r2, Gsrc, Gdst, GdstT, headB,
            mix_wx, mix_wt, lp["mix_b0"].reshape(1, H), lp["mix_w1"], lp["mix_b1"].reshape(1, H),
            lp["ln_g"].reshape(1, H), lp["ln_b"].reshape(1, H),
            w_qkv, b_qkv, lp["vec_w"],
            w_dkv, b_dkv, lp["o_w"], lp["o_b"].reshape(1, 3 * H)]
    args = [a.astype(jnp.float32) for a in args]
    return pl.pallas_call(
        functools.partial(_attn_layer_kernel, H=H, cutoff_upper=CUTOFF_UPPER),
        grid=(1,),
        in_specs=_full_specs(args),
        out_specs=pl.BlockSpec((N, 4 * H), lambda i: (0, 0)),
        out_shape=jax.ShapeDtypeStruct((N, 4 * H), jnp.float32),
    )(*args)


def output_head(params, state):
    N = state.shape[0]
    H = HIDDEN
    Hm = H // 2
    g1, g2 = params["gb1"], params["gb2"]
    args = [state,
            params["out_norm_g"].reshape(1, H), params["out_norm_b"].reshape(1, H),
            params["out_ln_g"].reshape(1, H), params["out_ln_b"].reshape(1, H),
            g1["vec1_w"], g1["vec2_w"], g1["up_w0"][:H], g1["up_w0"][H:],
            g1["up_b0"].reshape(1, H), g1["up_w1"], g1["up_b1"].reshape(1, 2 * Hm),
            g2["vec1_w"], g2["vec2_w"], g2["up_w0"][:Hm], g2["up_w0"][Hm:],
            g2["up_b0"].reshape(1, Hm), g2["up_w1"], g2["up_b1"].reshape(1, 2)]
    args = [a.astype(jnp.float32) for a in args]
    return pl.pallas_call(
        functools.partial(_output_head_kernel, H=H, Hm=Hm),
        grid=(1,),
        in_specs=_full_specs(args),
        out_specs=pl.BlockSpec((N, 3), lambda i: (0, 0)),
        out_shape=jax.ShapeDtypeStruct((N, 3), jnp.float32),
    )(*args)


# ----------------------------- plain-JAX glue --------------------------------
def cosine_cutoff(d):
    # CosineCutoff with cutoff_lower = 0
    c = 0.5 * (jnp.cos(d * math.pi / CUTOFF_UPPER) + 1.0)
    return c * (d < CUTOFF_UPPER).astype(jnp.float32)


def expnorm_rbf(d):
    # ExpNormalSmearing (non-trainable) applied to edge_weight (as the module does)
    alpha = 5.0 / (CUTOFF_UPPER - CUTOFF_LOWER)
    start = math.exp(-CUTOFF_UPPER + CUTOFF_LOWER)
    means = jnp.linspace(start, 1.0, NUM_RBF).astype(jnp.float32)
    betas = jnp.full((NUM_RBF,), (2.0 / NUM_RBF * (1.0 - start)) ** -2, jnp.float32)
    d = d[:, None]
    return cosine_cutoff(d) * jnp.exp(
        -betas * (jnp.exp(alpha * (-d + CUTOFF_LOWER)) - means) ** 2)


# ----------------------------- parameter init --------------------------------
class KeyGen:
    def __init__(self, seed):
        self._key = jax.random.PRNGKey(seed)
        self._i = 0

    def __call__(self):
        self._i += 1
        return jax.random.fold_in(self._key, self._i)


def xavier(kg, shape):
    fan_in, fan_out = shape
    a = math.sqrt(6.0 / (fan_in + fan_out))
    return jax.random.uniform(kg(), shape, jnp.float32, -a, a)


def zeros(shape):
    return jnp.zeros(shape, jnp.float32)


def init_params(seed=0):
    kg = KeyGen(seed)
    H, R = HIDDEN, NUM_RBF
    p = {}
    p["embedding"] = jax.random.normal(kg(), (MAX_Z, H), jnp.float32)
    # NeighborEmbedding
    p["ne_embedding"] = jax.random.normal(kg(), (MAX_Z, H), jnp.float32)
    p["ne_dist_w"] = xavier(kg, (R, H)); p["ne_dist_b"] = zeros((H,))
    p["ne_comb_w"] = xavier(kg, (2 * H, H)); p["ne_comb_b"] = zeros((H,))
    layers = []
    for _ in range(NUM_LAYERS):
        layers.append(dict(
            mix_w0=xavier(kg, (H + 1, H)), mix_b0=zeros((H,)),
            mix_w1=xavier(kg, (H, H)), mix_b1=zeros((H,)),
            ln_g=jnp.ones((H,), jnp.float32), ln_b=zeros((H,)),
            q_w=xavier(kg, (H, H)), q_b=zeros((H,)),
            k_w=xavier(kg, (H, H)), k_b=zeros((H,)),
            v_w=xavier(kg, (H, 3 * H)), v_b=zeros((3 * H,)),
            o_w=xavier(kg, (H, 3 * H)), o_b=zeros((3 * H,)),
            vec_w=xavier(kg, (H, 3 * H)),
            dk_w=xavier(kg, (R, H)), dk_b=zeros((H,)),
            dv_w=xavier(kg, (R, 3 * H)), dv_b=zeros((3 * H,)),
        ))
    p["layers"] = layers
    p["out_norm_g"] = jnp.ones((H,), jnp.float32); p["out_norm_b"] = zeros((H,))
    # EquivariantVectorOutput (two GatedEquivariantBlocks) + output layer norm
    p["out_ln_g"] = jnp.ones((H,), jnp.float32); p["out_ln_b"] = zeros((H,))
    Hm = H // 2
    p["gb1"] = dict(
        vec1_w=xavier(kg, (H, H)), vec2_w=xavier(kg, (H, Hm)),
        up_w0=xavier(kg, (2 * H, H)), up_b0=zeros((H,)),
        up_w1=xavier(kg, (H, 2 * Hm)), up_b1=zeros((2 * Hm,)),
    )
    p["gb2"] = dict(
        vec1_w=xavier(kg, (Hm, Hm)), vec2_w=xavier(kg, (Hm, 1)),
        up_w0=xavier(kg, (2 * Hm, Hm)), up_b0=zeros((Hm,)),
        up_w1=xavier(kg, (Hm, 2)), up_b1=zeros((2,)),
    )
    return p


# ----------------------------- model forward ---------------------------------
def torchmd_dynamics_forward(params, z, t, pos, edge_index, batch, *, num_graphs):
    src = edge_index[0]
    dst = edge_index[1]
    N = z.shape[0]
    E = src.shape[0]
    H = HIDDEN

    x = params["embedding"][z]                                       # (N, H)
    edge_vec = pos[src] - pos[dst]
    edge_weight = jnp.sum(edge_vec ** 2, axis=-1)                    # squared dist (as module)
    edge_attr = expnorm_rbf(edge_weight)                             # (E, NUM_RBF)
    self_mask = src == dst
    masked_ew = jnp.where(self_mask, 1.0, edge_weight)[:, None]
    edge_vec = edge_vec / masked_ew                                  # matches module

    # one-hot gather/scatter matrices shared by every kernel (MXU-friendly)
    node_iota = jnp.arange(N)
    Gsrc = (src[:, None] == node_iota[None, :]).astype(jnp.float32)  # (E, N)
    Gdst = (dst[:, None] == node_iota[None, :]).astype(jnp.float32)  # (E, N)
    GdstT = Gdst.T                                                   # (N, E) scatter form
    headB = _head_broadcast_matrix()                                 # (H, H) block-diag

    # NeighborEmbedding (fused kernel) -> initial state [x | vec=0] as (N, 4H)
    C = cosine_cutoff(edge_weight)
    C = jnp.where(self_mask, 0.0, C)[:, None]                        # (E, 1)
    xn = params["ne_embedding"][z]
    state = neighbor_embed_init(params, x, xn, edge_attr, C, Gsrc, GdstT)

    t2 = t.reshape(N, 1).astype(jnp.float32)
    r2 = edge_weight.reshape(E, 1).astype(jnp.float32)
    for lp in params["layers"]:
        state = attention_layer(lp, state, t2, edge_attr, edge_vec, r2,
                                Gsrc, Gdst, GdstT, headB)

    v = output_head(params, state)                                   # (N, 3)

    # center(v - pos, batch)
    y = v - pos
    onehot = (batch[:, None] == jnp.arange(num_graphs)[None, :]).astype(jnp.float32)
    sums = onehot.T @ y
    counts = jnp.sum(onehot, axis=0)[:, None]
    mean = sums / counts
    return y - mean[batch]


# ----------------------------- driver ----------------------------------------
if __name__ == "__main__":
    N_PER_MOL = 8
    NUM_MOLS = 2
    N = N_PER_MOL * NUM_MOLS

    key = jax.random.PRNGKey(0)
    kz, kt, kp = jax.random.split(key, 3)
    z = jax.random.randint(kz, (N,), 1, MAX_Z)
    t = jax.random.uniform(kt, (N,), jnp.float32)
    pos = jax.random.normal(kp, (N, 3), jnp.float32)
    batch = jnp.repeat(jnp.arange(NUM_MOLS, dtype=jnp.int32), N_PER_MOL)

    # fully connected graph per molecule, no self loops; row0 = source j, row1 = target i
    src_list, dst_list = [], []
    for b in range(NUM_MOLS):
        base = b * N_PER_MOL
        for i in range(N_PER_MOL):
            for j in range(N_PER_MOL):
                if i != j:
                    src_list.append(base + j)
                    dst_list.append(base + i)
    edge_index = jnp.array([src_list, dst_list], dtype=jnp.int32)    # (2, 112)

    params = init_params(0)

    fwd = jax.jit(functools.partial(torchmd_dynamics_forward, num_graphs=NUM_MOLS))
    out = fwd(params, z, t, pos, edge_index, batch)
    out = jax.block_until_ready(out)
    assert out.shape == (N, 3)
    assert bool(jnp.all(jnp.isfinite(out)))
    print("KERNEL_OK")
</pallas_src>

<mosaic_0001>
module attributes {stable_mosaic.version = 11 : i64} {
  func.func @_ne_init_kernel(%arg0: i32, %arg1: memref<16x32xf32, #tpu.memory_space<vmem>>, %arg2: memref<16x32xf32, #tpu.memory_space<vmem>>, %arg3: memref<112x16xf32, #tpu.memory_space<vmem>>, %arg4: memref<112x1xf32, #tpu.memory_space<vmem>>, %arg5: memref<112x16xf32, #tpu.memory_space<vmem>>, %arg6: memref<16x112xf32, #tpu.memory_space<vmem>>, %arg7: memref<16x32xf32, #tpu.memory_space<vmem>>, %arg8: memref<1x32xf32, #tpu.memory_space<vmem>>, %arg9: memref<32x32xf32, #tpu.memory_space<vmem>>, %arg10: memref<32x32xf32, #tpu.memory_space<vmem>>, %arg11: memref<1x32xf32, #tpu.memory_space<vmem>>, %arg12: memref<16x128xf32, #tpu.memory_space<vmem>>) attributes {dimension_semantics = [#tpu.dimension_semantics<arbitrary>], iteration_bounds = array<i64: 1>, scalar_prefetch = 0 : i64, scratch_operands = 0 : i64, tpu.core_type = #tpu.core_type<tc>, window_params = [{pipeline_mode = #tpu.pipeline_mode<synchronous>, transform_indices = @transform_0, window_bounds = array<i64: 16, 32>}, {pipeline_mode = #tpu.pipeline_mode<synchronous>, transform_indices = @transform_1, window_bounds = array<i64: 16, 32>}, {pipeline_mode = #tpu.pipeline_mode<synchronous>, transform_indices = @transform_2, window_bounds = array<i64: 112, 16>}, {pipeline_mode = #tpu.pipeline_mode<synchronous>, transform_indices = @transform_3, window_bounds = array<i64: 112, 1>}, {pipeline_mode = #tpu.pipeline_mode<synchronous>, transform_indices = @transform_4, window_bounds = array<i64: 112, 16>}, {pipeline_mode = #tpu.pipeline_mode<synchronous>, transform_indices = @transform_5, window_bounds = array<i64: 16, 112>}, {pipeline_mode = #tpu.pipeline_mode<synchronous>, transform_indices = @transform_6, window_bounds = array<i64: 16, 32>}, {pipeline_mode = #tpu.pipeline_mode<synchronous>, transform_indices = @transform_7, window_bounds = array<i64: 1, 32>}, {pipeline_mode = #tpu.pipeline_mode<synchronous>, transform_indices = @transform_8, window_bounds = array<i64: 32, 32>}, {pipeline_mode = #tpu.pipeline_mode<synchronous>, transform_indices = @transform_9, window_bounds = array<i64: 32, 32>}, {pipeline_mode = #tpu.pipeline_mode<synchronous>, transform_indices = @transform_10, window_bounds = array<i64: 1, 32>}, {pipeline_mode = #tpu.pipeline_mode<synchronous>, transform_indices = @transform_11, window_bounds = array<i64: 16, 128>}]} {
    %c0 = arith.constant 0 : index
    %c0_0 = arith.constant 0 : index
    %0 = vector.load %arg3[%c0, %c0_0] : memref<112x16xf32, #tpu.memory_space<vmem>>, vector<112x16xf32>
    %c0_1 = arith.constant 0 : index
    %c0_2 = arith.constant 0 : index
    %1 = vector.load %arg7[%c0_1, %c0_2] : memref<16x32xf32, #tpu.memory_space<vmem>>, vector<16x32xf32>
    %cst = arith.constant dense<0.000000e+00> : vector<112x32xf32>
    %2 = tpu.matmul %0, %1, %cst {dimension_numbers = #tpu.dot_dimension_numbers<[1], [0], [0], [1], [0, 0, 1, 1], [], []>} : vector<112x16xf32>, vector<16x32xf32>, vector<112x32xf32> -> vector<112x32xf32>
    %c0_3 = arith.constant 0 : index
    %c0_4 = arith.constant 0 : index
    %3 = vector.load %arg8[%c0_3, %c0_4] : memref<1x32xf32, #tpu.memory_space<vmem>>, vector<1x32xf32>
    %4 = vector.broadcast %3 : vector<1x32xf32> to vector<112x32xf32>
    %5 = arith.addf %2, %4 : vector<112x32xf32>
    %c0_5 = arith.constant 0 : index
    %c0_6 = arith.constant 0 : index
    %6 = vector.load %arg4[%c0_5, %c0_6] : memref<112x1xf32, #tpu.memory_space<vmem>>, vector<112x1xf32>
    %7 = vector.broadcast %6 : vector<112x1xf32> to vector<112x32xf32>
    %8 = arith.mulf %5, %7 : vector<112x32xf32>
    %c0_7 = arith.constant 0 : index
    %c0_8 = arith.constant 0 : index
    %9 = vector.load %arg5[%c0_7, %c0_8] : memref<112x16xf32, #tpu.memory_space<vmem>>, vector<112x16xf32>
    %c0_9 = arith.constant 0 : index
    %c0_10 = arith.constant 0 : index
    %10 = vector.load %arg2[%c0_9, %c0_10] : memref<16x32xf32, #tpu.memory_space<vmem>>, vector<16x32xf32>
    %cst_11 = arith.constant dense<0.000000e+00> : vector<112x32xf32>
    %11 = tpu.matmul %9, %10, %cst_11 {dimension_numbers = #tpu.dot_dimension_numbers<[1], [0], [0], [1], [0, 0, 1, 1], [], []>} : vector<112x16xf32>, vector<16x32xf32>, vector<112x32xf32> -> vector<112x32xf32>
    %c0_12 = arith.constant 0 : index
    %c0_13 = arith.constant 0 : index
    %12 = vector.load %arg6[%c0_12, %c0_13] : memref<16x112xf32, #tpu.memory_space<vmem>>, vector<16x112xf32>
    %13 = arith.mulf %11, %8 : vector<112x32xf32>
    %cst_14 = arith.constant dense<0.000000e+00> : vector<16x32xf32>
    %14 = tpu.matmul %12, %13, %cst_14 {dimension_numbers = #tpu.dot_dimension_numbers<[1], [0], [0], [1], [0, 0, 1, 1], [], []>} : vector<16x112xf32>, vector<112x32xf32>, vector<16x32xf32> -> vector<16x32xf32>
    %c0_15 = arith.constant 0 : index
    %c0_16 = arith.constant 0 : index
    %15 = vector.load %arg1[%c0_15, %c0_16] : memref<16x32xf32, #tpu.memory_space<vmem>>, vector<16x32xf32>
    %c0_17 = arith.constant 0 : index
    %c0_18 = arith.constant 0 : index
    %16 = vector.load %arg9[%c0_17, %c0_18] : memref<32x32xf32, #tpu.memory_space<vmem>>, vector<32x32xf32>
    %cst_19 = arith.constant dense<0.000000e+00> : vector<16x32xf32>
    %17 = tpu.matmul %15, %16, %cst_19 {dimension_numbers = #tpu.dot_dimension_numbers<[1], [0], [0], [1], [0, 0, 1, 1], [], []>} : vector<16x32xf32>, vector<32x32xf32>, vector<16x32xf32> -> vector<16x32xf32>
    %c0_20 = arith.constant 0 : index
    %c0_21 = arith.constant 0 : index
    %18 = vector.load %arg10[%c0_20, %c0_21] : memref<32x32xf32, #tpu.memory_space<vmem>>, vector<32x32xf32>
    %cst_22 = arith.constant dense<0.000000e+00> : vector<16x32xf32>
    %19 = tpu.matmul %14, %18, %cst_22 {dimension_numbers = #tpu.dot_dimension_numbers<[1], [0], [0], [1], [0, 0, 1, 1], [], []>} : vector<16x32xf32>, vector<32x32xf32>, vector<16x32xf32> -> vector<16x32xf32>
    %20 = arith.addf %17, %19 : vector<16x32xf32>
    %c0_23 = arith.constant 0 : index
    %c0_24 = arith.constant 0 : index
    %21 = vector.load %arg11[%c0_23, %c0_24] : memref<1x32xf32, #tpu.memory_space<vmem>>, vector<1x32xf32>
    %22 = vector.broadcast %21 : vector<1x32xf32> to vector<16x32xf32>
    %23 = arith.addf %20, %22 : vector<16x32xf32>
    %cst_25 = arith.constant 0.000000e+00 : f32
    %24 = vector.broadcast %cst_25 : f32 to vector<16x96xf32>
    %25 = tpu.concatenate %23, %24 in 1 : vector<16x32xf32>, vector<16x96xf32> -> vector<16x128xf32>
    %c0_26 = arith.constant 0 : index
    %c0_27 = arith.constant 0 : index
    %26 = vector.load %arg12[%c0_26, %c0_27] : memref<16x128xf32, #tpu.memory_space<vmem>>, vector<16x128xf32>
    tpu.vector_store %arg12[%c0_26, %c0_27], %25 {strides = array<i32>} : memref<16x128xf32, #tpu.memory_space<vmem>>, vector<16x128xf32>,
    return
  }
  func.func @transform_0(%arg0: i32) -> (i32, i32) {
    %c0_i32 = arith.constant 0 : i32
    %c0_i32_0 = arith.constant 0 : i32
    %c0_i32_1 = arith.constant 0 : i32
    return %c0_i32, %c0_i32_0 : i32, i32
  }
  func.func @transform_1(%arg0: i32) -> (i32, i32) {
    %c0_i32 = arith.constant 0 : i32
    %c0_i32_0 = arith.constant 0 : i32
    %c0_i32_1 = arith.constant 0 : i32
    return %c0_i32, %c0_i32_0 : i32, i32
  }
  func.func @transform_2(%arg0: i32) -> (i32, i32) {
    %c0_i32 = arith.constant 0 : i32
    %c0_i32_0 = arith.constant 0 : i32
    %c0_i32_1 = arith.constant 0 : i32
    return %c0_i32, %c0_i32_0 : i32, i32
  }
  func.func @transform_3(%arg0: i32) -> (i32, i32) {
    %c0_i32 = arith.constant 0 : i32
    %c0_i32_0 = arith.constant 0 : i32
    %c0_i32_1 = arith.constant 0 : i32
    return %c0_i32, %c0_i32_0 : i32, i32
  }
  func.func @transform_4(%arg0: i32) -> (i32, i32) {
    %c0_i32 = arith.constant 0 : i32
    %c0_i32_0 = arith.constant 0 : i32
    %c0_i32_1 = arith.constant 0 : i32
    return %c0_i32, %c0_i32_0 : i32, i32
  }
  func.func @transform_5(%arg0: i32) -> (i32, i32) {
    %c0_i32 = arith.constant 0 : i32
    %c0_i32_0 = arith.constant 0 : i32
    %c0_i32_1 = arith.constant 0 : i32
    return %c0_i32, %c0_i32_0 : i32, i32
  }
  func.func @transform_6(%arg0: i32) -> (i32, i32) {
    %c0_i32 = arith.constant 0 : i32
    %c0_i32_0 = arith.constant 0 : i32
    %c0_i32_1 = arith.constant 0 : i32
    return %c0_i32, %c0_i32_0 : i32, i32
  }
  func.func @transform_7(%arg0: i32) -> (i32, i32) {
    %c0_i32 = arith.constant 0 : i32
    %c0_i32_0 = arith.constant 0 : i32
    %c0_i32_1 = arith.constant 0 : i32
    return %c0_i32, %c0_i32_0 : i32, i32
  }
  func.func @transform_8(%arg0: i32) -> (i32, i32) {
    %c0_i32 = arith.constant 0 : i32
    %c0_i32_0 = arith.constant 0 : i32
    %c0_i32_1 = arith.constant 0 : i32
    return %c0_i32, %c0_i32_0 : i32, i32
  }
  func.func @transform_9(%arg0: i32) -> (i32, i32) {
    %c0_i32 = arith.constant 0 : i32
    %c0_i32_0 = arith.constant 0 : i32
    %c0_i32_1 = arith.constant 0 : i32
    return %c0_i32, %c0_i32_0 : i32, i32
  }
  func.func @transform_10(%arg0: i32) -> (i32, i32) {
    %c0_i32 = arith.constant 0 : i32
    %c0_i32_0 = arith.constant 0 : i32
    %c0_i32_1 = arith.constant 0 : i32
    return %c0_i32, %c0_i32_0 : i32, i32
  }
  func.func @transform_11(%arg0: i32) -> (i32, i32) {
    %c0_i32 = arith.constant 0 : i32
    %c0_i32_0 = arith.constant 0 : i32
    %c0_i32_1 = arith.constant 0 : i32
    return %c0_i32, %c0_i32_0 : i32, i32
  }
}

module attributes {stable_mosaic.version = 11 : i64} {
  func.func @_attn_layer_kernel(%arg0: i32, %arg1: memref<16x128xf32, #tpu.memory_space<vmem>>, %arg2: memref<16x1xf32, #tpu.memory_space<vmem>>, %arg3: memref<112x16xf32, #tpu.memory_space<vmem>>, %arg4: memref<112x3xf32, #tpu.memory_space<vmem>>, %arg5: memref<112x1xf32, #tpu.memory_space<vmem>>, %arg6: memref<112x16xf32, #tpu.memory_space<vmem>>, %arg7: memref<112x16xf32, #tpu.memory_space<vmem>>, %arg8: memref<16x112xf32, #tpu.memory_space<vmem>>, %arg9: memref<32x32xf32, #tpu.memory_space<vmem>>, %arg10: memref<32x32xf32, #tpu.memory_space<vmem>>, %arg11: memref<1x32xf32, #tpu.memory_space<vmem>>, %arg12: memref<1x32xf32, #tpu.memory_space<vmem>>, %arg13: memref<32x32xf32, #tpu.memory_space<vmem>>, %arg14: memref<1x32xf32, #tpu.memory_space<vmem>>, %arg15: memref<1x32xf32, #tpu.memory_space<vmem>>, %arg16: memref<1x32xf32, #tpu.memory_space<vmem>>, %arg17: memref<32x160xf32, #tpu.memory_space<vmem>>, %arg18: memref<1x160xf32, #tpu.memory_space<vmem>>, %arg19: memref<32x96xf32, #tpu.memory_space<vmem>>, %arg20: memref<16x128xf32, #tpu.memory_space<vmem>>, %arg21: memref<1x128xf32, #tpu.memory_space<vmem>>, %arg22: memref<32x96xf32, #tpu.memory_space<vmem>>, %arg23: memref<1x96xf32, #tpu.memory_space<vmem>>, %arg24: memref<16x128xf32, #tpu.memory_space<vmem>>) attributes {dimension_semantics = [#tpu.dimension_semantics<arbitrary>], iteration_bounds = array<i64: 1>, scalar_prefetch = 0 : i64, scratch_operands = 0 : i64, tpu.core_type = #tpu.core_type<tc>, window_params = [{pipeline_mode = #tpu.pipeline_mode<synchronous>, transform_indices = @transform_0, window_bounds = array<i64: 16, 128>}, {pipeline_mode = #tpu.pipeline_mode<synchronous>, transform_indices = @transform_1, window_bounds = array<i64: 16, 1>}, {pipeline_mode = #tpu.pipeline_mode<synchronous>, transform_indices = @transform_2, window_bounds = array<i64: 112, 16>}, {pipeline_mode = #tpu.pipeline_mode<synchronous>, transform_indices = @transform_3, window_bounds = array<i64: 112, 3>}, {pipeline_mode = #tpu.pipeline_mode<synchronous>, transform_indices = @transform_4, window_bounds = array<i64: 112, 1>}, {pipeline_mode = #tpu.pipeline_mode<synchronous>, transform_indices = @transform_5, window_bounds = array<i64: 112, 16>}, {pipeline_mode = #tpu.pipeline_mode<synchronous>, transform_indices = @transform_6, window_bounds = array<i64: 112, 16>}, {pipeline_mode = #tpu.pipeline_mode<synchronous>, transform_indices = @transform_7, window_bounds = array<i64: 16, 112>}, {pipeline_mode = #tpu.pipeline_mode<synchronous>, transform_indices = @transform_8, window_bounds = array<i64: 32, 32>}, {pipeline_mode = #tpu.pipeline_mode<synchronous>, transform_indices = @transform_9, window_bounds = array<i64: 32, 32>}, {pipeline_mode = #tpu.pipeline_mode<synchronous>, transform_indices = @transform_10, window_bounds = array<i64: 1, 32>}, {pipeline_mode = #tpu.pipeline_mode<synchronous>, transform_indices = @transform_11, window_bounds = array<i64: 1, 32>}, {pipeline_mode = #tpu.pipeline_mode<synchronous>, transform_indices = @transform_12, window_bounds = array<i64: 32, 32>}, {pipeline_mode = #tpu.pipeline_mode<synchronous>, transform_indices = @transform_13, window_bounds = array<i64: 1, 32>}, {pipeline_mode = #tpu.pipeline_mode<synchronous>, transform_indices = @transform_14, window_bounds = array<i64: 1, 32>}, {pipeline_mode = #tpu.pipeline_mode<synchronous>, transform_indices = @transform_15, window_bounds = array<i64: 1, 32>}, {pipeline_mode = #tpu.pipeline_mode<synchronous>, transform_indices = @transform_16, window_bounds = array<i64: 32, 160>}, {pipeline_mode = #tpu.pipeline_mode<synchronous>, transform_indices = @transform_17, window_bounds = array<i64: 1, 160>}, {pipeline_mode = #tpu.pipeline_mode<synchronous>, transform_indices = @transform_18, window_bounds = array<i64: 32, 96>}, {pipeline_mode = #tpu.pipeline_mode<synchronous>, transform_indices = @transform_19, window_bounds = array<i64: 16, 128>}, {pipeline_mode = #tpu.pipeline_mode<synchronous>, transform_indices = @transform_20, window_bounds = array<i64: 1, 128>}, {pipeline_mode = #tpu.pipeline_mode<synchronous>, transform_indices = @transform_21, window_bounds = array<i64: 32, 96>}, {pipeline_mode = #tpu.pipeline_mode<synchronous>, transform_indices = @transform_22, window_bounds = array<i64: 1, 96>}, {pipeline_mode = #tpu.pipeline_mode<synchronous>, transform_indices = @transform_23, window_bounds = array<i64: 16, 128>}]} {
    %c0 = arith.constant 0 : index
    %c0_0 = arith.constant 0 : index
    %0 = vector.load %arg1[%c0, %c0_0] : memref<16x128xf32, #tpu.memory_space<vmem>>, vector<16x128xf32>
    %1 = vector.extract_strided_slice %0 {offsets = [0, 0], sizes = [16, 32], strides = [1, 1]} : vector<16x128xf32> to vector<16x32xf32>
    %2 = vector.extract_strided_slice %0 {offsets = [0, 32], sizes = [16, 96], strides = [1, 1]} : vector<16x128xf32> to vector<16x96xf32>
    %c0_1 = arith.constant 0 : index
    %c0_2 = arith.constant 0 : index
    %3 = vector.load %arg2[%c0_1, %c0_2] : memref<16x1xf32, #tpu.memory_space<vmem>>, vector<16x1xf32>
    %c0_3 = arith.constant 0 : index
    %c0_4 = arith.constant 0 : index
    %4 = vector.load %arg10[%c0_3, %c0_4] : memref<32x32xf32, #tpu.memory_space<vmem>>, vector<32x32xf32>
    %cst = arith.constant dense<0.000000e+00> : vector<16x32xf32>
    %5 = tpu.matmul %1, %4, %cst {dimension_numbers = #tpu.dot_dimension_numbers<[1], [0], [0], [1], [0, 0, 1, 1], [], []>} : vector<16x32xf32>, vector<32x32xf32>, vector<16x32xf32> -> vector<16x32xf32>
    %c0_5 = arith.constant 0 : index
    %c0_6 = arith.constant 0 : index
    %6 = vector.load %arg11[%c0_5, %c0_6] : memref<1x32xf32, #tpu.memory_space<vmem>>, vector<1x32xf32>
    %7 = vector.broadcast %3 : vector<16x1xf32> to vector<16x32xf32>
    %8 = vector.broadcast %6 : vector<1x32xf32> to vector<16x32xf32>
    %9 = arith.mulf %7, %8 : vector<16x32xf32>
    %10 = arith.addf %5, %9 : vector<16x32xf32>
    %c0_7 = arith.constant 0 : index
    %c0_8 = arith.constant 0 : index
    %11 = vector.load %arg12[%c0_7, %c0_8] : memref<1x32xf32, #tpu.memory_space<vmem>>, vector<1x32xf32>
    %12 = vector.broadcast %11 : vector<1x32xf32> to vector<16x32xf32>
    %13 = arith.addf %10, %12 : vector<16x32xf32>
    %14 = arith.negf %13 : vector<16x32xf32>
    %15 = math.exp %14 : vector<16x32xf32>
    %cst_9 = arith.constant 1.000000e+00 : f32
    %16 = vector.broadcast %cst_9 : f32 to vector<16x32xf32>
    %17 = arith.addf %16, %15 : vector<16x32xf32>
    %18 = arith.divf %16, %17 : vector<16x32xf32>
    %19 = arith.mulf %13, %18 : vector<16x32xf32>
    %c0_10 = arith.constant 0 : index
    %c0_11 = arith.constant 0 : index
    %20 = vector.load %arg13[%c0_10, %c0_11] : memref<32x32xf32, #tpu.memory_space<vmem>>, vector<32x32xf32>
    %cst_12 = arith.constant dense<0.000000e+00> : vector<16x32xf32>
    %21 = tpu.matmul %19, %20, %cst_12 {dimension_numbers = #tpu.dot_dimension_numbers<[1], [0], [0], [1], [0, 0, 1, 1], [], []>} : vector<16x32xf32>, vector<32x32xf32>, vector<16x32xf32> -> vector<16x32xf32>
    %c0_13 = arith.constant 0 : index
    %c0_14 = arith.constant 0 : index
    %22 = vector.load %arg14[%c0_13, %c0_14] : memref<1x32xf32, #tpu.memory_space<vmem>>, vector<1x32xf32>
    %23 = vector.broadcast %22 : vector<1x32xf32> to vector<16x32xf32>
    %24 = arith.addf %21, %23 : vector<16x32xf32>
    %cst_15 = arith.constant dense<0.000000e+00> : vector<16xf32>
    %25 = vector.multi_reduction <add>, %24, %cst_15 [1] : vector<16x32xf32> to vector<16xf32>
    %26 = vector.shape_cast %25 : vector<16xf32> to vector<16x1xf32>
    %cst_16 = arith.constant 3.200000e+01 : f32
    %27 = vector.broadcast %cst_16 : f32 to vector<16x1xf32>
    %28 = arith.divf %26, %27 : vector<16x1xf32>
    %29 = vector.broadcast %28 : vector<16x1xf32> to vector<16x32xf32>
    %30 = arith.subf %24, %29 : vector<16x32xf32>
    %31 = arith.mulf %30, %30 : vector<16x32xf32>
    %cst_17 = arith.constant dense<0.000000e+00> : vector<16xf32>
    %32 = vector.multi_reduction <add>, %31, %cst_17 [1] : vector<16x32xf32> to vector<16xf32>
    %33 = vector.shape_cast %32 : vector<16xf32> to vector<16x1xf32>
    %cst_18 = arith.constant 3.200000e+01 : f32
    %34 = vector.broadcast %cst_18 : f32 to vector<16x1xf32>
    %35 = arith.divf %33, %34 : vector<16x1xf32>
    %cst_19 = arith.constant 9.99999974E-6 : f32
    %36 = vector.broadcast %cst_19 : f32 to vector<16x1xf32>
    %37 = arith.addf %35, %36 : vector<16x1xf32>
    %38 = math.rsqrt %37 : vector<16x1xf32>
    %39 = vector.broadcast %38 : vector<16x1xf32> to vector<16x32xf32>
    %40 = arith.mulf %30, %39 : vector<16x32xf32>
    %c0_20 = arith.constant 0 : index
    %c0_21 = arith.constant 0 : index
    %41 = vector.load %arg15[%c0_20, %c0_21] : memref<1x32xf32, #tpu.memory_space<vmem>>, vector<1x32xf32>
    %42 = vector.broadcast %41 : vector<1x32xf32> to vector<16x32xf32>
    %43 = arith.mulf %40, %42 : vector<16x32xf32>
    %c0_22 = arith.constant 0 : index
    %c0_23 = arith.constant 0 : index
    %44 = vector.load %arg16[%c0_22, %c0_23] : memref<1x32xf32, #tpu.memory_space<vmem>>, vector<1x32xf32>
    %45 = vector.broadcast %44 : vector<1x32xf32> to vector<16x32xf32>
    %46 = arith.addf %43, %45 : vector<16x32xf32>
    %c0_24 = arith.constant 0 : index
    %c0_25 = arith.constant 0 : index
    %47 = vector.load %arg17[%c0_24, %c0_25] : memref<32x160xf32, #tpu.memory_space<vmem>>, vector<32x160xf32>
    %cst_26 = arith.constant dense<0.000000e+00> : vector<16x160xf32>
    %48 = tpu.matmul %46, %47, %cst_26 {dimension_numbers = #tpu.dot_dimension_numbers<[1], [0], [0], [1], [0, 0, 1, 1], [], []>} : vector<16x32xf32>, vector<32x160xf32>, vector<16x160xf32> -> vector<16x160xf32>
    %c0_27 = arith.constant 0 : index
    %c0_28 = arith.constant 0 : index
    %49 = vector.load %arg18[%c0_27, %c0_28] : memref<1x160xf32, #tpu.memory_space<vmem>>, vector<1x160xf32>
    %50 = vector.broadcast %49 : vector<1x160xf32> to vector<16x160xf32>
    %51 = arith.addf %48, %50 : vector<16x160xf32>
    %52 = vector.extract_strided_slice %51 {offsets = [0, 0], sizes = [16, 32], strides = [1, 1]} : vector<16x160xf32> to vector<16x32xf32>
    %53 = vector.extract_strided_slice %51 {offsets = [0, 32], sizes = [16, 32], strides = [1, 1]} : vector<16x160xf32> to vector<16x32xf32>
    %54 = vector.extract_strided_slice %51 {offsets = [0, 64], sizes = [16, 96], strides = [1, 1]} : vector<16x160xf32> to vector<16x96xf32>
    %c0_29 = arith.constant 0 : index
    %c0_30 = arith.constant 0 : index
    %55 = vector.load %arg19[%c0_29, %c0_30] : memref<32x96xf32, #tpu.memory_space<vmem>>, vector<32x96xf32>
    %56 = vector.extract_strided_slice %2 {offsets = [0, 0], sizes = [16, 32], strides = [1, 1]} : vector<16x96xf32> to vector<16x32xf32>
    %cst_31 = arith.constant dense<0.000000e+00> : vector<16x96xf32>
    %57 = tpu.matmul %56, %55, %cst_31 {dimension_numbers = #tpu.dot_dimension_numbers<[1], [0], [0], [1], [0, 0, 1, 1], [], []>} : vector<16x32xf32>, vector<32x96xf32>, vector<16x96xf32> -> vector<16x96xf32>
    %58 = vector.extract_strided_slice %2 {offsets = [0, 32], sizes = [16, 32], strides = [1, 1]} : vector<16x96xf32> to vector<16x32xf32>
    %cst_32 = arith.constant dense<0.000000e+00> : vector<16x96xf32>
    %59 = tpu.matmul %58, %55, %cst_32 {dimension_numbers = #tpu.dot_dimension_numbers<[1], [0], [0], [1], [0, 0, 1, 1], [], []>} : vector<16x32xf32>, vector<32x96xf32>, vector<16x96xf32> -> vector<16x96xf32>
    %60 = vector.extract_strided_slice %2 {offsets = [0, 64], sizes = [16, 32], strides = [1, 1]} : vector<16x96xf32> to vector<16x32xf32>
    %cst_33 = arith.constant dense<0.000000e+00> : vector<16x96xf32>
    %61 = tpu.matmul %60, %55, %cst_33 {dimension_numbers = #tpu.dot_dimension_numbers<[1], [0], [0], [1], [0, 0, 1, 1], [], []>} : vector<16x32xf32>, vector<32x96xf32>, vector<16x96xf32> -> vector<16x96xf32>
    %62 = vector.extract_strided_slice %57 {offsets = [0, 0], sizes = [16, 32], strides = [1, 1]} : vector<16x96xf32> to vector<16x32xf32>
    %63 = vector.extract_strided_slice %57 {offsets = [0, 32], sizes = [16, 32], strides = [1, 1]} : vector<16x96xf32> to vector<16x32xf32>
    %64 = arith.mulf %62, %63 : vector<16x32xf32>
    %65 = vector.extract_strided_slice %59 {offsets = [0, 0], sizes = [16, 32], strides = [1, 1]} : vector<16x96xf32> to vector<16x32xf32>
    %66 = vector.extract_strided_slice %59 {offsets = [0, 32], sizes = [16, 32], strides = [1, 1]} : vector<16x96xf32> to vector<16x32xf32>
    %67 = arith.mulf %65, %66 : vector<16x32xf32>
    %68 = arith.addf %64, %67 : vector<16x32xf32>
    %69 = vector.extract_strided_slice %61 {offsets = [0, 0], sizes = [16, 32], strides = [1, 1]} : vector<16x96xf32> to vector<16x32xf32>
    %70 = vector.extract_strided_slice %61 {offsets = [0, 32], sizes = [16, 32], strides = [1, 1]} : vector<16x96xf32> to vector<16x32xf32>
    %71 = arith.mulf %69, %70 : vector<16x32xf32>
    %72 = arith.addf %68, %71 : vector<16x32xf32>
    %c0_34 = arith.constant 0 : index
    %c0_35 = arith.constant 0 : index
    %73 = vector.load %arg3[%c0_34, %c0_35] : memref<112x16xf32, #tpu.memory_space<vmem>>, vector<112x16xf32>
    %c0_36 = arith.constant 0 : index
    %c0_37 = arith.constant 0 : index
    %74 = vector.load %arg20[%c0_36, %c0_37] : memref<16x128xf32, #tpu.memory_space<vmem>>, vector<16x128xf32>
    %cst_38 = arith.constant dense<0.000000e+00> : vector<112x128xf32>
    %75 = tpu.matmul %73, %74, %cst_38 {dimension_numbers = #tpu.dot_dimension_numbers<[1], [0], [0], [1], [0, 0, 1, 1], [], []>} : vector<112x16xf32>, vector<16x128xf32>, vector<112x128xf32> -> vector<112x128xf32>
    %c0_39 = arith.constant 0 : index
    %c0_40 = arith.constant 0 : index
    %76 = vector.load %arg21[%c0_39, %c0_40] : memref<1x128xf32, #tpu.memory_space<vmem>>, vector<1x128xf32>
    %77 = vector.broadcast %76 : vector<1x128xf32> to vector<112x128xf32>
    %78 = arith.addf %75, %77 : vector<112x128xf32>
    %79 = arith.negf %78 : vector<112x128xf32>
    %80 = math.exp %79 : vector<112x128xf32>
    %cst_41 = arith.constant 1.000000e+00 : f32
    %81 = vector.broadcast %cst_41 : f32 to vector<112x128xf32>
    %82 = arith.addf %81, %80 : vector<112x128xf32>
    %83 = arith.divf %81, %82 : vector<112x128xf32>
    %84 = arith.mulf %78, %83 : vector<112x128xf32>
    %85 = vector.extract_strided_slice %84 {offsets = [0, 0], sizes = [112, 32], strides = [1, 1]} : vector<112x128xf32> to vector<112x32xf32>
    %86 = vector.extract_strided_slice %84 {offsets = [0, 32], sizes = [112, 96], strides = [1, 1]} : vector<112x128xf32> to vector<112x96xf32>
    %87 = tpu.concatenate %53, %54, %2 in 1 : vector<16x32xf32>, vector<16x96xf32>, vector<16x96xf32> -> vector<16x224xf32>
    %c0_42 = arith.constant 0 : index
    %c0_43 = arith.constant 0 : index
    %88 = vector.load %arg6[%c0_42, %c0_43] : memref<112x16xf32, #tpu.memory_space<vmem>>, vector<112x16xf32>
    %cst_44 = arith.constant dense<0.000000e+00> : vector<112x224xf32>
    %89 = tpu.matmul %88, %87, %cst_44 {dimension_numbers = #tpu.dot_dimension_numbers<[1], [0], [0], [1], [0, 0, 1, 1], [], []>} : vector<112x16xf32>, vector<16x224xf32>, vector<112x224xf32> -> vector<112x224xf32>
    %90 = vector.extract_strided_slice %89 {offsets = [0, 0], sizes = [112, 32], strides = [1, 1]} : vector<112x224xf32> to vector<112x32xf32>
    %91 = vector.extract_strided_slice %89 {offsets = [0, 32], sizes = [112, 96], strides = [1, 1]} : vector<112x224xf32> to vector<112x96xf32>
    %92 = vector.extract_strided_slice %89 {offsets = [0, 128], sizes = [112, 96], strides = [1, 1]} : vector<112x224xf32> to vector<112x96xf32>
    %c0_45 = arith.constant 0 : index
    %c0_46 = arith.constant 0 : index
    %93 = vector.load %arg7[%c0_45, %c0_46] : memref<112x16xf32, #tpu.memory_space<vmem>>, vector<112x16xf32>
    %cst_47 = arith.constant dense<0.000000e+00> : vector<112x32xf32>
    %94 = tpu.matmul %93, %52, %cst_47 {dimension_numbers = #tpu.dot_dimension_numbers<[1], [0], [0], [1], [0, 0, 1, 1], [], []>} : vector<112x16xf32>, vector<16x32xf32>, vector<112x32xf32> -> vector<112x32xf32>
    %95 = arith.mulf %94, %90 : vector<112x32xf32>
    %96 = arith.mulf %95, %85 : vector<112x32xf32>
    %c0_48 = arith.constant 0 : index
    %c0_49 = arith.constant 0 : index
    %97 = vector.load %arg9[%c0_48, %c0_49] : memref<32x32xf32, #tpu.memory_space<vmem>>, vector<32x32xf32>
    %cst_50 = arith.constant dense<0.000000e+00> : vector<112x32xf32>
    %98 = tpu.matmul %96, %97, %cst_50 {dimension_numbers = #tpu.dot_dimension_numbers<[1], [0], [0], [1], [0, 0, 1, 1], [], []>} : vector<112x32xf32>, vector<32x32xf32>, vector<112x32xf32> -> vector<112x32xf32>
    %99 = arith.negf %98 : vector<112x32xf32>
    %100 = math.exp %99 : vector<112x32xf32>
    %cst_51 = arith.constant 1.000000e+00 : f32
    %101 = vector.broadcast %cst_51 : f32 to vector<112x32xf32>
    %102 = arith.addf %101, %100 : vector<112x32xf32>
    %103 = arith.divf %101, %102 : vector<112x32xf32>
    %104 = arith.mulf %98, %103 : vector<112x32xf32>
    %c0_52 = arith.constant 0 : index
    %c0_53 = arith.constant 0 : index
    %105 = vector.load %arg5[%c0_52, %c0_53] : memref<112x1xf32, #tpu.memory_space<vmem>>, vector<112x1xf32>
    %cst_54 = arith.constant 0.314159274 : f32
    %106 = vector.broadcast %cst_54 : f32 to vector<112x1xf32>
    %107 = arith.mulf %105, %106 : vector<112x1xf32>
    %108 = math.cos %107 : vector<112x1xf32>
    %cst_55 = arith.constant 1.000000e+00 : f32
    %109 = vector.broadcast %cst_55 : f32 to vector<112x1xf32>
    %110 = arith.addf %108, %109 : vector<112x1xf32>
    %cst_56 = arith.constant 5.000000e-01 : f32
    %111 = vector.broadcast %cst_56 : f32 to vector<112x1xf32>
    %112 = arith.mulf %111, %110 : vector<112x1xf32>
    %cst_57 = arith.constant 1.000000e+01 : f32
    %113 = vector.broadcast %cst_57 : f32 to vector<112x1xf32>
    %114 = arith.cmpf olt, %105, %113 : vector<112x1xf32>
    %115 = arith.extui %114 : vector<112x1xi1> to vector<112x1xi32>
    %116 = arith.sitofp %115 : vector<112x1xi32> to vector<112x1xf32>
    %117 = arith.mulf %112, %116 : vector<112x1xf32>
    %118 = vector.broadcast %117 : vector<112x1xf32> to vector<112x32xf32>
    %119 = arith.mulf %104, %118 : vector<112x32xf32>
    %120 = arith.mulf %91, %86 : vector<112x96xf32>
    %121 = vector.extract_strided_slice %120 {offsets = [0, 0], sizes = [112, 32], strides = [1, 1]} : vector<112x96xf32> to vector<112x32xf32>
    %122 = arith.mulf %121, %119 : vector<112x32xf32>
    %123 = vector.extract_strided_slice %120 {offsets = [0, 32], sizes = [112, 32], strides = [1, 1]} : vector<112x96xf32> to vector<112x32xf32>
    %124 = vector.extract_strided_slice %120 {offsets = [0, 64], sizes = [112, 32], strides = [1, 1]} : vector<112x96xf32> to vector<112x32xf32>
    %c0_58 = arith.constant 0 : index
    %c0_59 = arith.constant 0 : index
    %125 = vector.load %arg4[%c0_58, %c0_59] : memref<112x3xf32, #tpu.memory_space<vmem>>, vector<112x3xf32>
    %126 = vector.extract_strided_slice %92 {offsets = [0, 0], sizes = [112, 32], strides = [1, 1]} : vector<112x96xf32> to vector<112x32xf32>
    %127 = arith.mulf %126, %123 : vector<112x32xf32>
    %128 = vector.extract_strided_slice %125 {offsets = [0, 0], sizes = [112, 1], strides = [1, 1]} : vector<112x3xf32> to vector<112x1xf32>
    %129 = vector.broadcast %128 : vector<112x1xf32> to vector<112x32xf32>
    %130 = arith.mulf %124, %129 : vector<112x32xf32>
    %131 = arith.addf %127, %130 : vector<112x32xf32>
    %132 = vector.extract_strided_slice %92 {offsets = [0, 32], sizes = [112, 32], strides = [1, 1]} : vector<112x96xf32> to vector<112x32xf32>
    %133 = arith.mulf %132, %123 : vector<112x32xf32>
    %134 = vector.extract_strided_slice %125 {offsets = [0, 1], sizes = [112, 1], strides = [1, 1]} : vector<112x3xf32> to vector<112x1xf32>
    %135 = vector.broadcast %134 : vector<112x1xf32> to vector<112x32xf32>
    %136 = arith.mulf %124, %135 : vector<112x32xf32>
    %137 = arith.addf %133, %136 : vector<112x32xf32>
    %138 = vector.extract_strided_slice %92 {offsets = [0, 64], sizes = [112, 32], strides = [1, 1]} : vector<112x96xf32> to vector<112x32xf32>
    %139 = arith.mulf %138, %123 : vector<112x32xf32>
    %140 = vector.extract_strided_slice %125 {offsets = [0, 2], sizes = [112, 1], strides = [1, 1]} : vector<112x3xf32> to vector<112x1xf32>
    %141 = vector.broadcast %140 : vector<112x1xf32> to vector<112x32xf32>
    %142 = arith.mulf %124, %141 : vector<112x32xf32>
    %143 = arith.addf %139, %142 : vector<112x32xf32>
    %144 = tpu.concatenate %122, %131, %137, %143 in 1 : vector<112x32xf32>, vector<112x32xf32>, vector<112x32xf32>, vector<112x32xf32> -> vector<112x128xf32>
    %c0_60 = arith.constant 0 : index
    %c0_61 = arith.constant 0 : index
    %145 = vector.load %arg8[%c0_60, %c0_61] : memref<16x112xf32, #tpu.memory_space<vmem>>, vector<16x112xf32>
    %cst_62 = arith.constant dense<0.000000e+00> : vector<16x128xf32>
    %146 = tpu.matmul %145, %144, %cst_62 {dimension_numbers = #tpu.dot_dimension_numbers<[1], [0], [0], [1], [0, 0, 1, 1], [], []>} : vector<16x112xf32>, vector<112x128xf32>, vector<16x128xf32> -> vector<16x128xf32>
    %147 = vector.extract_strided_slice %146 {offsets = [0, 0], sizes = [16, 32], strides = [1, 1]} : vector<16x128xf32> to vector<16x32xf32>
    %c0_63 = arith.constant 0 : index
    %c0_64 = arith.constant 0 : index
    %148 = vector.load %arg22[%c0_63, %c0_64] : memref<32x96xf32, #tpu.memory_space<vmem>>, vector<32x96xf32>
    %cst_65 = arith.constant dense<0.000000e+00> : vector<16x96xf32>
    %149 = tpu.matmul %147, %148, %cst_65 {dimension_numbers = #tpu.dot_dimension_numbers<[1], [0], [0], [1], [0, 0, 1, 1], [], []>} : vector<16x32xf32>, vector<32x96xf32>, vector<16x96xf32> -> vector<16x96xf32>
    %c0_66 = arith.constant 0 : index
    %c0_67 = arith.constant 0 : index
    %150 = vector.load %arg23[%c0_66, %c0_67] : memref<1x96xf32, #tpu.memory_space<vmem>>, vector<1x96xf32>
    %151 = vector.broadcast %150 : vector<1x96xf32> to vector<16x96xf32>
    %152 = arith.addf %149, %151 : vector<16x96xf32>
    %153 = vector.extract_strided_slice %152 {offsets = [0, 0], sizes = [16, 32], strides = [1, 1]} : vector<16x96xf32> to vector<16x32xf32>
    %154 = vector.extract_strided_slice %152 {offsets = [0, 32], sizes = [16, 32], strides = [1, 1]} : vector<16x96xf32> to vector<16x32xf32>
    %155 = vector.extract_strided_slice %152 {offsets = [0, 64], sizes = [16, 32], strides = [1, 1]} : vector<16x96xf32> to vector<16x32xf32>
    %156 = arith.mulf %72, %154 : vector<16x32xf32>
    %157 = arith.addf %156, %155 : vector<16x32xf32>
    %158 = arith.addf %1, %157 : vector<16x32xf32>
    %159 = vector.extract_strided_slice %57 {offsets = [0, 64], sizes = [16, 32], strides = [1, 1]} : vector<16x96xf32> to vector<16x32xf32>
    %160 = arith.mulf %159, %153 : vector<16x32xf32>
    %161 = vector.extract_strided_slice %146 {offsets = [0, 32], sizes = [16, 32], strides = [1, 1]} : vector<16x128xf32> to vector<16x32xf32>
    %162 = arith.addf %160, %161 : vector<16x32xf32>
    %163 = vector.extract_strided_slice %2 {offsets = [0, 0], sizes = [16, 32], strides = [1, 1]} : vector<16x96xf32> to vector<16x32xf32>
    %164 = arith.addf %163, %162 : vector<16x32xf32>
    %165 = vector.extract_strided_slice %59 {offsets = [0, 64], sizes = [16, 32], strides = [1, 1]} : vector<16x96xf32> to vector<16x32xf32>
    %166 = arith.mulf %165, %153 : vector<16x32xf32>
    %167 = vector.extract_strided_slice %146 {offsets = [0, 64], sizes = [16, 32], strides = [1, 1]} : vector<16x128xf32> to vector<16x32xf32>
    %168 = arith.addf %166, %167 : vector<16x32xf32>
    %169 = vector.extract_strided_slice %2 {offsets = [0, 32], sizes = [16, 32], strides = [1, 1]} : vector<16x96xf32> to vector<16x32xf32>
    %170 = arith.addf %169, %168 : vector<16x32xf32>
    %171 = vector.extract_strided_slice %61 {offsets = [0, 64], sizes = [16, 32], strides = [1, 1]} : vector<16x96xf32> to vector<16x32xf32>
    %172 = arith.mulf %171, %153 : vector<16x32xf32>
    %173 = vector.extract_strided_slice %146 {offsets = [0, 96], sizes = [16, 32], strides = [1, 1]} : vector<16x128xf32> to vector<16x32xf32>
    %174 = arith.addf %172, %173 : vector<16x32xf32>
    %175 = vector.extract_strided_slice %2 {offsets = [0, 64], sizes = [16, 32], strides = [1, 1]} : vector<16x96xf32> to vector<16x32xf32>
    %176 = arith.addf %175, %174 : vector<16x32xf32>
    %177 = tpu.concatenate %158, %164, %170, %176 in 1 : vector<16x32xf32>, vector<16x32xf32>, vector<16x32xf32>, vector<16x32xf32> -> vector<16x128xf32>
    %c0_68 = arith.constant 0 : index
    %c0_69 = arith.constant 0 : index
    %178 = vector.load %arg24[%c0_68, %c0_69] : memref<16x128xf32, #tpu.memory_space<vmem>>, vector<16x128xf32>
    tpu.vector_store %arg24[%c0_68, %c0_69], %177 {strides = array<i32>} : memref<16x128xf32, #tpu.memory_space<vmem>>, vector<16x128xf32>,
    return
  }
  func.func @transform_0(%arg0: i32) -> (i32, i32) {
    %c0_i32 = arith.constant 0 : i32
    %c0_i32_0 = arith.constant 0 : i32
    %c0_i32_1 = arith.constant 0 : i32
    return %c0_i32, %c0_i32_0 : i32, i32
  }
  func.func @transform_1(%arg0: i32) -> (i32, i32) {
    %c0_i32 = arith.constant 0 : i32
    %c0_i32_0 = arith.constant 0 : i32
    %c0_i32_1 = arith.constant 0 : i32
    return %c0_i32, %c0_i32_0 : i32, i32
  }
  func.func @transform_2(%arg0: i32) -> (i32, i32) {
    %c0_i32 = arith.constant 0 : i32
    %c0_i32_0 = arith.constant 0 : i32
    %c0_i32_1 = arith.constant 0 : i32
    return %c0_i32, %c0_i32_0 : i32, i32
  }
  func.func @transform_3(%arg0: i32) -> (i32, i32) {
    %c0_i32 = arith.constant 0 : i32
    %c0_i32_0 = arith.constant 0 : i32
    %c0_i32_1 = arith.constant 0 : i32
    return %c0_i32, %c0_i32_0 : i32, i32
  }
  func.func @transform_4(%arg0: i32) -> (i32, i32) {
    %c0_i32 = arith.constant 0 : i32
    %c0_i32_0 = arith.constant 0 : i32
    %c0_i32_1 = arith.constant 0 : i32
    return %c0_i32, %c0_i32_0 : i32, i32
  }
  func.func @transform_5(%arg0: i32) -> (i32, i32) {
    %c0_i32 = arith.constant 0 : i32
    %c0_i32_0 = arith.constant 0 : i32
    %c0_i32_1 = arith.constant 0 : i32
    return %c0_i32, %c0_i32_0 : i32, i32
  }
  func.func @transform_6(%arg0: i32) -> (i32, i32) {
    %c0_i32 = arith.constant 0 : i32
    %c0_i32_0 = arith.constant 0 : i32
    %c0_i32_1 = arith.constant 0 : i32
    return %c0_i32, %c0_i32_0 : i32, i32
  }
  func.func @transform_7(%arg0: i32) -> (i32, i32) {
    %c0_i32 = arith.constant 0 : i32
    %c0_i32_0 = arith.constant 0 : i32
    %c0_i32_1 = arith.constant 0 : i32
    return %c0_i32, %c0_i32_0 : i32, i32
  }
  func.func @transform_8(%arg0: i32) -> (i32, i32) {
    %c0_i32 = arith.constant 0 : i32
    %c0_i32_0 = arith.constant 0 : i32
    %c0_i32_1 = arith.constant 0 : i32
    return %c0_i32, %c0_i32_0 : i32, i32
  }
  func.func @transform_9(%arg0: i32) -> (i32, i32) {
    %c0_i32 = arith.constant 0 : i32
    %c0_i32_0 = arith.constant 0 : i32
    %c0_i32_1 = arith.constant 0 : i32
    return %c0_i32, %c0_i32_0 : i32, i32
  }
  func.func @transform_10(%arg0: i32) -> (i32, i32) {
    %c0_i32 = arith.constant 0 : i32
    %c0_i32_0 = arith.constant 0 : i32
    %c0_i32_1 = arith.constant 0 : i32
    return %c0_i32, %c0_i32_0 : i32, i32
  }
  func.func @transform_11(%arg0: i32) -> (i32, i32) {
    %c0_i32 = arith.constant 0 : i32
    %c0_i32_0 = arith.constant 0 : i32
    %c0_i32_1 = arith.constant 0 : i32
    return %c0_i32, %c0_i32_0 : i32, i32
  }
  func.func @transform_12(%arg0: i32) -> (i32, i32) {
    %c0_i32 = arith.constant 0 : i32
    %c0_i32_0 = arith.constant 0 : i32
    %c0_i32_1 = arith.constant 0 : i32
    return %c0_i32, %c0_i32_0 : i32, i32
  }
  func.func @transform_13(%arg0: i32) -> (i32, i32) {
    %c0_i32 = arith.constant 0 : i32
    %c0_i32_0 = arith.constant 0 : i32
    %c0_i32_1 = arith.constant 0 : i32
    return %c0_i32, %c0_i32_0 : i32, i32
  }
  func.func @transform_14(%arg0: i32) -> (i32, i32) {
    %c0_i32 = arith.constant 0 : i32
    %c0_i32_0 = arith.constant 0 : i32
    %c0_i32_1 = arith.constant 0 : i32
    return %c0_i32, %c0_i32_0 : i32, i32
  }
  func.func @transform_15(%arg0: i32) -> (i32, i32) {
    %c0_i32 = arith.constant 0 : i32
    %c0_i32_0 = arith.constant 0 : i32
    %c0_i32_1 = arith.constant 0 : i32
    return %c0_i32, %c0_i32_0 : i32, i32
  }
  func.func @transform_16(%arg0: i32) -> (i32, i32) {
    %c0_i32 = arith.constant 0 : i32
    %c0_i32_0 = arith.constant 0 : i32
    %c0_i32_1 = arith.constant 0 : i32
    return %c0_i32, %c0_i32_0 : i32, i32
  }
  func.func @transform_17(%arg0: i32) -> (i32, i32) {
    %c0_i32 = arith.constant 0 : i32
    %c0_i32_0 = arith.constant 0 : i32
    %c0_i32_1 = arith.constant 0 : i32
    return %c0_i32, %c0_i32_0 : i32, i32
  }
  func.func @transform_18(%arg0: i32) -> (i32, i32) {
    %c0_i32 = arith.constant 0 : i32
    %c0_i32_0 = arith.constant 0 : i32
    %c0_i32_1 = arith.constant 0 : i32
    return %c0_i32, %c0_i32_0 : i32, i32
  }
  func.func @transform_19(%arg0: i32) -> (i32, i32) {
    %c0_i32 = arith.constant 0 : i32
    %c0_i32_0 = arith.constant 0 : i32
    %c0_i32_1 = arith.constant 0 : i32
    return %c0_i32, %c0_i32_0 : i32, i32
  }
  func.func @transform_20(%arg0: i32) -> (i32, i32) {
    %c0_i32 = arith.constant 0 : i32
    %c0_i32_0 = arith.constant 0 : i32
    %c0_i32_1 = arith.constant 0 : i32
    return %c0_i32, %c0_i32_0 : i32, i32
  }
  func.func @transform_21(%arg0: i32) -> (i32, i32) {
    %c0_i32 = arith.constant 0 : i32
    %c0_i32_0 = arith.constant 0 : i32
    %c0_i32_1 = arith.constant 0 : i32
    return %c0_i32, %c0_i32_0 : i32, i32
  }
  func.func @transform_22(%arg0: i32) -> (i32, i32) {
    %c0_i32 = arith.constant 0 : i32
    %c0_i32_0 = arith.constant 0 : i32
    %c0_i32_1 = arith.constant 0 : i32
    return %c0_i32, %c0_i32_0 : i32, i32
  }
  func.func @transform_23(%arg0: i32) -> (i32, i32) {
    %c0_i32 = arith.constant 0 : i32
    %c0_i32_0 = arith.constant 0 : i32
    %c0_i32_1 = arith.constant 0 : i32
    return %c0_i32, %c0_i32_0 : i32, i32
  }
}

module attributes {stable_mosaic.version = 11 : i64} {
  func.func @_output_head_kernel(%arg0: i32, %arg1: memref<16x128xf32, #tpu.memory_space<vmem>>, %arg2: memref<1x32xf32, #tpu.memory_space<vmem>>, %arg3: memref<1x32xf32, #tpu.memory_space<vmem>>, %arg4: memref<1x32xf32, #tpu.memory_space<vmem>>, %arg5: memref<1x32xf32, #tpu.memory_space<vmem>>, %arg6: memref<32x32xf32, #tpu.memory_space<vmem>>, %arg7: memref<32x16xf32, #tpu.memory_space<vmem>>, %arg8: memref<32x32xf32, #tpu.memory_space<vmem>>, %arg9: memref<32x32xf32, #tpu.memory_space<vmem>>, %arg10: memref<1x32xf32, #tpu.memory_space<vmem>>, %arg11: memref<32x32xf32, #tpu.memory_space<vmem>>, %arg12: memref<1x32xf32, #tpu.memory_space<vmem>>, %arg13: memref<16x16xf32, #tpu.memory_space<vmem>>, %arg14: memref<16x1xf32, #tpu.memory_space<vmem>>, %arg15: memref<16x16xf32, #tpu.memory_space<vmem>>, %arg16: memref<16x16xf32, #tpu.memory_space<vmem>>, %arg17: memref<1x16xf32, #tpu.memory_space<vmem>>, %arg18: memref<16x2xf32, #tpu.memory_space<vmem>>, %arg19: memref<1x2xf32, #tpu.memory_space<vmem>>, %arg20: memref<16x3xf32, #tpu.memory_space<vmem>>) attributes {dimension_semantics = [#tpu.dimension_semantics<arbitrary>], iteration_bounds = array<i64: 1>, scalar_prefetch = 0 : i64, scratch_operands = 0 : i64, tpu.core_type = #tpu.core_type<tc>, window_params = [{pipeline_mode = #tpu.pipeline_mode<synchronous>, transform_indices = @transform_0, window_bounds = array<i64: 16, 128>}, {pipeline_mode = #tpu.pipeline_mode<synchronous>, transform_indices = @transform_1, window_bounds = array<i64: 1, 32>}, {pipeline_mode = #tpu.pipeline_mode<synchronous>, transform_indices = @transform_2, window_bounds = array<i64: 1, 32>}, {pipeline_mode = #tpu.pipeline_mode<synchronous>, transform_indices = @transform_3, window_bounds = array<i64: 1, 32>}, {pipeline_mode = #tpu.pipeline_mode<synchronous>, transform_indices = @transform_4, window_bounds = array<i64: 1, 32>}, {pipeline_mode = #tpu.pipeline_mode<synchronous>, transform_indices = @transform_5, window_bounds = array<i64: 32, 32>}, {pipeline_mode = #tpu.pipeline_mode<synchronous>, transform_indices = @transform_6, window_bounds = array<i64: 32, 16>}, {pipeline_mode = #tpu.pipeline_mode<synchronous>, transform_indices = @transform_7, window_bounds = array<i64: 32, 32>}, {pipeline_mode = #tpu.pipeline_mode<synchronous>, transform_indices = @transform_8, window_bounds = array<i64: 32, 32>}, {pipeline_mode = #tpu.pipeline_mode<synchronous>, transform_indices = @transform_9, window_bounds = array<i64: 1, 32>}, {pipeline_mode = #tpu.pipeline_mode<synchronous>, transform_indices = @transform_10, window_bounds = array<i64: 32, 32>}, {pipeline_mode = #tpu.pipeline_mode<synchronous>, transform_indices = @transform_11, window_bounds = array<i64: 1, 32>}, {pipeline_mode = #tpu.pipeline_mode<synchronous>, transform_indices = @transform_12, window_bounds = array<i64: 16, 16>}, {pipeline_mode = #tpu.pipeline_mode<synchronous>, transform_indices = @transform_13, window_bounds = array<i64: 16, 1>}, {pipeline_mode = #tpu.pipeline_mode<synchronous>, transform_indices = @transform_14, window_bounds = array<i64: 16, 16>}, {pipeline_mode = #tpu.pipeline_mode<synchronous>, transform_indices = @transform_15, window_bounds = array<i64: 16, 16>}, {pipeline_mode = #tpu.pipeline_mode<synchronous>, transform_indices = @transform_16, window_bounds = array<i64: 1, 16>}, {pipeline_mode = #tpu.pipeline_mode<synchronous>, transform_indices = @transform_17, window_bounds = array<i64: 16, 2>}, {pipeline_mode = #tpu.pipeline_mode<synchronous>, transform_indices = @transform_18, window_bounds = array<i64: 1, 2>}, {pipeline_mode = #tpu.pipeline_mode<synchronous>, transform_indices = @transform_19, window_bounds = array<i64: 16, 3>}]} {
    %c0 = arith.constant 0 : index
    %c0_0 = arith.constant 0 : index
    %0 = vector.load %arg1[%c0, %c0_0] : memref<16x128xf32, #tpu.memory_space<vmem>>, vector<16x128xf32>
    %1 = vector.extract_strided_slice %0 {offsets = [0, 0], sizes = [16, 32], strides = [1, 1]} : vector<16x128xf32> to vector<16x32xf32>
    %2 = vector.extract_strided_slice %0 {offsets = [0, 32], sizes = [16, 96], strides = [1, 1]} : vector<16x128xf32> to vector<16x96xf32>
    %c0_1 = arith.constant 0 : index
    %c0_2 = arith.constant 0 : index
    %3 = vector.load %arg2[%c0_1, %c0_2] : memref<1x32xf32, #tpu.memory_space<vmem>>, vector<1x32xf32>
    %c0_3 = arith.constant 0 : index
    %c0_4 = arith.constant 0 : index
    %4 = vector.load %arg3[%c0_3, %c0_4] : memref<1x32xf32, #tpu.memory_space<vmem>>, vector<1x32xf32>
    %cst = arith.constant dense<0.000000e+00> : vector<16xf32>
    %5 = vector.multi_reduction <add>, %1, %cst [1] : vector<16x32xf32> to vector<16xf32>
    %6 = vector.shape_cast %5 : vector<16xf32> to vector<16x1xf32>
    %cst_5 = arith.constant 3.200000e+01 : f32
    %7 = vector.broadcast %cst_5 : f32 to vector<16x1xf32>
    %8 = arith.divf %6, %7 : vector<16x1xf32>
    %9 = vector.broadcast %8 : vector<16x1xf32> to vector<16x32xf32>
    %10 = arith.subf %1, %9 : vector<16x32xf32>
    %11 = arith.mulf %10, %10 : vector<16x32xf32>
    %cst_6 = arith.constant dense<0.000000e+00> : vector<16xf32>
    %12 = vector.multi_reduction <add>, %11, %cst_6 [1] : vector<16x32xf32> to vector<16xf32>
    %13 = vector.shape_cast %12 : vector<16xf32> to vector<16x1xf32>
    %cst_7 = arith.constant 3.200000e+01 : f32
    %14 = vector.broadcast %cst_7 : f32 to vector<16x1xf32>
    %15 = arith.divf %13, %14 : vector<16x1xf32>
    %cst_8 = arith.constant 9.99999974E-6 : f32
    %16 = vector.broadcast %cst_8 : f32 to vector<16x1xf32>
    %17 = arith.addf %15, %16 : vector<16x1xf32>
    %18 = math.rsqrt %17 : vector<16x1xf32>
    %19 = vector.broadcast %18 : vector<16x1xf32> to vector<16x32xf32>
    %20 = arith.mulf %10, %19 : vector<16x32xf32>
    %21 = vector.broadcast %3 : vector<1x32xf32> to vector<16x32xf32>
    %22 = arith.mulf %20, %21 : vector<16x32xf32>
    %23 = vector.broadcast %4 : vector<1x32xf32> to vector<16x32xf32>
    %24 = arith.addf %22, %23 : vector<16x32xf32>
    %c0_9 = arith.constant 0 : index
    %c0_10 = arith.constant 0 : index
    %25 = vector.load %arg4[%c0_9, %c0_10] : memref<1x32xf32, #tpu.memory_space<vmem>>, vector<1x32xf32>
    %c0_11 = arith.constant 0 : index
    %c0_12 = arith.constant 0 : index
    %26 = vector.load %arg5[%c0_11, %c0_12] : memref<1x32xf32, #tpu.memory_space<vmem>>, vector<1x32xf32>
    %cst_13 = arith.constant dense<0.000000e+00> : vector<16xf32>
    %27 = vector.multi_reduction <add>, %24, %cst_13 [1] : vector<16x32xf32> to vector<16xf32>
    %28 = vector.shape_cast %27 : vector<16xf32> to vector<16x1xf32>
    %cst_14 = arith.constant 3.200000e+01 : f32
    %29 = vector.broadcast %cst_14 : f32 to vector<16x1xf32>
    %30 = arith.divf %28, %29 : vector<16x1xf32>
    %31 = vector.broadcast %30 : vector<16x1xf32> to vector<16x32xf32>
    %32 = arith.subf %24, %31 : vector<16x32xf32>
    %33 = arith.mulf %32, %32 : vector<16x32xf32>
    %cst_15 = arith.constant dense<0.000000e+00> : vector<16xf32>
    %34 = vector.multi_reduction <add>, %33, %cst_15 [1] : vector<16x32xf32> to vector<16xf32>
    %35 = vector.shape_cast %34 : vector<16xf32> to vector<16x1xf32>
    %cst_16 = arith.constant 3.200000e+01 : f32
    %36 = vector.broadcast %cst_16 : f32 to vector<16x1xf32>
    %37 = arith.divf %35, %36 : vector<16x1xf32>
    %cst_17 = arith.constant 9.99999974E-6 : f32
    %38 = vector.broadcast %cst_17 : f32 to vector<16x1xf32>
    %39 = arith.addf %37, %38 : vector<16x1xf32>
    %40 = math.rsqrt %39 : vector<16x1xf32>
    %41 = vector.broadcast %40 : vector<16x1xf32> to vector<16x32xf32>
    %42 = arith.mulf %32, %41 : vector<16x32xf32>
    %43 = vector.broadcast %25 : vector<1x32xf32> to vector<16x32xf32>
    %44 = arith.mulf %42, %43 : vector<16x32xf32>
    %45 = vector.broadcast %26 : vector<1x32xf32> to vector<16x32xf32>
    %46 = arith.addf %44, %45 : vector<16x32xf32>
    %47 = vector.extract_strided_slice %2 {offsets = [0, 0], sizes = [16, 32], strides = [1, 1]} : vector<16x96xf32> to vector<16x32xf32>
    %c0_18 = arith.constant 0 : index
    %c0_19 = arith.constant 0 : index
    %48 = vector.load %arg6[%c0_18, %c0_19] : memref<32x32xf32, #tpu.memory_space<vmem>>, vector<32x32xf32>
    %cst_20 = arith.constant dense<0.000000e+00> : vector<16x32xf32>
    %49 = tpu.matmul %47, %48, %cst_20 {dimension_numbers = #tpu.dot_dimension_numbers<[1], [0], [0], [1], [0, 0, 1, 1], [], []>} : vector<16x32xf32>, vector<32x32xf32>, vector<16x32xf32> -> vector<16x32xf32>
    %50 = vector.extract_strided_slice %2 {offsets = [0, 32], sizes = [16, 32], strides = [1, 1]} : vector<16x96xf32> to vector<16x32xf32>
    %c0_21 = arith.constant 0 : index
    %c0_22 = arith.constant 0 : index
    %51 = vector.load %arg6[%c0_21, %c0_22] : memref<32x32xf32, #tpu.memory_space<vmem>>, vector<32x32xf32>
    %cst_23 = arith.constant dense<0.000000e+00> : vector<16x32xf32>
    %52 = tpu.matmul %50, %51, %cst_23 {dimension_numbers = #tpu.dot_dimension_numbers<[1], [0], [0], [1], [0, 0, 1, 1], [], []>} : vector<16x32xf32>, vector<32x32xf32>, vector<16x32xf32> -> vector<16x32xf32>
    %53 = vector.extract_strided_slice %2 {offsets = [0, 64], sizes = [16, 32], strides = [1, 1]} : vector<16x96xf32> to vector<16x32xf32>
    %c0_24 = arith.constant 0 : index
    %c0_25 = arith.constant 0 : index
    %54 = vector.load %arg6[%c0_24, %c0_25] : memref<32x32xf32, #tpu.memory_space<vmem>>, vector<32x32xf32>
    %cst_26 = arith.constant dense<0.000000e+00> : vector<16x32xf32>
    %55 = tpu.matmul %53, %54, %cst_26 {dimension_numbers = #tpu.dot_dimension_numbers<[1], [0], [0], [1], [0, 0, 1, 1], [], []>} : vector<16x32xf32>, vector<32x32xf32>, vector<16x32xf32> -> vector<16x32xf32>
    %56 = vector.extract_strided_slice %2 {offsets = [0, 0], sizes = [16, 32], strides = [1, 1]} : vector<16x96xf32> to vector<16x32xf32>
    %c0_27 = arith.constant 0 : index
    %c0_28 = arith.constant 0 : index
    %57 = vector.load %arg7[%c0_27, %c0_28] : memref<32x16xf32, #tpu.memory_space<vmem>>, vector<32x16xf32>
    %cst_29 = arith.constant dense<0.000000e+00> : vector<16x16xf32>
    %58 = tpu.matmul %56, %57, %cst_29 {dimension_numbers = #tpu.dot_dimension_numbers<[1], [0], [0], [1], [0, 0, 1, 1], [], []>} : vector<16x32xf32>, vector<32x16xf32>, vector<16x16xf32> -> vector<16x16xf32>
    %59 = vector.extract_strided_slice %2 {offsets = [0, 32], sizes = [16, 32], strides = [1, 1]} : vector<16x96xf32> to vector<16x32xf32>
    %c0_30 = arith.constant 0 : index
    %c0_31 = arith.constant 0 : index
    %60 = vector.load %arg7[%c0_30, %c0_31] : memref<32x16xf32, #tpu.memory_space<vmem>>, vector<32x16xf32>
    %cst_32 = arith.constant dense<0.000000e+00> : vector<16x16xf32>
    %61 = tpu.matmul %59, %60, %cst_32 {dimension_numbers = #tpu.dot_dimension_numbers<[1], [0], [0], [1], [0, 0, 1, 1], [], []>} : vector<16x32xf32>, vector<32x16xf32>, vector<16x16xf32> -> vector<16x16xf32>
    %62 = vector.extract_strided_slice %2 {offsets = [0, 64], sizes = [16, 32], strides = [1, 1]} : vector<16x96xf32> to vector<16x32xf32>
    %c0_33 = arith.constant 0 : index
    %c0_34 = arith.constant 0 : index
    %63 = vector.load %arg7[%c0_33, %c0_34] : memref<32x16xf32, #tpu.memory_space<vmem>>, vector<32x16xf32>
    %cst_35 = arith.constant dense<0.000000e+00> : vector<16x16xf32>
    %64 = tpu.matmul %62, %63, %cst_35 {dimension_numbers = #tpu.dot_dimension_numbers<[1], [0], [0], [1], [0, 0, 1, 1], [], []>} : vector<16x32xf32>, vector<32x16xf32>, vector<16x16xf32> -> vector<16x16xf32>
    %65 = arith.mulf %49, %49 : vector<16x32xf32>
    %66 = arith.mulf %52, %52 : vector<16x32xf32>
    %67 = arith.addf %65, %66 : vector<16x32xf32>
    %68 = arith.mulf %55, %55 : vector<16x32xf32>
    %69 = arith.addf %67, %68 : vector<16x32xf32>
    %70 = math.sqrt %69 : vector<16x32xf32>
    %c0_36 = arith.constant 0 : index
    %c0_37 = arith.constant 0 : index
    %71 = vector.load %arg8[%c0_36, %c0_37] : memref<32x32xf32, #tpu.memory_space<vmem>>, vector<32x32xf32>
    %cst_38 = arith.constant dense<0.000000e+00> : vector<16x32xf32>
    %72 = tpu.matmul %46, %71, %cst_38 {dimension_numbers = #tpu.dot_dimension_numbers<[1], [0], [0], [1], [0, 0, 1, 1], [], []>} : vector<16x32xf32>, vector<32x32xf32>, vector<16x32xf32> -> vector<16x32xf32>
    %c0_39 = arith.constant 0 : index
    %c0_40 = arith.constant 0 : index
    %73 = vector.load %arg9[%c0_39, %c0_40] : memref<32x32xf32, #tpu.memory_space<vmem>>, vector<32x32xf32>
    %cst_41 = arith.constant dense<0.000000e+00> : vector<16x32xf32>
    %74 = tpu.matmul %70, %73, %cst_41 {dimension_numbers = #tpu.dot_dimension_numbers<[1], [0], [0], [1], [0, 0, 1, 1], [], []>} : vector<16x32xf32>, vector<32x32xf32>, vector<16x32xf32> -> vector<16x32xf32>
    %75 = arith.addf %72, %74 : vector<16x32xf32>
    %c0_42 = arith.constant 0 : index
    %c0_43 = arith.constant 0 : index
    %76 = vector.load %arg10[%c0_42, %c0_43] : memref<1x32xf32, #tpu.memory_space<vmem>>, vector<1x32xf32>
    %77 = vector.broadcast %76 : vector<1x32xf32> to vector<16x32xf32>
    %78 = arith.addf %75, %77 : vector<16x32xf32>
    %79 = arith.negf %78 : vector<16x32xf32>
    %80 = math.exp %79 : vector<16x32xf32>
    %cst_44 = arith.constant 1.000000e+00 : f32
    %81 = vector.broadcast %cst_44 : f32 to vector<16x32xf32>
    %82 = arith.addf %81, %80 : vector<16x32xf32>
    %83 = arith.divf %81, %82 : vector<16x32xf32>
    %84 = arith.mulf %78, %83 : vector<16x32xf32>
    %c0_45 = arith.constant 0 : index
    %c0_46 = arith.constant 0 : index
    %85 = vector.load %arg11[%c0_45, %c0_46] : memref<32x32xf32, #tpu.memory_space<vmem>>, vector<32x32xf32>
    %cst_47 = arith.constant dense<0.000000e+00> : vector<16x32xf32>
    %86 = tpu.matmul %84, %85, %cst_47 {dimension_numbers = #tpu.dot_dimension_numbers<[1], [0], [0], [1], [0, 0, 1, 1], [], []>} : vector<16x32xf32>, vector<32x32xf32>, vector<16x32xf32> -> vector<16x32xf32>
    %c0_48 = arith.constant 0 : index
    %c0_49 = arith.constant 0 : index
    %87 = vector.load %arg12[%c0_48, %c0_49] : memref<1x32xf32, #tpu.memory_space<vmem>>, vector<1x32xf32>
    %88 = vector.broadcast %87 : vector<1x32xf32> to vector<16x32xf32>
    %89 = arith.addf %86, %88 : vector<16x32xf32>
    %90 = vector.extract_strided_slice %89 {offsets = [0, 0], sizes = [16, 16], strides = [1, 1]} : vector<16x32xf32> to vector<16x16xf32>
    %91 = vector.extract_strided_slice %89 {offsets = [0, 16], sizes = [16, 16], strides = [1, 1]} : vector<16x32xf32> to vector<16x16xf32>
    %92 = arith.negf %90 : vector<16x16xf32>
    %93 = math.exp %92 : vector<16x16xf32>
    %cst_50 = arith.constant 1.000000e+00 : f32
    %94 = vector.broadcast %cst_50 : f32 to vector<16x16xf32>
    %95 = arith.addf %94, %93 : vector<16x16xf32>
    %96 = arith.divf %94, %95 : vector<16x16xf32>
    %97 = arith.mulf %90, %96 : vector<16x16xf32>
    %98 = arith.mulf %91, %58 : vector<16x16xf32>
    %99 = arith.mulf %91, %61 : vector<16x16xf32>
    %100 = arith.mulf %91, %64 : vector<16x16xf32>
    %c0_51 = arith.constant 0 : index
    %c0_52 = arith.constant 0 : index
    %101 = vector.load %arg13[%c0_51, %c0_52] : memref<16x16xf32, #tpu.memory_space<vmem>>, vector<16x16xf32>
    %cst_53 = arith.constant dense<0.000000e+00> : vector<16x16xf32>
    %102 = tpu.matmul %98, %101, %cst_53 {dimension_numbers = #tpu.dot_dimension_numbers<[1], [0], [0], [1], [0, 0, 1, 1], [], []>} : vector<16x16xf32>, vector<16x16xf32>, vector<16x16xf32> -> vector<16x16xf32>
    %c0_54 = arith.constant 0 : index
    %c0_55 = arith.constant 0 : index
    %103 = vector.load %arg13[%c0_54, %c0_55] : memref<16x16xf32, #tpu.memory_space<vmem>>, vector<16x16xf32>
    %cst_56 = arith.constant dense<0.000000e+00> : vector<16x16xf32>
    %104 = tpu.matmul %99, %103, %cst_56 {dimension_numbers = #tpu.dot_dimension_numbers<[1], [0], [0], [1], [0, 0, 1, 1], [], []>} : vector<16x16xf32>, vector<16x16xf32>, vector<16x16xf32> -> vector<16x16xf32>
    %c0_57 = arith.constant 0 : index
    %c0_58 = arith.constant 0 : index
    %105 = vector.load %arg13[%c0_57, %c0_58] : memref<16x16xf32, #tpu.memory_space<vmem>>, vector<16x16xf32>
    %cst_59 = arith.constant dense<0.000000e+00> : vector<16x16xf32>
    %106 = tpu.matmul %100, %105, %cst_59 {dimension_numbers = #tpu.dot_dimension_numbers<[1], [0], [0], [1], [0, 0, 1, 1], [], []>} : vector<16x16xf32>, vector<16x16xf32>, vector<16x16xf32> -> vector<16x16xf32>
    %c0_60 = arith.constant 0 : index
    %c0_61 = arith.constant 0 : index
    %107 = vector.load %arg14[%c0_60, %c0_61] : memref<16x1xf32, #tpu.memory_space<vmem>>, vector<16x1xf32>
    %cst_62 = arith.constant dense<0.000000e+00> : vector<16x1xf32>
    %108 = tpu.matmul %98, %107, %cst_62 {dimension_numbers = #tpu.dot_dimension_numbers<[1], [0], [0], [1], [0, 0, 1, 1], [], []>} : vector<16x16xf32>, vector<16x1xf32>, vector<16x1xf32> -> vector<16x1xf32>
    %c0_63 = arith.constant 0 : index
    %c0_64 = arith.constant 0 : index
    %109 = vector.load %arg14[%c0_63, %c0_64] : memref<16x1xf32, #tpu.memory_space<vmem>>, vector<16x1xf32>
    %cst_65 = arith.constant dense<0.000000e+00> : vector<16x1xf32>
    %110 = tpu.matmul %99, %109, %cst_65 {dimension_numbers = #tpu.dot_dimension_numbers<[1], [0], [0], [1], [0, 0, 1, 1], [], []>} : vector<16x16xf32>, vector<16x1xf32>, vector<16x1xf32> -> vector<16x1xf32>
    %c0_66 = arith.constant 0 : index
    %c0_67 = arith.constant 0 : index
    %111 = vector.load %arg14[%c0_66, %c0_67] : memref<16x1xf32, #tpu.memory_space<vmem>>, vector<16x1xf32>
    %cst_68 = arith.constant dense<0.000000e+00> : vector<16x1xf32>
    %112 = tpu.matmul %100, %111, %cst_68 {dimension_numbers = #tpu.dot_dimension_numbers<[1], [0], [0], [1], [0, 0, 1, 1], [], []>} : vector<16x16xf32>, vector<16x1xf32>, vector<16x1xf32> -> vector<16x1xf32>
    %113 = arith.mulf %102, %102 : vector<16x16xf32>
    %114 = arith.mulf %104, %104 : vector<16x16xf32>
    %115 = arith.addf %113, %114 : vector<16x16xf32>
    %116 = arith.mulf %106, %106 : vector<16x16xf32>
    %117 = arith.addf %115, %116 : vector<16x16xf32>
    %118 = math.sqrt %117 : vector<16x16xf32>
    %c0_69 = arith.constant 0 : index
    %c0_70 = arith.constant 0 : index
    %119 = vector.load %arg15[%c0_69, %c0_70] : memref<16x16xf32, #tpu.memory_space<vmem>>, vector<16x16xf32>
    %cst_71 = arith.constant dense<0.000000e+00> : vector<16x16xf32>
    %120 = tpu.matmul %97, %119, %cst_71 {dimension_numbers = #tpu.dot_dimension_numbers<[1], [0], [0], [1], [0, 0, 1, 1], [], []>} : vector<16x16xf32>, vector<16x16xf32>, vector<16x16xf32> -> vector<16x16xf32>
    %c0_72 = arith.constant 0 : index
    %c0_73 = arith.constant 0 : index
    %121 = vector.load %arg16[%c0_72, %c0_73] : memref<16x16xf32, #tpu.memory_space<vmem>>, vector<16x16xf32>
    %cst_74 = arith.constant dense<0.000000e+00> : vector<16x16xf32>
    %122 = tpu.matmul %118, %121, %cst_74 {dimension_numbers = #tpu.dot_dimension_numbers<[1], [0], [0], [1], [0, 0, 1, 1], [], []>} : vector<16x16xf32>, vector<16x16xf32>, vector<16x16xf32> -> vector<16x16xf32>
    %123 = arith.addf %120, %122 : vector<16x16xf32>
    %c0_75 = arith.constant 0 : index
    %c0_76 = arith.constant 0 : index
    %124 = vector.load %arg17[%c0_75, %c0_76] : memref<1x16xf32, #tpu.memory_space<vmem>>, vector<1x16xf32>
    %125 = vector.broadcast %124 : vector<1x16xf32> to vector<16x16xf32>
    %126 = arith.addf %123, %125 : vector<16x16xf32>
    %127 = arith.negf %126 : vector<16x16xf32>
    %128 = math.exp %127 : vector<16x16xf32>
    %cst_77 = arith.constant 1.000000e+00 : f32
    %129 = vector.broadcast %cst_77 : f32 to vector<16x16xf32>
    %130 = arith.addf %129, %128 : vector<16x16xf32>
    %131 = arith.divf %129, %130 : vector<16x16xf32>
    %132 = arith.mulf %126, %131 : vector<16x16xf32>
    %c0_78 = arith.constant 0 : index
    %c0_79 = arith.constant 0 : index
    %133 = vector.load %arg18[%c0_78, %c0_79] : memref<16x2xf32, #tpu.memory_space<vmem>>, vector<16x2xf32>
    %cst_80 = arith.constant dense<0.000000e+00> : vector<16x2xf32>
    %134 = tpu.matmul %132, %133, %cst_80 {dimension_numbers = #tpu.dot_dimension_numbers<[1], [0], [0], [1], [0, 0, 1, 1], [], []>} : vector<16x16xf32>, vector<16x2xf32>, vector<16x2xf32> -> vector<16x2xf32>
    %c0_81 = arith.constant 0 : index
    %c0_82 = arith.constant 0 : index
    %135 = vector.load %arg19[%c0_81, %c0_82] : memref<1x2xf32, #tpu.memory_space<vmem>>, vector<1x2xf32>
    %136 = vector.broadcast %135 : vector<1x2xf32> to vector<16x2xf32>
    %137 = arith.addf %134, %136 : vector<16x2xf32>
    %138 = vector.extract_strided_slice %137 {offsets = [0, 1], sizes = [16, 1], strides = [1, 1]} : vector<16x2xf32> to vector<16x1xf32>
    %139 = arith.mulf %138, %108 : vector<16x1xf32>
    %140 = arith.mulf %138, %110 : vector<16x1xf32>
    %141 = arith.mulf %138, %112 : vector<16x1xf32>
    %142 = tpu.concatenate %139, %140, %141 in 1 : vector<16x1xf32>, vector<16x1xf32>, vector<16x1xf32> -> vector<16x3xf32>
    %c0_83 = arith.constant 0 : index
    %c0_84 = arith.constant 0 : index
    %143 = vector.load %arg20[%c0_83, %c0_84] : memref<16x3xf32, #tpu.memory_space<vmem>>, vector<16x3xf32>
    tpu.vector_store %arg20[%c0_83, %c0_84], %142 {strides = array<i32>} : memref<16x3xf32, #tpu.memory_space<vmem>>, vector<16x3xf32>,
    return
  }
  func.func @transform_0(%arg0: i32) -> (i32, i32) {
    %c0_i32 = arith.constant 0 : i32
    %c0_i32_0 = arith.constant 0 : i32
    %c0_i32_1 = arith.constant 0 : i32
    return %c0_i32, %c0_i32_0 : i32, i32
  }
  func.func @transform_1(%arg0: i32) -> (i32, i32) {
    %c0_i32 = arith.constant 0 : i32
    %c0_i32_0 = arith.constant 0 : i32
    %c0_i32_1 = arith.constant 0 : i32
    return %c0_i32, %c0_i32_0 : i32, i32
  }
  func.func @transform_2(%arg0: i32) -> (i32, i32) {
    %c0_i32 = arith.constant 0 : i32
    %c0_i32_0 = arith.constant 0 : i32
    %c0_i32_1 = arith.constant 0 : i32
    return %c0_i32, %c0_i32_0 : i32, i32
  }
  func.func @transform_3(%arg0: i32) -> (i32, i32) {
    %c0_i32 = arith.constant 0 : i32
    %c0_i32_0 = arith.constant 0 : i32
    %c0_i32_1 = arith.constant 0 : i32
    return %c0_i32, %c0_i32_0 : i32, i32
  }
  func.func @transform_4(%arg0: i32) -> (i32, i32) {
    %c0_i32 = arith.constant 0 : i32
    %c0_i32_0 = arith.constant 0 : i32
    %c0_i32_1 = arith.constant 0 : i32
    return %c0_i32, %c0_i32_0 : i32, i32
  }
  func.func @transform_5(%arg0: i32) -> (i32, i32) {
    %c0_i32 = arith.constant 0 : i32
    %c0_i32_0 = arith.constant 0 : i32
    %c0_i32_1 = arith.constant 0 : i32
    return %c0_i32, %c0_i32_0 : i32, i32
  }
  func.func @transform_6(%arg0: i32) -> (i32, i32) {
    %c0_i32 = arith.constant 0 : i32
    %c0_i32_0 = arith.constant 0 : i32
    %c0_i32_1 = arith.constant 0 : i32
    return %c0_i32, %c0_i32_0 : i32, i32
  }
  func.func @transform_7(%arg0: i32) -> (i32, i32) {
    %c0_i32 = arith.constant 0 : i32
    %c0_i32_0 = arith.constant 0 : i32
    %c0_i32_1 = arith.constant 0 : i32
    return %c0_i32, %c0_i32_0 : i32, i32
  }
  func.func @transform_8(%arg0: i32) -> (i32, i32) {
    %c0_i32 = arith.constant 0 : i32
    %c0_i32_0 = arith.constant 0 : i32
    %c0_i32_1 = arith.constant 0 : i32
    return %c0_i32, %c0_i32_0 : i32, i32
  }
  func.func @transform_9(%arg0: i32) -> (i32, i32) {
    %c0_i32 = arith.constant 0 : i32
    %c0_i32_0 = arith.constant 0 : i32
    %c0_i32_1 = arith.constant 0 : i32
    return %c0_i32, %c0_i32_0 : i32, i32
  }
  func.func @transform_10(%arg0: i32) -> (i32, i32) {
    %c0_i32 = arith.constant 0 : i32
    %c0_i32_0 = arith.constant 0 : i32
    %c0_i32_1 = arith.constant 0 : i32
    return %c0_i32, %c0_i32_0 : i32, i32
  }
  func.func @transform_11(%arg0: i32) -> (i32, i32) {
    %c0_i32 = arith.constant 0 : i32
    %c0_i32_0 = arith.constant 0 : i32
    %c0_i32_1 = arith.constant 0 : i32
    return %c0_i32, %c0_i32_0 : i32, i32
  }
  func.func @transform_12(%arg0: i32) -> (i32, i32) {
    %c0_i32 = arith.constant 0 : i32
    %c0_i32_0 = arith.constant 0 : i32
    %c0_i32_1 = arith.constant 0 : i32
    return %c0_i32, %c0_i32_0 : i32, i32
  }
  func.func @transform_13(%arg0: i32) -> (i32, i32) {
    %c0_i32 = arith.constant 0 : i32
    %c0_i32_0 = arith.constant 0 : i32
    %c0_i32_1 = arith.constant 0 : i32
    return %c0_i32, %c0_i32_0 : i32, i32
  }
  func.func @transform_14(%arg0: i32) -> (i32, i32) {
    %c0_i32 = arith.constant 0 : i32
    %c0_i32_0 = arith.constant 0 : i32
    %c0_i32_1 = arith.constant 0 : i32
    return %c0_i32, %c0_i32_0 : i32, i32
  }
  func.func @transform_15(%arg0: i32) -> (i32, i32) {
    %c0_i32 = arith.constant 0 : i32
    %c0_i32_0 = arith.constant 0 : i32
    %c0_i32_1 = arith.constant 0 : i32
    return %c0_i32, %c0_i32_0 : i32, i32
  }
  func.func @transform_16(%arg0: i32) -> (i32, i32) {
    %c0_i32 = arith.constant 0 : i32
    %c0_i32_0 = arith.constant 0 : i32
    %c0_i32_1 = arith.constant 0 : i32
    return %c0_i32, %c0_i32_0 : i32, i32
  }
  func.func @transform_17(%arg0: i32) -> (i32, i32) {
    %c0_i32 = arith.constant 0 : i32
    %c0_i32_0 = arith.constant 0 : i32
    %c0_i32_1 = arith.constant 0 : i32
    return %c0_i32, %c0_i32_0 : i32, i32
  }
  func.func @transform_18(%arg0: i32) -> (i32, i32) {
    %c0_i32 = arith.constant 0 : i32
    %c0_i32_0 = arith.constant 0 : i32
    %c0_i32_1 = arith.constant 0 : i32
    return %c0_i32, %c0_i32_0 : i32, i32
  }
  func.func @transform_19(%arg0: i32) -> (i32, i32) {
    %c0_i32 = arith.constant 0 : i32
    %c0_i32_0 = arith.constant 0 : i32
    %c0_i32_1 = arith.constant 0 : i32
    return %c0_i32, %c0_i32_0 : i32, i32
  }
}

</mosaic_0001>

<llo_original>
// kernel: sub.20
$region0: #{sub.20}
  #allocation0 [shape = 's32[1]{0}', space=sflag, size = 0x4, scoped, tag = 'scoped memory for sub.20']
  %s0 = inlined_call_operand.vmem [shape: f32[16,3], index: 0, kind: input, shape index: {}]
  %s1 = inlined_call_operand.vmem [shape: f32[16,3], index: 1, kind: input, shape index: {}]
  %s2 = inlined_call_operand.vmem [shape: f32[16,3], index: 2, kind: output, shape index: {}]
  %v3 = vld [vmem:[%s0] sm:$0xff]
  %v4 = vld [vmem:[%s1] sm:$0xff]
  %5 = xla_tuple %v3, %v4
  %6 = xla_tuple %5
  %v7 = vsub.f32 %v3, %v4
  %8 = xla_tuple %v7
  %9 = vst [vmem:[%s2] sm:$0xff] %v7
  %s10 = scalar_lea.vmem %s0, 8
  %v11 = vld [vmem:[%s10] sm:$0xff]
  %s12 = scalar_lea.vmem %s1, 8
  %v13 = vld [vmem:[%s12] sm:$0xff]
  %14 = xla_tuple %v11, %v13
  %15 = xla_tuple %14
  %v16 = vsub.f32 %v11, %v13
  %17 = xla_tuple %v16
  %s18 = scalar_lea.vmem %s2, 8
  %19 = vst [vmem:[%s18] sm:$0xff] %v16

// kernel: torchmd_dynamics_forward.4
$region0: #{torchmd_dynamics_forward.4}
  #allocation0 [shape = 'u32[]', space=smem, size = 0x4, offset = 0x4, fixed_abs, tag = 'smem constant byte address 0x4 - core index']
  #allocation1 [shape = 'u32[72,128]{1,0:T(1,128)}', space=vmem, size = 0x9000, scoped, tag = 'internal scratch']
  %s0 = inlined_call_operand.vmem [shape: f32[16,32], index: 0, kind: input, shape index: {}]
  %s1 = inlined_call_operand.vmem [shape: f32[16,32], index: 1, kind: input, shape index: {}]
  %s2 = inlined_call_operand.vmem [shape: f32[112,16], index: 2, kind: input, shape index: {}]
  %s3 = inlined_call_operand.vmem [shape: f32[112,1], index: 3, kind: input, shape index: {}]
  %s4 = inlined_call_operand.vmem [shape: f32[112,16], index: 4, kind: input, shape index: {}]
  %s5 = inlined_call_operand.vmem [shape: f32[16,112], index: 5, kind: input, shape index: {}]
  %s6 = inlined_call_operand.vmem [shape: f32[16,32], index: 6, kind: input, shape index: {}]
  %s7 = inlined_call_operand.vmem [shape: f32[1,32], index: 7, kind: input, shape index: {}]
  %s8 = inlined_call_operand.vmem [shape: f32[32,32], index: 8, kind: input, shape index: {}]
  %s9 = inlined_call_operand.vmem [shape: f32[32,32], index: 9, kind: input, shape index: {}]
  %s10 = inlined_call_operand.vmem [shape: f32[1,32], index: 10, kind: input, shape index: {}]
  %s11 = inlined_call_operand.vmem [shape: f32[16,128], index: 11, kind: output, shape index: {}]
  %s12 = sld [smem:[#allocation0]]
  $region54: #{torchmd_dynamics_forward.4} parent=0
    _
  %s14 = ssub.s32 1, %s12
  %s15 = scalar_select 0, %s14, %s12
  // Predicated region
  $region2: #{torchmd_dynamics_forward.4} parent=0 // pred_check
    _
  $region3: #{torchmd_dynamics_forward.4} parent=0 // pred_check_branch
    %17 = sbr.rel (0) target = $region5
  $region4: #{torchmd_dynamics_forward.4} parent=0 // pred_region
    _
  $region5: #{torchmd_dynamics_forward.4} parent=0 // pred_fallthru
    _
  // Predicated region
  $region6: #{torchmd_dynamics_forward.4} parent=0 // pred_check
    _
  $region7: #{torchmd_dynamics_forward.4} parent=0 // pred_check_branch
    %19 = sbr.rel (0) target = $region9
  $region8: #{torchmd_dynamics_forward.4} parent=0 // pred_region
    _
  $region9: #{torchmd_dynamics_forward.4} parent=0 // pred_fallthru
    _
  // Predicated region
  $region10: #{torchmd_dynamics_forward.4} parent=0 // pred_check
    _
  $region11: #{torchmd_dynamics_forward.4} parent=0 // pred_check_branch
    %21 = sbr.rel (0) target = $region13
  $region12: #{torchmd_dynamics_forward.4} parent=0 // pred_region
    _
  $region13: #{torchmd_dynamics_forward.4} parent=0 // pred_fallthru
    _
  // Predicated region
  $region14: #{torchmd_dynamics_forward.4} parent=0 // pred_check
    _
  $region15: #{torchmd_dynamics_forward.4} parent=0 // pred_check_branch
    %23 = sbr.rel (0) target = $region17
  $region16: #{torchmd_dynamics_forward.4} parent=0 // pred_region
    _
  $region17: #{torchmd_dynamics_forward.4} parent=0 // pred_fallthru
    _
  // Predicated region
  $region18: #{torchmd_dynamics_forward.4} parent=0 // pred_check
    _
  $region19: #{torchmd_dynamics_forward.4} parent=0 // pred_check_branch
    %25 = sbr.rel (0) target = $region21
  $region20: #{torchmd_dynamics_forward.4} parent=0 // pred_region
    _
  $region21: #{torchmd_dynamics_forward.4} parent=0 // pred_fallthru
    _
  // Predicated region
  $region22: #{torchmd_dynamics_forward.4} parent=0 // pred_check
    _
  $region23: #{torchmd_dynamics_forward.4} parent=0 // pred_check_branch
    %27 = sbr.rel (0) target = $region25
  $region24: #{torchmd_dynamics_forward.4} parent=0 // pred_region
    _
  $region25: #{torchmd_dynamics_forward.4} parent=0 // pred_fallthru
    _
  // Predicated region
  $region26: #{torchmd_dynamics_forward.4} parent=0 // pred_check
    _
  $region27: #{torchmd_dynamics_forward.4} parent=0 // pred_check_branch
    %29 = sbr.rel (0) target = $region29
  $region28: #{torchmd_dynamics_forward.4} parent=0 // pred_region
    _
  $region29: #{torchmd_dynamics_forward.4} parent=0 // pred_fallthru
    _
  // Predicated region
  $region30: #{torchmd_dynamics_forward.4} parent=0 // pred_check
    _
  $region31: #{torchmd_dynamics_forward.4} parent=0 // pred_check_branch
    %31 = sbr.rel (0) target = $region33
  $region32: #{torchmd_dynamics_forward.4} parent=0 // pred_region
    _
  $region33: #{torchmd_dynamics_forward.4} parent=0 // pred_fallthru
    _
  // Predicated region
  $region34: #{torchmd_dynamics_forward.4} parent=0 // pred_check
    _
  $region35: #{torchmd_dynamics_forward.4} parent=0 // pred_check_branch
    %33 = sbr.rel (0) target = $region37
  $region36: #{torchmd_dynamics_forward.4} parent=0 // pred_region
    _
  $region37: #{torchmd_dynamics_forward.4} parent=0 // pred_fallthru
    _
  // Predicated region
  $region38: #{torchmd_dynamics_forward.4} parent=0 // pred_check
    _
  $region39: #{torchmd_dynamics_forward.4} parent=0 // pred_check_branch
    %35 = sbr.rel (0) target = $region41
  $region40: #{torchmd_dynamics_forward.4} parent=0 // pred_region
    _
  $region41: #{torchmd_dynamics_forward.4} parent=0 // pred_fallthru
    _
  // Predicated region
  $region42: #{torchmd_dynamics_forward.4} parent=0 // pred_check
    _
  $region43: #{torchmd_dynamics_forward.4} parent=0 // pred_check_branch
    %37 = sbr.rel (0) target = $region45
  $region44: #{torchmd_dynamics_forward.4} parent=0 // pred_region
    _
  $region45: #{torchmd_dynamics_forward.4} parent=0 // pred_fallthru
    _
  %v38 = vld [vmem:[%s2] sm:$0xff]
  %v39 = vld [vmem:[%s2 + $0x8] sm:$0xff]
  %v40 = vld [vmem:[%s2 + $0x10] sm:$0xff]
  %v41 = vld [vmem:[%s2 + $0x18] sm:$0xff]
  %v42 = vld [vmem:[%s2 + $0x20] sm:$0xff]
  %v43 = vld [vmem:[%s2 + $0x28] sm:$0xff]
  %v44 = vld [vmem:[%s2 + $0x30] sm:$0xff]
  %v45 = vld [vmem:[%s2 + $0x38] sm:$0xff]
  %v46 = vld [vmem:[%s2 + $0x40] sm:$0xff]
  %v47 = vld [vmem:[%s2 + $0x48] sm:$0xff]
  %v48 = vld [vmem:[%s2 + $0x50] sm:$0xff]
  %v49 = vld [vmem:[%s2 + $0x58] sm:$0xff]
  %v50 = vld [vmem:[%s2 + $0x60] sm:$0xff]
  %v51 = vld [vmem:[%s2 + $0x68] sm:$0xff]
  %v52 = vld [vmem:[%s6] sm:$0xff]
  %v53 = vld [vmem:[%s6 + $0x8] sm:$0xff]
  %v54 = vld [vmem:[%s7] sm:$0x1]
  %v56 = vperm.slane %v54, 0
  %vm58 = vcmask 130048
  %v60 = vsel %vm58, %v38, 0
  %v63 = vsel %vm58, %v39, 0
  %v66 = vsel %vm58, %v40, 0
  %v69 = vsel %vm58, %v41, 0
  %v72 = vsel %vm58, %v42, 0
  %v75 = vsel %vm58, %v43, 0
  %v78 = vsel %vm58, %v44, 0
  %v81 = vsel %vm58, %v45, 0
  %v84 = vsel %vm58, %v46, 0
  %v87 = vsel %vm58, %v47, 0
  %v90 = vsel %vm58, %v48, 0
  %v93 = vsel %vm58, %v49, 0
  %v96 = vsel %vm58, %v50, 0
  %v99 = vsel %vm58, %v51, 0
  %101 = vmatpush.msra.mxu0 0.0
  %102 = vmatpush.msra.mxu0 0.0
  %103 = vmatpush.msra.mxu0 0.0
  %104 = vmatpush.msra.mxu0 0.0
  %105 = vmatpush.msra.mxu0 0.0
  %106 = vmatpush.msra.mxu0 0.0
  %107 = vmatpush.msra.mxu0 0.0
  %108 = vmatpush.msra.mxu0 0.0
  %109 = vmatpush.msra.mxu0 0.0
  %110 = vmatpush.msra.mxu0 0.0
  %111 = vmatpush.msra.mxu0 0.0
  %112 = vmatpush.msra.mxu0 0.0
  %113 = vmatpush.msra.mxu0 0.0
  %114 = vmatpush.msra.mxu0 0.0
  %115 = vmatpush.msra.mxu0 %v53
  %116 = vmatpush.msra.mxu0 %v52
  %117 = vmatmul.f32.gmra.mxu0 %v60
  %v118 = vpop.f32.mrf.mxu0
  %v119 = vadd.f32 %v56, %v118
  %120 = vmatmul.f32.gmra.mxu0 %v63
  %v121 = vpop.f32.mrf.mxu0
  %v122 = vadd.f32 %v56, %v121
  %123 = vmatmul.f32.gmra.mxu0 %v66
  %v124 = vpop.f32.mrf.mxu0
  %v125 = vadd.f32 %v56, %v124
  %126 = vmatmul.f32.gmra.mxu0 %v69
  %v127 = vpop.f32.mrf.mxu0
  %v128 = vadd.f32 %v56, %v127
  %129 = vmatmul.f32.gmra.mxu0 %v72
  %v130 = vpop.f32.mrf.mxu0
  %v131 = vadd.f32 %v56, %v130
  %132 = vmatmul.f32.gmra.mxu0 %v75
  %v133 = vpop.f32.mrf.mxu0
  %v134 = vadd.f32 %v56, %v133
  %135 = vmatmul.f32.gmra.mxu0 %v78
  %v136 = vpop.f32.mrf.mxu0
  %v137 = vadd.f32 %v56, %v136
  %138 = vmatmul.f32.gmra.mxu0 %v81
  %v139 = vpop.f32.mrf.mxu0
  %v140 = vadd.f32 %v56, %v139
  %141 = vmatmul.f32.gmra.mxu0 %v84
  %v142 = vpop.f32.mrf.mxu0
  %v143 = vadd.f32 %v56, %v142
  %144 = vmatmul.f32.gmra.mxu0 %v87
  %v145 = vpop.f32.mrf.mxu0
  %v146 = vadd.f32 %v56, %v145
  %147 = vmatmul.f32.gmra.mxu0 %v90
  %v148 = vpop.f32.mrf.mxu0
  %v149 = vadd.f32 %v56, %v148
  %150 = vmatmul.f32.gmra.mxu0 %v93
  %v151 = vpop.f32.mrf.mxu0
  %v152 = vadd.f32 %v56, %v151
  %153 = vmatmul.f32.gmra.mxu0 %v96
  %v154 = vpop.f32.mrf.mxu0
  %v155 = vadd.f32 %v56, %v154
  %156 = vmatmul.f32.gmra.mxu0 %v99
  %v157 = vpop.f32.mrf.mxu0
  %v158 = vadd.f32 %v56, %v157
  %159 = vdwg.mxu0
  %v160 = vld [vmem:[%s3] sm:$0xff]
  %v161 = vld [vmem:[%s3 + $0x8] sm:$0xff]
  %v162 = vld [vmem:[%s3 + $0x10] sm:$0xff]
  %v163 = vld [vmem:[%s3 + $0x18] sm:$0xff]
  %v164 = vld [vmem:[%s3 + $0x20] sm:$0xff]
  %v165 = vld [vmem:[%s3 + $0x28] sm:$0xff]
  %v166 = vld [vmem:[%s3 + $0x30] sm:$0xff]
  %v167 = vld [vmem:[%s3 + $0x38] sm:$0xff]
  %v168 = vld [vmem:[%s3 + $0x40] sm:$0xff]
  %v169 = vld [vmem:[%s3 + $0x48] sm:$0xff]
  %v170 = vld [vmem:[%s3 + $0x50] sm:$0xff]
  %v171 = vld [vmem:[%s3 + $0x58] sm:$0xff]
  %v172 = vld [vmem:[%s3 + $0x60] sm:$0xff]
  %v173 = vld [vmem:[%s3 + $0x68] sm:$0xff]
  %175 = vset.pattern.permute.xlu0 0
  %176 = vperm.xlu0 %175, %v160
  %v177 = vpop.permute.xlu0 %176
  %180 = vset.pattern.permute.xlu0 0
  %181 = vperm.xlu0 %180, %v161
  %v182 = vpop.permute.xlu0 %181
  %185 = vset.pattern.permute.xlu0 0
  %186 = vperm.xlu0 %185, %v162
  %v187 = vpop.permute.xlu0 %186
  %190 = vset.pattern.permute.xlu0 0
  %191 = vperm.xlu0 %190, %v163
  %v192 = vpop.permute.xlu0 %191
  %195 = vset.pattern.permute.xlu0 0
  %196 = vperm.xlu0 %195, %v164
  %v197 = vpop.permute.xlu0 %196
  %200 = vset.pattern.permute.xlu0 0
  %201 = vperm.xlu0 %200, %v165
  %v202 = vpop.permute.xlu0 %201
  %205 = vset.pattern.permute.xlu0 0
  %206 = vperm.xlu0 %205, %v166
  %v207 = vpop.permute.xlu0 %206
  %210 = vset.pattern.permute.xlu0 0
  %211 = vperm.xlu0 %210, %v167
  %v212 = vpop.permute.xlu0 %211
  %215 = vset.pattern.permute.xlu0 0
  %216 = vperm.xlu0 %215, %v168
  %v217 = vpop.permute.xlu0 %216
  %220 = vset.pattern.permute.xlu0 0
  %221 = vperm.xlu0 %220, %v169
  %v222 = vpop.permute.xlu0 %221
  %225 = vset.pattern.permute.xlu0 0
  %226 = vperm.xlu0 %225, %v170
  %v227 = vpop.permute.xlu0 %226
  %230 = vset.pattern.permute.xlu0 0
  %231 = vperm.xlu0 %230, %v171
  %v232 = vpop.permute.xlu0 %231
  %235 = vset.pattern.permute.xlu0 0
  %236 = vperm.xlu0 %235, %v172
  %v237 = vpop.permute.xlu0 %236
  %240 = vset.pattern.permute.xlu0 0
  %241 = vperm.xlu0 %240, %v173
  %v242 = vpop.permute.xlu0 %241
  %v244 = vmul.f32 %v119, %v177
  %v245 = vmul.f32 %v122, %v182
  %v246 = vmul.f32 %v125, %v187
  %v247 = vmul.f32 %v128, %v192
  %v248 = vmul.f32 %v131, %v197
  %v249 = vmul.f32 %v134, %v202
  %v250 = vmul.f32 %v137, %v207
  %v251 = vmul.f32 %v140, %v212
  %v252 = vmul.f32 %v143, %v217
  %v253 = vmul.f32 %v146, %v222
  %v254 = vmul.f32 %v149, %v227
  %v255 = vmul.f32 %v152, %v232
  %v256 = vmul.f32 %v155, %v237
  %v257 = vmul.f32 %v158, %v242
  %v258 = vld [vmem:[%s4] sm:$0xff]
  %v259 = vld [vmem:[%s4 + $0x8] sm:$0xff]
  %v260 = vld [vmem:[%s4 + $0x10] sm:$0xff]
  %v261 = vld [vmem:[%s4 + $0x18] sm:$0xff]
  %v262 = vld [vmem:[%s4 + $0x20] sm:$0xff]
  %v263 = vld [vmem:[%s4 + $0x28] sm:$0xff]
  %v264 = vld [vmem:[%s4 + $0x30] sm:$0xff]
  %v265 = vld [vmem:[%s4 + $0x38] sm:$0xff]
  %v266 = vld [vmem:[%s4 + $0x40] sm:$0xff]
  %v267 = vld [vmem:[%s4 + $0x48] sm:$0xff]
  %v268 = vld [vmem:[%s4 + $0x50] sm:$0xff]
  %v269 = vld [vmem:[%s4 + $0x58] sm:$0xff]
  %v270 = vld [vmem:[%s4 + $0x60] sm:$0xff]
  %v271 = vld [vmem:[%s4 + $0x68] sm:$0xff]
  %v272 = vld [vmem:[%s1] sm:$0xff]
  %v273 = vld [vmem:[%s1 + $0x8] sm:$0xff]
  %v275 = vsel %vm58, %v258, 0
  %v278 = vsel %vm58, %v259, 0
  %v281 = vsel %vm58, %v260, 0
  %v284 = vsel %vm58, %v261, 0
  %v287 = vsel %vm58, %v262, 0
  %v290 = vsel %vm58, %v263, 0
  %v293 = vsel %vm58, %v264, 0
  %v296 = vsel %vm58, %v265, 0
  %v299 = vsel %vm58, %v266, 0
  %v302 = vsel %vm58, %v267, 0
  %v305 = vsel %vm58, %v268, 0
  %v308 = vsel %vm58, %v269, 0
  %v311 = vsel %vm58, %v270, 0
  %v314 = vsel %vm58, %v271, 0
  %316 = vmatpush.msra.mxu0 0.0
  %317 = vmatpush.msra.mxu0 0.0
  %318 = vmatpush.msra.mxu0 0.0
  %319 = vmatpush.msra.mxu0 0.0
  %320 = vmatpush.msra.mxu0 0.0
  %321 = vmatpush.msra.mxu0 0.0
  %322 = vmatpush.msra.mxu0 0.0
  %323 = vmatpush.msra.mxu0 0.0
  %324 = vmatpush.msra.mxu0 0.0
  %325 = vmatpush.msra.mxu0 0.0
  %326 = vmatpush.msra.mxu0 0.0
  %327 = vmatpush.msra.mxu0 0.0
  %328 = vmatpush.msra.mxu0 0.0
  %329 = vmatpush.msra.mxu0 0.0
  %330 = vmatpush.msra.mxu0 %v273
  %331 = vmatpush.msra.mxu0 %v272
  %332 = vmatmul.f32.gmra.mxu0 %v275
  %v333 = vpop.f32.mrf.mxu0
  %v334 = vadd.f32 0.0, %v333
  %335 = vmatmul.f32.gmra.mxu0 %v278
  %v336 = vpop.f32.mrf.mxu0
  %v337 = vadd.f32 0.0, %v336
  %338 = vmatmul.f32.gmra.mxu0 %v281
  %v339 = vpop.f32.mrf.mxu0
  %v340 = vadd.f32 0.0, %v339
  %341 = vmatmul.f32.gmra.mxu0 %v284
  %v342 = vpop.f32.mrf.mxu0
  %v343 = vadd.f32 0.0, %v342
  %344 = vmatmul.f32.gmra.mxu0 %v287
  %v345 = vpop.f32.mrf.mxu0
  %v346 = vadd.f32 0.0, %v345
  %347 = vmatmul.f32.gmra.mxu0 %v290
  %v348 = vpop.f32.mrf.mxu0
  %v349 = vadd.f32 0.0, %v348
  %350 = vmatmul.f32.gmra.mxu0 %v293
  %v351 = vpop.f32.mrf.mxu0
  %v352 = vadd.f32 0.0, %v351
  %353 = vmatmul.f32.gmra.mxu0 %v296
  %v354 = vpop.f32.mrf.mxu0
  %v355 = vadd.f32 0.0, %v354
  %356 = vmatmul.f32.gmra.mxu0 %v299
  %v357 = vpop.f32.mrf.mxu0
  %v358 = vadd.f32 0.0, %v357
  %359 = vmatmul.f32.gmra.mxu0 %v302
  %v360 = vpop.f32.mrf.mxu0
  %v361 = vadd.f32 0.0, %v360
  %362 = vmatmul.f32.gmra.mxu0 %v305
  %v363 = vpop.f32.mrf.mxu0
  %v364 = vadd.f32 0.0, %v363
  %365 = vmatmul.f32.gmra.mxu0 %v308
  %v366 = vpop.f32.mrf.mxu0
  %v367 = vadd.f32 0.0, %v366
  %368 = vmatmul.f32.gmra.mxu0 %v311
  %v369 = vpop.f32.mrf.mxu0
  %v370 = vadd.f32 0.0, %v369
  %371 = vmatmul.f32.gmra.mxu0 %v314
  %v372 = vpop.f32.mrf.mxu0
  %v373 = vadd.f32 0.0, %v372
  %374 = vdwg.mxu0
  %v375 = vld [vmem:[%s5] sm:$0xff]
  %v376 = vld [vmem:[%s5 + $0x8] sm:$0xff]
  %v377 = vmul.f32 %v334, %v244
  %v378 = vmul.f32 %v337, %v245
  %v379 = vmul.f32 %v340, %v246
  %v380 = vmul.f32 %v343, %v247
  %v381 = vmul.f32 %v346, %v248
  %v382 = vmul.f32 %v349, %v249
  %v383 = vmul.f32 %v352, %v250
  %v384 = vmul.f32 %v355, %v251
  %v385 = vmul.f32 %v358, %v252
  %v386 = vmul.f32 %v361, %v253
  %v387 = vmul.f32 %v364, %v254
  %v388 = vmul.f32 %v367, %v255
  %v389 = vmul.f32 %v370, %v256
  %v390 = vmul.f32 %v373, %v257
  %vm391 = vcmask 916480
  %v393 = vsel %vm391, %v375, 0
  %v396 = vsel %vm391, %v376, 0
  %398 = vmatpush.msra.mxu0 0.0
  %399 = vmatpush.msra.mxu0 0.0
  %400 = vmatpush.msra.mxu0 %v390
  %401 = vmatpush.msra.mxu0 %v389
  %402 = vmatpush.msra.mxu0 %v388
  %403 = vmatpush.msra.mxu0 %v387
  %404 = vmatpush.msra.mxu0 %v386
  %405 = vmatpush.msra.mxu0 %v385
  %406 = vmatpush.msra.mxu0 %v384
  %407 = vmatpush.msra.mxu0 %v383
  %408 = vmatpush.msra.mxu0 %v382
  %409 = vmatpush.msra.mxu0 %v381
  %410 = vmatpush.msra.mxu0 %v380
  %411 = vmatpush.msra.mxu0 %v379
  %412 = vmatpush.msra.mxu0 %v378
  %413 = vmatpush.msra.mxu0 %v377
  %414 = vmatmul.f32.gmra.mxu0 %v393
  %v415 = vpop.f32.mrf.mxu0
  %v416 = vadd.f32 0.0, %v415
  %417 = vmatmul.f32.gmra.mxu0 %v396
  %v418 = vpop.f32.mrf.mxu0
  %v419 = vadd.f32 0.0, %v418
  %420 = vdwg.mxu0
  %v421 = vld [vmem:[%s0] sm:$0xff]
  %v422 = vld [vmem:[%s0 + $0x8] sm:$0xff]
  %v423 = vld [vmem:[%s8] sm:$0xff]
  %v424 = vld [vmem:[%s8 + $0x8] sm:$0xff]
  %v425 = vld [vmem:[%s8 + $0x10] sm:$0xff]
  %v426 = vld [vmem:[%s8 + $0x18] sm:$0xff]
  %v427 = vld [vmem:[%s9] sm:$0xff]
  %v428 = vld [vmem:[%s9 + $0x8] sm:$0xff]
  %v429 = vld [vmem:[%s9 + $0x10] sm:$0xff]
  %v430 = vld [vmem:[%s9 + $0x18] sm:$0xff]
  %vm431 = vcmask 261120
  %v433 = vsel %vm431, %v416, 0
  %v436 = vsel %vm431, %v419, 0
  %438 = vmatpush.msra.mxu0 0.0
  %439 = vmatpush.msra.mxu0 0.0
  %440 = vmatpush.msra.mxu0 0.0
  %441 = vmatpush.msra.mxu0 0.0
  %442 = vmatpush.msra.mxu0 0.0
  %443 = vmatpush.msra.mxu0 0.0
  %444 = vmatpush.msra.mxu0 0.0
  %445 = vmatpush.msra.mxu0 0.0
  %446 = vmatpush.msra.mxu0 0.0
  %447 = vmatpush.msra.mxu0 0.0
  %448 = vmatpush.msra.mxu0 0.0
  %449 = vmatpush.msra.mxu0 0.0
  %450 = vmatpush.msra.mxu0 %v430
  %451 = vmatpush.msra.mxu0 %v429
  %452 = vmatpush.msra.mxu0 %v428
  %453 = vmatpush.msra.mxu0 %v427
  %454 = vmatmul.f32.gmra.mxu0 %v433
  %v455 = vpop.f32.mrf.mxu0
  %v456 = vadd.f32 0.0, %v455
  %457 = vmatmul.f32.gmra.mxu0 %v436
  %v458 = vpop.f32.mrf.mxu0
  %v459 = vadd.f32 0.0, %v458
  %460 = vdwg.mxu0
  %v462 = vsel %vm431, %v421, 0
  %v465 = vsel %vm431, %v422, 0
  %467 = vmatpush.msra.mxu0 0.0
  %468 = vmatpush.msra.mxu0 0.0
  %469 = vmatpush.msra.mxu0 0.0
  %470 = vmatpush.msra.mxu0 0.0
  %471 = vmatpush.msra.mxu0 0.0
  %472 = vmatpush.msra.mxu0 0.0
  %473 = vmatpush.msra.mxu0 0.0
  %474 = vmatpush.msra.mxu0 0.0
  %475 = vmatpush.msra.mxu0 0.0
  %476 = vmatpush.msra.mxu0 0.0
  %477 = vmatpush.msra.mxu0 0.0
  %478 = vmatpush.msra.mxu0 0.0
  %479 = vmatpush.msra.mxu0 %v426
  %480 = vmatpush.msra.mxu0 %v425
  %481 = vmatpush.msra.mxu0 %v424
  %482 = vmatpush.msra.mxu0 %v423
  %483 = vmatmul.f32.gmra.mxu0 %v462
  %v484 = vpop.f32.mrf.mxu0
  %v485 = vadd.f32 %v456, %v484
  %486 = vmatmul.f32.gmra.mxu0 %v465
  %v487 = vpop.f32.mrf.mxu0
  %v488 = vadd.f32 %v459, %v487
  %489 = vdwg.mxu0
  %v490 = vld [vmem:[%s10] sm:$0x1]
  %v492 = vperm.slane %v490, 0
  %v494 = vadd.f32 %v485, %v492
  %v495 = vadd.f32 %v488, %v492
  %v496 = vsel %vm431, %v494, 0.0
  %v497 = vsel %vm431, %v495, 0.0
  %498 = vst [vmem:[%s11] sm:$0xff] %v496
  %499 = vst [vmem:[%s11 + $0x8] sm:$0xff] %v497
  // Predicated region
  $region46: #{torchmd_dynamics_forward.4} parent=0 // pred_check
    _
  $region47: #{torchmd_dynamics_forward.4} parent=0 // pred_check_branch
    %501 = sbr.rel (0) target = $region49
  $region48: #{torchmd_dynamics_forward.4} parent=0 // pred_region
    _
  $region49: #{torchmd_dynamics_forward.4} parent=0 // pred_fallthru
    _
  // Predicated region
  $region50: #{torchmd_dynamics_forward.4} parent=0 // pred_check
    _
  $region51: #{torchmd_dynamics_forward.4} parent=0 // pred_check_branch
    %503 = sbr.rel (0) target = $region53
  $region52: #{torchmd_dynamics_forward.4} parent=0 // pred_region
    _
  $region53: #{torchmd_dynamics_forward.4} parent=0 // pred_fallthru
    _

// kernel: torchmd_dynamics_forward.7
$region0: #{torchmd_dynamics_forward.7}
  #allocation0 [shape = 'u32[]', space=smem, size = 0x4, offset = 0x4, fixed_abs, tag = 'smem constant byte address 0x4 - core index']
  #allocation1 [shape = 'u32[72,128]{1,0:T(1,128)}', space=vmem, size = 0x9000, scoped, tag = 'internal scratch']
  %s0 = inlined_call_operand.vmem [shape: f32[16,128], index: 0, kind: input, shape index: {}]
  %s1 = inlined_call_operand.vmem [shape: f32[1,32], index: 1, kind: input, shape index: {}]
  %s2 = inlined_call_operand.vmem [shape: f32[1,32], index: 2, kind: input, shape index: {}]
  %s3 = inlined_call_operand.vmem [shape: f32[1,32], index: 3, kind: input, shape index: {}]
  %s4 = inlined_call_operand.vmem [shape: f32[1,32], index: 4, kind: input, shape index: {}]
  %s5 = inlined_call_operand.vmem [shape: f32[32,32], index: 5, kind: input, shape index: {}]
  %s6 = inlined_call_operand.vmem [shape: f32[32,16], index: 6, kind: input, shape index: {}]
  %s7 = inlined_call_operand.vmem [shape: f32[32,32], index: 7, kind: input, shape index: {}]
  %s8 = inlined_call_operand.vmem [shape: f32[32,32], index: 8, kind: input, shape index: {}]
  %s9 = inlined_call_operand.vmem [shape: f32[1,32], index: 9, kind: input, shape index: {}]
  %s10 = inlined_call_operand.vmem [shape: f32[32,32], index: 10, kind: input, shape index: {}]
  %s11 = inlined_call_operand.vmem [shape: f32[1,32], index: 11, kind: input, shape index: {}]
  %s12 = inlined_call_operand.vmem [shape: f32[16,16], index: 12, kind: input, shape index: {}]
  %s13 = inlined_call_operand.vmem [shape: f32[16,1], index: 13, kind: input, shape index: {}]
  %s14 = inlined_call_operand.vmem [shape: f32[16,16], index: 14, kind: input, shape index: {}]
  %s15 = inlined_call_operand.vmem [shape: f32[16,16], index: 15, kind: input, shape index: {}]
  %s16 = inlined_call_operand.vmem [shape: f32[1,16], index: 16, kind: input, shape index: {}]
  %s17 = inlined_call_operand.vmem [shape: f32[16,2], index: 17, kind: input, shape index: {}]
  %s18 = inlined_call_operand.vmem [shape: f32[1,2], index: 18, kind: input, shape index: {}]
  %s19 = inlined_call_operand.vmem [shape: f32[16,3], index: 19, kind: output, shape index: {}]
  %s20 = sld [smem:[#allocation0]]
  $region86: #{torchmd_dynamics_forward.7} parent=0
    _
  %s22 = ssub.s32 1, %s20
  %s23 = scalar_select 0, %s22, %s20
  // Predicated region
  $region2: #{torchmd_dynamics_forward.7} parent=0 // pred_check
    _
  $region3: #{torchmd_dynamics_forward.7} parent=0 // pred_check_branch
    %25 = sbr.rel (0) target = $region5
  $region4: #{torchmd_dynamics_forward.7} parent=0 // pred_region
    _
  $region5: #{torchmd_dynamics_forward.7} parent=0 // pred_fallthru
    _
  // Predicated region
  $region6: #{torchmd_dynamics_forward.7} parent=0 // pred_check
    _
  $region7: #{torchmd_dynamics_forward.7} parent=0 // pred_check_branch
    %27 = sbr.rel (0) target = $region9
  $region8: #{torchmd_dynamics_forward.7} parent=0 // pred_region
    _
  $region9: #{torchmd_dynamics_forward.7} parent=0 // pred_fallthru
    _
  // Predicated region
  $region10: #{torchmd_dynamics_forward.7} parent=0 // pred_check
    _
  $region11: #{torchmd_dynamics_forward.7} parent=0 // pred_check_branch
    %29 = sbr.rel (0) target = $region13
  $region12: #{torchmd_dynamics_forward.7} parent=0 // pred_region
    _
  $region13: #{torchmd_dynamics_forward.7} parent=0 // pred_fallthru
    _
  // Predicated region
  $region14: #{torchmd_dynamics_forward.7} parent=0 // pred_check
    _
  $region15: #{torchmd_dynamics_forward.7} parent=0 // pred_check_branch
    %31 = sbr.rel (0) target = $region17
  $region16: #{torchmd_dynamics_forward.7} parent=0 // pred_region
    _
  $region17: #{torchmd_dynamics_forward.7} parent=0 // pred_fallthru
    _
  // Predicated region
  $region18: #{torchmd_dynamics_forward.7} parent=0 // pred_check
    _
  $region19: #{torchmd_dynamics_forward.7} parent=0 // pred_check_branch
    %33 = sbr.rel (0) target = $region21
  $region20: #{torchmd_dynamics_forward.7} parent=0 // pred_region
    _
  $region21: #{torchmd_dynamics_forward.7} parent=0 // pred_fallthru
    _
  // Predicated region
  $region22: #{torchmd_dynamics_forward.7} parent=0 // pred_check
    _
  $region23: #{torchmd_dynamics_forward.7} parent=0 // pred_check_branch
    %35 = sbr.rel (0) target = $region25
  $region24: #{torchmd_dynamics_forward.7} parent=0 // pred_region
    _
  $region25: #{torchmd_dynamics_forward.7} parent=0 // pred_fallthru
    _
  // Predicated region
  $region26: #{torchmd_dynamics_forward.7} parent=0 // pred_check
    _
  $region27: #{torchmd_dynamics_forward.7} parent=0 // pred_check_branch
    %37 = sbr.rel (0) target = $region29
  $region28: #{torchmd_dynamics_forward.7} parent=0 // pred_region
    _
  $region29: #{torchmd_dynamics_forward.7} parent=0 // pred_fallthru
    _
  // Predicated region
  $region30: #{torchmd_dynamics_forward.7} parent=0 // pred_check
    _
  $region31: #{torchmd_dynamics_forward.7} parent=0 // pred_check_branch
    %39 = sbr.rel (0) target = $region33
  $region32: #{torchmd_dynamics_forward.7} parent=0 // pred_region
    _
  $region33: #{torchmd_dynamics_forward.7} parent=0 // pred_fallthru
    _
  // Predicated region
  $region34: #{torchmd_dynamics_forward.7} parent=0 // pred_check
    _
  $region35: #{torchmd_dynamics_forward.7} parent=0 // pred_check_branch
    %41 = sbr.rel (0) target = $region37
  $region36: #{torchmd_dynamics_forward.7} parent=0 // pred_region
    _
  $region37: #{torchmd_dynamics_forward.7} parent=0 // pred_fallthru
    _
  // Predicated region
  $region38: #{torchmd_dynamics_forward.7} parent=0 // pred_check
    _
  $region39: #{torchmd_dynamics_forward.7} parent=0 // pred_check_branch
    %43 = sbr.rel (0) target = $region41
  $region40: #{torchmd_dynamics_forward.7} parent=0 // pred_region
    _
  $region41: #{torchmd_dynamics_forward.7} parent=0 // pred_fallthru
    _
  // Predicated region
  $region42: #{torchmd_dynamics_forward.7} parent=0 // pred_check
    _
  $region43: #{torchmd_dynamics_forward.7} parent=0 // pred_check_branch
    %45 = sbr.rel (0) target = $region45
  $region44: #{torchmd_dynamics_forward.7} parent=0 // pred_region
    _
  $region45: #{torchmd_dynamics_forward.7} parent=0 // pred_fallthru
    _
  // Predicated region
  $region46: #{torchmd_dynamics_forward.7} parent=0 // pred_check
    _
  $region47: #{torchmd_dynamics_forward.7} parent=0 // pred_check_branch
    %47 = sbr.rel (0) target = $region49
  $region48: #{torchmd_dynamics_forward.7} parent=0 // pred_region
    _
  $region49: #{torchmd_dynamics_forward.7} parent=0 // pred_fallthru
    _
  // Predicated region
  $region50: #{torchmd_dynamics_forward.7} parent=0 // pred_check
    _
  $region51: #{torchmd_dynamics_forward.7} parent=0 // pred_check_branch
    %49 = sbr.rel (0) target = $region53
  $region52: #{torchmd_dynamics_forward.7} parent=0 // pred_region
    _
  $region53: #{torchmd_dynamics_forward.7} parent=0 // pred_fallthru
    _
  // Predicated region
  $region54: #{torchmd_dynamics_forward.7} parent=0 // pred_check
    _
  $region55: #{torchmd_dynamics_forward.7} parent=0 // pred_check_branch
    %51 = sbr.rel (0) target = $region57
  $region56: #{torchmd_dynamics_forward.7} parent=0 // pred_region
    _
  $region57: #{torchmd_dynamics_forward.7} parent=0 // pred_fallthru
    _
  // Predicated region
  $region58: #{torchmd_dynamics_forward.7} parent=0 // pred_check
    _
  $region59: #{torchmd_dynamics_forward.7} parent=0 // pred_check_branch
    %53 = sbr.rel (0) target = $region61
  $region60: #{torchmd_dynamics_forward.7} parent=0 // pred_region
    _
  $region61: #{torchmd_dynamics_forward.7} parent=0 // pred_fallthru
    _
  // Predicated region
  $region62: #{torchmd_dynamics_forward.7} parent=0 // pred_check
    _
  $region63: #{torchmd_dynamics_forward.7} parent=0 // pred_check_branch
    %55 = sbr.rel (0) target = $region65
  $region64: #{torchmd_dynamics_forward.7} parent=0 // pred_region
    _
  $region65: #{torchmd_dynamics_forward.7} parent=0 // pred_fallthru
    _
  // Predicated region
  $region66: #{torchmd_dynamics_forward.7} parent=0 // pred_check
    _
  $region67: #{torchmd_dynamics_forward.7} parent=0 // pred_check_branch
    %57 = sbr.rel (0) target = $region69
  $region68: #{torchmd_dynamics_forward.7} parent=0 // pred_region
    _
  $region69: #{torchmd_dynamics_forward.7} parent=0 // pred_fallthru
    _
  // Predicated region
  $region70: #{torchmd_dynamics_forward.7} parent=0 // pred_check
    _
  $region71: #{torchmd_dynamics_forward.7} parent=0 // pred_check_branch
    %59 = sbr.rel (0) target = $region73
  $region72: #{torchmd_dynamics_forward.7} parent=0 // pred_region
    _
  $region73: #{torchmd_dynamics_forward.7} parent=0 // pred_fallthru
    _
  // Predicated region
  $region74: #{torchmd_dynamics_forward.7} parent=0 // pred_check
    _
  $region75: #{torchmd_dynamics_forward.7} parent=0 // pred_check_branch
    %61 = sbr.rel (0) target = $region77
  $region76: #{torchmd_dynamics_forward.7} parent=0 // pred_region
    _
  $region77: #{torchmd_dynamics_forward.7} parent=0 // pred_fallthru
    _
  %v62 = vld [vmem:[%s0] sm:$0xff]
  %v63 = vld [vmem:[%s0 + $0x8] sm:$0xff]
  %v64 = vld [vmem:[%s1] sm:$0x1]
  %v65 = vld [vmem:[%s2] sm:$0x1]
  %vm66 = vcmask 261120
  %v67 = vsel %vm66, %v62, 0.0
  %68 = vadd.xlane.f32.xlu0 %v67
  %v69 = vpop.xlane.xlu0 %68
  %v70 = vsel %vm66, %v63, 0.0
  %71 = vadd.xlane.f32.xlu0 %v70
  %v72 = vpop.xlane.xlu0 %71
  %v73 = vrcp.pop 32.0
  %v74 = vmul.f32 32.0, %v73
  %v75 = vsub.f32 1.0, %v74
  %v76 = vmul.f32 %v73, %v75
  %v77 = vadd.f32 %v73, %v76
  %vm78 = vweird.f32 %v73
  %v79 = vsel %vm78, %v73, %v77
  %v80 = vmul.f32 %v69, %v79
  %v81 = vmul.f32 %v72, %v79
  %v82 = vsub.f32 %v62, %v80
  %v83 = vsub.f32 %v63, %v81
  %v84 = vmul.f32 %v82, %v82
  %v85 = vmul.f32 %v83, %v83
  %v86 = vsel %vm66, %v84, 0.0
  %87 = vadd.xlane.f32.xlu0 %v86
  %v88 = vpop.xlane.xlu0 %87
  %v89 = vsel %vm66, %v85, 0.0
  %90 = vadd.xlane.f32.xlu0 %v89
  %v91 = vpop.xlane.xlu0 %90
  %v92 = vmul.f32 %v88, %v79
  %v93 = vmul.f32 %v91, %v79
  %v94 = vadd.f32 %v92, 1e-05
  %v95 = vadd.f32 %v93, 1e-05
  %v96 = vrsqrt.pop %v94
  %v97 = vmul.f32 %v96, %v94
  %v98 = vmul.f32 %v97, %v96
  %v99 = vmul.f32 0.5, %v98
  %v100 = vsub.f32 1.5, %v99
  %v101 = vmul.f32 %v96, %v100
  %vm102 = vweird.f32 %v94
  %vm103 = vweird.f32 %v96
  %vm104 = vmor %vm102, %vm103
  %v105 = vsel %vm104, %v96, %v101
  %v106 = vrsqrt.pop %v95
  %v107 = vmul.f32 %v106, %v95
  %v108 = vmul.f32 %v107, %v106
  %v109 = vmul.f32 0.5, %v108
  %v110 = vsub.f32 1.5, %v109
  %v111 = vmul.f32 %v106, %v110
  %vm112 = vweird.f32 %v95
  %vm113 = vweird.f32 %v106
  %vm114 = vmor %vm112, %vm113
  %v115 = vsel %vm114, %v106, %v111
  %v116 = vmul.f32 %v82, %v105
  %v117 = vmul.f32 %v83, %v115
  %v119 = vperm.slane %v64, 0
  %v121 = vmul.f32 %v116, %v119
  %v122 = vmul.f32 %v117, %v119
  %v124 = vperm.slane %v65, 0
  %v126 = vadd.f32 %v121, %v124
  %v127 = vadd.f32 %v122, %v124
  %v128 = vld [vmem:[%s3] sm:$0x1]
  %v129 = vld [vmem:[%s4] sm:$0x1]
  %v130 = vsel %vm66, %v126, 0.0
  %131 = vadd.xlane.f32.xlu0 %v130
  %v132 = vpop.xlane.xlu0 %131
  %v133 = vsel %vm66, %v127, 0.0
  %134 = vadd.xlane.f32.xlu0 %v133
  %v135 = vpop.xlane.xlu0 %134
  %v136 = vmul.f32 %v132, %v79
  %v137 = vmul.f32 %v135, %v79
  %v138 = vsub.f32 %v126, %v136
  %v139 = vsub.f32 %v127, %v137
  %v140 = vmul.f32 %v138, %v138
  %v141 = vmul.f32 %v139, %v139
  %v142 = vsel %vm66, %v140, 0.0
  %143 = vadd.xlane.f32.xlu0 %v142
  %v144 = vpop.xlane.xlu0 %143
  %v145 = vsel %vm66, %v141, 0.0
  %146 = vadd.xlane.f32.xlu0 %v145
  %v147 = vpop.xlane.xlu0 %146
  %v148 = vmul.f32 %v144, %v79
  %v149 = vmul.f32 %v147, %v79
  %v150 = vadd.f32 %v148, 1e-05
  %v151 = vadd.f32 %v149, 1e-05
  %v152 = vrsqrt.pop %v150
  %v153 = vmul.f32 %v152, %v150
  %v154 = vmul.f32 %v153, %v152
  %v155 = vmul.f32 0.5, %v154
  %v156 = vsub.f32 1.5, %v155
  %v157 = vmul.f32 %v152, %v156
  %vm158 = vweird.f32 %v150
  %vm159 = vweird.f32 %v152
  %vm160 = vmor %vm158, %vm159
  %v161 = vsel %vm160, %v152, %v157
  %v162 = vrsqrt.pop %v151
  %v163 = vmul.f32 %v162, %v151
  %v164 = vmul.f32 %v163, %v162
  %v165 = vmul.f32 0.5, %v164
  %v166 = vsub.f32 1.5, %v165
  %v167 = vmul.f32 %v162, %v166
  %vm168 = vweird.f32 %v151
  %vm169 = vweird.f32 %v162
  %vm170 = vmor %vm168, %vm169
  %v171 = vsel %vm170, %v162, %v167
  %v172 = vmul.f32 %v138, %v161
  %v173 = vmul.f32 %v139, %v171
  %v175 = vperm.slane %v128, 0
  %v177 = vmul.f32 %v172, %v175
  %v178 = vmul.f32 %v173, %v175
  %v180 = vperm.slane %v129, 0
  %v182 = vadd.f32 %v177, %v180
  %v183 = vadd.f32 %v178, %v180
  %v184 = vld [vmem:[%s5] sm:$0xff]
  %v185 = vld [vmem:[%s5 + $0x8] sm:$0xff]
  %v186 = vld [vmem:[%s5 + $0x10] sm:$0xff]
  %v187 = vld [vmem:[%s5 + $0x18] sm:$0xff]
  %190 = vrot.lane.b32.xlu0 %v62, 96
  %v191 = vpop.permute.xlu0 %190
  %192 = vrot.lane.b32.xlu0 %v63, 96
  %v193 = vpop.permute.xlu0 %192
  %v194 = vsel %vm66, %v191, 0
  %v196 = vsel %vm66, %v193, 0
  %198 = vmatpush.msra.mxu0 0.0
  %199 = vmatpush.msra.mxu0 0.0
  %200 = vmatpush.msra.mxu0 0.0
  %201 = vmatpush.msra.mxu0 0.0
  %202 = vmatpush.msra.mxu0 0.0
  %203 = vmatpush.msra.mxu0 0.0
  %204 = vmatpush.msra.mxu0 0.0
  %205 = vmatpush.msra.mxu0 0.0
  %206 = vmatpush.msra.mxu0 0.0
  %207 = vmatpush.msra.mxu0 0.0
  %208 = vmatpush.msra.mxu0 0.0
  %209 = vmatpush.msra.mxu0 0.0
  %210 = vmatpush.msra.mxu0 %v187
  %211 = vmatpush.msra.mxu0 %v186
  %212 = vmatpush.msra.mxu0 %v185
  %213 = vmatpush.msra.mxu0 %v184
  %214 = vmatmul.f32.gmra.mxu0 %v194
  %v215 = vpop.f32.mrf.mxu0
  %v216 = vadd.f32 0.0, %v215
  %217 = vmatmul.f32.gmra.mxu0 %v196
  %v218 = vpop.f32.mrf.mxu0
  %v219 = vadd.f32 0.0, %v218
  %220 = vdwg.mxu0
  %221 = vrot.lane.b32.xlu0 %v62, 64
  %v222 = vpop.permute.xlu0 %221
  %223 = vrot.lane.b32.xlu0 %v63, 64
  %v224 = vpop.permute.xlu0 %223
  %v225 = vsel %vm66, %v222, 0
  %v227 = vsel %vm66, %v224, 0
  %229 = vmatpush.msra.mxu0 0.0
  %230 = vmatpush.msra.mxu0 0.0
  %231 = vmatpush.msra.mxu0 0.0
  %232 = vmatpush.msra.mxu0 0.0
  %233 = vmatpush.msra.mxu0 0.0
  %234 = vmatpush.msra.mxu0 0.0
  %235 = vmatpush.msra.mxu0 0.0
  %236 = vmatpush.msra.mxu0 0.0
  %237 = vmatpush.msra.mxu0 0.0
  %238 = vmatpush.msra.mxu0 0.0
  %239 = vmatpush.msra.mxu0 0.0
  %240 = vmatpush.msra.mxu0 0.0
  %241 = vmatpush.msra.mxu0 %v187
  %242 = vmatpush.msra.mxu0 %v186
  %243 = vmatpush.msra.mxu0 %v185
  %244 = vmatpush.msra.mxu0 %v184
  %245 = vmatmul.f32.gmra.mxu0 %v225
  %v246 = vpop.f32.mrf.mxu0
  %v247 = vadd.f32 0.0, %v246
  %248 = vmatmul.f32.gmra.mxu0 %v227
  %v249 = vpop.f32.mrf.mxu0
  %v250 = vadd.f32 0.0, %v249
  %251 = vdwg.mxu0
  %252 = vrot.lane.b32.xlu0 %v62, 32
  %v253 = vpop.permute.xlu0 %252
  %254 = vrot.lane.b32.xlu0 %v63, 32
  %v255 = vpop.permute.xlu0 %254
  %v256 = vsel %vm66, %v253, 0
  %v258 = vsel %vm66, %v255, 0
  %260 = vmatpush.msra.mxu0 0.0
  %261 = vmatpush.msra.mxu0 0.0
  %262 = vmatpush.msra.mxu0 0.0
  %263 = vmatpush.msra.mxu0 0.0
  %264 = vmatpush.msra.mxu0 0.0
  %265 = vmatpush.msra.mxu0 0.0
  %266 = vmatpush.msra.mxu0 0.0
  %267 = vmatpush.msra.mxu0 0.0
  %268 = vmatpush.msra.mxu0 0.0
  %269 = vmatpush.msra.mxu0 0.0
  %270 = vmatpush.msra.mxu0 0.0
  %271 = vmatpush.msra.mxu0 0.0
  %272 = vmatpush.msra.mxu0 %v187
  %273 = vmatpush.msra.mxu0 %v186
  %274 = vmatpush.msra.mxu0 %v185
  %275 = vmatpush.msra.mxu0 %v184
  %276 = vmatmul.f32.gmra.mxu0 %v256
  %v277 = vpop.f32.mrf.mxu0
  %v278 = vadd.f32 0.0, %v277
  %279 = vmatmul.f32.gmra.mxu0 %v258
  %v280 = vpop.f32.mrf.mxu0
  %v281 = vadd.f32 0.0, %v280
  %282 = vdwg.mxu0
  %v283 = vld [vmem:[%s6] sm:$0xff]
  %v284 = vld [vmem:[%s6 + $0x8] sm:$0xff]
  %v285 = vld [vmem:[%s6 + $0x10] sm:$0xff]
  %v286 = vld [vmem:[%s6 + $0x18] sm:$0xff]
  %287 = vmatpush.msra.mxu0 0.0
  %288 = vmatpush.msra.mxu0 0.0
  %289 = vmatpush.msra.mxu0 0.0
  %290 = vmatpush.msra.mxu0 0.0
  %291 = vmatpush.msra.mxu0 0.0
  %292 = vmatpush.msra.mxu0 0.0
  %293 = vmatpush.msra.mxu0 0.0
  %294 = vmatpush.msra.mxu0 0.0
  %295 = vmatpush.msra.mxu0 0.0
  %296 = vmatpush.msra.mxu0 0.0
  %297 = vmatpush.msra.mxu0 0.0
  %298 = vmatpush.msra.mxu0 0.0
  %299 = vmatpush.msra.mxu0 %v286
  %300 = vmatpush.msra.mxu0 %v285
  %301 = vmatpush.msra.mxu0 %v284
  %302 = vmatpush.msra.mxu0 %v283
  %303 = vmatmul.f32.gmra.mxu0 %v194
  %v304 = vpop.f32.mrf.mxu0
  %v305 = vadd.f32 0.0, %v304
  %306 = vmatmul.f32.gmra.mxu0 %v196
  %v307 = vpop.f32.mrf.mxu0
  %v308 = vadd.f32 0.0, %v307
  %309 = vdwg.mxu0
  %310 = vmatpush.msra.mxu0 0.0
  %311 = vmatpush.msra.mxu0 0.0
  %312 = vmatpush.msra.mxu0 0.0
  %313 = vmatpush.msra.mxu0 0.0
  %314 = vmatpush.msra.mxu0 0.0
  %315 = vmatpush.msra.mxu0 0.0
  %316 = vmatpush.msra.mxu0 0.0
  %317 = vmatpush.msra.mxu0 0.0
  %318 = vmatpush.msra.mxu0 0.0
  %319 = vmatpush.msra.mxu0 0.0
  %320 = vmatpush.msra.mxu0 0.0
  %321 = vmatpush.msra.mxu0 0.0
  %322 = vmatpush.msra.mxu0 %v286
  %323 = vmatpush.msra.mxu0 %v285
  %324 = vmatpush.msra.mxu0 %v284
  %325 = vmatpush.msra.mxu0 %v283
  %326 = vmatmul.f32.gmra.mxu0 %v225
  %v327 = vpop.f32.mrf.mxu0
  %v328 = vadd.f32 0.0, %v327
  %329 = vmatmul.f32.gmra.mxu0 %v227
  %v330 = vpop.f32.mrf.mxu0
  %v331 = vadd.f32 0.0, %v330
  %332 = vdwg.mxu0
  %333 = vmatpush.msra.mxu0 0.0
  %334 = vmatpush.msra.mxu0 0.0
  %335 = vmatpush.msra.mxu0 0.0
  %336 = vmatpush.msra.mxu0 0.0
  %337 = vmatpush.msra.mxu0 0.0
  %338 = vmatpush.msra.mxu0 0.0
  %339 = vmatpush.msra.mxu0 0.0
  %340 = vmatpush.msra.mxu0 0.0
  %341 = vmatpush.msra.mxu0 0.0
  %342 = vmatpush.msra.mxu0 0.0
  %343 = vmatpush.msra.mxu0 0.0
  %344 = vmatpush.msra.mxu0 0.0
  %345 = vmatpush.msra.mxu0 %v286
  %346 = vmatpush.msra.mxu0 %v285
  %347 = vmatpush.msra.mxu0 %v284
  %348 = vmatpush.msra.mxu0 %v283
  %349 = vmatmul.f32.gmra.mxu0 %v256
  %v350 = vpop.f32.mrf.mxu0
  %v351 = vadd.f32 0.0, %v350
  %352 = vmatmul.f32.gmra.mxu0 %v258
  %v353 = vpop.f32.mrf.mxu0
  %v354 = vadd.f32 0.0, %v353
  %355 = vdwg.mxu0
  %v356 = vmul.f32 %v216, %v216
  %v357 = vmul.f32 %v219, %v219
  %v358 = vmul.f32 %v247, %v247
  %v359 = vmul.f32 %v250, %v250
  %v360 = vadd.f32 %v356, %v358
  %v361 = vadd.f32 %v357, %v359
  %v362 = vmul.f32 %v278, %v278
  %v363 = vmul.f32 %v281, %v281
  %v364 = vadd.f32 %v360, %v362
  %v365 = vadd.f32 %v361, %v363
  %v366 = vrsqrt.pop %v364
  %v367 = vmul.f32 %v366, %v364
  %v368 = vmul.f32 %v367, %v366
  %v369 = vmul.f32 0.5, %v368
  %v370 = vsub.f32 1.5, %v369
  %v371 = vmul.f32 %v366, %v370
  %v372 = vmul.f32 %v364, %v371
  %vm373 = vcmp.eq.f32.partialorder %v364, inf
  %v374 = vsel %vm373, %v364, %v372
  %vm375 = vcmp.eq.f32.partialorder %v364, 0.0
  %v376 = vand.u32 %v364, 2147483648
  %v377 = vsel %vm375, %v376, %v374
  %v378 = vrsqrt.pop %v365
  %v379 = vmul.f32 %v378, %v365
  %v380 = vmul.f32 %v379, %v378
  %v381 = vmul.f32 0.5, %v380
  %v382 = vsub.f32 1.5, %v381
  %v383 = vmul.f32 %v378, %v382
  %v384 = vmul.f32 %v365, %v383
  %vm385 = vcmp.eq.f32.partialorder %v365, inf
  %v386 = vsel %vm385, %v365, %v384
  %vm387 = vcmp.eq.f32.partialorder %v365, 0.0
  %v388 = vand.u32 %v365, 2147483648
  %v389 = vsel %vm387, %v388, %v386
  %v390 = vld [vmem:[%s7] sm:$0xff]
  %v391 = vld [vmem:[%s7 + $0x8] sm:$0xff]
  %v392 = vld [vmem:[%s7 + $0x10] sm:$0xff]
  %v393 = vld [vmem:[%s7 + $0x18] sm:$0xff]
  %v394 = vld [vmem:[%s8] sm:$0xff]
  %v395 = vld [vmem:[%s8 + $0x8] sm:$0xff]
  %v396 = vld [vmem:[%s8 + $0x10] sm:$0xff]
  %v397 = vld [vmem:[%s8 + $0x18] sm:$0xff]
  %v399 = vsel %vm66, %v377, 0
  %v402 = vsel %vm66, %v389, 0
  %404 = vmatpush.msra.mxu0 0.0
  %405 = vmatpush.msra.mxu0 0.0
  %406 = vmatpush.msra.mxu0 0.0
  %407 = vmatpush.msra.mxu0 0.0
  %408 = vmatpush.msra.mxu0 0.0
  %409 = vmatpush.msra.mxu0 0.0
  %410 = vmatpush.msra.mxu0 0.0
  %411 = vmatpush.msra.mxu0 0.0
  %412 = vmatpush.msra.mxu0 0.0
  %413 = vmatpush.msra.mxu0 0.0
  %414 = vmatpush.msra.mxu0 0.0
  %415 = vmatpush.msra.mxu0 0.0
  %416 = vmatpush.msra.mxu0 %v397
  %417 = vmatpush.msra.mxu0 %v396
  %418 = vmatpush.msra.mxu0 %v395
  %419 = vmatpush.msra.mxu0 %v394
  %420 = vmatmul.f32.gmra.mxu0 %v399
  %v421 = vpop.f32.mrf.mxu0
  %v422 = vadd.f32 0.0, %v421
  %423 = vmatmul.f32.gmra.mxu0 %v402
  %v424 = vpop.f32.mrf.mxu0
  %v425 = vadd.f32 0.0, %v424
  %426 = vdwg.mxu0
  %v428 = vsel %vm66, %v182, 0
  %v431 = vsel %vm66, %v183, 0
  %433 = vmatpush.msra.mxu0 0.0
  %434 = vmatpush.msra.mxu0 0.0
  %435 = vmatpush.msra.mxu0 0.0
  %436 = vmatpush.msra.mxu0 0.0
  %437 = vmatpush.msra.mxu0 0.0
  %438 = vmatpush.msra.mxu0 0.0
  %439 = vmatpush.msra.mxu0 0.0
  %440 = vmatpush.msra.mxu0 0.0
  %441 = vmatpush.msra.mxu0 0.0
  %442 = vmatpush.msra.mxu0 0.0
  %443 = vmatpush.msra.mxu0 0.0
  %444 = vmatpush.msra.mxu0 0.0
  %445 = vmatpush.msra.mxu0 %v393
  %446 = vmatpush.msra.mxu0 %v392
  %447 = vmatpush.msra.mxu0 %v391
  %448 = vmatpush.msra.mxu0 %v390
  %449 = vmatmul.f32.gmra.mxu0 %v428
  %v450 = vpop.f32.mrf.mxu0
  %v451 = vadd.f32 %v422, %v450
  %452 = vmatmul.f32.gmra.mxu0 %v431
  %v453 = vpop.f32.mrf.mxu0
  %v454 = vadd.f32 %v425, %v453
  %455 = vdwg.mxu0
  %v456 = vld [vmem:[%s9] sm:$0x1]
  %v458 = vperm.slane %v456, 0
  %v460 = vadd.f32 %v451, %v458
  %v461 = vadd.f32 %v454, %v458
  %v462 = vxor.u32 %v460, 2147483648
  %v463 = vxor.u32 %v461, 2147483648
  %v464 = vmul.f32 %v462, 1.442695
  %v465 = vpow.pop %v464
  %v466 = vmul.f32 %v463, 1.442695
  %v467 = vpow.pop %v466
  %v468 = vadd.f32 %v465, 1.0
  %v469 = vadd.f32 %v467, 1.0
  %v470 = vrcp.pop %v468
  %v471 = vmul.f32 %v468, %v470
  %v472 = vsub.f32 1.0, %v471
  %v473 = vmul.f32 %v470, %v472
  %v474 = vadd.f32 %v470, %v473
  %vm475 = vweird.f32 %v468
  %vm476 = vweird.f32 %v470
  %vm477 = vmor %vm475, %vm476
  %v478 = vsel %vm477, %v470, %v474
  %v479 = vand.u32 2147483647, %v468
  %vm480 = vcmp.eq.f32.partialorder %v479, 8.507059e+37
  %v481 = vand.u32 %v468, 2147483648
  %v482 = vor.u32 1.1754944e-38, %v481
  %v483 = vsel %vm480, %v482, %v478
  %v484 = vmul.f32 1.0, %v483
  %v485 = vrcp.pop %v469
  %v486 = vmul.f32 %v469, %v485
  %v487 = vsub.f32 1.0, %v486
  %v488 = vmul.f32 %v485, %v487
  %v489 = vadd.f32 %v485, %v488
  %vm490 = vweird.f32 %v469
  %vm491 = vweird.f32 %v485
  %vm492 = vmor %vm490, %vm491
  %v493 = vsel %vm492, %v485, %v489
  %v494 = vand.u32 2147483647, %v469
  %vm495 = vcmp.eq.f32.partialorder %v494, 8.507059e+37
  %v496 = vand.u32 %v469, 2147483648
  %v497 = vor.u32 1.1754944e-38, %v496
  %v498 = vsel %vm495, %v497, %v493
  %v499 = vmul.f32 1.0, %v498
  %v500 = vmul.f32 %v460, %v484
  %v501 = vmul.f32 %v461, %v499
  %v502 = vld [vmem:[%s10] sm:$0xff]
  %v503 = vld [vmem:[%s10 + $0x8] sm:$0xff]
  %v504 = vld [vmem:[%s10 + $0x10] sm:$0xff]
  %v505 = vld [vmem:[%s10 + $0x18] sm:$0xff]
  %v506 = vld [vmem:[%s11] sm:$0x1]
  %v508 = vperm.slane %v506, 0
  %v511 = vsel %vm66, %v500, 0
  %v514 = vsel %vm66, %v501, 0
  %516 = vmatpush.msra.mxu0 0.0
  %517 = vmatpush.msra.mxu0 0.0
  %518 = vmatpush.msra.mxu0 0.0
  %519 = vmatpush.msra.mxu0 0.0
  %520 = vmatpush.msra.mxu0 0.0
  %521 = vmatpush.msra.mxu0 0.0
  %522 = vmatpush.msra.mxu0 0.0
  %523 = vmatpush.msra.mxu0 0.0
  %524 = vmatpush.msra.mxu0 0.0
  %525 = vmatpush.msra.mxu0 0.0
  %526 = vmatpush.msra.mxu0 0.0
  %527 = vmatpush.msra.mxu0 0.0
  %528 = vmatpush.msra.mxu0 %v505
  %529 = vmatpush.msra.mxu0 %v504
  %530 = vmatpush.msra.mxu0 %v503
  %531 = vmatpush.msra.mxu0 %v502
  %532 = vmatmul.f32.gmra.mxu0 %v511
  %v533 = vpop.f32.mrf.mxu0
  %v534 = vadd.f32 %v508, %v533
  %535 = vmatmul.f32.gmra.mxu0 %v514
  %v536 = vpop.f32.mrf.mxu0
  %v537 = vadd.f32 %v508, %v536
  %538 = vdwg.mxu0
  %v539 = vxor.u32 %v534, 2147483648
  %v540 = vxor.u32 %v537, 2147483648
  %v541 = vmul.f32 %v539, 1.442695
  %v542 = vpow.pop %v541
  %v543 = vmul.f32 %v540, 1.442695
  %v544 = vpow.pop %v543
  %v545 = vadd.f32 %v542, 1.0
  %v546 = vadd.f32 %v544, 1.0
  %v547 = vrcp.pop %v545
  %v548 = vmul.f32 %v545, %v547
  %v549 = vsub.f32 1.0, %v548
  %v550 = vmul.f32 %v547, %v549
  %v551 = vadd.f32 %v547, %v550
  %vm552 = vweird.f32 %v545
  %vm553 = vweird.f32 %v547
  %vm554 = vmor %vm552, %vm553
  %v555 = vsel %vm554, %v547, %v551
  %v556 = vand.u32 2147483647, %v545
  %vm557 = vcmp.eq.f32.partialorder %v556, 8.507059e+37
  %v558 = vand.u32 %v545, 2147483648
  %v559 = vor.u32 1.1754944e-38, %v558
  %v560 = vsel %vm557, %v559, %v555
  %v561 = vmul.f32 1.0, %v560
  %v562 = vrcp.pop %v546
  %v563 = vmul.f32 %v546, %v562
  %v564 = vsub.f32 1.0, %v563
  %v565 = vmul.f32 %v562, %v564
  %v566 = vadd.f32 %v562, %v565
  %vm567 = vweird.f32 %v546
  %vm568 = vweird.f32 %v562
  %vm569 = vmor %vm567, %vm568
  %v570 = vsel %vm569, %v562, %v566
  %v571 = vand.u32 2147483647, %v546
  %vm572 = vcmp.eq.f32.partialorder %v571, 8.507059e+37
  %v573 = vand.u32 %v546, 2147483648
  %v574 = vor.u32 1.1754944e-38, %v573
  %v575 = vsel %vm572, %v574, %v570
  %v576 = vmul.f32 1.0, %v575
  %v577 = vmul.f32 %v534, %v561
  %v578 = vmul.f32 %v537, %v576
  %581 = vrot.lane.b32.xlu0 %v305, 16
  %v582 = vpop.permute.xlu0 %581
  %583 = vrot.lane.b32.xlu0 %v308, 16
  %v584 = vpop.permute.xlu0 %583
  %v587 = vmul.f32 %v534, %v582
  %v588 = vmul.f32 %v537, %v584
  %591 = vrot.lane.b32.xlu0 %v328, 16
  %v592 = vpop.permute.xlu0 %591
  %593 = vrot.lane.b32.xlu0 %v331, 16
  %v594 = vpop.permute.xlu0 %593
  %v597 = vmul.f32 %v534, %v592
  %v598 = vmul.f32 %v537, %v594
  %601 = vrot.lane.b32.xlu0 %v351, 16
  %v602 = vpop.permute.xlu0 %601
  %603 = vrot.lane.b32.xlu0 %v354, 16
  %v604 = vpop.permute.xlu0 %603
  %v607 = vmul.f32 %v534, %v602
  %v608 = vmul.f32 %v537, %v604
  %v609 = vld [vmem:[%s12] sm:$0xff]
  %v610 = vld [vmem:[%s12 + $0x8] sm:$0xff]
  %613 = vrot.lane.b32.xlu0 %v587, 112
  %v614 = vpop.permute.xlu0 %613
  %615 = vrot.lane.b32.xlu0 %v588, 112
  %v616 = vpop.permute.xlu0 %615
  %vm617 = vcmask 130048
  %v618 = vsel %vm617, %v614, 0
  %v620 = vsel %vm617, %v616, 0
  %622 = vmatpush.msra.mxu0 0.0
  %623 = vmatpush.msra.mxu0 0.0
  %624 = vmatpush.msra.mxu0 0.0
  %625 = vmatpush.msra.mxu0 0.0
  %626 = vmatpush.msra.mxu0 0.0
  %627 = vmatpush.msra.mxu0 0.0
  %628 = vmatpush.msra.mxu0 0.0
  %629 = vmatpush.msra.mxu0 0.0
  %630 = vmatpush.msra.mxu0 0.0
  %631 = vmatpush.msra.mxu0 0.0
  %632 = vmatpush.msra.mxu0 0.0
  %633 = vmatpush.msra.mxu0 0.0
  %634 = vmatpush.msra.mxu0 0.0
  %635 = vmatpush.msra.mxu0 0.0
  %636 = vmatpush.msra.mxu0 %v610
  %637 = vmatpush.msra.mxu0 %v609
  %638 = vmatmul.f32.gmra.mxu0 %v618
  %v639 = vpop.f32.mrf.mxu0
  %v640 = vadd.f32 0.0, %v639
  %641 = vmatmul.f32.gmra.mxu0 %v620
  %v642 = vpop.f32.mrf.mxu0
  %v643 = vadd.f32 0.0, %v642
  %644 = vdwg.mxu0
  %647 = vrot.lane.b32.xlu0 %v597, 112
  %v648 = vpop.permute.xlu0 %647
  %649 = vrot.lane.b32.xlu0 %v598, 112
  %v650 = vpop.permute.xlu0 %649
  %v651 = vsel %vm617, %v648, 0
  %v653 = vsel %vm617, %v650, 0
  %655 = vmatpush.msra.mxu0 0.0
  %656 = vmatpush.msra.mxu0 0.0
  %657 = vmatpush.msra.mxu0 0.0
  %658 = vmatpush.msra.mxu0 0.0
  %659 = vmatpush.msra.mxu0 0.0
  %660 = vmatpush.msra.mxu0 0.0
  %661 = vmatpush.msra.mxu0 0.0
  %662 = vmatpush.msra.mxu0 0.0
  %663 = vmatpush.msra.mxu0 0.0
  %664 = vmatpush.msra.mxu0 0.0
  %665 = vmatpush.msra.mxu0 0.0
  %666 = vmatpush.msra.mxu0 0.0
  %667 = vmatpush.msra.mxu0 0.0
  %668 = vmatpush.msra.mxu0 0.0
  %669 = vmatpush.msra.mxu0 %v610
  %670 = vmatpush.msra.mxu0 %v609
  %671 = vmatmul.f32.gmra.mxu0 %v651
  %v672 = vpop.f32.mrf.mxu0
  %v673 = vadd.f32 0.0, %v672
  %674 = vmatmul.f32.gmra.mxu0 %v653
  %v675 = vpop.f32.mrf.mxu0
  %v676 = vadd.f32 0.0, %v675
  %677 = vdwg.mxu0
  %680 = vrot.lane.b32.xlu0 %v607, 112
  %v681 = vpop.permute.xlu0 %680
  %682 = vrot.lane.b32.xlu0 %v608, 112
  %v683 = vpop.permute.xlu0 %682
  %v684 = vsel %vm617, %v681, 0
  %v686 = vsel %vm617, %v683, 0
  %688 = vmatpush.msra.mxu0 0.0
  %689 = vmatpush.msra.mxu0 0.0
  %690 = vmatpush.msra.mxu0 0.0
  %691 = vmatpush.msra.mxu0 0.0
  %692 = vmatpush.msra.mxu0 0.0
  %693 = vmatpush.msra.mxu0 0.0
  %694 = vmatpush.msra.mxu0 0.0
  %695 = vmatpush.msra.mxu0 0.0
  %696 = vmatpush.msra.mxu0 0.0
  %697 = vmatpush.msra.mxu0 0.0
  %698 = vmatpush.msra.mxu0 0.0
  %699 = vmatpush.msra.mxu0 0.0
  %700 = vmatpush.msra.mxu0 0.0
  %701 = vmatpush.msra.mxu0 0.0
  %702 = vmatpush.msra.mxu0 %v610
  %703 = vmatpush.msra.mxu0 %v609
  %704 = vmatmul.f32.gmra.mxu0 %v684
  %v705 = vpop.f32.mrf.mxu0
  %v706 = vadd.f32 0.0, %v705
  %707 = vmatmul.f32.gmra.mxu0 %v686
  %v708 = vpop.f32.mrf.mxu0
  %v709 = vadd.f32 0.0, %v708
  %710 = vdwg.mxu0
  %v711 = vld [vmem:[%s13] sm:$0xff]
  %v712 = vld [vmem:[%s13 + $0x8] sm:$0xff]
  %713 = vmatpush.msra.mxu0 0.0
  %714 = vmatpush.msra.mxu0 0.0
  %715 = vmatpush.msra.mxu0 0.0
  %716 = vmatpush.msra.mxu0 0.0
  %717 = vmatpush.msra.mxu0 0.0
  %718 = vmatpush.msra.mxu0 0.0
  %719 = vmatpush.msra.mxu0 0.0
  %720 = vmatpush.msra.mxu0 0.0
  %721 = vmatpush.msra.mxu0 0.0
  %722 = vmatpush.msra.mxu0 0.0
  %723 = vmatpush.msra.mxu0 0.0
  %724 = vmatpush.msra.mxu0 0.0
  %725 = vmatpush.msra.mxu0 0.0
  %726 = vmatpush.msra.mxu0 0.0
  %727 = vmatpush.msra.mxu0 %v712
  %728 = vmatpush.msra.mxu0 %v711
  %729 = vmatmul.f32.gmra.mxu0 %v618
  %v730 = vpop.f32.mrf.mxu0
  %v731 = vadd.f32 0.0, %v730
  %732 = vmatmul.f32.gmra.mxu0 %v620
  %v733 = vpop.f32.mrf.mxu0
  %v734 = vadd.f32 0.0, %v733
  %735 = vdwg.mxu0
  %736 = vmatpush.msra.mxu0 0.0
  %737 = vmatpush.msra.mxu0 0.0
  %738 = vmatpush.msra.mxu0 0.0
  %739 = vmatpush.msra.mxu0 0.0
  %740 = vmatpush.msra.mxu0 0.0
  %741 = vmatpush.msra.mxu0 0.0
  %742 = vmatpush.msra.mxu0 0.0
  %743 = vmatpush.msra.mxu0 0.0
  %744 = vmatpush.msra.mxu0 0.0
  %745 = vmatpush.msra.mxu0 0.0
  %746 = vmatpush.msra.mxu0 0.0
  %747 = vmatpush.msra.mxu0 0.0
  %748 = vmatpush.msra.mxu0 0.0
  %749 = vmatpush.msra.mxu0 0.0
  %750 = vmatpush.msra.mxu0 %v712
  %751 = vmatpush.msra.mxu0 %v711
  %752 = vmatmul.f32.gmra.mxu0 %v651
  %v753 = vpop.f32.mrf.mxu0
  %v754 = vadd.f32 0.0, %v753
  %755 = vmatmul.f32.gmra.mxu0 %v653
  %v756 = vpop.f32.mrf.mxu0
  %v757 = vadd.f32 0.0, %v756
  %758 = vdwg.mxu0
  %759 = vmatpush.msra.mxu0 0.0
  %760 = vmatpush.msra.mxu0 0.0
  %761 = vmatpush.msra.mxu0 0.0
  %762 = vmatpush.msra.mxu0 0.0
  %763 = vmatpush.msra.mxu0 0.0
  %764 = vmatpush.msra.mxu0 0.0
  %765 = vmatpush.msra.mxu0 0.0
  %766 = vmatpush.msra.mxu0 0.0
  %767 = vmatpush.msra.mxu0 0.0
  %768 = vmatpush.msra.mxu0 0.0
  %769 = vmatpush.msra.mxu0 0.0
  %770 = vmatpush.msra.mxu0 0.0
  %771 = vmatpush.msra.mxu0 0.0
  %772 = vmatpush.msra.mxu0 0.0
  %773 = vmatpush.msra.mxu0 %v712
  %774 = vmatpush.msra.mxu0 %v711
  %775 = vmatmul.f32.gmra.mxu0 %v684
  %v776 = vpop.f32.mrf.mxu0
  %v777 = vadd.f32 0.0, %v776
  %778 = vmatmul.f32.gmra.mxu0 %v686
  %v779 = vpop.f32.mrf.mxu0
  %v780 = vadd.f32 0.0, %v779
  %781 = vdwg.mxu0
  %v782 = vmul.f32 %v640, %v640
  %v783 = vmul.f32 %v643, %v643
  %v784 = vmul.f32 %v673, %v673
  %v785 = vmul.f32 %v676, %v676
  %v786 = vadd.f32 %v782, %v784
  %v787 = vadd.f32 %v783, %v785
  %v788 = vmul.f32 %v706, %v706
  %v789 = vmul.f32 %v709, %v709
  %v790 = vadd.f32 %v786, %v788
  %v791 = vadd.f32 %v787, %v789
  %v792 = vrsqrt.pop %v790
  %v793 = vmul.f32 %v792, %v790
  %v794 = vmul.f32 %v793, %v792
  %v795 = vmul.f32 0.5, %v794
  %v796 = vsub.f32 1.5, %v795
  %v797 = vmul.f32 %v792, %v796
  %v798 = vmul.f32 %v790, %v797
  %vm799 = vcmp.eq.f32.partialorder %v790, inf
  %v800 = vsel %vm799, %v790, %v798
  %vm801 = vcmp.eq.f32.partialorder %v790, 0.0
  %v802 = vand.u32 %v790, 2147483648
  %v803 = vsel %vm801, %v802, %v800
  %v804 = vrsqrt.pop %v791
  %v805 = vmul.f32 %v804, %v791
  %v806 = vmul.f32 %v805, %v804
  %v807 = vmul.f32 0.5, %v806
  %v808 = vsub.f32 1.5, %v807
  %v809 = vmul.f32 %v804, %v808
  %v810 = vmul.f32 %v791, %v809
  %vm811 = vcmp.eq.f32.partialorder %v791, inf
  %v812 = vsel %vm811, %v791, %v810
  %vm813 = vcmp.eq.f32.partialorder %v791, 0.0
  %v814 = vand.u32 %v791, 2147483648
  %v815 = vsel %vm813, %v814, %v812
  %v816 = vld [vmem:[%s14] sm:$0xff]
  %v817 = vld [vmem:[%s14 + $0x8] sm:$0xff]
  %v818 = vld [vmem:[%s15] sm:$0xff]
  %v819 = vld [vmem:[%s15 + $0x8] sm:$0xff]
  %v821 = vsel %vm617, %v803, 0
  %v824 = vsel %vm617, %v815, 0
  %826 = vmatpush.msra.mxu0 0.0
  %827 = vmatpush.msra.mxu0 0.0
  %828 = vmatpush.msra.mxu0 0.0
  %829 = vmatpush.msra.mxu0 0.0
  %830 = vmatpush.msra.mxu0 0.0
  %831 = vmatpush.msra.mxu0 0.0
  %832 = vmatpush.msra.mxu0 0.0
  %833 = vmatpush.msra.mxu0 0.0
  %834 = vmatpush.msra.mxu0 0.0
  %835 = vmatpush.msra.mxu0 0.0
  %836 = vmatpush.msra.mxu0 0.0
  %837 = vmatpush.msra.mxu0 0.0
  %838 = vmatpush.msra.mxu0 0.0
  %839 = vmatpush.msra.mxu0 0.0
  %840 = vmatpush.msra.mxu0 %v819
  %841 = vmatpush.msra.mxu0 %v818
  %842 = vmatmul.f32.gmra.mxu0 %v821
  %v843 = vpop.f32.mrf.mxu0
  %v844 = vadd.f32 0.0, %v843
  %845 = vmatmul.f32.gmra.mxu0 %v824
  %v846 = vpop.f32.mrf.mxu0
  %v847 = vadd.f32 0.0, %v846
  %848 = vdwg.mxu0
  %v850 = vsel %vm617, %v577, 0
  %v853 = vsel %vm617, %v578, 0
  %855 = vmatpush.msra.mxu0 0.0
  %856 = vmatpush.msra.mxu0 0.0
  %857 = vmatpush.msra.mxu0 0.0
  %858 = vmatpush.msra.mxu0 0.0
  %859 = vmatpush.msra.mxu0 0.0
  %860 = vmatpush.msra.mxu0 0.0
  %861 = vmatpush.msra.mxu0 0.0
  %862 = vmatpush.msra.mxu0 0.0
  %863 = vmatpush.msra.mxu0 0.0
  %864 = vmatpush.msra.mxu0 0.0
  %865 = vmatpush.msra.mxu0 0.0
  %866 = vmatpush.msra.mxu0 0.0
  %867 = vmatpush.msra.mxu0 0.0
  %868 = vmatpush.msra.mxu0 0.0
  %869 = vmatpush.msra.mxu0 %v817
  %870 = vmatpush.msra.mxu0 %v816
  %871 = vmatmul.f32.gmra.mxu0 %v850
  %v872 = vpop.f32.mrf.mxu0
  %v873 = vadd.f32 %v844, %v872
  %874 = vmatmul.f32.gmra.mxu0 %v853
  %v875 = vpop.f32.mrf.mxu0
  %v876 = vadd.f32 %v847, %v875
  %877 = vdwg.mxu0
  %v878 = vld [vmem:[%s16] sm:$0x1]
  %v880 = vperm.slane %v878, 0
  %v882 = vadd.f32 %v873, %v880
  %v883 = vadd.f32 %v876, %v880
  %v884 = vxor.u32 %v882, 2147483648
  %v885 = vxor.u32 %v883, 2147483648
  %v886 = vmul.f32 %v884, 1.442695
  %v887 = vpow.pop %v886
  %v888 = vmul.f32 %v885, 1.442695
  %v889 = vpow.pop %v888
  %v890 = vadd.f32 %v887, 1.0
  %v891 = vadd.f32 %v889, 1.0
  %v892 = vrcp.pop %v890
  %v893 = vmul.f32 %v890, %v892
  %v894 = vsub.f32 1.0, %v893
  %v895 = vmul.f32 %v892, %v894
  %v896 = vadd.f32 %v892, %v895
  %vm897 = vweird.f32 %v890
  %vm898 = vweird.f32 %v892
  %vm899 = vmor %vm897, %vm898
  %v900 = vsel %vm899, %v892, %v896
  %v901 = vand.u32 2147483647, %v890
  %vm902 = vcmp.eq.f32.partialorder %v901, 8.507059e+37
  %v903 = vand.u32 %v890, 2147483648
  %v904 = vor.u32 1.1754944e-38, %v903
  %v905 = vsel %vm902, %v904, %v900
  %v906 = vmul.f32 1.0, %v905
  %v907 = vrcp.pop %v891
  %v908 = vmul.f32 %v891, %v907
  %v909 = vsub.f32 1.0, %v908
  %v910 = vmul.f32 %v907, %v909
  %v911 = vadd.f32 %v907, %v910
  %vm912 = vweird.f32 %v891
  %vm913 = vweird.f32 %v907
  %vm914 = vmor %vm912, %vm913
  %v915 = vsel %vm914, %v907, %v911
  %v916 = vand.u32 2147483647, %v891
  %vm917 = vcmp.eq.f32.partialorder %v916, 8.507059e+37
  %v918 = vand.u32 %v891, 2147483648
  %v919 = vor.u32 1.1754944e-38, %v918
  %v920 = vsel %vm917, %v919, %v915
  %v921 = vmul.f32 1.0, %v920
  %v922 = vmul.f32 %v882, %v906
  %v923 = vmul.f32 %v883, %v921
  %v924 = vld [vmem:[%s17] sm:$0xff]
  %v925 = vld [vmem:[%s17 + $0x8] sm:$0xff]
  %v926 = vld [vmem:[%s18] sm:$0x1]
  %v928 = vperm.slane %v926, 0
  %v931 = vsel %vm617, %v922, 0
  %v934 = vsel %vm617, %v923, 0
  %936 = vmatpush.msra.mxu0 0.0
  %937 = vmatpush.msra.mxu0 0.0
  %938 = vmatpush.msra.mxu0 0.0
  %939 = vmatpush.msra.mxu0 0.0
  %940 = vmatpush.msra.mxu0 0.0
  %941 = vmatpush.msra.mxu0 0.0
  %942 = vmatpush.msra.mxu0 0.0
  %943 = vmatpush.msra.mxu0 0.0
  %944 = vmatpush.msra.mxu0 0.0
  %945 = vmatpush.msra.mxu0 0.0
  %946 = vmatpush.msra.mxu0 0.0
  %947 = vmatpush.msra.mxu0 0.0
  %948 = vmatpush.msra.mxu0 0.0
  %949 = vmatpush.msra.mxu0 0.0
  %950 = vmatpush.msra.mxu0 %v925
  %951 = vmatpush.msra.mxu0 %v924
  %952 = vmatmul.f32.gmra.mxu0 %v931
  %v953 = vpop.f32.mrf.mxu0
  %v954 = vadd.f32 %v928, %v953
  %955 = vmatmul.f32.gmra.mxu0 %v934
  %v956 = vpop.f32.mrf.mxu0
  %v957 = vadd.f32 %v928, %v956
  %958 = vdwg.mxu0
  %961 = vrot.lane.b32.xlu0 %v731, 1
  %v962 = vpop.permute.xlu0 %961
  %963 = vrot.lane.b32.xlu0 %v734, 1
  %v964 = vpop.permute.xlu0 %963
  %v967 = vmul.f32 %v954, %v962
  %v968 = vmul.f32 %v957, %v964
  %971 = vrot.lane.b32.xlu0 %v754, 1
  %v972 = vpop.permute.xlu0 %971
  %973 = vrot.lane.b32.xlu0 %v757, 1
  %v974 = vpop.permute.xlu0 %973
  %v977 = vmul.f32 %v954, %v972
  %v978 = vmul.f32 %v957, %v974
  %981 = vrot.lane.b32.xlu0 %v777, 1
  %v982 = vpop.permute.xlu0 %981
  %983 = vrot.lane.b32.xlu0 %v780, 1
  %v984 = vpop.permute.xlu0 %983
  %v987 = vmul.f32 %v954, %v982
  %v988 = vmul.f32 %v957, %v984
  %991 = vrot.lane.b32.xlu0 %v967, 127
  %v992 = vpop.permute.xlu0 %991
  %993 = vrot.lane.b32.xlu0 %v968, 127
  %v994 = vpop.permute.xlu0 %993
  %999 = vrot.lane.b32.xlu0 %v987, 1
  %v1000 = vpop.permute.xlu0 %999
  %1001 = vrot.lane.b32.xlu0 %v988, 1
  %v1002 = vpop.permute.xlu0 %1001
  %vm1005 = vcmask 7168
  %v1006 = vsel %vm1005, %v992, %v977
  %v1007 = vsel %vm1005, %v994, %v978
  %vm1008 = vcmask 15360
  %v1009 = vsel %vm1008, %v1006, %v1000
  %v1010 = vsel %vm1008, %v1007, %v1002
  %vm1011 = vcmask 23552
  %1012 = vst.msk [vmem:[%s19] sm:$0xff] %vm1011, %v1009
  %1013 = vst.msk [vmem:[%s19 + $0x8] sm:$0xff] %vm1011, %v1010
  // Predicated region
  $region78: #{torchmd_dynamics_forward.7} parent=0 // pred_check
    _
  $region79: #{torchmd_dynamics_forward.7} parent=0 // pred_check_branch
    %1015 = sbr.rel (0) target = $region81
  $region80: #{torchmd_dynamics_forward.7} parent=0 // pred_region
    _
  $region81: #{torchmd_dynamics_forward.7} parent=0 // pred_fallthru
    _
  // Predicated region
  $region82: #{torchmd_dynamics_forward.7} parent=0 // pred_check
    _
  $region83: #{torchmd_dynamics_forward.7} parent=0 // pred_check_branch
    %1017 = sbr.rel (0) target = $region85
  $region84: #{torchmd_dynamics_forward.7} parent=0 // pred_region
    _
  $region85: #{torchmd_dynamics_forward.7} parent=0 // pred_fallthru
    _

// kernel: torchmd_dynamics_forward.5
$region0: #{torchmd_dynamics_forward.5}
  #allocation0 [shape = 'u32[]', space=smem, size = 0x4, offset = 0x4, fixed_abs, tag = 'smem constant byte address 0x4 - core index']
  #allocation1 [shape = 'u32[72,128]{1,0:T(1,128)}', space=vmem, size = 0x9000, scoped, tag = 'internal scratch']
  %s0 = inlined_call_operand.vmem [shape: f32[16,128], index: 0, kind: input, shape index: {}]
  %s1 = inlined_call_operand.vmem [shape: f32[16,1], index: 1, kind: input, shape index: {}]
  %s2 = inlined_call_operand.vmem [shape: f32[112,16], index: 2, kind: input, shape index: {}]
  %s3 = inlined_call_operand.vmem [shape: f32[112,3], index: 3, kind: input, shape index: {}]
  %s4 = inlined_call_operand.vmem [shape: f32[112,1], index: 4, kind: input, shape index: {}]
  %s5 = inlined_call_operand.vmem [shape: f32[112,16], index: 5, kind: input, shape index: {}]
  %s6 = inlined_call_operand.vmem [shape: f32[112,16], index: 6, kind: input, shape index: {}]
  %s7 = inlined_call_operand.vmem [shape: f32[16,112], index: 7, kind: input, shape index: {}]
  %s8 = inlined_call_operand.vmem [shape: f32[32,32], index: 8, kind: input, shape index: {}]
  %s9 = inlined_call_operand.vmem [shape: f32[32,32], index: 9, kind: input, shape index: {}]
  %s10 = inlined_call_operand.vmem [shape: f32[1,32], index: 10, kind: input, shape index: {}]
  %s11 = inlined_call_operand.vmem [shape: f32[1,32], index: 11, kind: input, shape index: {}]
  %s12 = inlined_call_operand.vmem [shape: f32[32,32], index: 12, kind: input, shape index: {}]
  %s13 = inlined_call_operand.vmem [shape: f32[1,32], index: 13, kind: input, shape index: {}]
  %s14 = inlined_call_operand.vmem [shape: f32[1,32], index: 14, kind: input, shape index: {}]
  %s15 = inlined_call_operand.vmem [shape: f32[1,32], index: 15, kind: input, shape index: {}]
  %s16 = inlined_call_operand.vmem [shape: f32[32,160], index: 16, kind: input, shape index: {}]
  %s17 = inlined_call_operand.vmem [shape: f32[1,160], index: 17, kind: input, shape index: {}]
  %s18 = inlined_call_operand.vmem [shape: f32[32,96], index: 18, kind: input, shape index: {}]
  %s19 = inlined_call_operand.vmem [shape: f32[16,128], index: 19, kind: input, shape index: {}]
  %s20 = inlined_call_operand.vmem [shape: f32[1,128], index: 20, kind: input, shape index: {}]
  %s21 = inlined_call_operand.vmem [shape: f32[32,96], index: 21, kind: input, shape index: {}]
  %s22 = inlined_call_operand.vmem [shape: f32[1,96], index: 22, kind: input, shape index: {}]
  %s23 = inlined_call_operand.vmem [shape: f32[16,128], index: 23, kind: output, shape index: {}]
  %s24 = sld [smem:[#allocation0]]
  $region102: #{torchmd_dynamics_forward.5} parent=0
    _
  %s26 = ssub.s32 1, %s24
  %s27 = scalar_select 0, %s26, %s24
  // Predicated region
  $region2: #{torchmd_dynamics_forward.5} parent=0 // pred_check
    _
  $region3: #{torchmd_dynamics_forward.5} parent=0 // pred_check_branch
    %29 = sbr.rel (0) target = $region5
  $region4: #{torchmd_dynamics_forward.5} parent=0 // pred_region
    _
  $region5: #{torchmd_dynamics_forward.5} parent=0 // pred_fallthru
    _
  // Predicated region
  $region6: #{torchmd_dynamics_forward.5} parent=0 // pred_check
    _
  $region7: #{torchmd_dynamics_forward.5} parent=0 // pred_check_branch
    %31 = sbr.rel (0) target = $region9
  $region8: #{torchmd_dynamics_forward.5} parent=0 // pred_region
    _
  $region9: #{torchmd_dynamics_forward.5} parent=0 // pred_fallthru
    _
  // Predicated region
  $region10: #{torchmd_dynamics_forward.5} parent=0 // pred_check
    _
  $region11: #{torchmd_dynamics_forward.5} parent=0 // pred_check_branch
    %33 = sbr.rel (0) target = $region13
  $region12: #{torchmd_dynamics_forward.5} parent=0 // pred_region
    _
  $region13: #{torchmd_dynamics_forward.5} parent=0 // pred_fallthru
    _
  // Predicated region
  $region14: #{torchmd_dynamics_forward.5} parent=0 // pred_check
    _
  $region15: #{torchmd_dynamics_forward.5} parent=0 // pred_check_branch
    %35 = sbr.rel (0) target = $region17
  $region16: #{torchmd_dynamics_forward.5} parent=0 // pred_region
    _
  $region17: #{torchmd_dynamics_forward.5} parent=0 // pred_fallthru
    _
  // Predicated region
  $region18: #{torchmd_dynamics_forward.5} parent=0 // pred_check
    _
  $region19: #{torchmd_dynamics_forward.5} parent=0 // pred_check_branch
    %37 = sbr.rel (0) target = $region21
  $region20: #{torchmd_dynamics_forward.5} parent=0 // pred_region
    _
  $region21: #{torchmd_dynamics_forward.5} parent=0 // pred_fallthru
    _
  // Predicated region
  $region22: #{torchmd_dynamics_forward.5} parent=0 // pred_check
    _
  $region23: #{torchmd_dynamics_forward.5} parent=0 // pred_check_branch
    %39 = sbr.rel (0) target = $region25
  $region24: #{torchmd_dynamics_forward.5} parent=0 // pred_region
    _
  $region25: #{torchmd_dynamics_forward.5} parent=0 // pred_fallthru
    _
  // Predicated region
  $region26: #{torchmd_dynamics_forward.5} parent=0 // pred_check
    _
  $region27: #{torchmd_dynamics_forward.5} parent=0 // pred_check_branch
    %41 = sbr.rel (0) target = $region29
  $region28: #{torchmd_dynamics_forward.5} parent=0 // pred_region
    _
  $region29: #{torchmd_dynamics_forward.5} parent=0 // pred_fallthru
    _
  // Predicated region
  $region30: #{torchmd_dynamics_forward.5} parent=0 // pred_check
    _
  $region31: #{torchmd_dynamics_forward.5} parent=0 // pred_check_branch
    %43 = sbr.rel (0) target = $region33
  $region32: #{torchmd_dynamics_forward.5} parent=0 // pred_region
    _
  $region33: #{torchmd_dynamics_forward.5} parent=0 // pred_fallthru
    _
  // Predicated region
  $region34: #{torchmd_dynamics_forward.5} parent=0 // pred_check
    _
  $region35: #{torchmd_dynamics_forward.5} parent=0 // pred_check_branch
    %45 = sbr.rel (0) target = $region37
  $region36: #{torchmd_dynamics_forward.5} parent=0 // pred_region
    _
  $region37: #{torchmd_dynamics_forward.5} parent=0 // pred_fallthru
    _
  // Predicated region
  $region38: #{torchmd_dynamics_forward.5} parent=0 // pred_check
    _
  $region39: #{torchmd_dynamics_forward.5} parent=0 // pred_check_branch
    %47 = sbr.rel (0) target = $region41
  $region40: #{torchmd_dynamics_forward.5} parent=0 // pred_region
    _
  $region41: #{torchmd_dynamics_forward.5} parent=0 // pred_fallthru
    _
  // Predicated region
  $region42: #{torchmd_dynamics_forward.5} parent=0 // pred_check
    _
  $region43: #{torchmd_dynamics_forward.5} parent=0 // pred_check_branch
    %49 = sbr.rel (0) target = $region45
  $region44: #{torchmd_dynamics_forward.5} parent=0 // pred_region
    _
  $region45: #{torchmd_dynamics_forward.5} parent=0 // pred_fallthru
    _
  // Predicated region
  $region46: #{torchmd_dynamics_forward.5} parent=0 // pred_check
    _
  $region47: #{torchmd_dynamics_forward.5} parent=0 // pred_check_branch
    %51 = sbr.rel (0) target = $region49
  $region48: #{torchmd_dynamics_forward.5} parent=0 // pred_region
    _
  $region49: #{torchmd_dynamics_forward.5} parent=0 // pred_fallthru
    _
  // Predicated region
  $region50: #{torchmd_dynamics_forward.5} parent=0 // pred_check
    _
  $region51: #{torchmd_dynamics_forward.5} parent=0 // pred_check_branch
    %53 = sbr.rel (0) target = $region53
  $region52: #{torchmd_dynamics_forward.5} parent=0 // pred_region
    _
  $region53: #{torchmd_dynamics_forward.5} parent=0 // pred_fallthru
    _
  // Predicated region
  $region54: #{torchmd_dynamics_forward.5} parent=0 // pred_check
    _
  $region55: #{torchmd_dynamics_forward.5} parent=0 // pred_check_branch
    %55 = sbr.rel (0) target = $region57
  $region56: #{torchmd_dynamics_forward.5} parent=0 // pred_region
    _
  $region57: #{torchmd_dynamics_forward.5} parent=0 // pred_fallthru
    _
  // Predicated region
  $region58: #{torchmd_dynamics_forward.5} parent=0 // pred_check
    _
  $region59: #{torchmd_dynamics_forward.5} parent=0 // pred_check_branch
    %57 = sbr.rel (0) target = $region61
  $region60: #{torchmd_dynamics_forward.5} parent=0 // pred_region
    _
  $region61: #{torchmd_dynamics_forward.5} parent=0 // pred_fallthru
    _
  // Predicated region
  $region62: #{torchmd_dynamics_forward.5} parent=0 // pred_check
    _
  $region63: #{torchmd_dynamics_forward.5} parent=0 // pred_check_branch
    %59 = sbr.rel (0) target = $region65
  $region64: #{torchmd_dynamics_forward.5} parent=0 // pred_region
    _
  $region65: #{torchmd_dynamics_forward.5} parent=0 // pred_fallthru
    _
  // Predicated region
  $region66: #{torchmd_dynamics_forward.5} parent=0 // pred_check
    _
  $region67: #{torchmd_dynamics_forward.5} parent=0 // pred_check_branch
    %61 = sbr.rel (0) target = $region69
  $region68: #{torchmd_dynamics_forward.5} parent=0 // pred_region
    _
  $region69: #{torchmd_dynamics_forward.5} parent=0 // pred_fallthru
    _
  // Predicated region
  $region70: #{torchmd_dynamics_forward.5} parent=0 // pred_check
    _
  $region71: #{torchmd_dynamics_forward.5} parent=0 // pred_check_branch
    %63 = sbr.rel (0) target = $region73
  $region72: #{torchmd_dynamics_forward.5} parent=0 // pred_region
    _
  $region73: #{torchmd_dynamics_forward.5} parent=0 // pred_fallthru
    _
  // Predicated region
  $region74: #{torchmd_dynamics_forward.5} parent=0 // pred_check
    _
  $region75: #{torchmd_dynamics_forward.5} parent=0 // pred_check_branch
    %65 = sbr.rel (0) target = $region77
  $region76: #{torchmd_dynamics_forward.5} parent=0 // pred_region
    _
  $region77: #{torchmd_dynamics_forward.5} parent=0 // pred_fallthru
    _
  // Predicated region
  $region78: #{torchmd_dynamics_forward.5} parent=0 // pred_check
    _
  $region79: #{torchmd_dynamics_forward.5} parent=0 // pred_check_branch
    %67 = sbr.rel (0) target = $region81
  $region80: #{torchmd_dynamics_forward.5} parent=0 // pred_region
    _
  $region81: #{torchmd_dynamics_forward.5} parent=0 // pred_fallthru
    _
  // Predicated region
  $region82: #{torchmd_dynamics_forward.5} parent=0 // pred_check
    _
  $region83: #{torchmd_dynamics_forward.5} parent=0 // pred_check_branch
    %69 = sbr.rel (0) target = $region85
  $region84: #{torchmd_dynamics_forward.5} parent=0 // pred_region
    _
  $region85: #{torchmd_dynamics_forward.5} parent=0 // pred_fallthru
    _
  // Predicated region
  $region86: #{torchmd_dynamics_forward.5} parent=0 // pred_check
    _
  $region87: #{torchmd_dynamics_forward.5} parent=0 // pred_check_branch
    %71 = sbr.rel (0) target = $region89
  $region88: #{torchmd_dynamics_forward.5} parent=0 // pred_region
    _
  $region89: #{torchmd_dynamics_forward.5} parent=0 // pred_fallthru
    _
  // Predicated region
  $region90: #{torchmd_dynamics_forward.5} parent=0 // pred_check
    _
  $region91: #{torchmd_dynamics_forward.5} parent=0 // pred_check_branch
    %73 = sbr.rel (0) target = $region93
  $region92: #{torchmd_dynamics_forward.5} parent=0 // pred_region
    _
  $region93: #{torchmd_dynamics_forward.5} parent=0 // pred_fallthru
    _
  %v74 = vld [vmem:[%s0] sm:$0xff]
  %v75 = vld [vmem:[%s0 + $0x8] sm:$0xff]
  %v76 = vld [vmem:[%s1] sm:$0xff]
  %v77 = vld [vmem:[%s1 + $0x8] sm:$0xff]
  %v78 = vld [vmem:[%s9] sm:$0xff]
  %v79 = vld [vmem:[%s9 + $0x8] sm:$0xff]
  %v80 = vld [vmem:[%s9 + $0x10] sm:$0xff]
  %v81 = vld [vmem:[%s9 + $0x18] sm:$0xff]
  %v82 = vld [vmem:[%s10] sm:$0x1]
  %84 = vset.pattern.permute.xlu0 0
  %85 = vperm.xlu0 %84, %v76
  %v86 = vpop.permute.xlu0 %85
  %89 = vset.pattern.permute.xlu0 0
  %90 = vperm.xlu0 %89, %v77
  %v91 = vpop.permute.xlu0 %90
  %v94 = vperm.slane %v82, 0
  %v96 = vmul.f32 %v86, %v94
  %v97 = vmul.f32 %v91, %v94
  %vm98 = vcmask 261120
  %v100 = vsel %vm98, %v74, 0
  %v103 = vsel %vm98, %v75, 0
  %105 = vmatpush.msra.mxu0 0.0
  %106 = vmatpush.msra.mxu0 0.0
  %107 = vmatpush.msra.mxu0 0.0
  %108 = vmatpush.msra.mxu0 0.0
  %109 = vmatpush.msra.mxu0 0.0
  %110 = vmatpush.msra.mxu0 0.0
  %111 = vmatpush.msra.mxu0 0.0
  %112 = vmatpush.msra.mxu0 0.0
  %113 = vmatpush.msra.mxu0 0.0
  %114 = vmatpush.msra.mxu0 0.0
  %115 = vmatpush.msra.mxu0 0.0
  %116 = vmatpush.msra.mxu0 0.0
  %117 = vmatpush.msra.mxu0 %v81
  %118 = vmatpush.msra.mxu0 %v80
  %119 = vmatpush.msra.mxu0 %v79
  %120 = vmatpush.msra.mxu0 %v78
  %121 = vmatmul.f32.gmra.mxu0 %v100
  %v122 = vpop.f32.mrf.mxu0
  %v123 = vadd.f32 %v96, %v122
  %124 = vmatmul.f32.gmra.mxu0 %v103
  %v125 = vpop.f32.mrf.mxu0
  %v126 = vadd.f32 %v97, %v125
  %127 = vdwg.mxu0
  %v128 = vld [vmem:[%s11] sm:$0x1]
  %v130 = vperm.slane %v128, 0
  %v132 = vadd.f32 %v123, %v130
  %v133 = vadd.f32 %v126, %v130
  %v134 = vxor.u32 %v132, 2147483648
  %v135 = vxor.u32 %v133, 2147483648
  %v136 = vmul.f32 %v134, 1.442695
  %v137 = vpow.pop %v136
  %v138 = vmul.f32 %v135, 1.442695
  %v139 = vpow.pop %v138
  %v140 = vadd.f32 %v137, 1.0
  %v141 = vadd.f32 %v139, 1.0
  %v142 = vrcp.pop %v140
  %v143 = vmul.f32 %v140, %v142
  %v144 = vsub.f32 1.0, %v143
  %v145 = vmul.f32 %v142, %v144
  %v146 = vadd.f32 %v142, %v145
  %vm147 = vweird.f32 %v140
  %vm148 = vweird.f32 %v142
  %vm149 = vmor %vm147, %vm148
  %v150 = vsel %vm149, %v142, %v146
  %v151 = vand.u32 2147483647, %v140
  %vm152 = vcmp.eq.f32.partialorder %v151, 8.507059e+37
  %v153 = vand.u32 %v140, 2147483648
  %v154 = vor.u32 1.1754944e-38, %v153
  %v155 = vsel %vm152, %v154, %v150
  %v156 = vmul.f32 1.0, %v155
  %v157 = vrcp.pop %v141
  %v158 = vmul.f32 %v141, %v157
  %v159 = vsub.f32 1.0, %v158
  %v160 = vmul.f32 %v157, %v159
  %v161 = vadd.f32 %v157, %v160
  %vm162 = vweird.f32 %v141
  %vm163 = vweird.f32 %v157
  %vm164 = vmor %vm162, %vm163
  %v165 = vsel %vm164, %v157, %v161
  %v166 = vand.u32 2147483647, %v141
  %vm167 = vcmp.eq.f32.partialorder %v166, 8.507059e+37
  %v168 = vand.u32 %v141, 2147483648
  %v169 = vor.u32 1.1754944e-38, %v168
  %v170 = vsel %vm167, %v169, %v165
  %v171 = vmul.f32 1.0, %v170
  %v172 = vmul.f32 %v132, %v156
  %v173 = vmul.f32 %v133, %v171
  %v174 = vld [vmem:[%s12] sm:$0xff]
  %v175 = vld [vmem:[%s12 + $0x8] sm:$0xff]
  %v176 = vld [vmem:[%s12 + $0x10] sm:$0xff]
  %v177 = vld [vmem:[%s12 + $0x18] sm:$0xff]
  %v178 = vld [vmem:[%s13] sm:$0x1]
  %v180 = vperm.slane %v178, 0
  %v183 = vsel %vm98, %v172, 0
  %v186 = vsel %vm98, %v173, 0
  %188 = vmatpush.msra.mxu0 0.0
  %189 = vmatpush.msra.mxu0 0.0
  %190 = vmatpush.msra.mxu0 0.0
  %191 = vmatpush.msra.mxu0 0.0
  %192 = vmatpush.msra.mxu0 0.0
  %193 = vmatpush.msra.mxu0 0.0
  %194 = vmatpush.msra.mxu0 0.0
  %195 = vmatpush.msra.mxu0 0.0
  %196 = vmatpush.msra.mxu0 0.0
  %197 = vmatpush.msra.mxu0 0.0
  %198 = vmatpush.msra.mxu0 0.0
  %199 = vmatpush.msra.mxu0 0.0
  %200 = vmatpush.msra.mxu0 %v177
  %201 = vmatpush.msra.mxu0 %v176
  %202 = vmatpush.msra.mxu0 %v175
  %203 = vmatpush.msra.mxu0 %v174
  %204 = vmatmul.f32.gmra.mxu0 %v183
  %v205 = vpop.f32.mrf.mxu0
  %v206 = vadd.f32 %v180, %v205
  %207 = vmatmul.f32.gmra.mxu0 %v186
  %v208 = vpop.f32.mrf.mxu0
  %v209 = vadd.f32 %v180, %v208
  %210 = vdwg.mxu0
  %v211 = vsel %vm98, %v206, 0.0
  %212 = vadd.xlane.f32.xlu0 %v211
  %v213 = vpop.xlane.xlu0 %212
  %v214 = vsel %vm98, %v209, 0.0
  %215 = vadd.xlane.f32.xlu0 %v214
  %v216 = vpop.xlane.xlu0 %215
  %v217 = vrcp.pop 32.0
  %v218 = vmul.f32 32.0, %v217
  %v219 = vsub.f32 1.0, %v218
  %v220 = vmul.f32 %v217, %v219
  %v221 = vadd.f32 %v217, %v220
  %vm222 = vweird.f32 %v217
  %v223 = vsel %vm222, %v217, %v221
  %v224 = vmul.f32 %v213, %v223
  %v225 = vmul.f32 %v216, %v223
  %v226 = vsub.f32 %v206, %v224
  %v227 = vsub.f32 %v209, %v225
  %v228 = vmul.f32 %v226, %v226
  %v229 = vmul.f32 %v227, %v227
  %v230 = vsel %vm98, %v228, 0.0
  %231 = vadd.xlane.f32.xlu0 %v230
  %v232 = vpop.xlane.xlu0 %231
  %v233 = vsel %vm98, %v229, 0.0
  %234 = vadd.xlane.f32.xlu0 %v233
  %v235 = vpop.xlane.xlu0 %234
  %v236 = vmul.f32 %v232, %v223
  %v237 = vmul.f32 %v235, %v223
  %v238 = vadd.f32 %v236, 1e-05
  %v239 = vadd.f32 %v237, 1e-05
  %v240 = vrsqrt.pop %v238
  %v241 = vmul.f32 %v240, %v238
  %v242 = vmul.f32 %v241, %v240
  %v243 = vmul.f32 0.5, %v242
  %v244 = vsub.f32 1.5, %v243
  %v245 = vmul.f32 %v240, %v244
  %vm246 = vweird.f32 %v238
  %vm247 = vweird.f32 %v240
  %vm248 = vmor %vm246, %vm247
  %v249 = vsel %vm248, %v240, %v245
  %v250 = vrsqrt.pop %v239
  %v251 = vmul.f32 %v250, %v239
  %v252 = vmul.f32 %v251, %v250
  %v253 = vmul.f32 0.5, %v252
  %v254 = vsub.f32 1.5, %v253
  %v255 = vmul.f32 %v250, %v254
  %vm256 = vweird.f32 %v239
  %vm257 = vweird.f32 %v250
  %vm258 = vmor %vm256, %vm257
  %v259 = vsel %vm258, %v250, %v255
  %v260 = vmul.f32 %v226, %v249
  %v261 = vmul.f32 %v227, %v259
  %v262 = vld [vmem:[%s14] sm:$0x1]
  %v264 = vperm.slane %v262, 0
  %v266 = vmul.f32 %v260, %v264
  %v267 = vmul.f32 %v261, %v264
  %v268 = vld [vmem:[%s15] sm:$0x1]
  %v270 = vperm.slane %v268, 0
  %v272 = vadd.f32 %v266, %v270
  %v273 = vadd.f32 %v267, %v270
  %v274 = vld [vmem:[%s16] sm:$0xff]
  %v275 = vld [vmem:[%s16 + $0x8] sm:$0xff]
  %v276 = vld [vmem:[%s16 + $0x10] sm:$0xff]
  %v277 = vld [vmem:[%s16 + $0x18] sm:$0xff]
  %v278 = vld [vmem:[%s16 + $0x20] sm:$0xff]
  %v279 = vld [vmem:[%s16 + $0x28] sm:$0xff]
  %v280 = vld [vmem:[%s16 + $0x30] sm:$0xff]
  %v281 = vld [vmem:[%s16 + $0x38] sm:$0xff]
  %v282 = vld [vmem:[%s17] sm:$0x3]
  %v284 = vperm.slane %v282, 0
  %v285 = vperm.slane %v282, 1
  %v289 = vsel %vm98, %v272, 0
  %v292 = vsel %vm98, %v273, 0
  %294 = vmatpush.msra.mxu0 0.0
  %295 = vmatpush.msra.mxu0 0.0
  %296 = vmatpush.msra.mxu0 0.0
  %297 = vmatpush.msra.mxu0 0.0
  %298 = vmatpush.msra.mxu0 0.0
  %299 = vmatpush.msra.mxu0 0.0
  %300 = vmatpush.msra.mxu0 0.0
  %301 = vmatpush.msra.mxu0 0.0
  %302 = vmatpush.msra.mxu0 0.0
  %303 = vmatpush.msra.mxu0 0.0
  %304 = vmatpush.msra.mxu0 0.0
  %305 = vmatpush.msra.mxu0 0.0
  %306 = vmatpush.msra.mxu0 %v280
  %307 = vmatpush.msra.mxu0 %v278
  %308 = vmatpush.msra.mxu0 %v276
  %309 = vmatpush.msra.mxu0 %v274
  %310 = vmatmul.f32.gmra.mxu0 %v289
  %v311 = vpop.f32.mrf.mxu0
  %v312 = vadd.f32 %v284, %v311
  %313 = vmatmul.f32.gmra.mxu0 %v292
  %v314 = vpop.f32.mrf.mxu0
  %v315 = vadd.f32 %v284, %v314
  %316 = vdwg.mxu0
  %317 = vmatpush.msra.mxu0 0.0
  %318 = vmatpush.msra.mxu0 0.0
  %319 = vmatpush.msra.mxu0 0.0
  %320 = vmatpush.msra.mxu0 0.0
  %321 = vmatpush.msra.mxu0 0.0
  %322 = vmatpush.msra.mxu0 0.0
  %323 = vmatpush.msra.mxu0 0.0
  %324 = vmatpush.msra.mxu0 0.0
  %325 = vmatpush.msra.mxu0 0.0
  %326 = vmatpush.msra.mxu0 0.0
  %327 = vmatpush.msra.mxu0 0.0
  %328 = vmatpush.msra.mxu0 0.0
  %329 = vmatpush.msra.mxu0 %v281
  %330 = vmatpush.msra.mxu0 %v279
  %331 = vmatpush.msra.mxu0 %v277
  %332 = vmatpush.msra.mxu0 %v275
  %333 = vmatmul.f32.gmra.mxu0 %v289
  %v334 = vpop.f32.mrf.mxu0
  %v335 = vadd.f32 %v285, %v334
  %336 = vmatmul.f32.gmra.mxu0 %v292
  %v337 = vpop.f32.mrf.mxu0
  %v338 = vadd.f32 %v285, %v337
  %339 = vdwg.mxu0
  %v340 = vld [vmem:[%s18] sm:$0xff]
  %v341 = vld [vmem:[%s18 + $0x8] sm:$0xff]
  %v342 = vld [vmem:[%s18 + $0x10] sm:$0xff]
  %v343 = vld [vmem:[%s18 + $0x18] sm:$0xff]
  %344 = vrot.lane.b32.xlu0 %v74, 96
  %v345 = vpop.permute.xlu0 %344
  %346 = vrot.lane.b32.xlu0 %v75, 96
  %v347 = vpop.permute.xlu0 %346
  %v348 = vsel %vm98, %v345, 0
  %v350 = vsel %vm98, %v347, 0
  %352 = vmatpush.msra.mxu0 0.0
  %353 = vmatpush.msra.mxu0 0.0
  %354 = vmatpush.msra.mxu0 0.0
  %355 = vmatpush.msra.mxu0 0.0
  %356 = vmatpush.msra.mxu0 0.0
  %357 = vmatpush.msra.mxu0 0.0
  %358 = vmatpush.msra.mxu0 0.0
  %359 = vmatpush.msra.mxu0 0.0
  %360 = vmatpush.msra.mxu0 0.0
  %361 = vmatpush.msra.mxu0 0.0
  %362 = vmatpush.msra.mxu0 0.0
  %363 = vmatpush.msra.mxu0 0.0
  %364 = vmatpush.msra.mxu0 %v343
  %365 = vmatpush.msra.mxu0 %v342
  %366 = vmatpush.msra.mxu0 %v341
  %367 = vmatpush.msra.mxu0 %v340
  %368 = vmatmul.f32.gmra.mxu0 %v348
  %v369 = vpop.f32.mrf.mxu0
  %v370 = vadd.f32 0.0, %v369
  %371 = vmatmul.f32.gmra.mxu0 %v350
  %v372 = vpop.f32.mrf.mxu0
  %v373 = vadd.f32 0.0, %v372
  %374 = vdwg.mxu0
  %375 = vrot.lane.b32.xlu0 %v74, 64
  %v376 = vpop.permute.xlu0 %375
  %377 = vrot.lane.b32.xlu0 %v75, 64
  %v378 = vpop.permute.xlu0 %377
  %v379 = vsel %vm98, %v376, 0
  %v381 = vsel %vm98, %v378, 0
  %383 = vmatpush.msra.mxu0 0.0
  %384 = vmatpush.msra.mxu0 0.0
  %385 = vmatpush.msra.mxu0 0.0
  %386 = vmatpush.msra.mxu0 0.0
  %387 = vmatpush.msra.mxu0 0.0
  %388 = vmatpush.msra.mxu0 0.0
  %389 = vmatpush.msra.mxu0 0.0
  %390 = vmatpush.msra.mxu0 0.0
  %391 = vmatpush.msra.mxu0 0.0
  %392 = vmatpush.msra.mxu0 0.0
  %393 = vmatpush.msra.mxu0 0.0
  %394 = vmatpush.msra.mxu0 0.0
  %395 = vmatpush.msra.mxu0 %v343
  %396 = vmatpush.msra.mxu0 %v342
  %397 = vmatpush.msra.mxu0 %v341
  %398 = vmatpush.msra.mxu0 %v340
  %399 = vmatmul.f32.gmra.mxu0 %v379
  %v400 = vpop.f32.mrf.mxu0
  %v401 = vadd.f32 0.0, %v400
  %402 = vmatmul.f32.gmra.mxu0 %v381
  %v403 = vpop.f32.mrf.mxu0
  %v404 = vadd.f32 0.0, %v403
  %405 = vdwg.mxu0
  %406 = vrot.lane.b32.xlu0 %v74, 32
  %v407 = vpop.permute.xlu0 %406
  %408 = vrot.lane.b32.xlu0 %v75, 32
  %v409 = vpop.permute.xlu0 %408
  %v410 = vsel %vm98, %v407, 0
  %v412 = vsel %vm98, %v409, 0
  %414 = vmatpush.msra.mxu0 0.0
  %415 = vmatpush.msra.mxu0 0.0
  %416 = vmatpush.msra.mxu0 0.0
  %417 = vmatpush.msra.mxu0 0.0
  %418 = vmatpush.msra.mxu0 0.0
  %419 = vmatpush.msra.mxu0 0.0
  %420 = vmatpush.msra.mxu0 0.0
  %421 = vmatpush.msra.mxu0 0.0
  %422 = vmatpush.msra.mxu0 0.0
  %423 = vmatpush.msra.mxu0 0.0
  %424 = vmatpush.msra.mxu0 0.0
  %425 = vmatpush.msra.mxu0 0.0
  %426 = vmatpush.msra.mxu0 %v343
  %427 = vmatpush.msra.mxu0 %v342
  %428 = vmatpush.msra.mxu0 %v341
  %429 = vmatpush.msra.mxu0 %v340
  %430 = vmatmul.f32.gmra.mxu0 %v410
  %v431 = vpop.f32.mrf.mxu0
  %v432 = vadd.f32 0.0, %v431
  %433 = vmatmul.f32.gmra.mxu0 %v412
  %v434 = vpop.f32.mrf.mxu0
  %v435 = vadd.f32 0.0, %v434
  %436 = vdwg.mxu0
  %439 = vrot.lane.b32.xlu0 %v370, 96
  %v440 = vpop.permute.xlu0 %439
  %441 = vrot.lane.b32.xlu0 %v373, 96
  %v442 = vpop.permute.xlu0 %441
  %v445 = vmul.f32 %v370, %v440
  %v446 = vmul.f32 %v373, %v442
  %449 = vrot.lane.b32.xlu0 %v401, 96
  %v450 = vpop.permute.xlu0 %449
  %451 = vrot.lane.b32.xlu0 %v404, 96
  %v452 = vpop.permute.xlu0 %451
  %v455 = vmul.f32 %v401, %v450
  %v456 = vmul.f32 %v404, %v452
  %v457 = vadd.f32 %v445, %v455
  %v458 = vadd.f32 %v446, %v456
  %461 = vrot.lane.b32.xlu0 %v432, 96
  %v462 = vpop.permute.xlu0 %461
  %463 = vrot.lane.b32.xlu0 %v435, 96
  %v464 = vpop.permute.xlu0 %463
  %v467 = vmul.f32 %v432, %v462
  %v468 = vmul.f32 %v435, %v464
  %v469 = vadd.f32 %v457, %v467
  %v470 = vadd.f32 %v458, %v468
  %v471 = vld [vmem:[%s2] sm:$0xff]
  %v472 = vld [vmem:[%s2 + $0x8] sm:$0xff]
  %v473 = vld [vmem:[%s2 + $0x10] sm:$0xff]
  %v474 = vld [vmem:[%s2 + $0x18] sm:$0xff]
  %v475 = vld [vmem:[%s2 + $0x20] sm:$0xff]
  %v476 = vld [vmem:[%s2 + $0x28] sm:$0xff]
  %v477 = vld [vmem:[%s2 + $0x30] sm:$0xff]
  %v478 = vld [vmem:[%s2 + $0x38] sm:$0xff]
  %v479 = vld [vmem:[%s2 + $0x40] sm:$0xff]
  %v480 = vld [vmem:[%s2 + $0x48] sm:$0xff]
  %v481 = vld [vmem:[%s2 + $0x50] sm:$0xff]
  %v482 = vld [vmem:[%s2 + $0x58] sm:$0xff]
  %v483 = vld [vmem:[%s2 + $0x60] sm:$0xff]
  %v484 = vld [vmem:[%s2 + $0x68] sm:$0xff]
  %v485 = vld [vmem:[%s19] sm:$0xff]
  %v486 = vld [vmem:[%s19 + $0x8] sm:$0xff]
  %v487 = vld [vmem:[%s20] sm:$0x1]
  %v489 = vperm.slane %v487, 0
  %vm491 = vcmask 130048
  %v493 = vsel %vm491, %v471, 0
  %v496 = vsel %vm491, %v472, 0
  %v499 = vsel %vm491, %v473, 0
  %v502 = vsel %vm491, %v474, 0
  %v505 = vsel %vm491, %v475, 0
  %v508 = vsel %vm491, %v476, 0
  %v511 = vsel %vm491, %v477, 0
  %v514 = vsel %vm491, %v478, 0
  %v517 = vsel %vm491, %v479, 0
  %v520 = vsel %vm491, %v480, 0
  %v523 = vsel %vm491, %v481, 0
  %v526 = vsel %vm491, %v482, 0
  %v529 = vsel %vm491, %v483, 0
  %v532 = vsel %vm491, %v484, 0
  %534 = vmatpush.msra.mxu0 0.0
  %535 = vmatpush.msra.mxu0 0.0
  %536 = vmatpush.msra.mxu0 0.0
  %537 = vmatpush.msra.mxu0 0.0
  %538 = vmatpush.msra.mxu0 0.0
  %539 = vmatpush.msra.mxu0 0.0
  %540 = vmatpush.msra.mxu0 0.0
  %541 = vmatpush.msra.mxu0 0.0
  %542 = vmatpush.msra.mxu0 0.0
  %543 = vmatpush.msra.mxu0 0.0
  %544 = vmatpush.msra.mxu0 0.0
  %545 = vmatpush.msra.mxu0 0.0
  %546 = vmatpush.msra.mxu0 0.0
  %547 = vmatpush.msra.mxu0 0.0
  %548 = vmatpush.msra.mxu0 %v486
  %549 = vmatpush.msra.mxu0 %v485
  %550 = vmatmul.f32.gmra.mxu0 %v493
  %v551 = vpop.f32.mrf.mxu0
  %v552 = vadd.f32 %v489, %v551
  %553 = vmatmul.f32.gmra.mxu0 %v496
  %v554 = vpop.f32.mrf.mxu0
  %v555 = vadd.f32 %v489, %v554
  %556 = vmatmul.f32.gmra.mxu0 %v499
  %v557 = vpop.f32.mrf.mxu0
  %v558 = vadd.f32 %v489, %v557
  %559 = vmatmul.f32.gmra.mxu0 %v502
  %v560 = vpop.f32.mrf.mxu0
  %v561 = vadd.f32 %v489, %v560
  %562 = vmatmul.f32.gmra.mxu0 %v505
  %v563 = vpop.f32.mrf.mxu0
  %v564 = vadd.f32 %v489, %v563
  %565 = vmatmul.f32.gmra.mxu0 %v508
  %v566 = vpop.f32.mrf.mxu0
  %v567 = vadd.f32 %v489, %v566
  %568 = vmatmul.f32.gmra.mxu0 %v511
  %v569 = vpop.f32.mrf.mxu0
  %v570 = vadd.f32 %v489, %v569
  %571 = vmatmul.f32.gmra.mxu0 %v514
  %v572 = vpop.f32.mrf.mxu0
  %v573 = vadd.f32 %v489, %v572
  %574 = vmatmul.f32.gmra.mxu0 %v517
  %v575 = vpop.f32.mrf.mxu0
  %v576 = vadd.f32 %v489, %v575
  %577 = vmatmul.f32.gmra.mxu0 %v520
  %v578 = vpop.f32.mrf.mxu0
  %v579 = vadd.f32 %v489, %v578
  %580 = vmatmul.f32.gmra.mxu0 %v523
  %v581 = vpop.f32.mrf.mxu0
  %v582 = vadd.f32 %v489, %v581
  %583 = vmatmul.f32.gmra.mxu0 %v526
  %v584 = vpop.f32.mrf.mxu0
  %v585 = vadd.f32 %v489, %v584
  %586 = vmatmul.f32.gmra.mxu0 %v529
  %v587 = vpop.f32.mrf.mxu0
  %v588 = vadd.f32 %v489, %v587
  %589 = vmatmul.f32.gmra.mxu0 %v532
  %v590 = vpop.f32.mrf.mxu0
  %v591 = vadd.f32 %v489, %v590
  %592 = vdwg.mxu0
  %v593 = vxor.u32 %v552, 2147483648
  %v594 = vxor.u32 %v555, 2147483648
  %v595 = vxor.u32 %v558, 2147483648
  %v596 = vxor.u32 %v561, 2147483648
  %v597 = vxor.u32 %v564, 2147483648
  %v598 = vxor.u32 %v567, 2147483648
  %v599 = vxor.u32 %v570, 2147483648
  %v600 = vxor.u32 %v573, 2147483648
  %v601 = vxor.u32 %v576, 2147483648
  %v602 = vxor.u32 %v579, 2147483648
  %v603 = vxor.u32 %v582, 2147483648
  %v604 = vxor.u32 %v585, 2147483648
  %v605 = vxor.u32 %v588, 2147483648
  %v606 = vxor.u32 %v591, 2147483648
  %v607 = vmul.f32 %v593, 1.442695
  %v608 = vpow.pop %v607
  %v609 = vmul.f32 %v594, 1.442695
  %v610 = vpow.pop %v609
  %v611 = vmul.f32 %v595, 1.442695
  %v612 = vpow.pop %v611
  %v613 = vmul.f32 %v596, 1.442695
  %v614 = vpow.pop %v613
  %v615 = vmul.f32 %v597, 1.442695
  %v616 = vpow.pop %v615
  %v617 = vmul.f32 %v598, 1.442695
  %v618 = vpow.pop %v617
  %v619 = vmul.f32 %v599, 1.442695
  %v620 = vpow.pop %v619
  %v621 = vmul.f32 %v600, 1.442695
  %v622 = vpow.pop %v621
  %v623 = vmul.f32 %v601, 1.442695
  %v624 = vpow.pop %v623
  %v625 = vmul.f32 %v602, 1.442695
  %v626 = vpow.pop %v625
  %v627 = vmul.f32 %v603, 1.442695
  %v628 = vpow.pop %v627
  %v629 = vmul.f32 %v604, 1.442695
  %v630 = vpow.pop %v629
  %v631 = vmul.f32 %v605, 1.442695
  %v632 = vpow.pop %v631
  %v633 = vmul.f32 %v606, 1.442695
  %v634 = vpow.pop %v633
  %v635 = vadd.f32 %v608, 1.0
  %v636 = vadd.f32 %v610, 1.0
  %v637 = vadd.f32 %v612, 1.0
  %v638 = vadd.f32 %v614, 1.0
  %v639 = vadd.f32 %v616, 1.0
  %v640 = vadd.f32 %v618, 1.0
  %v641 = vadd.f32 %v620, 1.0
  %v642 = vadd.f32 %v622, 1.0
  %v643 = vadd.f32 %v624, 1.0
  %v644 = vadd.f32 %v626, 1.0
  %v645 = vadd.f32 %v628, 1.0
  %v646 = vadd.f32 %v630, 1.0
  %v647 = vadd.f32 %v632, 1.0
  %v648 = vadd.f32 %v634, 1.0
  %v649 = vrcp.pop %v635
  %v650 = vmul.f32 %v635, %v649
  %v651 = vsub.f32 1.0, %v650
  %v652 = vmul.f32 %v649, %v651
  %v653 = vadd.f32 %v649, %v652
  %vm654 = vweird.f32 %v635
  %vm655 = vweird.f32 %v649
  %vm656 = vmor %vm654, %vm655
  %v657 = vsel %vm656, %v649, %v653
  %v658 = vand.u32 2147483647, %v635
  %vm659 = vcmp.eq.f32.partialorder %v658, 8.507059e+37
  %v660 = vand.u32 %v635, 2147483648
  %v661 = vor.u32 1.1754944e-38, %v660
  %v662 = vsel %vm659, %v661, %v657
  %v663 = vmul.f32 1.0, %v662
  %v664 = vrcp.pop %v636
  %v665 = vmul.f32 %v636, %v664
  %v666 = vsub.f32 1.0, %v665
  %v667 = vmul.f32 %v664, %v666
  %v668 = vadd.f32 %v664, %v667
  %vm669 = vweird.f32 %v636
  %vm670 = vweird.f32 %v664
  %vm671 = vmor %vm669, %vm670
  %v672 = vsel %vm671, %v664, %v668
  %v673 = vand.u32 2147483647, %v636
  %vm674 = vcmp.eq.f32.partialorder %v673, 8.507059e+37
  %v675 = vand.u32 %v636, 2147483648
  %v676 = vor.u32 1.1754944e-38, %v675
  %v677 = vsel %vm674, %v676, %v672
  %v678 = vmul.f32 1.0, %v677
  %v679 = vrcp.pop %v637
  %v680 = vmul.f32 %v637, %v679
  %v681 = vsub.f32 1.0, %v680
  %v682 = vmul.f32 %v679, %v681
  %v683 = vadd.f32 %v679, %v682
  %vm684 = vweird.f32 %v637
  %vm685 = vweird.f32 %v679
  %vm686 = vmor %vm684, %vm685
  %v687 = vsel %vm686, %v679, %v683
  %v688 = vand.u32 2147483647, %v637
  %vm689 = vcmp.eq.f32.partialorder %v688, 8.507059e+37
  %v690 = vand.u32 %v637, 2147483648
  %v691 = vor.u32 1.1754944e-38, %v690
  %v692 = vsel %vm689, %v691, %v687
  %v693 = vmul.f32 1.0, %v692
  %v694 = vrcp.pop %v638
  %v695 = vmul.f32 %v638, %v694
  %v696 = vsub.f32 1.0, %v695
  %v697 = vmul.f32 %v694, %v696
  %v698 = vadd.f32 %v694, %v697
  %vm699 = vweird.f32 %v638
  %vm700 = vweird.f32 %v694
  %vm701 = vmor %vm699, %vm700
  %v702 = vsel %vm701, %v694, %v698
  %v703 = vand.u32 2147483647, %v638
  %vm704 = vcmp.eq.f32.partialorder %v703, 8.507059e+37
  %v705 = vand.u32 %v638, 2147483648
  %v706 = vor.u32 1.1754944e-38, %v705
  %v707 = vsel %vm704, %v706, %v702
  %v708 = vmul.f32 1.0, %v707
  %v709 = vrcp.pop %v639
  %v710 = vmul.f32 %v639, %v709
  %v711 = vsub.f32 1.0, %v710
  %v712 = vmul.f32 %v709, %v711
  %v713 = vadd.f32 %v709, %v712
  %vm714 = vweird.f32 %v639
  %vm715 = vweird.f32 %v709
  %vm716 = vmor %vm714, %vm715
  %v717 = vsel %vm716, %v709, %v713
  %v718 = vand.u32 2147483647, %v639
  %vm719 = vcmp.eq.f32.partialorder %v718, 8.507059e+37
  %v720 = vand.u32 %v639, 2147483648
  %v721 = vor.u32 1.1754944e-38, %v720
  %v722 = vsel %vm719, %v721, %v717
  %v723 = vmul.f32 1.0, %v722
  %v724 = vrcp.pop %v640
  %v725 = vmul.f32 %v640, %v724
  %v726 = vsub.f32 1.0, %v725
  %v727 = vmul.f32 %v724, %v726
  %v728 = vadd.f32 %v724, %v727
  %vm729 = vweird.f32 %v640
  %vm730 = vweird.f32 %v724
  %vm731 = vmor %vm729, %vm730
  %v732 = vsel %vm731, %v724, %v728
  %v733 = vand.u32 2147483647, %v640
  %vm734 = vcmp.eq.f32.partialorder %v733, 8.507059e+37
  %v735 = vand.u32 %v640, 2147483648
  %v736 = vor.u32 1.1754944e-38, %v735
  %v737 = vsel %vm734, %v736, %v732
  %v738 = vmul.f32 1.0, %v737
  %v739 = vrcp.pop %v641
  %v740 = vmul.f32 %v641, %v739
  %v741 = vsub.f32 1.0, %v740
  %v742 = vmul.f32 %v739, %v741
  %v743 = vadd.f32 %v739, %v742
  %vm744 = vweird.f32 %v641
  %vm745 = vweird.f32 %v739
  %vm746 = vmor %vm744, %vm745
  %v747 = vsel %vm746, %v739, %v743
  %v748 = vand.u32 2147483647, %v641
  %vm749 = vcmp.eq.f32.partialorder %v748, 8.507059e+37
  %v750 = vand.u32 %v641, 2147483648
  %v751 = vor.u32 1.1754944e-38, %v750
  %v752 = vsel %vm749, %v751, %v747
  %v753 = vmul.f32 1.0, %v752
  %v754 = vrcp.pop %v642
  %v755 = vmul.f32 %v642, %v754
  %v756 = vsub.f32 1.0, %v755
  %v757 = vmul.f32 %v754, %v756
  %v758 = vadd.f32 %v754, %v757
  %vm759 = vweird.f32 %v642
  %vm760 = vweird.f32 %v754
  %vm761 = vmor %vm759, %vm760
  %v762 = vsel %vm761, %v754, %v758
  %v763 = vand.u32 2147483647, %v642
  %vm764 = vcmp.eq.f32.partialorder %v763, 8.507059e+37
  %v765 = vand.u32 %v642, 2147483648
  %v766 = vor.u32 1.1754944e-38, %v765
  %v767 = vsel %vm764, %v766, %v762
  %v768 = vmul.f32 1.0, %v767
  %v769 = vrcp.pop %v643
  %v770 = vmul.f32 %v643, %v769
  %v771 = vsub.f32 1.0, %v770
  %v772 = vmul.f32 %v769, %v771
  %v773 = vadd.f32 %v769, %v772
  %vm774 = vweird.f32 %v643
  %vm775 = vweird.f32 %v769
  %vm776 = vmor %vm774, %vm775
  %v777 = vsel %vm776, %v769, %v773
  %v778 = vand.u32 2147483647, %v643
  %vm779 = vcmp.eq.f32.partialorder %v778, 8.507059e+37
  %v780 = vand.u32 %v643, 2147483648
  %v781 = vor.u32 1.1754944e-38, %v780
  %v782 = vsel %vm779, %v781, %v777
  %v783 = vmul.f32 1.0, %v782
  %v784 = vrcp.pop %v644
  %v785 = vmul.f32 %v644, %v784
  %v786 = vsub.f32 1.0, %v785
  %v787 = vmul.f32 %v784, %v786
  %v788 = vadd.f32 %v784, %v787
  %vm789 = vweird.f32 %v644
  %vm790 = vweird.f32 %v784
  %vm791 = vmor %vm789, %vm790
  %v792 = vsel %vm791, %v784, %v788
  %v793 = vand.u32 2147483647, %v644
  %vm794 = vcmp.eq.f32.partialorder %v793, 8.507059e+37
  %v795 = vand.u32 %v644, 2147483648
  %v796 = vor.u32 1.1754944e-38, %v795
  %v797 = vsel %vm794, %v796, %v792
  %v798 = vmul.f32 1.0, %v797
  %v799 = vrcp.pop %v645
  %v800 = vmul.f32 %v645, %v799
  %v801 = vsub.f32 1.0, %v800
  %v802 = vmul.f32 %v799, %v801
  %v803 = vadd.f32 %v799, %v802
  %vm804 = vweird.f32 %v645
  %vm805 = vweird.f32 %v799
  %vm806 = vmor %vm804, %vm805
  %v807 = vsel %vm806, %v799, %v803
  %v808 = vand.u32 2147483647, %v645
  %vm809 = vcmp.eq.f32.partialorder %v808, 8.507059e+37
  %v810 = vand.u32 %v645, 2147483648
  %v811 = vor.u32 1.1754944e-38, %v810
  %v812 = vsel %vm809, %v811, %v807
  %v813 = vmul.f32 1.0, %v812
  %v814 = vrcp.pop %v646
  %v815 = vmul.f32 %v646, %v814
  %v816 = vsub.f32 1.0, %v815
  %v817 = vmul.f32 %v814, %v816
  %v818 = vadd.f32 %v814, %v817
  %vm819 = vweird.f32 %v646
  %vm820 = vweird.f32 %v814
  %vm821 = vmor %vm819, %vm820
  %v822 = vsel %vm821, %v814, %v818
  %v823 = vand.u32 2147483647, %v646
  %vm824 = vcmp.eq.f32.partialorder %v823, 8.507059e+37
  %v825 = vand.u32 %v646, 2147483648
  %v826 = vor.u32 1.1754944e-38, %v825
  %v827 = vsel %vm824, %v826, %v822
  %v828 = vmul.f32 1.0, %v827
  %v829 = vrcp.pop %v647
  %v830 = vmul.f32 %v647, %v829
  %v831 = vsub.f32 1.0, %v830
  %v832 = vmul.f32 %v829, %v831
  %v833 = vadd.f32 %v829, %v832
  %vm834 = vweird.f32 %v647
  %vm835 = vweird.f32 %v829
  %vm836 = vmor %vm834, %vm835
  %v837 = vsel %vm836, %v829, %v833
  %v838 = vand.u32 2147483647, %v647
  %vm839 = vcmp.eq.f32.partialorder %v838, 8.507059e+37
  %v840 = vand.u32 %v647, 2147483648
  %v841 = vor.u32 1.1754944e-38, %v840
  %v842 = vsel %vm839, %v841, %v837
  %v843 = vmul.f32 1.0, %v842
  %v844 = vrcp.pop %v648
  %v845 = vmul.f32 %v648, %v844
  %v846 = vsub.f32 1.0, %v845
  %v847 = vmul.f32 %v844, %v846
  %v848 = vadd.f32 %v844, %v847
  %vm849 = vweird.f32 %v648
  %vm850 = vweird.f32 %v844
  %vm851 = vmor %vm849, %vm850
  %v852 = vsel %vm851, %v844, %v848
  %v853 = vand.u32 2147483647, %v648
  %vm854 = vcmp.eq.f32.partialorder %v853, 8.507059e+37
  %v855 = vand.u32 %v648, 2147483648
  %v856 = vor.u32 1.1754944e-38, %v855
  %v857 = vsel %vm854, %v856, %v852
  %v858 = vmul.f32 1.0, %v857
  %v859 = vmul.f32 %v552, %v663
  %v860 = vmul.f32 %v555, %v678
  %v861 = vmul.f32 %v558, %v693
  %v862 = vmul.f32 %v561, %v708
  %v863 = vmul.f32 %v564, %v723
  %v864 = vmul.f32 %v567, %v738
  %v865 = vmul.f32 %v570, %v753
  %v866 = vmul.f32 %v573, %v768
  %v867 = vmul.f32 %v576, %v783
  %v868 = vmul.f32 %v579, %v798
  %v869 = vmul.f32 %v582, %v813
  %v870 = vmul.f32 %v585, %v828
  %v871 = vmul.f32 %v588, %v843
  %v872 = vmul.f32 %v591, %v858
  %875 = vrot.lane.b32.xlu0 %v312, 96
  %v876 = vpop.permute.xlu0 %875
  %877 = vrot.lane.b32.xlu0 %v315, 96
  %v878 = vpop.permute.xlu0 %877
  %883 = vrot.lane.b32.xlu0 %v335, 96
  %v884 = vpop.permute.xlu0 %883
  %885 = vrot.lane.b32.xlu0 %v338, 96
  %v886 = vpop.permute.xlu0 %885
  %vm887 = vcmask 785408
  %v888 = vsel %vm887, %v876, %v884
  %v889 = vsel %vm887, %v878, %v886
  %v894 = vsel %vm98, %v876, %v888
  %v895 = vsel %vm98, %v878, %v889
  %v896 = vld [vmem:[%s5] sm:$0xff]
  %v897 = vld [vmem:[%s5 + $0x8] sm:$0xff]
  %v898 = vld [vmem:[%s5 + $0x10] sm:$0xff]
  %v899 = vld [vmem:[%s5 + $0x18] sm:$0xff]
  %v900 = vld [vmem:[%s5 + $0x20] sm:$0xff]
  %v901 = vld [vmem:[%s5 + $0x28] sm:$0xff]
  %v902 = vld [vmem:[%s5 + $0x30] sm:$0xff]
  %v903 = vld [vmem:[%s5 + $0x38] sm:$0xff]
  %v904 = vld [vmem:[%s5 + $0x40] sm:$0xff]
  %v905 = vld [vmem:[%s5 + $0x48] sm:$0xff]
  %v906 = vld [vmem:[%s5 + $0x50] sm:$0xff]
  %v907 = vld [vmem:[%s5 + $0x58] sm:$0xff]
  %v908 = vld [vmem:[%s5 + $0x60] sm:$0xff]
  %v909 = vld [vmem:[%s5 + $0x68] sm:$0xff]
  %v911 = vsel %vm491, %v896, 0
  %v914 = vsel %vm491, %v897, 0
  %v917 = vsel %vm491, %v898, 0
  %v920 = vsel %vm491, %v899, 0
  %v923 = vsel %vm491, %v900, 0
  %v926 = vsel %vm491, %v901, 0
  %v929 = vsel %vm491, %v902, 0
  %v932 = vsel %vm491, %v903, 0
  %v935 = vsel %vm491, %v904, 0
  %v938 = vsel %vm491, %v905, 0
  %v941 = vsel %vm491, %v906, 0
  %v944 = vsel %vm491, %v907, 0
  %v947 = vsel %vm491, %v908, 0
  %v950 = vsel %vm491, %v909, 0
  %952 = vmatpush.msra.mxu0 0.0
  %953 = vmatpush.msra.mxu0 0.0
  %954 = vmatpush.msra.mxu0 0.0
  %955 = vmatpush.msra.mxu0 0.0
  %956 = vmatpush.msra.mxu0 0.0
  %957 = vmatpush.msra.mxu0 0.0
  %958 = vmatpush.msra.mxu0 0.0
  %959 = vmatpush.msra.mxu0 0.0
  %960 = vmatpush.msra.mxu0 0.0
  %961 = vmatpush.msra.mxu0 0.0
  %962 = vmatpush.msra.mxu0 0.0
  %963 = vmatpush.msra.mxu0 0.0
  %964 = vmatpush.msra.mxu0 0.0
  %965 = vmatpush.msra.mxu0 0.0
  %966 = vmatpush.msra.mxu0 %v895
  %967 = vmatpush.msra.mxu0 %v894
  %968 = vmatmul.f32.gmra.mxu0 %v911
  %v969 = vpop.f32.mrf.mxu0
  %v970 = vadd.f32 0.0, %v969
  %971 = vmatmul.f32.gmra.mxu0 %v914
  %v972 = vpop.f32.mrf.mxu0
  %v973 = vadd.f32 0.0, %v972
  %974 = vmatmul.f32.gmra.mxu0 %v917
  %v975 = vpop.f32.mrf.mxu0
  %v976 = vadd.f32 0.0, %v975
  %977 = vmatmul.f32.gmra.mxu0 %v920
  %v978 = vpop.f32.mrf.mxu0
  %v979 = vadd.f32 0.0, %v978
  %980 = vmatmul.f32.gmra.mxu0 %v923
  %v981 = vpop.f32.mrf.mxu0
  %v982 = vadd.f32 0.0, %v981
  %983 = vmatmul.f32.gmra.mxu0 %v926
  %v984 = vpop.f32.mrf.mxu0
  %v985 = vadd.f32 0.0, %v984
  %986 = vmatmul.f32.gmra.mxu0 %v929
  %v987 = vpop.f32.mrf.mxu0
  %v988 = vadd.f32 0.0, %v987
  %989 = vmatmul.f32.gmra.mxu0 %v932
  %v990 = vpop.f32.mrf.mxu0
  %v991 = vadd.f32 0.0, %v990
  %992 = vmatmul.f32.gmra.mxu0 %v935
  %v993 = vpop.f32.mrf.mxu0
  %v994 = vadd.f32 0.0, %v993
  %995 = vmatmul.f32.gmra.mxu0 %v938
  %v996 = vpop.f32.mrf.mxu0
  %v997 = vadd.f32 0.0, %v996
  %998 = vmatmul.f32.gmra.mxu0 %v941
  %v999 = vpop.f32.mrf.mxu0
  %v1000 = vadd.f32 0.0, %v999
  %1001 = vmatmul.f32.gmra.mxu0 %v944
  %v1002 = vpop.f32.mrf.mxu0
  %v1003 = vadd.f32 0.0, %v1002
  %1004 = vmatmul.f32.gmra.mxu0 %v947
  %v1005 = vpop.f32.mrf.mxu0
  %v1006 = vadd.f32 0.0, %v1005
  %1007 = vmatmul.f32.gmra.mxu0 %v950
  %v1008 = vpop.f32.mrf.mxu0
  %v1009 = vadd.f32 0.0, %v1008
  %1010 = vdwg.mxu0
  %1011 = vmatpush.msra.mxu0 0.0
  %1012 = vmatpush.msra.mxu0 0.0
  %1013 = vmatpush.msra.mxu0 0.0
  %1014 = vmatpush.msra.mxu0 0.0
  %1015 = vmatpush.msra.mxu0 0.0
  %1016 = vmatpush.msra.mxu0 0.0
  %1017 = vmatpush.msra.mxu0 0.0
  %1018 = vmatpush.msra.mxu0 0.0
  %1019 = vmatpush.msra.mxu0 0.0
  %1020 = vmatpush.msra.mxu0 0.0
  %1021 = vmatpush.msra.mxu0 0.0
  %1022 = vmatpush.msra.mxu0 0.0
  %1023 = vmatpush.msra.mxu0 0.0
  %1024 = vmatpush.msra.mxu0 0.0
  %1025 = vmatpush.msra.mxu0 %v347
  %1026 = vmatpush.msra.mxu0 %v345
  %1027 = vmatmul.f32.gmra.mxu0 %v911
  %v1028 = vpop.f32.mrf.mxu0
  %v1029 = vadd.f32 0.0, %v1028
  %1030 = vmatmul.f32.gmra.mxu0 %v914
  %v1031 = vpop.f32.mrf.mxu0
  %v1032 = vadd.f32 0.0, %v1031
  %1033 = vmatmul.f32.gmra.mxu0 %v917
  %v1034 = vpop.f32.mrf.mxu0
  %v1035 = vadd.f32 0.0, %v1034
  %1036 = vmatmul.f32.gmra.mxu0 %v920
  %v1037 = vpop.f32.mrf.mxu0
  %v1038 = vadd.f32 0.0, %v1037
  %1039 = vmatmul.f32.gmra.mxu0 %v923
  %v1040 = vpop.f32.mrf.mxu0
  %v1041 = vadd.f32 0.0, %v1040
  %1042 = vmatmul.f32.gmra.mxu0 %v926
  %v1043 = vpop.f32.mrf.mxu0
  %v1044 = vadd.f32 0.0, %v1043
  %1045 = vmatmul.f32.gmra.mxu0 %v929
  %v1046 = vpop.f32.mrf.mxu0
  %v1047 = vadd.f32 0.0, %v1046
  %1048 = vmatmul.f32.gmra.mxu0 %v932
  %v1049 = vpop.f32.mrf.mxu0
  %v1050 = vadd.f32 0.0, %v1049
  %1051 = vmatmul.f32.gmra.mxu0 %v935
  %v1052 = vpop.f32.mrf.mxu0
  %v1053 = vadd.f32 0.0, %v1052
  %1054 = vmatmul.f32.gmra.mxu0 %v938
  %v1055 = vpop.f32.mrf.mxu0
  %v1056 = vadd.f32 0.0, %v1055
  %1057 = vmatmul.f32.gmra.mxu0 %v941
  %v1058 = vpop.f32.mrf.mxu0
  %v1059 = vadd.f32 0.0, %v1058
  %1060 = vmatmul.f32.gmra.mxu0 %v944
  %v1061 = vpop.f32.mrf.mxu0
  %v1062 = vadd.f32 0.0, %v1061
  %1063 = vmatmul.f32.gmra.mxu0 %v947
  %v1064 = vpop.f32.mrf.mxu0
  %v1065 = vadd.f32 0.0, %v1064
  %1066 = vmatmul.f32.gmra.mxu0 %v950
  %v1067 = vpop.f32.mrf.mxu0
  %v1068 = vadd.f32 0.0, %v1067
  %1069 = vdwg.mxu0
  %v1070 = vld [vmem:[%s6] sm:$0xff]
  %v1071 = vld [vmem:[%s6 + $0x8] sm:$0xff]
  %v1072 = vld [vmem:[%s6 + $0x10] sm:$0xff]
  %v1073 = vld [vmem:[%s6 + $0x18] sm:$0xff]
  %v1074 = vld [vmem:[%s6 + $0x20] sm:$0xff]
  %v1075 = vld [vmem:[%s6 + $0x28] sm:$0xff]
  %v1076 = vld [vmem:[%s6 + $0x30] sm:$0xff]
  %v1077 = vld [vmem:[%s6 + $0x38] sm:$0xff]
  %v1078 = vld [vmem:[%s6 + $0x40] sm:$0xff]
  %v1079 = vld [vmem:[%s6 + $0x48] sm:$0xff]
  %v1080 = vld [vmem:[%s6 + $0x50] sm:$0xff]
  %v1081 = vld [vmem:[%s6 + $0x58] sm:$0xff]
  %v1082 = vld [vmem:[%s6 + $0x60] sm:$0xff]
  %v1083 = vld [vmem:[%s6 + $0x68] sm:$0xff]
  %v1085 = vsel %vm491, %v1070, 0
  %v1088 = vsel %vm491, %v1071, 0
  %v1091 = vsel %vm491, %v1072, 0
  %v1094 = vsel %vm491, %v1073, 0
  %v1097 = vsel %vm491, %v1074, 0
  %v1100 = vsel %vm491, %v1075, 0
  %v1103 = vsel %vm491, %v1076, 0
  %v1106 = vsel %vm491, %v1077, 0
  %v1109 = vsel %vm491, %v1078, 0
  %v1112 = vsel %vm491, %v1079, 0
  %v1115 = vsel %vm491, %v1080, 0
  %v1118 = vsel %vm491, %v1081, 0
  %v1121 = vsel %vm491, %v1082, 0
  %v1124 = vsel %vm491, %v1083, 0
  %1126 = vmatpush.msra.mxu0 0.0
  %1127 = vmatpush.msra.mxu0 0.0
  %1128 = vmatpush.msra.mxu0 0.0
  %1129 = vmatpush.msra.mxu0 0.0
  %1130 = vmatpush.msra.mxu0 0.0
  %1131 = vmatpush.msra.mxu0 0.0
  %1132 = vmatpush.msra.mxu0 0.0
  %1133 = vmatpush.msra.mxu0 0.0
  %1134 = vmatpush.msra.mxu0 0.0
  %1135 = vmatpush.msra.mxu0 0.0
  %1136 = vmatpush.msra.mxu0 0.0
  %1137 = vmatpush.msra.mxu0 0.0
  %1138 = vmatpush.msra.mxu0 0.0
  %1139 = vmatpush.msra.mxu0 0.0
  %1140 = vmatpush.msra.mxu0 %v315
  %1141 = vmatpush.msra.mxu0 %v312
  %1142 = vmatmul.f32.gmra.mxu0 %v1085
  %v1143 = vpop.f32.mrf.mxu0
  %v1144 = vadd.f32 0.0, %v1143
  %1145 = vmatmul.f32.gmra.mxu0 %v1088
  %v1146 = vpop.f32.mrf.mxu0
  %v1147 = vadd.f32 0.0, %v1146
  %1148 = vmatmul.f32.gmra.mxu0 %v1091
  %v1149 = vpop.f32.mrf.mxu0
  %v1150 = vadd.f32 0.0, %v1149
  %1151 = vmatmul.f32.gmra.mxu0 %v1094
  %v1152 = vpop.f32.mrf.mxu0
  %v1153 = vadd.f32 0.0, %v1152
  %1154 = vmatmul.f32.gmra.mxu0 %v1097
  %v1155 = vpop.f32.mrf.mxu0
  %v1156 = vadd.f32 0.0, %v1155
  %1157 = vmatmul.f32.gmra.mxu0 %v1100
  %v1158 = vpop.f32.mrf.mxu0
  %v1159 = vadd.f32 0.0, %v1158
  %1160 = vmatmul.f32.gmra.mxu0 %v1103
  %v1161 = vpop.f32.mrf.mxu0
  %v1162 = vadd.f32 0.0, %v1161
  %1163 = vmatmul.f32.gmra.mxu0 %v1106
  %v1164 = vpop.f32.mrf.mxu0
  %v1165 = vadd.f32 0.0, %v1164
  %1166 = vmatmul.f32.gmra.mxu0 %v1109
  %v1167 = vpop.f32.mrf.mxu0
  %v1168 = vadd.f32 0.0, %v1167
  %1169 = vmatmul.f32.gmra.mxu0 %v1112
  %v1170 = vpop.f32.mrf.mxu0
  %v1171 = vadd.f32 0.0, %v1170
  %1172 = vmatmul.f32.gmra.mxu0 %v1115
  %v1173 = vpop.f32.mrf.mxu0
  %v1174 = vadd.f32 0.0, %v1173
  %1175 = vmatmul.f32.gmra.mxu0 %v1118
  %v1176 = vpop.f32.mrf.mxu0
  %v1177 = vadd.f32 0.0, %v1176
  %1178 = vmatmul.f32.gmra.mxu0 %v1121
  %v1179 = vpop.f32.mrf.mxu0
  %v1180 = vadd.f32 0.0, %v1179
  %1181 = vmatmul.f32.gmra.mxu0 %v1124
  %v1182 = vpop.f32.mrf.mxu0
  %v1183 = vadd.f32 0.0, %v1182
  %1184 = vdwg.mxu0
  %v1185 = vmul.f32 %v1144, %v970
  %v1186 = vmul.f32 %v1147, %v973
  %v1187 = vmul.f32 %v1150, %v976
  %v1188 = vmul.f32 %v1153, %v979
  %v1189 = vmul.f32 %v1156, %v982
  %v1190 = vmul.f32 %v1159, %v985
  %v1191 = vmul.f32 %v1162, %v988
  %v1192 = vmul.f32 %v1165, %v991
  %v1193 = vmul.f32 %v1168, %v994
  %v1194 = vmul.f32 %v1171, %v997
  %v1195 = vmul.f32 %v1174, %v1000
  %v1196 = vmul.f32 %v1177, %v1003
  %v1197 = vmul.f32 %v1180, %v1006
  %v1198 = vmul.f32 %v1183, %v1009
  %v1199 = vmul.f32 %v1185, %v859
  %v1200 = vmul.f32 %v1186, %v860
  %v1201 = vmul.f32 %v1187, %v861
  %v1202 = vmul.f32 %v1188, %v862
  %v1203 = vmul.f32 %v1189, %v863
  %v1204 = vmul.f32 %v1190, %v864
  %v1205 = vmul.f32 %v1191, %v865
  %v1206 = vmul.f32 %v1192, %v866
  %v1207 = vmul.f32 %v1193, %v867
  %v1208 = vmul.f32 %v1194, %v868
  %v1209 = vmul.f32 %v1195, %v869
  %v1210 = vmul.f32 %v1196, %v870
  %v1211 = vmul.f32 %v1197, %v871
  %v1212 = vmul.f32 %v1198, %v872
  %v1213 = vld [vmem:[%s8] sm:$0xff]
  %v1214 = vld [vmem:[%s8 + $0x8] sm:$0xff]
  %v1215 = vld [vmem:[%s8 + $0x10] sm:$0xff]
  %v1216 = vld [vmem:[%s8 + $0x18] sm:$0xff]
  %v1218 = vsel %vm98, %v1199, 0
  %v1221 = vsel %vm98, %v1200, 0
  %v1224 = vsel %vm98, %v1201, 0
  %v1227 = vsel %vm98, %v1202, 0
  %v1230 = vsel %vm98, %v1203, 0
  %v1233 = vsel %vm98, %v1204, 0
  %v1236 = vsel %vm98, %v1205, 0
  %v1239 = vsel %vm98, %v1206, 0
  %v1242 = vsel %vm98, %v1207, 0
  %v1245 = vsel %vm98, %v1208, 0
  %v1248 = vsel %vm98, %v1209, 0
  %v1251 = vsel %vm98, %v1210, 0
  %v1254 = vsel %vm98, %v1211, 0
  %v1257 = vsel %vm98, %v1212, 0
  %1259 = vmatpush.msra.mxu0 0.0
  %1260 = vmatpush.msra.mxu0 0.0
  %1261 = vmatpush.msra.mxu0 0.0
  %1262 = vmatpush.msra.mxu0 0.0
  %1263 = vmatpush.msra.mxu0 0.0
  %1264 = vmatpush.msra.mxu0 0.0
  %1265 = vmatpush.msra.mxu0 0.0
  %1266 = vmatpush.msra.mxu0 0.0
  %1267 = vmatpush.msra.mxu0 0.0
  %1268 = vmatpush.msra.mxu0 0.0
  %1269 = vmatpush.msra.mxu0 0.0
  %1270 = vmatpush.msra.mxu0 0.0
  %1271 = vmatpush.msra.mxu0 %v1216
  %1272 = vmatpush.msra.mxu0 %v1215
  %1273 = vmatpush.msra.mxu0 %v1214
  %1274 = vmatpush.msra.mxu0 %v1213
  %1275 = vmatmul.f32.gmra.mxu0 %v1218
  %v1276 = vpop.f32.mrf.mxu0
  %v1277 = vadd.f32 0.0, %v1276
  %1278 = vmatmul.f32.gmra.mxu0 %v1221
  %v1279 = vpop.f32.mrf.mxu0
  %v1280 = vadd.f32 0.0, %v1279
  %1281 = vmatmul.f32.gmra.mxu0 %v1224
  %v1282 = vpop.f32.mrf.mxu0
  %v1283 = vadd.f32 0.0, %v1282
  %1284 = vmatmul.f32.gmra.mxu0 %v1227
  %v1285 = vpop.f32.mrf.mxu0
  %v1286 = vadd.f32 0.0, %v1285
  %1287 = vmatmul.f32.gmra.mxu0 %v1230
  %v1288 = vpop.f32.mrf.mxu0
  %v1289 = vadd.f32 0.0, %v1288
  %1290 = vmatmul.f32.gmra.mxu0 %v1233
  %v1291 = vpop.f32.mrf.mxu0
  %v1292 = vadd.f32 0.0, %v1291
  %1293 = vmatmul.f32.gmra.mxu0 %v1236
  %v1294 = vpop.f32.mrf.mxu0
  %v1295 = vadd.f32 0.0, %v1294
  %1296 = vmatmul.f32.gmra.mxu0 %v1239
  %v1297 = vpop.f32.mrf.mxu0
  %v1298 = vadd.f32 0.0, %v1297
  %1299 = vmatmul.f32.gmra.mxu0 %v1242
  %v1300 = vpop.f32.mrf.mxu0
  %v1301 = vadd.f32 0.0, %v1300
  %1302 = vmatmul.f32.gmra.mxu0 %v1245
  %v1303 = vpop.f32.mrf.mxu0
  %v1304 = vadd.f32 0.0, %v1303
  %1305 = vmatmul.f32.gmra.mxu0 %v1248
  %v1306 = vpop.f32.mrf.mxu0
  %v1307 = vadd.f32 0.0, %v1306
  %1308 = vmatmul.f32.gmra.mxu0 %v1251
  %v1309 = vpop.f32.mrf.mxu0
  %v1310 = vadd.f32 0.0, %v1309
  %1311 = vmatmul.f32.gmra.mxu0 %v1254
  %v1312 = vpop.f32.mrf.mxu0
  %v1313 = vadd.f32 0.0, %v1312
  %1314 = vmatmul.f32.gmra.mxu0 %v1257
  %v1315 = vpop.f32.mrf.mxu0
  %v1316 = vadd.f32 0.0, %v1315
  %1317 = vdwg.mxu0
  %v1318 = vxor.u32 %v1277, 2147483648
  %v1319 = vxor.u32 %v1280, 2147483648
  %v1320 = vxor.u32 %v1283, 2147483648
  %v1321 = vxor.u32 %v1286, 2147483648
  %v1322 = vxor.u32 %v1289, 2147483648
  %v1323 = vxor.u32 %v1292, 2147483648
  %v1324 = vxor.u32 %v1295, 2147483648
  %v1325 = vxor.u32 %v1298, 2147483648
  %v1326 = vxor.u32 %v1301, 2147483648
  %v1327 = vxor.u32 %v1304, 2147483648
  %v1328 = vxor.u32 %v1307, 2147483648
  %v1329 = vxor.u32 %v1310, 2147483648
  %v1330 = vxor.u32 %v1313, 2147483648
  %v1331 = vxor.u32 %v1316, 2147483648
  %v1332 = vmul.f32 %v1318, 1.442695
  %v1333 = vpow.pop %v1332
  %v1334 = vmul.f32 %v1319, 1.442695
  %v1335 = vpow.pop %v1334
  %v1336 = vmul.f32 %v1320, 1.442695
  %v1337 = vpow.pop %v1336
  %v1338 = vmul.f32 %v1321, 1.442695
  %v1339 = vpow.pop %v1338
  %v1340 = vmul.f32 %v1322, 1.442695
  %v1341 = vpow.pop %v1340
  %v1342 = vmul.f32 %v1323, 1.442695
  %v1343 = vpow.pop %v1342
  %v1344 = vmul.f32 %v1324, 1.442695
  %v1345 = vpow.pop %v1344
  %v1346 = vmul.f32 %v1325, 1.442695
  %v1347 = vpow.pop %v1346
  %v1348 = vmul.f32 %v1326, 1.442695
  %v1349 = vpow.pop %v1348
  %v1350 = vmul.f32 %v1327, 1.442695
  %v1351 = vpow.pop %v1350
  %v1352 = vmul.f32 %v1328, 1.442695
  %v1353 = vpow.pop %v1352
  %v1354 = vmul.f32 %v1329, 1.442695
  %v1355 = vpow.pop %v1354
  %v1356 = vmul.f32 %v1330, 1.442695
  %v1357 = vpow.pop %v1356
  %v1358 = vmul.f32 %v1331, 1.442695
  %v1359 = vpow.pop %v1358
  %v1360 = vadd.f32 %v1333, 1.0
  %v1361 = vadd.f32 %v1335, 1.0
  %v1362 = vadd.f32 %v1337, 1.0
  %v1363 = vadd.f32 %v1339, 1.0
  %v1364 = vadd.f32 %v1341, 1.0
  %v1365 = vadd.f32 %v1343, 1.0
  %v1366 = vadd.f32 %v1345, 1.0
  %v1367 = vadd.f32 %v1347, 1.0
  %v1368 = vadd.f32 %v1349, 1.0
  %v1369 = vadd.f32 %v1351, 1.0
  %v1370 = vadd.f32 %v1353, 1.0
  %v1371 = vadd.f32 %v1355, 1.0
  %v1372 = vadd.f32 %v1357, 1.0
  %v1373 = vadd.f32 %v1359, 1.0
  %v1374 = vrcp.pop %v1360
  %v1375 = vmul.f32 %v1360, %v1374
  %v1376 = vsub.f32 1.0, %v1375
  %v1377 = vmul.f32 %v1374, %v1376
  %v1378 = vadd.f32 %v1374, %v1377
  %vm1379 = vweird.f32 %v1360
  %vm1380 = vweird.f32 %v1374
  %vm1381 = vmor %vm1379, %vm1380
  %v1382 = vsel %vm1381, %v1374, %v1378
  %v1383 = vand.u32 2147483647, %v1360
  %vm1384 = vcmp.eq.f32.partialorder %v1383, 8.507059e+37
  %v1385 = vand.u32 %v1360, 2147483648
  %v1386 = vor.u32 1.1754944e-38, %v1385
  %v1387 = vsel %vm1384, %v1386, %v1382
  %v1388 = vmul.f32 1.0, %v1387
  %v1389 = vrcp.pop %v1361
  %v1390 = vmul.f32 %v1361, %v1389
  %v1391 = vsub.f32 1.0, %v1390
  %v1392 = vmul.f32 %v1389, %v1391
  %v1393 = vadd.f32 %v1389, %v1392
  %vm1394 = vweird.f32 %v1361
  %vm1395 = vweird.f32 %v1389
  %vm1396 = vmor %vm1394, %vm1395
  %v1397 = vsel %vm1396, %v1389, %v1393
  %v1398 = vand.u32 2147483647, %v1361
  %vm1399 = vcmp.eq.f32.partialorder %v1398, 8.507059e+37
  %v1400 = vand.u32 %v1361, 2147483648
  %v1401 = vor.u32 1.1754944e-38, %v1400
  %v1402 = vsel %vm1399, %v1401, %v1397
  %v1403 = vmul.f32 1.0, %v1402
  %v1404 = vrcp.pop %v1362
  %v1405 = vmul.f32 %v1362, %v1404
  %v1406 = vsub.f32 1.0, %v1405
  %v1407 = vmul.f32 %v1404, %v1406
  %v1408 = vadd.f32 %v1404, %v1407
  %vm1409 = vweird.f32 %v1362
  %vm1410 = vweird.f32 %v1404
  %vm1411 = vmor %vm1409, %vm1410
  %v1412 = vsel %vm1411, %v1404, %v1408
  %v1413 = vand.u32 2147483647, %v1362
  %vm1414 = vcmp.eq.f32.partialorder %v1413, 8.507059e+37
  %v1415 = vand.u32 %v1362, 2147483648
  %v1416 = vor.u32 1.1754944e-38, %v1415
  %v1417 = vsel %vm1414, %v1416, %v1412
  %v1418 = vmul.f32 1.0, %v1417
  %v1419 = vrcp.pop %v1363
  %v1420 = vmul.f32 %v1363, %v1419
  %v1421 = vsub.f32 1.0, %v1420
  %v1422 = vmul.f32 %v1419, %v1421
  %v1423 = vadd.f32 %v1419, %v1422
  %vm1424 = vweird.f32 %v1363
  %vm1425 = vweird.f32 %v1419
  %vm1426 = vmor %vm1424, %vm1425
  %v1427 = vsel %vm1426, %v1419, %v1423
  %v1428 = vand.u32 2147483647, %v1363
  %vm1429 = vcmp.eq.f32.partialorder %v1428, 8.507059e+37
  %v1430 = vand.u32 %v1363, 2147483648
  %v1431 = vor.u32 1.1754944e-38, %v1430
  %v1432 = vsel %vm1429, %v1431, %v1427
  %v1433 = vmul.f32 1.0, %v1432
  %v1434 = vrcp.pop %v1364
  %v1435 = vmul.f32 %v1364, %v1434
  %v1436 = vsub.f32 1.0, %v1435
  %v1437 = vmul.f32 %v1434, %v1436
  %v1438 = vadd.f32 %v1434, %v1437
  %vm1439 = vweird.f32 %v1364
  %vm1440 = vweird.f32 %v1434
  %vm1441 = vmor %vm1439, %vm1440
  %v1442 = vsel %vm1441, %v1434, %v1438
  %v1443 = vand.u32 2147483647, %v1364
  %vm1444 = vcmp.eq.f32.partialorder %v1443, 8.507059e+37
  %v1445 = vand.u32 %v1364, 2147483648
  %v1446 = vor.u32 1.1754944e-38, %v1445
  %v1447 = vsel %vm1444, %v1446, %v1442
  %v1448 = vmul.f32 1.0, %v1447
  %v1449 = vrcp.pop %v1365
  %v1450 = vmul.f32 %v1365, %v1449
  %v1451 = vsub.f32 1.0, %v1450
  %v1452 = vmul.f32 %v1449, %v1451
  %v1453 = vadd.f32 %v1449, %v1452
  %vm1454 = vweird.f32 %v1365
  %vm1455 = vweird.f32 %v1449
  %vm1456 = vmor %vm1454, %vm1455
  %v1457 = vsel %vm1456, %v1449, %v1453
  %v1458 = vand.u32 2147483647, %v1365
  %vm1459 = vcmp.eq.f32.partialorder %v1458, 8.507059e+37
  %v1460 = vand.u32 %v1365, 2147483648
  %v1461 = vor.u32 1.1754944e-38, %v1460
  %v1462 = vsel %vm1459, %v1461, %v1457
  %v1463 = vmul.f32 1.0, %v1462
  %v1464 = vrcp.pop %v1366
  %v1465 = vmul.f32 %v1366, %v1464
  %v1466 = vsub.f32 1.0, %v1465
  %v1467 = vmul.f32 %v1464, %v1466
  %v1468 = vadd.f32 %v1464, %v1467
  %vm1469 = vweird.f32 %v1366
  %vm1470 = vweird.f32 %v1464
  %vm1471 = vmor %vm1469, %vm1470
  %v1472 = vsel %vm1471, %v1464, %v1468
  %v1473 = vand.u32 2147483647, %v1366
  %vm1474 = vcmp.eq.f32.partialorder %v1473, 8.507059e+37
  %v1475 = vand.u32 %v1366, 2147483648
  %v1476 = vor.u32 1.1754944e-38, %v1475
  %v1477 = vsel %vm1474, %v1476, %v1472
  %v1478 = vmul.f32 1.0, %v1477
  %v1479 = vrcp.pop %v1367
  %v1480 = vmul.f32 %v1367, %v1479
  %v1481 = vsub.f32 1.0, %v1480
  %v1482 = vmul.f32 %v1479, %v1481
  %v1483 = vadd.f32 %v1479, %v1482
  %vm1484 = vweird.f32 %v1367
  %vm1485 = vweird.f32 %v1479
  %vm1486 = vmor %vm1484, %vm1485
  %v1487 = vsel %vm1486, %v1479, %v1483
  %v1488 = vand.u32 2147483647, %v1367
  %vm1489 = vcmp.eq.f32.partialorder %v1488, 8.507059e+37
  %v1490 = vand.u32 %v1367, 2147483648
  %v1491 = vor.u32 1.1754944e-38, %v1490
  %v1492 = vsel %vm1489, %v1491, %v1487
  %v1493 = vmul.f32 1.0, %v1492
  %v1494 = vrcp.pop %v1368
  %v1495 = vmul.f32 %v1368, %v1494
  %v1496 = vsub.f32 1.0, %v1495
  %v1497 = vmul.f32 %v1494, %v1496
  %v1498 = vadd.f32 %v1494, %v1497
  %vm1499 = vweird.f32 %v1368
  %vm1500 = vweird.f32 %v1494
  %vm1501 = vmor %vm1499, %vm1500
  %v1502 = vsel %vm1501, %v1494, %v1498
  %v1503 = vand.u32 2147483647, %v1368
  %vm1504 = vcmp.eq.f32.partialorder %v1503, 8.507059e+37
  %v1505 = vand.u32 %v1368, 2147483648
  %v1506 = vor.u32 1.1754944e-38, %v1505
  %v1507 = vsel %vm1504, %v1506, %v1502
  %v1508 = vmul.f32 1.0, %v1507
  %v1509 = vrcp.pop %v1369
  %v1510 = vmul.f32 %v1369, %v1509
  %v1511 = vsub.f32 1.0, %v1510
  %v1512 = vmul.f32 %v1509, %v1511
  %v1513 = vadd.f32 %v1509, %v1512
  %vm1514 = vweird.f32 %v1369
  %vm1515 = vweird.f32 %v1509
  %vm1516 = vmor %vm1514, %vm1515
  %v1517 = vsel %vm1516, %v1509, %v1513
  %v1518 = vand.u32 2147483647, %v1369
  %vm1519 = vcmp.eq.f32.partialorder %v1518, 8.507059e+37
  %v1520 = vand.u32 %v1369, 2147483648
  %v1521 = vor.u32 1.1754944e-38, %v1520
  %v1522 = vsel %vm1519, %v1521, %v1517
  %v1523 = vmul.f32 1.0, %v1522
  %v1524 = vrcp.pop %v1370
  %v1525 = vmul.f32 %v1370, %v1524
  %v1526 = vsub.f32 1.0, %v1525
  %v1527 = vmul.f32 %v1524, %v1526
  %v1528 = vadd.f32 %v1524, %v1527
  %vm1529 = vweird.f32 %v1370
  %vm1530 = vweird.f32 %v1524
  %vm1531 = vmor %vm1529, %vm1530
  %v1532 = vsel %vm1531, %v1524, %v1528
  %v1533 = vand.u32 2147483647, %v1370
  %vm1534 = vcmp.eq.f32.partialorder %v1533, 8.507059e+37
  %v1535 = vand.u32 %v1370, 2147483648
  %v1536 = vor.u32 1.1754944e-38, %v1535
  %v1537 = vsel %vm1534, %v1536, %v1532
  %v1538 = vmul.f32 1.0, %v1537
  %v1539 = vrcp.pop %v1371
  %v1540 = vmul.f32 %v1371, %v1539
  %v1541 = vsub.f32 1.0, %v1540
  %v1542 = vmul.f32 %v1539, %v1541
  %v1543 = vadd.f32 %v1539, %v1542
  %vm1544 = vweird.f32 %v1371
  %vm1545 = vweird.f32 %v1539
  %vm1546 = vmor %vm1544, %vm1545
  %v1547 = vsel %vm1546, %v1539, %v1543
  %v1548 = vand.u32 2147483647, %v1371
  %vm1549 = vcmp.eq.f32.partialorder %v1548, 8.507059e+37
  %v1550 = vand.u32 %v1371, 2147483648
  %v1551 = vor.u32 1.1754944e-38, %v1550
  %v1552 = vsel %vm1549, %v1551, %v1547
  %v1553 = vmul.f32 1.0, %v1552
  %v1554 = vrcp.pop %v1372
  %v1555 = vmul.f32 %v1372, %v1554
  %v1556 = vsub.f32 1.0, %v1555
  %v1557 = vmul.f32 %v1554, %v1556
  %v1558 = vadd.f32 %v1554, %v1557
  %vm1559 = vweird.f32 %v1372
  %vm1560 = vweird.f32 %v1554
  %vm1561 = vmor %vm1559, %vm1560
  %v1562 = vsel %vm1561, %v1554, %v1558
  %v1563 = vand.u32 2147483647, %v1372
  %vm1564 = vcmp.eq.f32.partialorder %v1563, 8.507059e+37
  %v1565 = vand.u32 %v1372, 2147483648
  %v1566 = vor.u32 1.1754944e-38, %v1565
  %v1567 = vsel %vm1564, %v1566, %v1562
  %v1568 = vmul.f32 1.0, %v1567
  %v1569 = vrcp.pop %v1373
  %v1570 = vmul.f32 %v1373, %v1569
  %v1571 = vsub.f32 1.0, %v1570
  %v1572 = vmul.f32 %v1569, %v1571
  %v1573 = vadd.f32 %v1569, %v1572
  %vm1574 = vweird.f32 %v1373
  %vm1575 = vweird.f32 %v1569
  %vm1576 = vmor %vm1574, %vm1575
  %v1577 = vsel %vm1576, %v1569, %v1573
  %v1578 = vand.u32 2147483647, %v1373
  %vm1579 = vcmp.eq.f32.partialorder %v1578, 8.507059e+37
  %v1580 = vand.u32 %v1373, 2147483648
  %v1581 = vor.u32 1.1754944e-38, %v1580
  %v1582 = vsel %vm1579, %v1581, %v1577
  %v1583 = vmul.f32 1.0, %v1582
  %v1584 = vmul.f32 %v1277, %v1388
  %v1585 = vmul.f32 %v1280, %v1403
  %v1586 = vmul.f32 %v1283, %v1418
  %v1587 = vmul.f32 %v1286, %v1433
  %v1588 = vmul.f32 %v1289, %v1448
  %v1589 = vmul.f32 %v1292, %v1463
  %v1590 = vmul.f32 %v1295, %v1478
  %v1591 = vmul.f32 %v1298, %v1493
  %v1592 = vmul.f32 %v1301, %v1508
  %v1593 = vmul.f32 %v1304, %v1523
  %v1594 = vmul.f32 %v1307, %v1538
  %v1595 = vmul.f32 %v1310, %v1553
  %v1596 = vmul.f32 %v1313, %v1568
  %v1597 = vmul.f32 %v1316, %v1583
  %v1598 = vld [vmem:[%s4] sm:$0xff]
  %v1599 = vld [vmem:[%s4 + $0x8] sm:$0xff]
  %v1600 = vld [vmem:[%s4 + $0x10] sm:$0xff]
  %v1601 = vld [vmem:[%s4 + $0x18] sm:$0xff]
  %v1602 = vld [vmem:[%s4 + $0x20] sm:$0xff]
  %v1603 = vld [vmem:[%s4 + $0x28] sm:$0xff]
  %v1604 = vld [vmem:[%s4 + $0x30] sm:$0xff]
  %v1605 = vld [vmem:[%s4 + $0x38] sm:$0xff]
  %v1606 = vld [vmem:[%s4 + $0x40] sm:$0xff]
  %v1607 = vld [vmem:[%s4 + $0x48] sm:$0xff]
  %v1608 = vld [vmem:[%s4 + $0x50] sm:$0xff]
  %v1609 = vld [vmem:[%s4 + $0x58] sm:$0xff]
  %v1610 = vld [vmem:[%s4 + $0x60] sm:$0xff]
  %v1611 = vld [vmem:[%s4 + $0x68] sm:$0xff]
  %v1612 = vmul.f32 %v1598, 0.31415927
  %v1613 = vmul.f32 %v1599, 0.31415927
  %v1614 = vmul.f32 %v1600, 0.31415927
  %v1615 = vmul.f32 %v1601, 0.31415927
  %v1616 = vmul.f32 %v1602, 0.31415927
  %v1617 = vmul.f32 %v1603, 0.31415927
  %v1618 = vmul.f32 %v1604, 0.31415927
  %v1619 = vmul.f32 %v1605, 0.31415927
  %v1620 = vmul.f32 %v1606, 0.31415927
  %v1621 = vmul.f32 %v1607, 0.31415927
  %v1622 = vmul.f32 %v1608, 0.31415927
  %v1623 = vmul.f32 %v1609, 0.31415927
  %v1624 = vmul.f32 %v1610, 0.31415927
  %v1625 = vmul.f32 %v1611, 0.31415927
  %v1626 = vand.u32 2147483647, %v1612
  %vm1627 = vcmp.le.f32.partialorder %v1626, 0.7853982
  %vm1628 = vcmp.lt.s32.totalorder %v1612, 0
  %v1629 = vand.u32 %v1612, 2139095040
  %v1630 = vshrl.u32 %v1629, 23
  %v1631 = vsub.s32 %v1630, 127
  %v1632 = vand.u32 2147483647, %v1612
  %v1633 = vand.u32 %v1632, 8388607
  %v1634 = vor.u32 %v1633, 8388608
  %v1635 = vsub.s32 0, %v1634
  %v1636 = vadd.s32 %v1631, 1
  %vm1637 = vcmp.gt.s32.totalorder %v1636, 0
  %v1638 = vsel %vm1637, %v1636, 0
  %v1639 = vshrl.u32 %v1638, 5
  %v1640 = vand.u32 %v1638, 31
  %v1641 = vsub.s32 32, %v1640
  %v1642 = vshrl.u32 683565275, %v1641
  %v1643 = vshll.u32 683565275, %v1640
  %v1644 = vshrl.u32 2475754826, %v1641
  %v1645 = vor.u32 %v1643, %v1644
  %v1646 = vshll.u32 2475754826, %v1640
  %v1647 = vshrl.u32 2131351028, %v1641
  %v1648 = vor.u32 %v1646, %v1647
  %v1649 = vshll.u32 2131351028, %v1640
  %v1650 = vshrl.u32 2102212464, %v1641
  %v1651 = vor.u32 %v1649, %v1650
  %v1652 = vshll.u32 2102212464, %v1640
  %v1653 = vshrl.u32 920167782, %v1641
  %v1654 = vor.u32 %v1652, %v1653
  %v1655 = vshll.u32 920167782, %v1640
  %v1656 = vshrl.u32 1326507024, %v1641
  %v1657 = vor.u32 %v1655, %v1656
  %vm1658 = vcmp.lt.s32.totalorder %v1639, 1
  %vm1659 = vcmp.lt.s32.totalorder %v1639, 2
  %vm1660 = vcmp.lt.s32.totalorder %v1639, 3
  %vm1661 = vcmp.lt.s32.totalorder %v1639, 4
  %v1662 = vsel %vm1658, %v1642, %v1645
  %v1663 = vsel %vm1661, %v1651, 2102212464
  %v1664 = vsel %vm1660, %v1648, %v1663
  %v1665 = vsel %vm1659, %v1662, %v1664
  %v1666 = vsel %vm1658, %v1645, %v1648
  %v1667 = vsel %vm1661, %v1654, 920167782
  %v1668 = vsel %vm1660, %v1651, %v1667
  %v1669 = vsel %vm1659, %v1666, %v1668
  %v1670 = vsel %vm1658, %v1648, %v1651
  %v1671 = vsel %vm1661, %v1657, 1326507024
  %v1672 = vsel %vm1660, %v1654, %v1671
  %v1673 = vsel %vm1659, %v1670, %v1672
  %v1674 = vshll.u32 %v1634, 8
  %v1675 = vand.u32 %v1674, 65535
  %v1676 = vshrl.u32 %v1674, 16
  %v1677 = vand.u32 %v1673, 65535
  %v1678 = vshrl.u32 %v1673, 16
  %v1679 = vmul.u32 %v1675, %v1677
  %v1680 = vmul.u32 %v1675, %v1678
  %v1681 = vmul.u32 %v1676, %v1677
  %v1682 = vmul.u32 %v1676, %v1678
  %v1683 = vshll.u32 %v1680, 16
  %v1684 = vshrl.u32 %v1680, 16
  %v1685 = vshll.u32 %v1681, 16
  %v1686 = vshrl.u32 %v1681, 16
  %vm1687 = vc.u32 %v1679, %v1683
  %v1688 = vsel %vm1687, 1, 0
  %v1689 = vadd.s32 %v1679, %v1683
  %v1690 = vadd.s32 %v1682, %v1688
  %vm1691 = vc.u32 %v1689, %v1685
  %v1692 = vsel %vm1691, 1, 0
  %v1693 = vadd.s32 %v1689, %v1685
  %v1694 = vadd.s32 %v1690, %v1692
  %v1695 = vadd.s32 %v1694, %v1684
  %v1696 = vadd.s32 %v1695, %v1686
  %v1697 = vand.u32 %v1674, 65535
  %v1698 = vshrl.u32 %v1674, 16
  %v1699 = vand.u32 %v1669, 65535
  %v1700 = vshrl.u32 %v1669, 16
  %v1701 = vmul.u32 %v1697, %v1699
  %v1702 = vmul.u32 %v1697, %v1700
  %v1703 = vmul.u32 %v1698, %v1699
  %v1704 = vmul.u32 %v1698, %v1700
  %v1705 = vshll.u32 %v1702, 16
  %v1706 = vshrl.u32 %v1702, 16
  %v1707 = vshll.u32 %v1703, 16
  %v1708 = vshrl.u32 %v1703, 16
  %vm1709 = vc.u32 %v1701, %v1705
  %v1710 = vsel %vm1709, 1, 0
  %v1711 = vadd.s32 %v1701, %v1705
  %v1712 = vadd.s32 %v1704, %v1710
  %vm1713 = vc.u32 %v1711, %v1707
  %v1714 = vsel %vm1713, 1, 0
  %v1715 = vadd.s32 %v1711, %v1707
  %v1716 = vadd.s32 %v1712, %v1714
  %v1717 = vadd.s32 %v1716, %v1706
  %v1718 = vadd.s32 %v1717, %v1708
  %v1719 = vmul.u32 %v1674, %v1665
  %v1720 = vadd.s32 %v1696, %v1715
  %vm1721 = vc.u32 %v1696, %v1715
  %v1722 = vadd.s32 %v1718, 1
  %v1723 = vsel %vm1721, %v1722, %v1718
  %v1724 = vadd.s32 %v1719, %v1723
  %v1725 = vadd.s32 %v1724, 536870912
  %v1726 = vshrl.u32 %v1725, 30
  %v1727 = vshll.u32 %v1726, 30
  %v1728 = vsub.s32 %v1724, %v1727
  %vm1729 = vcmp.lt.s32.totalorder %v1728, 0
  %v1730 = vsub.s32 0, %v1728
  %v1731 = vsel %vm1729, %v1730, %v1728
  %v1732 = vclz %v1731
  %v1733 = vsub.s32 %v1732, 2
  %vm1734 = vcmp.gt.s32.totalorder 0, %v1733
  %v1735 = vsel %vm1734, 0, %v1733
  %v1736 = vsub.s32 32, %v1735
  %v1737 = vshll.u32 %v1728, %v1735
  %v1738 = vshrl.u32 %v1720, %v1736
  %v1739 = vor.u32 %v1737, %v1738
  %v1740 = vsub.s32 4294967266, %v1735
  %v1741 = vadd.s32 %v1740, 127
  %v1742 = vshll.u32 %v1741, 23
  %v1743 = vor.u32 4788187, %v1742
  %v1744 = vand.u32 2147483647, %v1743
  %v1746 = vcvt.s32.f32 %v1739
  %v1747 = vmul.f32 %v1746, %v1744
  %v1748 = vxor.u32 %v1747, 2147483648
  %v1749 = vsel %vm1628, %v1748, %v1747
  %v1750 = vsub.s32 4, %v1726
  %v1751 = vsel %vm1628, %v1750, %v1726
  %v1752 = vsel %vm1627, %v1612, %v1749
  %v1753 = vsel %vm1627, 0, %v1751
  %v1754 = vmul.f32 %v1752, %v1752
  %v1755 = vmul.f32 %v1754, -0.001358992
  %v1756 = vadd.f32 %v1755, 0.041655596
  %v1757 = vmul.f32 %v1754, %v1756
  %v1758 = vadd.f32 %v1757, -0.4999988
  %v1759 = vmul.f32 %v1754, %v1758
  %v1760 = vadd.f32 1.0, %v1759
  %v1761 = vmul.f32 %v1752, %v1752
  %v1762 = vmul.f32 %v1761, -0.00019511016
  %v1763 = vadd.f32 %v1762, 0.008332121
  %v1764 = vmul.f32 %v1761, %v1763
  %v1765 = vadd.f32 %v1764, -0.16666654
  %v1766 = vmul.f32 %v1761, %v1765
  %v1767 = vadd.f32 %v1766, 1.0
  %v1768 = vmul.f32 %v1767, %v1752
  %vm1769 = vweird.f32 %v1612
  %v1770 = vand.u32 %v1753, 3
  %vm1771 = vcmp.lt.s32.totalorder %v1770, 2
  %vm1772 = vcmp.eq.s32.totalorder %v1770, 0
  %v1773 = vxor.u32 %v1768, 2147483648
  %v1774 = vsel %vm1772, %v1760, %v1773
  %vm1775 = vcmp.eq.s32.totalorder %v1770, 2
  %v1776 = vxor.u32 %v1760, 2147483648
  %v1777 = vsel %vm1775, %v1776, %v1768
  %v1778 = vsel %vm1771, %v1774, %v1777
  %v1779 = vsel %vm1769, nan, %v1778
  %v1780 = vand.u32 2147483647, %v1613
  %vm1781 = vcmp.le.f32.partialorder %v1780, 0.7853982
  %vm1782 = vcmp.lt.s32.totalorder %v1613, 0
  %v1783 = vand.u32 %v1613, 2139095040
  %v1784 = vshrl.u32 %v1783, 23
  %v1785 = vsub.s32 %v1784, 127
  %v1786 = vand.u32 2147483647, %v1613
  %v1787 = vand.u32 %v1786, 8388607
  %v1788 = vor.u32 %v1787, 8388608
  %v1789 = vsub.s32 0, %v1788
  %v1790 = vadd.s32 %v1785, 1
  %vm1791 = vcmp.gt.s32.totalorder %v1790, 0
  %v1792 = vsel %vm1791, %v1790, 0
  %v1793 = vshrl.u32 %v1792, 5
  %v1794 = vand.u32 %v1792, 31
  %v1795 = vsub.s32 32, %v1794
  %v1796 = vshrl.u32 683565275, %v1795
  %v1797 = vshll.u32 683565275, %v1794
  %v1798 = vshrl.u32 2475754826, %v1795
  %v1799 = vor.u32 %v1797, %v1798
  %v1800 = vshll.u32 2475754826, %v1794
  %v1801 = vshrl.u32 2131351028, %v1795
  %v1802 = vor.u32 %v1800, %v1801
  %v1803 = vshll.u32 2131351028, %v1794
  %v1804 = vshrl.u32 2102212464, %v1795
  %v1805 = vor.u32 %v1803, %v1804
  %v1806 = vshll.u32 2102212464, %v1794
  %v1807 = vshrl.u32 920167782, %v1795
  %v1808 = vor.u32 %v1806, %v1807
  %v1809 = vshll.u32 920167782, %v1794
  %v1810 = vshrl.u32 1326507024, %v1795
  %v1811 = vor.u32 %v1809, %v1810
  %vm1812 = vcmp.lt.s32.totalorder %v1793, 1
  %vm1813 = vcmp.lt.s32.totalorder %v1793, 2
  %vm1814 = vcmp.lt.s32.totalorder %v1793, 3
  %vm1815 = vcmp.lt.s32.totalorder %v1793, 4
  %v1816 = vsel %vm1812, %v1796, %v1799
  %v1817 = vsel %vm1815, %v1805, 2102212464
  %v1818 = vsel %vm1814, %v1802, %v1817
  %v1819 = vsel %vm1813, %v1816, %v1818
  %v1820 = vsel %vm1812, %v1799, %v1802
  %v1821 = vsel %vm1815, %v1808, 920167782
  %v1822 = vsel %vm1814, %v1805, %v1821
  %v1823 = vsel %vm1813, %v1820, %v1822
  %v1824 = vsel %vm1812, %v1802, %v1805
  %v1825 = vsel %vm1815, %v1811, 1326507024
  %v1826 = vsel %vm1814, %v1808, %v1825
  %v1827 = vsel %vm1813, %v1824, %v1826
  %v1828 = vshll.u32 %v1788, 8
  %v1829 = vand.u32 %v1828, 65535
  %v1830 = vshrl.u32 %v1828, 16
  %v1831 = vand.u32 %v1827, 65535
  %v1832 = vshrl.u32 %v1827, 16
  %v1833 = vmul.u32 %v1829, %v1831
  %v1834 = vmul.u32 %v1829, %v1832
  %v1835 = vmul.u32 %v1830, %v1831
  %v1836 = vmul.u32 %v1830, %v1832
  %v1837 = vshll.u32 %v1834, 16
  %v1838 = vshrl.u32 %v1834, 16
  %v1839 = vshll.u32 %v1835, 16
  %v1840 = vshrl.u32 %v1835, 16
  %vm1841 = vc.u32 %v1833, %v1837
  %v1842 = vsel %vm1841, 1, 0
  %v1843 = vadd.s32 %v1833, %v1837
  %v1844 = vadd.s32 %v1836, %v1842
  %vm1845 = vc.u32 %v1843, %v1839
  %v1846 = vsel %vm1845, 1, 0
  %v1847 = vadd.s32 %v1843, %v1839
  %v1848 = vadd.s32 %v1844, %v1846
  %v1849 = vadd.s32 %v1848, %v1838
  %v1850 = vadd.s32 %v1849, %v1840
  %v1851 = vand.u32 %v1828, 65535
  %v1852 = vshrl.u32 %v1828, 16
  %v1853 = vand.u32 %v1823, 65535
  %v1854 = vshrl.u32 %v1823, 16
  %v1855 = vmul.u32 %v1851, %v1853
  %v1856 = vmul.u32 %v1851, %v1854
  %v1857 = vmul.u32 %v1852, %v1853
  %v1858 = vmul.u32 %v1852, %v1854
  %v1859 = vshll.u32 %v1856, 16
  %v1860 = vshrl.u32 %v1856, 16
  %v1861 = vshll.u32 %v1857, 16
  %v1862 = vshrl.u32 %v1857, 16
  %vm1863 = vc.u32 %v1855, %v1859
  %v1864 = vsel %vm1863, 1, 0
  %v1865 = vadd.s32 %v1855, %v1859
  %v1866 = vadd.s32 %v1858, %v1864
  %vm1867 = vc.u32 %v1865, %v1861
  %v1868 = vsel %vm1867, 1, 0
  %v1869 = vadd.s32 %v1865, %v1861
  %v1870 = vadd.s32 %v1866, %v1868
  %v1871 = vadd.s32 %v1870, %v1860
  %v1872 = vadd.s32 %v1871, %v1862
  %v1873 = vmul.u32 %v1828, %v1819
  %v1874 = vadd.s32 %v1850, %v1869
  %vm1875 = vc.u32 %v1850, %v1869
  %v1876 = vadd.s32 %v1872, 1
  %v1877 = vsel %vm1875, %v1876, %v1872
  %v1878 = vadd.s32 %v1873, %v1877
  %v1879 = vadd.s32 %v1878, 536870912
  %v1880 = vshrl.u32 %v1879, 30
  %v1881 = vshll.u32 %v1880, 30
  %v1882 = vsub.s32 %v1878, %v1881
  %vm1883 = vcmp.lt.s32.totalorder %v1882, 0
  %v1884 = vsub.s32 0, %v1882
  %v1885 = vsel %vm1883, %v1884, %v1882
  %v1886 = vclz %v1885
  %v1887 = vsub.s32 %v1886, 2
  %vm1888 = vcmp.gt.s32.totalorder 0, %v1887
  %v1889 = vsel %vm1888, 0, %v1887
  %v1890 = vsub.s32 32, %v1889
  %v1891 = vshll.u32 %v1882, %v1889
  %v1892 = vshrl.u32 %v1874, %v1890
  %v1893 = vor.u32 %v1891, %v1892
  %v1894 = vsub.s32 4294967266, %v1889
  %v1895 = vadd.s32 %v1894, 127
  %v1896 = vshll.u32 %v1895, 23
  %v1897 = vor.u32 4788187, %v1896
  %v1898 = vand.u32 2147483647, %v1897
  %v1900 = vcvt.s32.f32 %v1893
  %v1901 = vmul.f32 %v1900, %v1898
  %v1902 = vxor.u32 %v1901, 2147483648
  %v1903 = vsel %vm1782, %v1902, %v1901
  %v1904 = vsub.s32 4, %v1880
  %v1905 = vsel %vm1782, %v1904, %v1880
  %v1906 = vsel %vm1781, %v1613, %v1903
  %v1907 = vsel %vm1781, 0, %v1905
  %v1908 = vmul.f32 %v1906, %v1906
  %v1909 = vmul.f32 %v1908, -0.001358992
  %v1910 = vadd.f32 %v1909, 0.041655596
  %v1911 = vmul.f32 %v1908, %v1910
  %v1912 = vadd.f32 %v1911, -0.4999988
  %v1913 = vmul.f32 %v1908, %v1912
  %v1914 = vadd.f32 1.0, %v1913
  %v1915 = vmul.f32 %v1906, %v1906
  %v1916 = vmul.f32 %v1915, -0.00019511016
  %v1917 = vadd.f32 %v1916, 0.008332121
  %v1918 = vmul.f32 %v1915, %v1917
  %v1919 = vadd.f32 %v1918, -0.16666654
  %v1920 = vmul.f32 %v1915, %v1919
  %v1921 = vadd.f32 %v1920, 1.0
  %v1922 = vmul.f32 %v1921, %v1906
  %vm1923 = vweird.f32 %v1613
  %v1924 = vand.u32 %v1907, 3
  %vm1925 = vcmp.lt.s32.totalorder %v1924, 2
  %vm1926 = vcmp.eq.s32.totalorder %v1924, 0
  %v1927 = vxor.u32 %v1922, 2147483648
  %v1928 = vsel %vm1926, %v1914, %v1927
  %vm1929 = vcmp.eq.s32.totalorder %v1924, 2
  %v1930 = vxor.u32 %v1914, 2147483648
  %v1931 = vsel %vm1929, %v1930, %v1922
  %v1932 = vsel %vm1925, %v1928, %v1931
  %v1933 = vsel %vm1923, nan, %v1932
  %v1934 = vand.u32 2147483647, %v1614
  %vm1935 = vcmp.le.f32.partialorder %v1934, 0.7853982
  %vm1936 = vcmp.lt.s32.totalorder %v1614, 0
  %v1937 = vand.u32 %v1614, 2139095040
  %v1938 = vshrl.u32 %v1937, 23
  %v1939 = vsub.s32 %v1938, 127
  %v1940 = vand.u32 2147483647, %v1614
  %v1941 = vand.u32 %v1940, 8388607
  %v1942 = vor.u32 %v1941, 8388608
  %v1943 = vsub.s32 0, %v1942
  %v1944 = vadd.s32 %v1939, 1
  %vm1945 = vcmp.gt.s32.totalorder %v1944, 0
  %v1946 = vsel %vm1945, %v1944, 0
  %v1947 = vshrl.u32 %v1946, 5
  %v1948 = vand.u32 %v1946, 31
  %v1949 = vsub.s32 32, %v1948
  %v1950 = vshrl.u32 683565275, %v1949
  %v1951 = vshll.u32 683565275, %v1948
  %v1952 = vshrl.u32 2475754826, %v1949
  %v1953 = vor.u32 %v1951, %v1952
  %v1954 = vshll.u32 2475754826, %v1948
  %v1955 = vshrl.u32 2131351028, %v1949
  %v1956 = vor.u32 %v1954, %v1955
  %v1957 = vshll.u32 2131351028, %v1948
  %v1958 = vshrl.u32 2102212464, %v1949
  %v1959 = vor.u32 %v1957, %v1958
  %v1960 = vshll.u32 2102212464, %v1948
  %v1961 = vshrl.u32 920167782, %v1949
  %v1962 = vor.u32 %v1960, %v1961
  %v1963 = vshll.u32 920167782, %v1948
  %v1964 = vshrl.u32 1326507024, %v1949
  %v1965 = vor.u32 %v1963, %v1964
  %vm1966 = vcmp.lt.s32.totalorder %v1947, 1
  %vm1967 = vcmp.lt.s32.totalorder %v1947, 2
  %vm1968 = vcmp.lt.s32.totalorder %v1947, 3
  %vm1969 = vcmp.lt.s32.totalorder %v1947, 4
  %v1970 = vsel %vm1966, %v1950, %v1953
  %v1971 = vsel %vm1969, %v1959, 2102212464
  %v1972 = vsel %vm1968, %v1956, %v1971
  %v1973 = vsel %vm1967, %v1970, %v1972
  %v1974 = vsel %vm1966, %v1953, %v1956
  %v1975 = vsel %vm1969, %v1962, 920167782
  %v1976 = vsel %vm1968, %v1959, %v1975
  %v1977 = vsel %vm1967, %v1974, %v1976
  %v1978 = vsel %vm1966, %v1956, %v1959
  %v1979 = vsel %vm1969, %v1965, 1326507024
  %v1980 = vsel %vm1968, %v1962, %v1979
  %v1981 = vsel %vm1967, %v1978, %v1980
  %v1982 = vshll.u32 %v1942, 8
  %v1983 = vand.u32 %v1982, 65535
  %v1984 = vshrl.u32 %v1982, 16
  %v1985 = vand.u32 %v1981, 65535
  %v1986 = vshrl.u32 %v1981, 16
  %v1987 = vmul.u32 %v1983, %v1985
  %v1988 = vmul.u32 %v1983, %v1986
  %v1989 = vmul.u32 %v1984, %v1985
  %v1990 = vmul.u32 %v1984, %v1986
  %v1991 = vshll.u32 %v1988, 16
  %v1992 = vshrl.u32 %v1988, 16
  %v1993 = vshll.u32 %v1989, 16
  %v1994 = vshrl.u32 %v1989, 16
  %vm1995 = vc.u32 %v1987, %v1991
  %v1996 = vsel %vm1995, 1, 0
  %v1997 = vadd.s32 %v1987, %v1991
  %v1998 = vadd.s32 %v1990, %v1996
  %vm1999 = vc.u32 %v1997, %v1993
  %v2000 = vsel %vm1999, 1, 0
  %v2001 = vadd.s32 %v1997, %v1993
  %v2002 = vadd.s32 %v1998, %v2000
  %v2003 = vadd.s32 %v2002, %v1992
  %v2004 = vadd.s32 %v2003, %v1994
  %v2005 = vand.u32 %v1982, 65535
  %v2006 = vshrl.u32 %v1982, 16
  %v2007 = vand.u32 %v1977, 65535
  %v2008 = vshrl.u32 %v1977, 16
  %v2009 = vmul.u32 %v2005, %v2007
  %v2010 = vmul.u32 %v2005, %v2008
  %v2011 = vmul.u32 %v2006, %v2007
  %v2012 = vmul.u32 %v2006, %v2008
  %v2013 = vshll.u32 %v2010, 16
  %v2014 = vshrl.u32 %v2010, 16
  %v2015 = vshll.u32 %v2011, 16
  %v2016 = vshrl.u32 %v2011, 16
  %vm2017 = vc.u32 %v2009, %v2013
  %v2018 = vsel %vm2017, 1, 0
  %v2019 = vadd.s32 %v2009, %v2013
  %v2020 = vadd.s32 %v2012, %v2018
  %vm2021 = vc.u32 %v2019, %v2015
  %v2022 = vsel %vm2021, 1, 0
  %v2023 = vadd.s32 %v2019, %v2015
  %v2024 = vadd.s32 %v2020, %v2022
  %v2025 = vadd.s32 %v2024, %v2014
  %v2026 = vadd.s32 %v2025, %v2016
  %v2027 = vmul.u32 %v1982, %v1973
  %v2028 = vadd.s32 %v2004, %v2023
  %vm2029 = vc.u32 %v2004, %v2023
  %v2030 = vadd.s32 %v2026, 1
  %v2031 = vsel %vm2029, %v2030, %v2026
  %v2032 = vadd.s32 %v2027, %v2031
  %v2033 = vadd.s32 %v2032, 536870912
  %v2034 = vshrl.u32 %v2033, 30
  %v2035 = vshll.u32 %v2034, 30
  %v2036 = vsub.s32 %v2032, %v2035
  %vm2037 = vcmp.lt.s32.totalorder %v2036, 0
  %v2038 = vsub.s32 0, %v2036
  %v2039 = vsel %vm2037, %v2038, %v2036
  %v2040 = vclz %v2039
  %v2041 = vsub.s32 %v2040, 2
  %vm2042 = vcmp.gt.s32.totalorder 0, %v2041
  %v2043 = vsel %vm2042, 0, %v2041
  %v2044 = vsub.s32 32, %v2043
  %v2045 = vshll.u32 %v2036, %v2043
  %v2046 = vshrl.u32 %v2028, %v2044
  %v2047 = vor.u32 %v2045, %v2046
  %v2048 = vsub.s32 4294967266, %v2043
  %v2049 = vadd.s32 %v2048, 127
  %v2050 = vshll.u32 %v2049, 23
  %v2051 = vor.u32 4788187, %v2050
  %v2052 = vand.u32 2147483647, %v2051
  %v2054 = vcvt.s32.f32 %v2047
  %v2055 = vmul.f32 %v2054, %v2052
  %v2056 = vxor.u32 %v2055, 2147483648
  %v2057 = vsel %vm1936, %v2056, %v2055
  %v2058 = vsub.s32 4, %v2034
  %v2059 = vsel %vm1936, %v2058, %v2034
  %v2060 = vsel %vm1935, %v1614, %v2057
  %v2061 = vsel %vm1935, 0, %v2059
  %v2062 = vmul.f32 %v2060, %v2060
  %v2063 = vmul.f32 %v2062, -0.001358992
  %v2064 = vadd.f32 %v2063, 0.041655596
  %v2065 = vmul.f32 %v2062, %v2064
  %v2066 = vadd.f32 %v2065, -0.4999988
  %v2067 = vmul.f32 %v2062, %v2066
  %v2068 = vadd.f32 1.0, %v2067
  %v2069 = vmul.f32 %v2060, %v2060
  %v2070 = vmul.f32 %v2069, -0.00019511016
  %v2071 = vadd.f32 %v2070, 0.008332121
  %v2072 = vmul.f32 %v2069, %v2071
  %v2073 = vadd.f32 %v2072, -0.16666654
  %v2074 = vmul.f32 %v2069, %v2073
  %v2075 = vadd.f32 %v2074, 1.0
  %v2076 = vmul.f32 %v2075, %v2060
  %vm2077 = vweird.f32 %v1614
  %v2078 = vand.u32 %v2061, 3
  %vm2079 = vcmp.lt.s32.totalorder %v2078, 2
  %vm2080 = vcmp.eq.s32.totalorder %v2078, 0
  %v2081 = vxor.u32 %v2076, 2147483648
  %v2082 = vsel %vm2080, %v2068, %v2081
  %vm2083 = vcmp.eq.s32.totalorder %v2078, 2
  %v2084 = vxor.u32 %v2068, 2147483648
  %v2085 = vsel %vm2083, %v2084, %v2076
  %v2086 = vsel %vm2079, %v2082, %v2085
  %v2087 = vsel %vm2077, nan, %v2086
  %v2088 = vand.u32 2147483647, %v1615
  %vm2089 = vcmp.le.f32.partialorder %v2088, 0.7853982
  %vm2090 = vcmp.lt.s32.totalorder %v1615, 0
  %v2091 = vand.u32 %v1615, 2139095040
  %v2092 = vshrl.u32 %v2091, 23
  %v2093 = vsub.s32 %v2092, 127
  %v2094 = vand.u32 2147483647, %v1615
  %v2095 = vand.u32 %v2094, 8388607
  %v2096 = vor.u32 %v2095, 8388608
  %v2097 = vsub.s32 0, %v2096
  %v2098 = vadd.s32 %v2093, 1
  %vm2099 = vcmp.gt.s32.totalorder %v2098, 0
  %v2100 = vsel %vm2099, %v2098, 0
  %v2101 = vshrl.u32 %v2100, 5
  %v2102 = vand.u32 %v2100, 31
  %v2103 = vsub.s32 32, %v2102
  %v2104 = vshrl.u32 683565275, %v2103
  %v2105 = vshll.u32 683565275, %v2102
  %v2106 = vshrl.u32 2475754826, %v2103
  %v2107 = vor.u32 %v2105, %v2106
  %v2108 = vshll.u32 2475754826, %v2102
  %v2109 = vshrl.u32 2131351028, %v2103
  %v2110 = vor.u32 %v2108, %v2109
  %v2111 = vshll.u32 2131351028, %v2102
  %v2112 = vshrl.u32 2102212464, %v2103
  %v2113 = vor.u32 %v2111, %v2112
  %v2114 = vshll.u32 2102212464, %v2102
  %v2115 = vshrl.u32 920167782, %v2103
  %v2116 = vor.u32 %v2114, %v2115
  %v2117 = vshll.u32 920167782, %v2102
  %v2118 = vshrl.u32 1326507024, %v2103
  %v2119 = vor.u32 %v2117, %v2118
  %vm2120 = vcmp.lt.s32.totalorder %v2101, 1
  %vm2121 = vcmp.lt.s32.totalorder %v2101, 2
  %vm2122 = vcmp.lt.s32.totalorder %v2101, 3
  %vm2123 = vcmp.lt.s32.totalorder %v2101, 4
  %v2124 = vsel %vm2120, %v2104, %v2107
  %v2125 = vsel %vm2123, %v2113, 2102212464
  %v2126 = vsel %vm2122, %v2110, %v2125
  %v2127 = vsel %vm2121, %v2124, %v2126
  %v2128 = vsel %vm2120, %v2107, %v2110
  %v2129 = vsel %vm2123, %v2116, 920167782
  %v2130 = vsel %vm2122, %v2113, %v2129
  %v2131 = vsel %vm2121, %v2128, %v2130
  %v2132 = vsel %vm2120, %v2110, %v2113
  %v2133 = vsel %vm2123, %v2119, 1326507024
  %v2134 = vsel %vm2122, %v2116, %v2133
  %v2135 = vsel %vm2121, %v2132, %v2134
  %v2136 = vshll.u32 %v2096, 8
  %v2137 = vand.u32 %v2136, 65535
  %v2138 = vshrl.u32 %v2136, 16
  %v2139 = vand.u32 %v2135, 65535
  %v2140 = vshrl.u32 %v2135, 16
  %v2141 = vmul.u32 %v2137, %v2139
  %v2142 = vmul.u32 %v2137, %v2140
  %v2143 = vmul.u32 %v2138, %v2139
  %v2144 = vmul.u32 %v2138, %v2140
  %v2145 = vshll.u32 %v2142, 16
  %v2146 = vshrl.u32 %v2142, 16
  %v2147 = vshll.u32 %v2143, 16
  %v2148 = vshrl.u32 %v2143, 16
  %vm2149 = vc.u32 %v2141, %v2145
  %v2150 = vsel %vm2149, 1, 0
  %v2151 = vadd.s32 %v2141, %v2145
  %v2152 = vadd.s32 %v2144, %v2150
  %vm2153 = vc.u32 %v2151, %v2147
  %v2154 = vsel %vm2153, 1, 0
  %v2155 = vadd.s32 %v2151, %v2147
  %v2156 = vadd.s32 %v2152, %v2154
  %v2157 = vadd.s32 %v2156, %v2146
  %v2158 = vadd.s32 %v2157, %v2148
  %v2159 = vand.u32 %v2136, 65535
  %v2160 = vshrl.u32 %v2136, 16
  %v2161 = vand.u32 %v2131, 65535
  %v2162 = vshrl.u32 %v2131, 16
  %v2163 = vmul.u32 %v2159, %v2161
  %v2164 = vmul.u32 %v2159, %v2162
  %v2165 = vmul.u32 %v2160, %v2161
  %v2166 = vmul.u32 %v2160, %v2162
  %v2167 = vshll.u32 %v2164, 16
  %v2168 = vshrl.u32 %v2164, 16
  %v2169 = vshll.u32 %v2165, 16
  %v2170 = vshrl.u32 %v2165, 16
  %vm2171 = vc.u32 %v2163, %v2167
  %v2172 = vsel %vm2171, 1, 0
  %v2173 = vadd.s32 %v2163, %v2167
  %v2174 = vadd.s32 %v2166, %v2172
  %vm2175 = vc.u32 %v2173, %v2169
  %v2176 = vsel %vm2175, 1, 0
  %v2177 = vadd.s32 %v2173, %v2169
  %v2178 = vadd.s32 %v2174, %v2176
  %v2179 = vadd.s32 %v2178, %v2168
  %v2180 = vadd.s32 %v2179, %v2170
  %v2181 = vmul.u32 %v2136, %v2127
  %v2182 = vadd.s32 %v2158, %v2177
  %vm2183 = vc.u32 %v2158, %v2177
  %v2184 = vadd.s32 %v2180, 1
  %v2185 = vsel %vm2183, %v2184, %v2180
  %v2186 = vadd.s32 %v2181, %v2185
  %v2187 = vadd.s32 %v2186, 536870912
  %v2188 = vshrl.u32 %v2187, 30
  %v2189 = vshll.u32 %v2188, 30
  %v2190 = vsub.s32 %v2186, %v2189
  %vm2191 = vcmp.lt.s32.totalorder %v2190, 0
  %v2192 = vsub.s32 0, %v2190
  %v2193 = vsel %vm2191, %v2192, %v2190
  %v2194 = vclz %v2193
  %v2195 = vsub.s32 %v2194, 2
  %vm2196 = vcmp.gt.s32.totalorder 0, %v2195
  %v2197 = vsel %vm2196, 0, %v2195
  %v2198 = vsub.s32 32, %v2197
  %v2199 = vshll.u32 %v2190, %v2197
  %v2200 = vshrl.u32 %v2182, %v2198
  %v2201 = vor.u32 %v2199, %v2200
  %v2202 = vsub.s32 4294967266, %v2197
  %v2203 = vadd.s32 %v2202, 127
  %v2204 = vshll.u32 %v2203, 23
  %v2205 = vor.u32 4788187, %v2204
  %v2206 = vand.u32 2147483647, %v2205
  %v2208 = vcvt.s32.f32 %v2201
  %v2209 = vmul.f32 %v2208, %v2206
  %v2210 = vxor.u32 %v2209, 2147483648
  %v2211 = vsel %vm2090, %v2210, %v2209
  %v2212 = vsub.s32 4, %v2188
  %v2213 = vsel %vm2090, %v2212, %v2188
  %v2214 = vsel %vm2089, %v1615, %v2211
  %v2215 = vsel %vm2089, 0, %v2213
  %v2216 = vmul.f32 %v2214, %v2214
  %v2217 = vmul.f32 %v2216, -0.001358992
  %v2218 = vadd.f32 %v2217, 0.041655596
  %v2219 = vmul.f32 %v2216, %v2218
  %v2220 = vadd.f32 %v2219, -0.4999988
  %v2221 = vmul.f32 %v2216, %v2220
  %v2222 = vadd.f32 1.0, %v2221
  %v2223 = vmul.f32 %v2214, %v2214
  %v2224 = vmul.f32 %v2223, -0.00019511016
  %v2225 = vadd.f32 %v2224, 0.008332121
  %v2226 = vmul.f32 %v2223, %v2225
  %v2227 = vadd.f32 %v2226, -0.16666654
  %v2228 = vmul.f32 %v2223, %v2227
  %v2229 = vadd.f32 %v2228, 1.0
  %v2230 = vmul.f32 %v2229, %v2214
  %vm2231 = vweird.f32 %v1615
  %v2232 = vand.u32 %v2215, 3
  %vm2233 = vcmp.lt.s32.totalorder %v2232, 2
  %vm2234 = vcmp.eq.s32.totalorder %v2232, 0
  %v2235 = vxor.u32 %v2230, 2147483648
  %v2236 = vsel %vm2234, %v2222, %v2235
  %vm2237 = vcmp.eq.s32.totalorder %v2232, 2
  %v2238 = vxor.u32 %v2222, 2147483648
  %v2239 = vsel %vm2237, %v2238, %v2230
  %v2240 = vsel %vm2233, %v2236, %v2239
  %v2241 = vsel %vm2231, nan, %v2240
  %v2242 = vand.u32 2147483647, %v1616
  %vm2243 = vcmp.le.f32.partialorder %v2242, 0.7853982
  %vm2244 = vcmp.lt.s32.totalorder %v1616, 0
  %v2245 = vand.u32 %v1616, 2139095040
  %v2246 = vshrl.u32 %v2245, 23
  %v2247 = vsub.s32 %v2246, 127
  %v2248 = vand.u32 2147483647, %v1616
  %v2249 = vand.u32 %v2248, 8388607
  %v2250 = vor.u32 %v2249, 8388608
  %v2251 = vsub.s32 0, %v2250
  %v2252 = vadd.s32 %v2247, 1
  %vm2253 = vcmp.gt.s32.totalorder %v2252, 0
  %v2254 = vsel %vm2253, %v2252, 0
  %v2255 = vshrl.u32 %v2254, 5
  %v2256 = vand.u32 %v2254, 31
  %v2257 = vsub.s32 32, %v2256
  %v2258 = vshrl.u32 683565275, %v2257
  %v2259 = vshll.u32 683565275, %v2256
  %v2260 = vshrl.u32 2475754826, %v2257
  %v2261 = vor.u32 %v2259, %v2260
  %v2262 = vshll.u32 2475754826, %v2256
  %v2263 = vshrl.u32 2131351028, %v2257
  %v2264 = vor.u32 %v2262, %v2263
  %v2265 = vshll.u32 2131351028, %v2256
  %v2266 = vshrl.u32 2102212464, %v2257
  %v2267 = vor.u32 %v2265, %v2266
  %v2268 = vshll.u32 2102212464, %v2256
  %v2269 = vshrl.u32 920167782, %v2257
  %v2270 = vor.u32 %v2268, %v2269
  %v2271 = vshll.u32 920167782, %v2256
  %v2272 = vshrl.u32 1326507024, %v2257
  %v2273 = vor.u32 %v2271, %v2272
  %vm2274 = vcmp.lt.s32.totalorder %v2255, 1
  %vm2275 = vcmp.lt.s32.totalorder %v2255, 2
  %vm2276 = vcmp.lt.s32.totalorder %v2255, 3
  %vm2277 = vcmp.lt.s32.totalorder %v2255, 4
  %v2278 = vsel %vm2274, %v2258, %v2261
  %v2279 = vsel %vm2277, %v2267, 2102212464
  %v2280 = vsel %vm2276, %v2264, %v2279
  %v2281 = vsel %vm2275, %v2278, %v2280
  %v2282 = vsel %vm2274, %v2261, %v2264
  %v2283 = vsel %vm2277, %v2270, 920167782
  %v2284 = vsel %vm2276, %v2267, %v2283
  %v2285 = vsel %vm2275, %v2282, %v2284
  %v2286 = vsel %vm2274, %v2264, %v2267
  %v2287 = vsel %vm2277, %v2273, 1326507024
  %v2288 = vsel %vm2276, %v2270, %v2287
  %v2289 = vsel %vm2275, %v2286, %v2288
  %v2290 = vshll.u32 %v2250, 8
  %v2291 = vand.u32 %v2290, 65535
  %v2292 = vshrl.u32 %v2290, 16
  %v2293 = vand.u32 %v2289, 65535
  %v2294 = vshrl.u32 %v2289, 16
  %v2295 = vmul.u32 %v2291, %v2293
  %v2296 = vmul.u32 %v2291, %v2294
  %v2297 = vmul.u32 %v2292, %v2293
  %v2298 = vmul.u32 %v2292, %v2294
  %v2299 = vshll.u32 %v2296, 16
  %v2300 = vshrl.u32 %v2296, 16
  %v2301 = vshll.u32 %v2297, 16
  %v2302 = vshrl.u32 %v2297, 16
  %vm2303 = vc.u32 %v2295, %v2299
  %v2304 = vsel %vm2303, 1, 0
  %v2305 = vadd.s32 %v2295, %v2299
  %v2306 = vadd.s32 %v2298, %v2304
  %vm2307 = vc.u32 %v2305, %v2301
  %v2308 = vsel %vm2307, 1, 0
  %v2309 = vadd.s32 %v2305, %v2301
  %v2310 = vadd.s32 %v2306, %v2308
  %v2311 = vadd.s32 %v2310, %v2300
  %v2312 = vadd.s32 %v2311, %v2302
  %v2313 = vand.u32 %v2290, 65535
  %v2314 = vshrl.u32 %v2290, 16
  %v2315 = vand.u32 %v2285, 65535
  %v2316 = vshrl.u32 %v2285, 16
  %v2317 = vmul.u32 %v2313, %v2315
  %v2318 = vmul.u32 %v2313, %v2316
  %v2319 = vmul.u32 %v2314, %v2315
  %v2320 = vmul.u32 %v2314, %v2316
  %v2321 = vshll.u32 %v2318, 16
  %v2322 = vshrl.u32 %v2318, 16
  %v2323 = vshll.u32 %v2319, 16
  %v2324 = vshrl.u32 %v2319, 16
  %vm2325 = vc.u32 %v2317, %v2321
  %v2326 = vsel %vm2325, 1, 0
  %v2327 = vadd.s32 %v2317, %v2321
  %v2328 = vadd.s32 %v2320, %v2326
  %vm2329 = vc.u32 %v2327, %v2323
  %v2330 = vsel %vm2329, 1, 0
  %v2331 = vadd.s32 %v2327, %v2323
  %v2332 = vadd.s32 %v2328, %v2330
  %v2333 = vadd.s32 %v2332, %v2322
  %v2334 = vadd.s32 %v2333, %v2324
  %v2335 = vmul.u32 %v2290, %v2281
  %v2336 = vadd.s32 %v2312, %v2331
  %vm2337 = vc.u32 %v2312, %v2331
  %v2338 = vadd.s32 %v2334, 1
  %v2339 = vsel %vm2337, %v2338, %v2334
  %v2340 = vadd.s32 %v2335, %v2339
  %v2341 = vadd.s32 %v2340, 536870912
  %v2342 = vshrl.u32 %v2341, 30
  %v2343 = vshll.u32 %v2342, 30
  %v2344 = vsub.s32 %v2340, %v2343
  %vm2345 = vcmp.lt.s32.totalorder %v2344, 0
  %v2346 = vsub.s32 0, %v2344
  %v2347 = vsel %vm2345, %v2346, %v2344
  %v2348 = vclz %v2347
  %v2349 = vsub.s32 %v2348, 2
  %vm2350 = vcmp.gt.s32.totalorder 0, %v2349
  %v2351 = vsel %vm2350, 0, %v2349
  %v2352 = vsub.s32 32, %v2351
  %v2353 = vshll.u32 %v2344, %v2351
  %v2354 = vshrl.u32 %v2336, %v2352
  %v2355 = vor.u32 %v2353, %v2354
  %v2356 = vsub.s32 4294967266, %v2351
  %v2357 = vadd.s32 %v2356, 127
  %v2358 = vshll.u32 %v2357, 23
  %v2359 = vor.u32 4788187, %v2358
  %v2360 = vand.u32 2147483647, %v2359
  %v2362 = vcvt.s32.f32 %v2355
  %v2363 = vmul.f32 %v2362, %v2360
  %v2364 = vxor.u32 %v2363, 2147483648
  %v2365 = vsel %vm2244, %v2364, %v2363
  %v2366 = vsub.s32 4, %v2342
  %v2367 = vsel %vm2244, %v2366, %v2342
  %v2368 = vsel %vm2243, %v1616, %v2365
  %v2369 = vsel %vm2243, 0, %v2367
  %v2370 = vmul.f32 %v2368, %v2368
  %v2371 = vmul.f32 %v2370, -0.001358992
  %v2372 = vadd.f32 %v2371, 0.041655596
  %v2373 = vmul.f32 %v2370, %v2372
  %v2374 = vadd.f32 %v2373, -0.4999988
  %v2375 = vmul.f32 %v2370, %v2374
  %v2376 = vadd.f32 1.0, %v2375
  %v2377 = vmul.f32 %v2368, %v2368
  %v2378 = vmul.f32 %v2377, -0.00019511016
  %v2379 = vadd.f32 %v2378, 0.008332121
  %v2380 = vmul.f32 %v2377, %v2379
  %v2381 = vadd.f32 %v2380, -0.16666654
  %v2382 = vmul.f32 %v2377, %v2381
  %v2383 = vadd.f32 %v2382, 1.0
  %v2384 = vmul.f32 %v2383, %v2368
  %vm2385 = vweird.f32 %v1616
  %v2386 = vand.u32 %v2369, 3
  %vm2387 = vcmp.lt.s32.totalorder %v2386, 2
  %vm2388 = vcmp.eq.s32.totalorder %v2386, 0
  %v2389 = vxor.u32 %v2384, 2147483648
  %v2390 = vsel %vm2388, %v2376, %v2389
  %vm2391 = vcmp.eq.s32.totalorder %v2386, 2
  %v2392 = vxor.u32 %v2376, 2147483648
  %v2393 = vsel %vm2391, %v2392, %v2384
  %v2394 = vsel %vm2387, %v2390, %v2393
  %v2395 = vsel %vm2385, nan, %v2394
  %v2396 = vand.u32 2147483647, %v1617
  %vm2397 = vcmp.le.f32.partialorder %v2396, 0.7853982
  %vm2398 = vcmp.lt.s32.totalorder %v1617, 0
  %v2399 = vand.u32 %v1617, 2139095040
  %v2400 = vshrl.u32 %v2399, 23
  %v2401 = vsub.s32 %v2400, 127
  %v2402 = vand.u32 2147483647, %v1617
  %v2403 = vand.u32 %v2402, 8388607
  %v2404 = vor.u32 %v2403, 8388608
  %v2405 = vsub.s32 0, %v2404
  %v2406 = vadd.s32 %v2401, 1
  %vm2407 = vcmp.gt.s32.totalorder %v2406, 0
  %v2408 = vsel %vm2407, %v2406, 0
  %v2409 = vshrl.u32 %v2408, 5
  %v2410 = vand.u32 %v2408, 31
  %v2411 = vsub.s32 32, %v2410
  %v2412 = vshrl.u32 683565275, %v2411
  %v2413 = vshll.u32 683565275, %v2410
  %v2414 = vshrl.u32 2475754826, %v2411
  %v2415 = vor.u32 %v2413, %v2414
  %v2416 = vshll.u32 2475754826, %v2410
  %v2417 = vshrl.u32 2131351028, %v2411
  %v2418 = vor.u32 %v2416, %v2417
  %v2419 = vshll.u32 2131351028, %v2410
  %v2420 = vshrl.u32 2102212464, %v2411
  %v2421 = vor.u32 %v2419, %v2420
  %v2422 = vshll.u32 2102212464, %v2410
  %v2423 = vshrl.u32 920167782, %v2411
  %v2424 = vor.u32 %v2422, %v2423
  %v2425 = vshll.u32 920167782, %v2410
  %v2426 = vshrl.u32 1326507024, %v2411
  %v2427 = vor.u32 %v2425, %v2426
  %vm2428 = vcmp.lt.s32.totalorder %v2409, 1
  %vm2429 = vcmp.lt.s32.totalorder %v2409, 2
  %vm2430 = vcmp.lt.s32.totalorder %v2409, 3
  %vm2431 = vcmp.lt.s32.totalorder %v2409, 4
  %v2432 = vsel %vm2428, %v2412, %v2415
  %v2433 = vsel %vm2431, %v2421, 2102212464
  %v2434 = vsel %vm2430, %v2418, %v2433
  %v2435 = vsel %vm2429, %v2432, %v2434
  %v2436 = vsel %vm2428, %v2415, %v2418
  %v2437 = vsel %vm2431, %v2424, 920167782
  %v2438 = vsel %vm2430, %v2421, %v2437
  %v2439 = vsel %vm2429, %v2436, %v2438
  %v2440 = vsel %vm2428, %v2418, %v2421
  %v2441 = vsel %vm2431, %v2427, 1326507024
  %v2442 = vsel %vm2430, %v2424, %v2441
  %v2443 = vsel %vm2429, %v2440, %v2442
  %v2444 = vshll.u32 %v2404, 8
  %v2445 = vand.u32 %v2444, 65535
  %v2446 = vshrl.u32 %v2444, 16
  %v2447 = vand.u32 %v2443, 65535
  %v2448 = vshrl.u32 %v2443, 16
  %v2449 = vmul.u32 %v2445, %v2447
  %v2450 = vmul.u32 %v2445, %v2448
  %v2451 = vmul.u32 %v2446, %v2447
  %v2452 = vmul.u32 %v2446, %v2448
  %v2453 = vshll.u32 %v2450, 16
  %v2454 = vshrl.u32 %v2450, 16
  %v2455 = vshll.u32 %v2451, 16
  %v2456 = vshrl.u32 %v2451, 16
  %vm2457 = vc.u32 %v2449, %v2453
  %v2458 = vsel %vm2457, 1, 0
  %v2459 = vadd.s32 %v2449, %v2453
  %v2460 = vadd.s32 %v2452, %v2458
  %vm2461 = vc.u32 %v2459, %v2455
  %v2462 = vsel %vm2461, 1, 0
  %v2463 = vadd.s32 %v2459, %v2455
  %v2464 = vadd.s32 %v2460, %v2462
  %v2465 = vadd.s32 %v2464, %v2454
  %v2466 = vadd.s32 %v2465, %v2456
  %v2467 = vand.u32 %v2444, 65535
  %v2468 = vshrl.u32 %v2444, 16
  %v2469 = vand.u32 %v2439, 65535
  %v2470 = vshrl.u32 %v2439, 16
  %v2471 = vmul.u32 %v2467, %v2469
  %v2472 = vmul.u32 %v2467, %v2470
  %v2473 = vmul.u32 %v2468, %v2469
  %v2474 = vmul.u32 %v2468, %v2470
  %v2475 = vshll.u32 %v2472, 16
  %v2476 = vshrl.u32 %v2472, 16
  %v2477 = vshll.u32 %v2473, 16
  %v2478 = vshrl.u32 %v2473, 16
  %vm2479 = vc.u32 %v2471, %v2475
  %v2480 = vsel %vm2479, 1, 0
  %v2481 = vadd.s32 %v2471, %v2475
  %v2482 = vadd.s32 %v2474, %v2480
  %vm2483 = vc.u32 %v2481, %v2477
  %v2484 = vsel %vm2483, 1, 0
  %v2485 = vadd.s32 %v2481, %v2477
  %v2486 = vadd.s32 %v2482, %v2484
  %v2487 = vadd.s32 %v2486, %v2476
  %v2488 = vadd.s32 %v2487, %v2478
  %v2489 = vmul.u32 %v2444, %v2435
  %v2490 = vadd.s32 %v2466, %v2485
  %vm2491 = vc.u32 %v2466, %v2485
  %v2492 = vadd.s32 %v2488, 1
  %v2493 = vsel %vm2491, %v2492, %v2488
  %v2494 = vadd.s32 %v2489, %v2493
  %v2495 = vadd.s32 %v2494, 536870912
  %v2496 = vshrl.u32 %v2495, 30
  %v2497 = vshll.u32 %v2496, 30
  %v2498 = vsub.s32 %v2494, %v2497
  %vm2499 = vcmp.lt.s32.totalorder %v2498, 0
  %v2500 = vsub.s32 0, %v2498
  %v2501 = vsel %vm2499, %v2500, %v2498
  %v2502 = vclz %v2501
  %v2503 = vsub.s32 %v2502, 2
  %vm2504 = vcmp.gt.s32.totalorder 0, %v2503
  %v2505 = vsel %vm2504, 0, %v2503
  %v2506 = vsub.s32 32, %v2505
  %v2507 = vshll.u32 %v2498, %v2505
  %v2508 = vshrl.u32 %v2490, %v2506
  %v2509 = vor.u32 %v2507, %v2508
  %v2510 = vsub.s32 4294967266, %v2505
  %v2511 = vadd.s32 %v2510, 127
  %v2512 = vshll.u32 %v2511, 23
  %v2513 = vor.u32 4788187, %v2512
  %v2514 = vand.u32 2147483647, %v2513
  %v2516 = vcvt.s32.f32 %v2509
  %v2517 = vmul.f32 %v2516, %v2514
  %v2518 = vxor.u32 %v2517, 2147483648
  %v2519 = vsel %vm2398, %v2518, %v2517
  %v2520 = vsub.s32 4, %v2496
  %v2521 = vsel %vm2398, %v2520, %v2496
  %v2522 = vsel %vm2397, %v1617, %v2519
  %v2523 = vsel %vm2397, 0, %v2521
  %v2524 = vmul.f32 %v2522, %v2522
  %v2525 = vmul.f32 %v2524, -0.001358992
  %v2526 = vadd.f32 %v2525, 0.041655596
  %v2527 = vmul.f32 %v2524, %v2526
  %v2528 = vadd.f32 %v2527, -0.4999988
  %v2529 = vmul.f32 %v2524, %v2528
  %v2530 = vadd.f32 1.0, %v2529
  %v2531 = vmul.f32 %v2522, %v2522
  %v2532 = vmul.f32 %v2531, -0.00019511016
  %v2533 = vadd.f32 %v2532, 0.008332121
  %v2534 = vmul.f32 %v2531, %v2533
  %v2535 = vadd.f32 %v2534, -0.16666654
  %v2536 = vmul.f32 %v2531, %v2535
  %v2537 = vadd.f32 %v2536, 1.0
  %v2538 = vmul.f32 %v2537, %v2522
  %vm2539 = vweird.f32 %v1617
  %v2540 = vand.u32 %v2523, 3
  %vm2541 = vcmp.lt.s32.totalorder %v2540, 2
  %vm2542 = vcmp.eq.s32.totalorder %v2540, 0
  %v2543 = vxor.u32 %v2538, 2147483648
  %v2544 = vsel %vm2542, %v2530, %v2543
  %vm2545 = vcmp.eq.s32.totalorder %v2540, 2
  %v2546 = vxor.u32 %v2530, 2147483648
  %v2547 = vsel %vm2545, %v2546, %v2538
  %v2548 = vsel %vm2541, %v2544, %v2547
  %v2549 = vsel %vm2539, nan, %v2548
  %v2550 = vand.u32 2147483647, %v1618
  %vm2551 = vcmp.le.f32.partialorder %v2550, 0.7853982
  %vm2552 = vcmp.lt.s32.totalorder %v1618, 0
  %v2553 = vand.u32 %v1618, 2139095040
  %v2554 = vshrl.u32 %v2553, 23
  %v2555 = vsub.s32 %v2554, 127
  %v2556 = vand.u32 2147483647, %v1618
  %v2557 = vand.u32 %v2556, 8388607
  %v2558 = vor.u32 %v2557, 8388608
  %v2559 = vsub.s32 0, %v2558
  %v2560 = vadd.s32 %v2555, 1
  %vm2561 = vcmp.gt.s32.totalorder %v2560, 0
  %v2562 = vsel %vm2561, %v2560, 0
  %v2563 = vshrl.u32 %v2562, 5
  %v2564 = vand.u32 %v2562, 31
  %v2565 = vsub.s32 32, %v2564
  %v2566 = vshrl.u32 683565275, %v2565
  %v2567 = vshll.u32 683565275, %v2564
  %v2568 = vshrl.u32 2475754826, %v2565
  %v2569 = vor.u32 %v2567, %v2568
  %v2570 = vshll.u32 2475754826, %v2564
  %v2571 = vshrl.u32 2131351028, %v2565
  %v2572 = vor.u32 %v2570, %v2571
  %v2573 = vshll.u32 2131351028, %v2564
  %v2574 = vshrl.u32 2102212464, %v2565
  %v2575 = vor.u32 %v2573, %v2574
  %v2576 = vshll.u32 2102212464, %v2564
  %v2577 = vshrl.u32 920167782, %v2565
  %v2578 = vor.u32 %v2576, %v2577
  %v2579 = vshll.u32 920167782, %v2564
  %v2580 = vshrl.u32 1326507024, %v2565
  %v2581 = vor.u32 %v2579, %v2580
  %vm2582 = vcmp.lt.s32.totalorder %v2563, 1
  %vm2583 = vcmp.lt.s32.totalorder %v2563, 2
  %vm2584 = vcmp.lt.s32.totalorder %v2563, 3
  %vm2585 = vcmp.lt.s32.totalorder %v2563, 4
  %v2586 = vsel %vm2582, %v2566, %v2569
  %v2587 = vsel %vm2585, %v2575, 2102212464
  %v2588 = vsel %vm2584, %v2572, %v2587
  %v2589 = vsel %vm2583, %v2586, %v2588
  %v2590 = vsel %vm2582, %v2569, %v2572
  %v2591 = vsel %vm2585, %v2578, 920167782
  %v2592 = vsel %vm2584, %v2575, %v2591
  %v2593 = vsel %vm2583, %v2590, %v2592
  %v2594 = vsel %vm2582, %v2572, %v2575
  %v2595 = vsel %vm2585, %v2581, 1326507024
  %v2596 = vsel %vm2584, %v2578, %v2595
  %v2597 = vsel %vm2583, %v2594, %v2596
  %v2598 = vshll.u32 %v2558, 8
  %v2599 = vand.u32 %v2598, 65535
  %v2600 = vshrl.u32 %v2598, 16
  %v2601 = vand.u32 %v2597, 65535
  %v2602 = vshrl.u32 %v2597, 16
  %v2603 = vmul.u32 %v2599, %v2601
  %v2604 = vmul.u32 %v2599, %v2602
  %v2605 = vmul.u32 %v2600, %v2601
  %v2606 = vmul.u32 %v2600, %v2602
  %v2607 = vshll.u32 %v2604, 16
  %v2608 = vshrl.u32 %v2604, 16
  %v2609 = vshll.u32 %v2605, 16
  %v2610 = vshrl.u32 %v2605, 16
  %vm2611 = vc.u32 %v2603, %v2607
  %v2612 = vsel %vm2611, 1, 0
  %v2613 = vadd.s32 %v2603, %v2607
  %v2614 = vadd.s32 %v2606, %v2612
  %vm2615 = vc.u32 %v2613, %v2609
  %v2616 = vsel %vm2615, 1, 0
  %v2617 = vadd.s32 %v2613, %v2609
  %v2618 = vadd.s32 %v2614, %v2616
  %v2619 = vadd.s32 %v2618, %v2608
  %v2620 = vadd.s32 %v2619, %v2610
  %v2621 = vand.u32 %v2598, 65535
  %v2622 = vshrl.u32 %v2598, 16
  %v2623 = vand.u32 %v2593, 65535
  %v2624 = vshrl.u32 %v2593, 16
  %v2625 = vmul.u32 %v2621, %v2623
  %v2626 = vmul.u32 %v2621, %v2624
  %v2627 = vmul.u32 %v2622, %v2623
  %v2628 = vmul.u32 %v2622, %v2624
  %v2629 = vshll.u32 %v2626, 16
  %v2630 = vshrl.u32 %v2626, 16
  %v2631 = vshll.u32 %v2627, 16
  %v2632 = vshrl.u32 %v2627, 16
  %vm2633 = vc.u32 %v2625, %v2629
  %v2634 = vsel %vm2633, 1, 0
  %v2635 = vadd.s32 %v2625, %v2629
  %v2636 = vadd.s32 %v2628, %v2634
  %vm2637 = vc.u32 %v2635, %v2631
  %v2638 = vsel %vm2637, 1, 0
  %v2639 = vadd.s32 %v2635, %v2631
  %v2640 = vadd.s32 %v2636, %v2638
  %v2641 = vadd.s32 %v2640, %v2630
  %v2642 = vadd.s32 %v2641, %v2632
  %v2643 = vmul.u32 %v2598, %v2589
  %v2644 = vadd.s32 %v2620, %v2639
  %vm2645 = vc.u32 %v2620, %v2639
  %v2646 = vadd.s32 %v2642, 1
  %v2647 = vsel %vm2645, %v2646, %v2642
  %v2648 = vadd.s32 %v2643, %v2647
  %v2649 = vadd.s32 %v2648, 536870912
  %v2650 = vshrl.u32 %v2649, 30
  %v2651 = vshll.u32 %v2650, 30
  %v2652 = vsub.s32 %v2648, %v2651
  %vm2653 = vcmp.lt.s32.totalorder %v2652, 0
  %v2654 = vsub.s32 0, %v2652
  %v2655 = vsel %vm2653, %v2654, %v2652
  %v2656 = vclz %v2655
  %v2657 = vsub.s32 %v2656, 2
  %vm2658 = vcmp.gt.s32.totalorder 0, %v2657
  %v2659 = vsel %vm2658, 0, %v2657
  %v2660 = vsub.s32 32, %v2659
  %v2661 = vshll.u32 %v2652, %v2659
  %v2662 = vshrl.u32 %v2644, %v2660
  %v2663 = vor.u32 %v2661, %v2662
  %v2664 = vsub.s32 4294967266, %v2659
  %v2665 = vadd.s32 %v2664, 127
  %v2666 = vshll.u32 %v2665, 23
  %v2667 = vor.u32 4788187, %v2666
  %v2668 = vand.u32 2147483647, %v2667
  %v2670 = vcvt.s32.f32 %v2663
  %v2671 = vmul.f32 %v2670, %v2668
  %v2672 = vxor.u32 %v2671, 2147483648
  %v2673 = vsel %vm2552, %v2672, %v2671
  %v2674 = vsub.s32 4, %v2650
  %v2675 = vsel %vm2552, %v2674, %v2650
  %v2676 = vsel %vm2551, %v1618, %v2673
  %v2677 = vsel %vm2551, 0, %v2675
  %v2678 = vmul.f32 %v2676, %v2676
  %v2679 = vmul.f32 %v2678, -0.001358992
  %v2680 = vadd.f32 %v2679, 0.041655596
  %v2681 = vmul.f32 %v2678, %v2680
  %v2682 = vadd.f32 %v2681, -0.4999988
  %v2683 = vmul.f32 %v2678, %v2682
  %v2684 = vadd.f32 1.0, %v2683
  %v2685 = vmul.f32 %v2676, %v2676
  %v2686 = vmul.f32 %v2685, -0.00019511016
  %v2687 = vadd.f32 %v2686, 0.008332121
  %v2688 = vmul.f32 %v2685, %v2687
  %v2689 = vadd.f32 %v2688, -0.16666654
  %v2690 = vmul.f32 %v2685, %v2689
  %v2691 = vadd.f32 %v2690, 1.0
  %v2692 = vmul.f32 %v2691, %v2676
  %vm2693 = vweird.f32 %v1618
  %v2694 = vand.u32 %v2677, 3
  %vm2695 = vcmp.lt.s32.totalorder %v2694, 2
  %vm2696 = vcmp.eq.s32.totalorder %v2694, 0
  %v2697 = vxor.u32 %v2692, 2147483648
  %v2698 = vsel %vm2696, %v2684, %v2697
  %vm2699 = vcmp.eq.s32.totalorder %v2694, 2
  %v2700 = vxor.u32 %v2684, 2147483648
  %v2701 = vsel %vm2699, %v2700, %v2692
  %v2702 = vsel %vm2695, %v2698, %v2701
  %v2703 = vsel %vm2693, nan, %v2702
  %v2704 = vand.u32 2147483647, %v1619
  %vm2705 = vcmp.le.f32.partialorder %v2704, 0.7853982
  %vm2706 = vcmp.lt.s32.totalorder %v1619, 0
  %v2707 = vand.u32 %v1619, 2139095040
  %v2708 = vshrl.u32 %v2707, 23
  %v2709 = vsub.s32 %v2708, 127
  %v2710 = vand.u32 2147483647, %v1619
  %v2711 = vand.u32 %v2710, 8388607
  %v2712 = vor.u32 %v2711, 8388608
  %v2713 = vsub.s32 0, %v2712
  %v2714 = vadd.s32 %v2709, 1
  %vm2715 = vcmp.gt.s32.totalorder %v2714, 0
  %v2716 = vsel %vm2715, %v2714, 0
  %v2717 = vshrl.u32 %v2716, 5
  %v2718 = vand.u32 %v2716, 31
  %v2719 = vsub.s32 32, %v2718
  %v2720 = vshrl.u32 683565275, %v2719
  %v2721 = vshll.u32 683565275, %v2718
  %v2722 = vshrl.u32 2475754826, %v2719
  %v2723 = vor.u32 %v2721, %v2722
  %v2724 = vshll.u32 2475754826, %v2718
  %v2725 = vshrl.u32 2131351028, %v2719
  %v2726 = vor.u32 %v2724, %v2725
  %v2727 = vshll.u32 2131351028, %v2718
  %v2728 = vshrl.u32 2102212464, %v2719
  %v2729 = vor.u32 %v2727, %v2728
  %v2730 = vshll.u32 2102212464, %v2718
  %v2731 = vshrl.u32 920167782, %v2719
  %v2732 = vor.u32 %v2730, %v2731
  %v2733 = vshll.u32 920167782, %v2718
  %v2734 = vshrl.u32 1326507024, %v2719
  %v2735 = vor.u32 %v2733, %v2734
  %vm2736 = vcmp.lt.s32.totalorder %v2717, 1
  %vm2737 = vcmp.lt.s32.totalorder %v2717, 2
  %vm2738 = vcmp.lt.s32.totalorder %v2717, 3
  %vm2739 = vcmp.lt.s32.totalorder %v2717, 4
  %v2740 = vsel %vm2736, %v2720, %v2723
  %v2741 = vsel %vm2739, %v2729, 2102212464
  %v2742 = vsel %vm2738, %v2726, %v2741
  %v2743 = vsel %vm2737, %v2740, %v2742
  %v2744 = vsel %vm2736, %v2723, %v2726
  %v2745 = vsel %vm2739, %v2732, 920167782
  %v2746 = vsel %vm2738, %v2729, %v2745
  %v2747 = vsel %vm2737, %v2744, %v2746
  %v2748 = vsel %vm2736, %v2726, %v2729
  %v2749 = vsel %vm2739, %v2735, 1326507024
  %v2750 = vsel %vm2738, %v2732, %v2749
  %v2751 = vsel %vm2737, %v2748, %v2750
  %v2752 = vshll.u32 %v2712, 8
  %v2753 = vand.u32 %v2752, 65535
  %v2754 = vshrl.u32 %v2752, 16
  %v2755 = vand.u32 %v2751, 65535
  %v2756 = vshrl.u32 %v2751, 16
  %v2757 = vmul.u32 %v2753, %v2755
  %v2758 = vmul.u32 %v2753, %v2756
  %v2759 = vmul.u32 %v2754, %v2755
  %v2760 = vmul.u32 %v2754, %v2756
  %v2761 = vshll.u32 %v2758, 16
  %v2762 = vshrl.u32 %v2758, 16
  %v2763 = vshll.u32 %v2759, 16
  %v2764 = vshrl.u32 %v2759, 16
  %vm2765 = vc.u32 %v2757, %v2761
  %v2766 = vsel %vm2765, 1, 0
  %v2767 = vadd.s32 %v2757, %v2761
  %v2768 = vadd.s32 %v2760, %v2766
  %vm2769 = vc.u32 %v2767, %v2763
  %v2770 = vsel %vm2769, 1, 0
  %v2771 = vadd.s32 %v2767, %v2763
  %v2772 = vadd.s32 %v2768, %v2770
  %v2773 = vadd.s32 %v2772, %v2762
  %v2774 = vadd.s32 %v2773, %v2764
  %v2775 = vand.u32 %v2752, 65535
  %v2776 = vshrl.u32 %v2752, 16
  %v2777 = vand.u32 %v2747, 65535
  %v2778 = vshrl.u32 %v2747, 16
  %v2779 = vmul.u32 %v2775, %v2777
  %v2780 = vmul.u32 %v2775, %v2778
  %v2781 = vmul.u32 %v2776, %v2777
  %v2782 = vmul.u32 %v2776, %v2778
  %v2783 = vshll.u32 %v2780, 16
  %v2784 = vshrl.u32 %v2780, 16
  %v2785 = vshll.u32 %v2781, 16
  %v2786 = vshrl.u32 %v2781, 16
  %vm2787 = vc.u32 %v2779, %v2783
  %v2788 = vsel %vm2787, 1, 0
  %v2789 = vadd.s32 %v2779, %v2783
  %v2790 = vadd.s32 %v2782, %v2788
  %vm2791 = vc.u32 %v2789, %v2785
  %v2792 = vsel %vm2791, 1, 0
  %v2793 = vadd.s32 %v2789, %v2785
  %v2794 = vadd.s32 %v2790, %v2792
  %v2795 = vadd.s32 %v2794, %v2784
  %v2796 = vadd.s32 %v2795, %v2786
  %v2797 = vmul.u32 %v2752, %v2743
  %v2798 = vadd.s32 %v2774, %v2793
  %vm2799 = vc.u32 %v2774, %v2793
  %v2800 = vadd.s32 %v2796, 1
  %v2801 = vsel %vm2799, %v2800, %v2796
  %v2802 = vadd.s32 %v2797, %v2801
  %v2803 = vadd.s32 %v2802, 536870912
  %v2804 = vshrl.u32 %v2803, 30
  %v2805 = vshll.u32 %v2804, 30
  %v2806 = vsub.s32 %v2802, %v2805
  %vm2807 = vcmp.lt.s32.totalorder %v2806, 0
  %v2808 = vsub.s32 0, %v2806
  %v2809 = vsel %vm2807, %v2808, %v2806
  %v2810 = vclz %v2809
  %v2811 = vsub.s32 %v2810, 2
  %vm2812 = vcmp.gt.s32.totalorder 0, %v2811
  %v2813 = vsel %vm2812, 0, %v2811
  %v2814 = vsub.s32 32, %v2813
  %v2815 = vshll.u32 %v2806, %v2813
  %v2816 = vshrl.u32 %v2798, %v2814
  %v2817 = vor.u32 %v2815, %v2816
  %v2818 = vsub.s32 4294967266, %v2813
  %v2819 = vadd.s32 %v2818, 127
  %v2820 = vshll.u32 %v2819, 23
  %v2821 = vor.u32 4788187, %v2820
  %v2822 = vand.u32 2147483647, %v2821
  %v2824 = vcvt.s32.f32 %v2817
  %v2825 = vmul.f32 %v2824, %v2822
  %v2826 = vxor.u32 %v2825, 2147483648
  %v2827 = vsel %vm2706, %v2826, %v2825
  %v2828 = vsub.s32 4, %v2804
  %v2829 = vsel %vm2706, %v2828, %v2804
  %v2830 = vsel %vm2705, %v1619, %v2827
  %v2831 = vsel %vm2705, 0, %v2829
  %v2832 = vmul.f32 %v2830, %v2830
  %v2833 = vmul.f32 %v2832, -0.001358992
  %v2834 = vadd.f32 %v2833, 0.041655596
  %v2835 = vmul.f32 %v2832, %v2834
  %v2836 = vadd.f32 %v2835, -0.4999988
  %v2837 = vmul.f32 %v2832, %v2836
  %v2838 = vadd.f32 1.0, %v2837
  %v2839 = vmul.f32 %v2830, %v2830
  %v2840 = vmul.f32 %v2839, -0.00019511016
  %v2841 = vadd.f32 %v2840, 0.008332121
  %v2842 = vmul.f32 %v2839, %v2841
  %v2843 = vadd.f32 %v2842, -0.16666654
  %v2844 = vmul.f32 %v2839, %v2843
  %v2845 = vadd.f32 %v2844, 1.0
  %v2846 = vmul.f32 %v2845, %v2830
  %vm2847 = vweird.f32 %v1619
  %v2848 = vand.u32 %v2831, 3
  %vm2849 = vcmp.lt.s32.totalorder %v2848, 2
  %vm2850 = vcmp.eq.s32.totalorder %v2848, 0
  %v2851 = vxor.u32 %v2846, 2147483648
  %v2852 = vsel %vm2850, %v2838, %v2851
  %vm2853 = vcmp.eq.s32.totalorder %v2848, 2
  %v2854 = vxor.u32 %v2838, 2147483648
  %v2855 = vsel %vm2853, %v2854, %v2846
  %v2856 = vsel %vm2849, %v2852, %v2855
  %v2857 = vsel %vm2847, nan, %v2856
  %v2858 = vand.u32 2147483647, %v1620
  %vm2859 = vcmp.le.f32.partialorder %v2858, 0.7853982
  %vm2860 = vcmp.lt.s32.totalorder %v1620, 0
  %v2861 = vand.u32 %v1620, 2139095040
  %v2862 = vshrl.u32 %v2861, 23
  %v2863 = vsub.s32 %v2862, 127
  %v2864 = vand.u32 2147483647, %v1620
  %v2865 = vand.u32 %v2864, 8388607
  %v2866 = vor.u32 %v2865, 8388608
  %v2867 = vsub.s32 0, %v2866
  %v2868 = vadd.s32 %v2863, 1
  %vm2869 = vcmp.gt.s32.totalorder %v2868, 0
  %v2870 = vsel %vm2869, %v2868, 0
  %v2871 = vshrl.u32 %v2870, 5
  %v2872 = vand.u32 %v2870, 31
  %v2873 = vsub.s32 32, %v2872
  %v2874 = vshrl.u32 683565275, %v2873
  %v2875 = vshll.u32 683565275, %v2872
  %v2876 = vshrl.u32 2475754826, %v2873
  %v2877 = vor.u32 %v2875, %v2876
  %v2878 = vshll.u32 2475754826, %v2872
  %v2879 = vshrl.u32 2131351028, %v2873
  %v2880 = vor.u32 %v2878, %v2879
  %v2881 = vshll.u32 2131351028, %v2872
  %v2882 = vshrl.u32 2102212464, %v2873
  %v2883 = vor.u32 %v2881, %v2882
  %v2884 = vshll.u32 2102212464, %v2872
  %v2885 = vshrl.u32 920167782, %v2873
  %v2886 = vor.u32 %v2884, %v2885
  %v2887 = vshll.u32 920167782, %v2872
  %v2888 = vshrl.u32 1326507024, %v2873
  %v2889 = vor.u32 %v2887, %v2888
  %vm2890 = vcmp.lt.s32.totalorder %v2871, 1
  %vm2891 = vcmp.lt.s32.totalorder %v2871, 2
  %vm2892 = vcmp.lt.s32.totalorder %v2871, 3
  %vm2893 = vcmp.lt.s32.totalorder %v2871, 4
  %v2894 = vsel %vm2890, %v2874, %v2877
  %v2895 = vsel %vm2893, %v2883, 2102212464
  %v2896 = vsel %vm2892, %v2880, %v2895
  %v2897 = vsel %vm2891, %v2894, %v2896
  %v2898 = vsel %vm2890, %v2877, %v2880
  %v2899 = vsel %vm2893, %v2886, 920167782
  %v2900 = vsel %vm2892, %v2883, %v2899
  %v2901 = vsel %vm2891, %v2898, %v2900
  %v2902 = vsel %vm2890, %v2880, %v2883
  %v2903 = vsel %vm2893, %v2889, 1326507024
  %v2904 = vsel %vm2892, %v2886, %v2903
  %v2905 = vsel %vm2891, %v2902, %v2904
  %v2906 = vshll.u32 %v2866, 8
  %v2907 = vand.u32 %v2906, 65535
  %v2908 = vshrl.u32 %v2906, 16
  %v2909 = vand.u32 %v2905, 65535
  %v2910 = vshrl.u32 %v2905, 16
  %v2911 = vmul.u32 %v2907, %v2909
  %v2912 = vmul.u32 %v2907, %v2910
  %v2913 = vmul.u32 %v2908, %v2909
  %v2914 = vmul.u32 %v2908, %v2910
  %v2915 = vshll.u32 %v2912, 16
  %v2916 = vshrl.u32 %v2912, 16
  %v2917 = vshll.u32 %v2913, 16
  %v2918 = vshrl.u32 %v2913, 16
  %vm2919 = vc.u32 %v2911, %v2915
  %v2920 = vsel %vm2919, 1, 0
  %v2921 = vadd.s32 %v2911, %v2915
  %v2922 = vadd.s32 %v2914, %v2920
  %vm2923 = vc.u32 %v2921, %v2917
  %v2924 = vsel %vm2923, 1, 0
  %v2925 = vadd.s32 %v2921, %v2917
  %v2926 = vadd.s32 %v2922, %v2924
  %v2927 = vadd.s32 %v2926, %v2916
  %v2928 = vadd.s32 %v2927, %v2918
  %v2929 = vand.u32 %v2906, 65535
  %v2930 = vshrl.u32 %v2906, 16
  %v2931 = vand.u32 %v2901, 65535
  %v2932 = vshrl.u32 %v2901, 16
  %v2933 = vmul.u32 %v2929, %v2931
  %v2934 = vmul.u32 %v2929, %v2932
  %v2935 = vmul.u32 %v2930, %v2931
  %v2936 = vmul.u32 %v2930, %v2932
  %v2937 = vshll.u32 %v2934, 16
  %v2938 = vshrl.u32 %v2934, 16
  %v2939 = vshll.u32 %v2935, 16
  %v2940 = vshrl.u32 %v2935, 16
  %vm2941 = vc.u32 %v2933, %v2937
  %v2942 = vsel %vm2941, 1, 0
  %v2943 = vadd.s32 %v2933, %v2937
  %v2944 = vadd.s32 %v2936, %v2942
  %vm2945 = vc.u32 %v2943, %v2939
  %v2946 = vsel %vm2945, 1, 0
  %v2947 = vadd.s32 %v2943, %v2939
  %v2948 = vadd.s32 %v2944, %v2946
  %v2949 = vadd.s32 %v2948, %v2938
  %v2950 = vadd.s32 %v2949, %v2940
  %v2951 = vmul.u32 %v2906, %v2897
  %v2952 = vadd.s32 %v2928, %v2947
  %vm2953 = vc.u32 %v2928, %v2947
  %v2954 = vadd.s32 %v2950, 1
  %v2955 = vsel %vm2953, %v2954, %v2950
  %v2956 = vadd.s32 %v2951, %v2955
  %v2957 = vadd.s32 %v2956, 536870912
  %v2958 = vshrl.u32 %v2957, 30
  %v2959 = vshll.u32 %v2958, 30
  %v2960 = vsub.s32 %v2956, %v2959
  %vm2961 = vcmp.lt.s32.totalorder %v2960, 0
  %v2962 = vsub.s32 0, %v2960
  %v2963 = vsel %vm2961, %v2962, %v2960
  %v2964 = vclz %v2963
  %v2965 = vsub.s32 %v2964, 2
  %vm2966 = vcmp.gt.s32.totalorder 0, %v2965
  %v2967 = vsel %vm2966, 0, %v2965
  %v2968 = vsub.s32 32, %v2967
  %v2969 = vshll.u32 %v2960, %v2967
  %v2970 = vshrl.u32 %v2952, %v2968
  %v2971 = vor.u32 %v2969, %v2970
  %v2972 = vsub.s32 4294967266, %v2967
  %v2973 = vadd.s32 %v2972, 127
  %v2974 = vshll.u32 %v2973, 23
  %v2975 = vor.u32 4788187, %v2974
  %v2976 = vand.u32 2147483647, %v2975
  %v2978 = vcvt.s32.f32 %v2971
  %v2979 = vmul.f32 %v2978, %v2976
  %v2980 = vxor.u32 %v2979, 2147483648
  %v2981 = vsel %vm2860, %v2980, %v2979
  %v2982 = vsub.s32 4, %v2958
  %v2983 = vsel %vm2860, %v2982, %v2958
  %v2984 = vsel %vm2859, %v1620, %v2981
  %v2985 = vsel %vm2859, 0, %v2983
  %v2986 = vmul.f32 %v2984, %v2984
  %v2987 = vmul.f32 %v2986, -0.001358992
  %v2988 = vadd.f32 %v2987, 0.041655596
  %v2989 = vmul.f32 %v2986, %v2988
  %v2990 = vadd.f32 %v2989, -0.4999988
  %v2991 = vmul.f32 %v2986, %v2990
  %v2992 = vadd.f32 1.0, %v2991
  %v2993 = vmul.f32 %v2984, %v2984
  %v2994 = vmul.f32 %v2993, -0.00019511016
  %v2995 = vadd.f32 %v2994, 0.008332121
  %v2996 = vmul.f32 %v2993, %v2995
  %v2997 = vadd.f32 %v2996, -0.16666654
  %v2998 = vmul.f32 %v2993, %v2997
  %v2999 = vadd.f32 %v2998, 1.0
  %v3000 = vmul.f32 %v2999, %v2984
  %vm3001 = vweird.f32 %v1620
  %v3002 = vand.u32 %v2985, 3
  %vm3003 = vcmp.lt.s32.totalorder %v3002, 2
  %vm3004 = vcmp.eq.s32.totalorder %v3002, 0
  %v3005 = vxor.u32 %v3000, 2147483648
  %v3006 = vsel %vm3004, %v2992, %v3005
  %vm3007 = vcmp.eq.s32.totalorder %v3002, 2
  %v3008 = vxor.u32 %v2992, 2147483648
  %v3009 = vsel %vm3007, %v3008, %v3000
  %v3010 = vsel %vm3003, %v3006, %v3009
  %v3011 = vsel %vm3001, nan, %v3010
  %v3012 = vand.u32 2147483647, %v1621
  %vm3013 = vcmp.le.f32.partialorder %v3012, 0.7853982
  %vm3014 = vcmp.lt.s32.totalorder %v1621, 0
  %v3015 = vand.u32 %v1621, 2139095040
  %v3016 = vshrl.u32 %v3015, 23
  %v3017 = vsub.s32 %v3016, 127
  %v3018 = vand.u32 2147483647, %v1621
  %v3019 = vand.u32 %v3018, 8388607
  %v3020 = vor.u32 %v3019, 8388608
  %v3021 = vsub.s32 0, %v3020
  %v3022 = vadd.s32 %v3017, 1
  %vm3023 = vcmp.gt.s32.totalorder %v3022, 0
  %v3024 = vsel %vm3023, %v3022, 0
  %v3025 = vshrl.u32 %v3024, 5
  %v3026 = vand.u32 %v3024, 31
  %v3027 = vsub.s32 32, %v3026
  %v3028 = vshrl.u32 683565275, %v3027
  %v3029 = vshll.u32 683565275, %v3026
  %v3030 = vshrl.u32 2475754826, %v3027
  %v3031 = vor.u32 %v3029, %v3030
  %v3032 = vshll.u32 2475754826, %v3026
  %v3033 = vshrl.u32 2131351028, %v3027
  %v3034 = vor.u32 %v3032, %v3033
  %v3035 = vshll.u32 2131351028, %v3026
  %v3036 = vshrl.u32 2102212464, %v3027
  %v3037 = vor.u32 %v3035, %v3036
  %v3038 = vshll.u32 2102212464, %v3026
  %v3039 = vshrl.u32 920167782, %v3027
  %v3040 = vor.u32 %v3038, %v3039
  %v3041 = vshll.u32 920167782, %v3026
  %v3042 = vshrl.u32 1326507024, %v3027
  %v3043 = vor.u32 %v3041, %v3042
  %vm3044 = vcmp.lt.s32.totalorder %v3025, 1
  %vm3045 = vcmp.lt.s32.totalorder %v3025, 2
  %vm3046 = vcmp.lt.s32.totalorder %v3025, 3
  %vm3047 = vcmp.lt.s32.totalorder %v3025, 4
  %v3048 = vsel %vm3044, %v3028, %v3031
  %v3049 = vsel %vm3047, %v3037, 2102212464
  %v3050 = vsel %vm3046, %v3034, %v3049
  %v3051 = vsel %vm3045, %v3048, %v3050
  %v3052 = vsel %vm3044, %v3031, %v3034
  %v3053 = vsel %vm3047, %v3040, 920167782
  %v3054 = vsel %vm3046, %v3037, %v3053
  %v3055 = vsel %vm3045, %v3052, %v3054
  %v3056 = vsel %vm3044, %v3034, %v3037
  %v3057 = vsel %vm3047, %v3043, 1326507024
  %v3058 = vsel %vm3046, %v3040, %v3057
  %v3059 = vsel %vm3045, %v3056, %v3058
  %v3060 = vshll.u32 %v3020, 8
  %v3061 = vand.u32 %v3060, 65535
  %v3062 = vshrl.u32 %v3060, 16
  %v3063 = vand.u32 %v3059, 65535
  %v3064 = vshrl.u32 %v3059, 16
  %v3065 = vmul.u32 %v3061, %v3063
  %v3066 = vmul.u32 %v3061, %v3064
  %v3067 = vmul.u32 %v3062, %v3063
  %v3068 = vmul.u32 %v3062, %v3064
  %v3069 = vshll.u32 %v3066, 16
  %v3070 = vshrl.u32 %v3066, 16
  %v3071 = vshll.u32 %v3067, 16
  %v3072 = vshrl.u32 %v3067, 16
  %vm3073 = vc.u32 %v3065, %v3069
  %v3074 = vsel %vm3073, 1, 0
  %v3075 = vadd.s32 %v3065, %v3069
  %v3076 = vadd.s32 %v3068, %v3074
  %vm3077 = vc.u32 %v3075, %v3071
  %v3078 = vsel %vm3077, 1, 0
  %v3079 = vadd.s32 %v3075, %v3071
  %v3080 = vadd.s32 %v3076, %v3078
  %v3081 = vadd.s32 %v3080, %v3070
  %v3082 = vadd.s32 %v3081, %v3072
  %v3083 = vand.u32 %v3060, 65535
  %v3084 = vshrl.u32 %v3060, 16
  %v3085 = vand.u32 %v3055, 65535
  %v3086 = vshrl.u32 %v3055, 16
  %v3087 = vmul.u32 %v3083, %v3085
  %v3088 = vmul.u32 %v3083, %v3086
  %v3089 = vmul.u32 %v3084, %v3085
  %v3090 = vmul.u32 %v3084, %v3086
  %v3091 = vshll.u32 %v3088, 16
  %v3092 = vshrl.u32 %v3088, 16
  %v3093 = vshll.u32 %v3089, 16
  %v3094 = vshrl.u32 %v3089, 16
  %vm3095 = vc.u32 %v3087, %v3091
  %v3096 = vsel %vm3095, 1, 0
  %v3097 = vadd.s32 %v3087, %v3091
  %v3098 = vadd.s32 %v3090, %v3096
  %vm3099 = vc.u32 %v3097, %v3093
  %v3100 = vsel %vm3099, 1, 0
  %v3101 = vadd.s32 %v3097, %v3093
  %v3102 = vadd.s32 %v3098, %v3100
  %v3103 = vadd.s32 %v3102, %v3092
  %v3104 = vadd.s32 %v3103, %v3094
  %v3105 = vmul.u32 %v3060, %v3051
  %v3106 = vadd.s32 %v3082, %v3101
  %vm3107 = vc.u32 %v3082, %v3101
  %v3108 = vadd.s32 %v3104, 1
  %v3109 = vsel %vm3107, %v3108, %v3104
  %v3110 = vadd.s32 %v3105, %v3109
  %v3111 = vadd.s32 %v3110, 536870912
  %v3112 = vshrl.u32 %v3111, 30
  %v3113 = vshll.u32 %v3112, 30
  %v3114 = vsub.s32 %v3110, %v3113
  %vm3115 = vcmp.lt.s32.totalorder %v3114, 0
  %v3116 = vsub.s32 0, %v3114
  %v3117 = vsel %vm3115, %v3116, %v3114
  %v3118 = vclz %v3117
  %v3119 = vsub.s32 %v3118, 2
  %vm3120 = vcmp.gt.s32.totalorder 0, %v3119
  %v3121 = vsel %vm3120, 0, %v3119
  %v3122 = vsub.s32 32, %v3121
  %v3123 = vshll.u32 %v3114, %v3121
  %v3124 = vshrl.u32 %v3106, %v3122
  %v3125 = vor.u32 %v3123, %v3124
  %v3126 = vsub.s32 4294967266, %v3121
  %v3127 = vadd.s32 %v3126, 127
  %v3128 = vshll.u32 %v3127, 23
  %v3129 = vor.u32 4788187, %v3128
  %v3130 = vand.u32 2147483647, %v3129
  %v3132 = vcvt.s32.f32 %v3125
  %v3133 = vmul.f32 %v3132, %v3130
  %v3134 = vxor.u32 %v3133, 2147483648
  %v3135 = vsel %vm3014, %v3134, %v3133
  %v3136 = vsub.s32 4, %v3112
  %v3137 = vsel %vm3014, %v3136, %v3112
  %v3138 = vsel %vm3013, %v1621, %v3135
  %v3139 = vsel %vm3013, 0, %v3137
  %v3140 = vmul.f32 %v3138, %v3138
  %v3141 = vmul.f32 %v3140, -0.001358992
  %v3142 = vadd.f32 %v3141, 0.041655596
  %v3143 = vmul.f32 %v3140, %v3142
  %v3144 = vadd.f32 %v3143, -0.4999988
  %v3145 = vmul.f32 %v3140, %v3144
  %v3146 = vadd.f32 1.0, %v3145
  %v3147 = vmul.f32 %v3138, %v3138
  %v3148 = vmul.f32 %v3147, -0.00019511016
  %v3149 = vadd.f32 %v3148, 0.008332121
  %v3150 = vmul.f32 %v3147, %v3149
  %v3151 = vadd.f32 %v3150, -0.16666654
  %v3152 = vmul.f32 %v3147, %v3151
  %v3153 = vadd.f32 %v3152, 1.0
  %v3154 = vmul.f32 %v3153, %v3138
  %vm3155 = vweird.f32 %v1621
  %v3156 = vand.u32 %v3139, 3
  %vm3157 = vcmp.lt.s32.totalorder %v3156, 2
  %vm3158 = vcmp.eq.s32.totalorder %v3156, 0
  %v3159 = vxor.u32 %v3154, 2147483648
  %v3160 = vsel %vm3158, %v3146, %v3159
  %vm3161 = vcmp.eq.s32.totalorder %v3156, 2
  %v3162 = vxor.u32 %v3146, 2147483648
  %v3163 = vsel %vm3161, %v3162, %v3154
  %v3164 = vsel %vm3157, %v3160, %v3163
  %v3165 = vsel %vm3155, nan, %v3164
  %v3166 = vand.u32 2147483647, %v1622
  %vm3167 = vcmp.le.f32.partialorder %v3166, 0.7853982
  %vm3168 = vcmp.lt.s32.totalorder %v1622, 0
  %v3169 = vand.u32 %v1622, 2139095040
  %v3170 = vshrl.u32 %v3169, 23
  %v3171 = vsub.s32 %v3170, 127
  %v3172 = vand.u32 2147483647, %v1622
  %v3173 = vand.u32 %v3172, 8388607
  %v3174 = vor.u32 %v3173, 8388608
  %v3175 = vsub.s32 0, %v3174
  %v3176 = vadd.s32 %v3171, 1
  %vm3177 = vcmp.gt.s32.totalorder %v3176, 0
  %v3178 = vsel %vm3177, %v3176, 0
  %v3179 = vshrl.u32 %v3178, 5
  %v3180 = vand.u32 %v3178, 31
  %v3181 = vsub.s32 32, %v3180
  %v3182 = vshrl.u32 683565275, %v3181
  %v3183 = vshll.u32 683565275, %v3180
  %v3184 = vshrl.u32 2475754826, %v3181
  %v3185 = vor.u32 %v3183, %v3184
  %v3186 = vshll.u32 2475754826, %v3180
  %v3187 = vshrl.u32 2131351028, %v3181
  %v3188 = vor.u32 %v3186, %v3187
  %v3189 = vshll.u32 2131351028, %v3180
  %v3190 = vshrl.u32 2102212464, %v3181
  %v3191 = vor.u32 %v3189, %v3190
  %v3192 = vshll.u32 2102212464, %v3180
  %v3193 = vshrl.u32 920167782, %v3181
  %v3194 = vor.u32 %v3192, %v3193
  %v3195 = vshll.u32 920167782, %v3180
  %v3196 = vshrl.u32 1326507024, %v3181
  %v3197 = vor.u32 %v3195, %v3196
  %vm3198 = vcmp.lt.s32.totalorder %v3179, 1
  %vm3199 = vcmp.lt.s32.totalorder %v3179, 2
  %vm3200 = vcmp.lt.s32.totalorder %v3179, 3
  %vm3201 = vcmp.lt.s32.totalorder %v3179, 4
  %v3202 = vsel %vm3198, %v3182, %v3185
  %v3203 = vsel %vm3201, %v3191, 2102212464
  %v3204 = vsel %vm3200, %v3188, %v3203
  %v3205 = vsel %vm3199, %v3202, %v3204
  %v3206 = vsel %vm3198, %v3185, %v3188
  %v3207 = vsel %vm3201, %v3194, 920167782
  %v3208 = vsel %vm3200, %v3191, %v3207
  %v3209 = vsel %vm3199, %v3206, %v3208
  %v3210 = vsel %vm3198, %v3188, %v3191
  %v3211 = vsel %vm3201, %v3197, 1326507024
  %v3212 = vsel %vm3200, %v3194, %v3211
  %v3213 = vsel %vm3199, %v3210, %v3212
  %v3214 = vshll.u32 %v3174, 8
  %v3215 = vand.u32 %v3214, 65535
  %v3216 = vshrl.u32 %v3214, 16
  %v3217 = vand.u32 %v3213, 65535
  %v3218 = vshrl.u32 %v3213, 16
  %v3219 = vmul.u32 %v3215, %v3217
  %v3220 = vmul.u32 %v3215, %v3218
  %v3221 = vmul.u32 %v3216, %v3217
  %v3222 = vmul.u32 %v3216, %v3218
  %v3223 = vshll.u32 %v3220, 16
  %v3224 = vshrl.u32 %v3220, 16
  %v3225 = vshll.u32 %v3221, 16
  %v3226 = vshrl.u32 %v3221, 16
  %vm3227 = vc.u32 %v3219, %v3223
  %v3228 = vsel %vm3227, 1, 0
  %v3229 = vadd.s32 %v3219, %v3223
  %v3230 = vadd.s32 %v3222, %v3228
  %vm3231 = vc.u32 %v3229, %v3225
  %v3232 = vsel %vm3231, 1, 0
  %v3233 = vadd.s32 %v3229, %v3225
  %v3234 = vadd.s32 %v3230, %v3232
  %v3235 = vadd.s32 %v3234, %v3224
  %v3236 = vadd.s32 %v3235, %v3226
  %v3237 = vand.u32 %v3214, 65535
  %v3238 = vshrl.u32 %v3214, 16
  %v3239 = vand.u32 %v3209, 65535
  %v3240 = vshrl.u32 %v3209, 16
  %v3241 = vmul.u32 %v3237, %v3239
  %v3242 = vmul.u32 %v3237, %v3240
  %v3243 = vmul.u32 %v3238, %v3239
  %v3244 = vmul.u32 %v3238, %v3240
  %v3245 = vshll.u32 %v3242, 16
  %v3246 = vshrl.u32 %v3242, 16
  %v3247 = vshll.u32 %v3243, 16
  %v3248 = vshrl.u32 %v3243, 16
  %vm3249 = vc.u32 %v3241, %v3245
  %v3250 = vsel %vm3249, 1, 0
  %v3251 = vadd.s32 %v3241, %v3245
  %v3252 = vadd.s32 %v3244, %v3250
  %vm3253 = vc.u32 %v3251, %v3247
  %v3254 = vsel %vm3253, 1, 0
  %v3255 = vadd.s32 %v3251, %v3247
  %v3256 = vadd.s32 %v3252, %v3254
  %v3257 = vadd.s32 %v3256, %v3246
  %v3258 = vadd.s32 %v3257, %v3248
  %v3259 = vmul.u32 %v3214, %v3205
  %v3260 = vadd.s32 %v3236, %v3255
  %vm3261 = vc.u32 %v3236, %v3255
  %v3262 = vadd.s32 %v3258, 1
  %v3263 = vsel %vm3261, %v3262, %v3258
  %v3264 = vadd.s32 %v3259, %v3263
  %v3265 = vadd.s32 %v3264, 536870912
  %v3266 = vshrl.u32 %v3265, 30
  %v3267 = vshll.u32 %v3266, 30
  %v3268 = vsub.s32 %v3264, %v3267
  %vm3269 = vcmp.lt.s32.totalorder %v3268, 0
  %v3270 = vsub.s32 0, %v3268
  %v3271 = vsel %vm3269, %v3270, %v3268
  %v3272 = vclz %v3271
  %v3273 = vsub.s32 %v3272, 2
  %vm3274 = vcmp.gt.s32.totalorder 0, %v3273
  %v3275 = vsel %vm3274, 0, %v3273
  %v3276 = vsub.s32 32, %v3275
  %v3277 = vshll.u32 %v3268, %v3275
  %v3278 = vshrl.u32 %v3260, %v3276
  %v3279 = vor.u32 %v3277, %v3278
  %v3280 = vsub.s32 4294967266, %v3275
  %v3281 = vadd.s32 %v3280, 127
  %v3282 = vshll.u32 %v3281, 23
  %v3283 = vor.u32 4788187, %v3282
  %v3284 = vand.u32 2147483647, %v3283
  %v3286 = vcvt.s32.f32 %v3279
  %v3287 = vmul.f32 %v3286, %v3284
  %v3288 = vxor.u32 %v3287, 2147483648
  %v3289 = vsel %vm3168, %v3288, %v3287
  %v3290 = vsub.s32 4, %v3266
  %v3291 = vsel %vm3168, %v3290, %v3266
  %v3292 = vsel %vm3167, %v1622, %v3289
  %v3293 = vsel %vm3167, 0, %v3291
  %v3294 = vmul.f32 %v3292, %v3292
  %v3295 = vmul.f32 %v3294, -0.001358992
  %v3296 = vadd.f32 %v3295, 0.041655596
  %v3297 = vmul.f32 %v3294, %v3296
  %v3298 = vadd.f32 %v3297, -0.4999988
  %v3299 = vmul.f32 %v3294, %v3298
  %v3300 = vadd.f32 1.0, %v3299
  %v3301 = vmul.f32 %v3292, %v3292
  %v3302 = vmul.f32 %v3301, -0.00019511016
  %v3303 = vadd.f32 %v3302, 0.008332121
  %v3304 = vmul.f32 %v3301, %v3303
  %v3305 = vadd.f32 %v3304, -0.16666654
  %v3306 = vmul.f32 %v3301, %v3305
  %v3307 = vadd.f32 %v3306, 1.0
  %v3308 = vmul.f32 %v3307, %v3292
  %vm3309 = vweird.f32 %v1622
  %v3310 = vand.u32 %v3293, 3
  %vm3311 = vcmp.lt.s32.totalorder %v3310, 2
  %vm3312 = vcmp.eq.s32.totalorder %v3310, 0
  %v3313 = vxor.u32 %v3308, 2147483648
  %v3314 = vsel %vm3312, %v3300, %v3313
  %vm3315 = vcmp.eq.s32.totalorder %v3310, 2
  %v3316 = vxor.u32 %v3300, 2147483648
  %v3317 = vsel %vm3315, %v3316, %v3308
  %v3318 = vsel %vm3311, %v3314, %v3317
  %v3319 = vsel %vm3309, nan, %v3318
  %v3320 = vand.u32 2147483647, %v1623
  %vm3321 = vcmp.le.f32.partialorder %v3320, 0.7853982
  %vm3322 = vcmp.lt.s32.totalorder %v1623, 0
  %v3323 = vand.u32 %v1623, 2139095040
  %v3324 = vshrl.u32 %v3323, 23
  %v3325 = vsub.s32 %v3324, 127
  %v3326 = vand.u32 2147483647, %v1623
  %v3327 = vand.u32 %v3326, 8388607
  %v3328 = vor.u32 %v3327, 8388608
  %v3329 = vsub.s32 0, %v3328
  %v3330 = vadd.s32 %v3325, 1
  %vm3331 = vcmp.gt.s32.totalorder %v3330, 0
  %v3332 = vsel %vm3331, %v3330, 0
  %v3333 = vshrl.u32 %v3332, 5
  %v3334 = vand.u32 %v3332, 31
  %v3335 = vsub.s32 32, %v3334
  %v3336 = vshrl.u32 683565275, %v3335
  %v3337 = vshll.u32 683565275, %v3334
  %v3338 = vshrl.u32 2475754826, %v3335
  %v3339 = vor.u32 %v3337, %v3338
  %v3340 = vshll.u32 2475754826, %v3334
  %v3341 = vshrl.u32 2131351028, %v3335
  %v3342 = vor.u32 %v3340, %v3341
  %v3343 = vshll.u32 2131351028, %v3334
  %v3344 = vshrl.u32 2102212464, %v3335
  %v3345 = vor.u32 %v3343, %v3344
  %v3346 = vshll.u32 2102212464, %v3334
  %v3347 = vshrl.u32 920167782, %v3335
  %v3348 = vor.u32 %v3346, %v3347
  %v3349 = vshll.u32 920167782, %v3334
  %v3350 = vshrl.u32 1326507024, %v3335
  %v3351 = vor.u32 %v3349, %v3350
  %vm3352 = vcmp.lt.s32.totalorder %v3333, 1
  %vm3353 = vcmp.lt.s32.totalorder %v3333, 2
  %vm3354 = vcmp.lt.s32.totalorder %v3333, 3
  %vm3355 = vcmp.lt.s32.totalorder %v3333, 4
  %v3356 = vsel %vm3352, %v3336, %v3339
  %v3357 = vsel %vm3355, %v3345, 2102212464
  %v3358 = vsel %vm3354, %v3342, %v3357
  %v3359 = vsel %vm3353, %v3356, %v3358
  %v3360 = vsel %vm3352, %v3339, %v3342
  %v3361 = vsel %vm3355, %v3348, 920167782
  %v3362 = vsel %vm3354, %v3345, %v3361
  %v3363 = vsel %vm3353, %v3360, %v3362
  %v3364 = vsel %vm3352, %v3342, %v3345
  %v3365 = vsel %vm3355, %v3351, 1326507024
  %v3366 = vsel %vm3354, %v3348, %v3365
  %v3367 = vsel %vm3353, %v3364, %v3366
  %v3368 = vshll.u32 %v3328, 8
  %v3369 = vand.u32 %v3368, 65535
  %v3370 = vshrl.u32 %v3368, 16
  %v3371 = vand.u32 %v3367, 65535
  %v3372 = vshrl.u32 %v3367, 16
  %v3373 = vmul.u32 %v3369, %v3371
  %v3374 = vmul.u32 %v3369, %v3372
  %v3375 = vmul.u32 %v3370, %v3371
  %v3376 = vmul.u32 %v3370, %v3372
  %v3377 = vshll.u32 %v3374, 16
  %v3378 = vshrl.u32 %v3374, 16
  %v3379 = vshll.u32 %v3375, 16
  %v3380 = vshrl.u32 %v3375, 16
  %vm3381 = vc.u32 %v3373, %v3377
  %v3382 = vsel %vm3381, 1, 0
  %v3383 = vadd.s32 %v3373, %v3377
  %v3384 = vadd.s32 %v3376, %v3382
  %vm3385 = vc.u32 %v3383, %v3379
  %v3386 = vsel %vm3385, 1, 0
  %v3387 = vadd.s32 %v3383, %v3379
  %v3388 = vadd.s32 %v3384, %v3386
  %v3389 = vadd.s32 %v3388, %v3378
  %v3390 = vadd.s32 %v3389, %v3380
  %v3391 = vand.u32 %v3368, 65535
  %v3392 = vshrl.u32 %v3368, 16
  %v3393 = vand.u32 %v3363, 65535
  %v3394 = vshrl.u32 %v3363, 16
  %v3395 = vmul.u32 %v3391, %v3393
  %v3396 = vmul.u32 %v3391, %v3394
  %v3397 = vmul.u32 %v3392, %v3393
  %v3398 = vmul.u32 %v3392, %v3394
  %v3399 = vshll.u32 %v3396, 16
  %v3400 = vshrl.u32 %v3396, 16
  %v3401 = vshll.u32 %v3397, 16
  %v3402 = vshrl.u32 %v3397, 16
  %vm3403 = vc.u32 %v3395, %v3399
  %v3404 = vsel %vm3403, 1, 0
  %v3405 = vadd.s32 %v3395, %v3399
  %v3406 = vadd.s32 %v3398, %v3404
  %vm3407 = vc.u32 %v3405, %v3401
  %v3408 = vsel %vm3407, 1, 0
  %v3409 = vadd.s32 %v3405, %v3401
  %v3410 = vadd.s32 %v3406, %v3408
  %v3411 = vadd.s32 %v3410, %v3400
  %v3412 = vadd.s32 %v3411, %v3402
  %v3413 = vmul.u32 %v3368, %v3359
  %v3414 = vadd.s32 %v3390, %v3409
  %vm3415 = vc.u32 %v3390, %v3409
  %v3416 = vadd.s32 %v3412, 1
  %v3417 = vsel %vm3415, %v3416, %v3412
  %v3418 = vadd.s32 %v3413, %v3417
  %v3419 = vadd.s32 %v3418, 536870912
  %v3420 = vshrl.u32 %v3419, 30
  %v3421 = vshll.u32 %v3420, 30
  %v3422 = vsub.s32 %v3418, %v3421
  %vm3423 = vcmp.lt.s32.totalorder %v3422, 0
  %v3424 = vsub.s32 0, %v3422
  %v3425 = vsel %vm3423, %v3424, %v3422
  %v3426 = vclz %v3425
  %v3427 = vsub.s32 %v3426, 2
  %vm3428 = vcmp.gt.s32.totalorder 0, %v3427
  %v3429 = vsel %vm3428, 0, %v3427
  %v3430 = vsub.s32 32, %v3429
  %v3431 = vshll.u32 %v3422, %v3429
  %v3432 = vshrl.u32 %v3414, %v3430
  %v3433 = vor.u32 %v3431, %v3432
  %v3434 = vsub.s32 4294967266, %v3429
  %v3435 = vadd.s32 %v3434, 127
  %v3436 = vshll.u32 %v3435, 23
  %v3437 = vor.u32 4788187, %v3436
  %v3438 = vand.u32 2147483647, %v3437
  %v3440 = vcvt.s32.f32 %v3433
  %v3441 = vmul.f32 %v3440, %v3438
  %v3442 = vxor.u32 %v3441, 2147483648
  %v3443 = vsel %vm3322, %v3442, %v3441
  %v3444 = vsub.s32 4, %v3420
  %v3445 = vsel %vm3322, %v3444, %v3420
  %v3446 = vsel %vm3321, %v1623, %v3443
  %v3447 = vsel %vm3321, 0, %v3445
  %v3448 = vmul.f32 %v3446, %v3446
  %v3449 = vmul.f32 %v3448, -0.001358992
  %v3450 = vadd.f32 %v3449, 0.041655596
  %v3451 = vmul.f32 %v3448, %v3450
  %v3452 = vadd.f32 %v3451, -0.4999988
  %v3453 = vmul.f32 %v3448, %v3452
  %v3454 = vadd.f32 1.0, %v3453
  %v3455 = vmul.f32 %v3446, %v3446
  %v3456 = vmul.f32 %v3455, -0.00019511016
  %v3457 = vadd.f32 %v3456, 0.008332121
  %v3458 = vmul.f32 %v3455, %v3457
  %v3459 = vadd.f32 %v3458, -0.16666654
  %v3460 = vmul.f32 %v3455, %v3459
  %v3461 = vadd.f32 %v3460, 1.0
  %v3462 = vmul.f32 %v3461, %v3446
  %vm3463 = vweird.f32 %v1623
  %v3464 = vand.u32 %v3447, 3
  %vm3465 = vcmp.lt.s32.totalorder %v3464, 2
  %vm3466 = vcmp.eq.s32.totalorder %v3464, 0
  %v3467 = vxor.u32 %v3462, 2147483648
  %v3468 = vsel %vm3466, %v3454, %v3467
  %vm3469 = vcmp.eq.s32.totalorder %v3464, 2
  %v3470 = vxor.u32 %v3454, 2147483648
  %v3471 = vsel %vm3469, %v3470, %v3462
  %v3472 = vsel %vm3465, %v3468, %v3471
  %v3473 = vsel %vm3463, nan, %v3472
  %v3474 = vand.u32 2147483647, %v1624
  %vm3475 = vcmp.le.f32.partialorder %v3474, 0.7853982
  %vm3476 = vcmp.lt.s32.totalorder %v1624, 0
  %v3477 = vand.u32 %v1624, 2139095040
  %v3478 = vshrl.u32 %v3477, 23
  %v3479 = vsub.s32 %v3478, 127
  %v3480 = vand.u32 2147483647, %v1624
  %v3481 = vand.u32 %v3480, 8388607
  %v3482 = vor.u32 %v3481, 8388608
  %v3483 = vsub.s32 0, %v3482
  %v3484 = vadd.s32 %v3479, 1
  %vm3485 = vcmp.gt.s32.totalorder %v3484, 0
  %v3486 = vsel %vm3485, %v3484, 0
  %v3487 = vshrl.u32 %v3486, 5
  %v3488 = vand.u32 %v3486, 31
  %v3489 = vsub.s32 32, %v3488
  %v3490 = vshrl.u32 683565275, %v3489
  %v3491 = vshll.u32 683565275, %v3488
  %v3492 = vshrl.u32 2475754826, %v3489
  %v3493 = vor.u32 %v3491, %v3492
  %v3494 = vshll.u32 2475754826, %v3488
  %v3495 = vshrl.u32 2131351028, %v3489
  %v3496 = vor.u32 %v3494, %v3495
  %v3497 = vshll.u32 2131351028, %v3488
  %v3498 = vshrl.u32 2102212464, %v3489
  %v3499 = vor.u32 %v3497, %v3498
  %v3500 = vshll.u32 2102212464, %v3488
  %v3501 = vshrl.u32 920167782, %v3489
  %v3502 = vor.u32 %v3500, %v3501
  %v3503 = vshll.u32 920167782, %v3488
  %v3504 = vshrl.u32 1326507024, %v3489
  %v3505 = vor.u32 %v3503, %v3504
  %vm3506 = vcmp.lt.s32.totalorder %v3487, 1
  %vm3507 = vcmp.lt.s32.totalorder %v3487, 2
  %vm3508 = vcmp.lt.s32.totalorder %v3487, 3
  %vm3509 = vcmp.lt.s32.totalorder %v3487, 4
  %v3510 = vsel %vm3506, %v3490, %v3493
  %v3511 = vsel %vm3509, %v3499, 2102212464
  %v3512 = vsel %vm3508, %v3496, %v3511
  %v3513 = vsel %vm3507, %v3510, %v3512
  %v3514 = vsel %vm3506, %v3493, %v3496
  %v3515 = vsel %vm3509, %v3502, 920167782
  %v3516 = vsel %vm3508, %v3499, %v3515
  %v3517 = vsel %vm3507, %v3514, %v3516
  %v3518 = vsel %vm3506, %v3496, %v3499
  %v3519 = vsel %vm3509, %v3505, 1326507024
  %v3520 = vsel %vm3508, %v3502, %v3519
  %v3521 = vsel %vm3507, %v3518, %v3520
  %v3522 = vshll.u32 %v3482, 8
  %v3523 = vand.u32 %v3522, 65535
  %v3524 = vshrl.u32 %v3522, 16
  %v3525 = vand.u32 %v3521, 65535
  %v3526 = vshrl.u32 %v3521, 16
  %v3527 = vmul.u32 %v3523, %v3525
  %v3528 = vmul.u32 %v3523, %v3526
  %v3529 = vmul.u32 %v3524, %v3525
  %v3530 = vmul.u32 %v3524, %v3526
  %v3531 = vshll.u32 %v3528, 16
  %v3532 = vshrl.u32 %v3528, 16
  %v3533 = vshll.u32 %v3529, 16
  %v3534 = vshrl.u32 %v3529, 16
  %vm3535 = vc.u32 %v3527, %v3531
  %v3536 = vsel %vm3535, 1, 0
  %v3537 = vadd.s32 %v3527, %v3531
  %v3538 = vadd.s32 %v3530, %v3536
  %vm3539 = vc.u32 %v3537, %v3533
  %v3540 = vsel %vm3539, 1, 0
  %v3541 = vadd.s32 %v3537, %v3533
  %v3542 = vadd.s32 %v3538, %v3540
  %v3543 = vadd.s32 %v3542, %v3532
  %v3544 = vadd.s32 %v3543, %v3534
  %v3545 = vand.u32 %v3522, 65535
  %v3546 = vshrl.u32 %v3522, 16
  %v3547 = vand.u32 %v3517, 65535
  %v3548 = vshrl.u32 %v3517, 16
  %v3549 = vmul.u32 %v3545, %v3547
  %v3550 = vmul.u32 %v3545, %v3548
  %v3551 = vmul.u32 %v3546, %v3547
  %v3552 = vmul.u32 %v3546, %v3548
  %v3553 = vshll.u32 %v3550, 16
  %v3554 = vshrl.u32 %v3550, 16
  %v3555 = vshll.u32 %v3551, 16
  %v3556 = vshrl.u32 %v3551, 16
  %vm3557 = vc.u32 %v3549, %v3553
  %v3558 = vsel %vm3557, 1, 0
  %v3559 = vadd.s32 %v3549, %v3553
  %v3560 = vadd.s32 %v3552, %v3558
  %vm3561 = vc.u32 %v3559, %v3555
  %v3562 = vsel %vm3561, 1, 0
  %v3563 = vadd.s32 %v3559, %v3555
  %v3564 = vadd.s32 %v3560, %v3562
  %v3565 = vadd.s32 %v3564, %v3554
  %v3566 = vadd.s32 %v3565, %v3556
  %v3567 = vmul.u32 %v3522, %v3513
  %v3568 = vadd.s32 %v3544, %v3563
  %vm3569 = vc.u32 %v3544, %v3563
  %v3570 = vadd.s32 %v3566, 1
  %v3571 = vsel %vm3569, %v3570, %v3566
  %v3572 = vadd.s32 %v3567, %v3571
  %v3573 = vadd.s32 %v3572, 536870912
  %v3574 = vshrl.u32 %v3573, 30
  %v3575 = vshll.u32 %v3574, 30
  %v3576 = vsub.s32 %v3572, %v3575
  %vm3577 = vcmp.lt.s32.totalorder %v3576, 0
  %v3578 = vsub.s32 0, %v3576
  %v3579 = vsel %vm3577, %v3578, %v3576
  %v3580 = vclz %v3579
  %v3581 = vsub.s32 %v3580, 2
  %vm3582 = vcmp.gt.s32.totalorder 0, %v3581
  %v3583 = vsel %vm3582, 0, %v3581
  %v3584 = vsub.s32 32, %v3583
  %v3585 = vshll.u32 %v3576, %v3583
  %v3586 = vshrl.u32 %v3568, %v3584
  %v3587 = vor.u32 %v3585, %v3586
  %v3588 = vsub.s32 4294967266, %v3583
  %v3589 = vadd.s32 %v3588, 127
  %v3590 = vshll.u32 %v3589, 23
  %v3591 = vor.u32 4788187, %v3590
  %v3592 = vand.u32 2147483647, %v3591
  %v3594 = vcvt.s32.f32 %v3587
  %v3595 = vmul.f32 %v3594, %v3592
  %v3596 = vxor.u32 %v3595, 2147483648
  %v3597 = vsel %vm3476, %v3596, %v3595
  %v3598 = vsub.s32 4, %v3574
  %v3599 = vsel %vm3476, %v3598, %v3574
  %v3600 = vsel %vm3475, %v1624, %v3597
  %v3601 = vsel %vm3475, 0, %v3599
  %v3602 = vmul.f32 %v3600, %v3600
  %v3603 = vmul.f32 %v3602, -0.001358992
  %v3604 = vadd.f32 %v3603, 0.041655596
  %v3605 = vmul.f32 %v3602, %v3604
  %v3606 = vadd.f32 %v3605, -0.4999988
  %v3607 = vmul.f32 %v3602, %v3606
  %v3608 = vadd.f32 1.0, %v3607
  %v3609 = vmul.f32 %v3600, %v3600
  %v3610 = vmul.f32 %v3609, -0.00019511016
  %v3611 = vadd.f32 %v3610, 0.008332121
  %v3612 = vmul.f32 %v3609, %v3611
  %v3613 = vadd.f32 %v3612, -0.16666654
  %v3614 = vmul.f32 %v3609, %v3613
  %v3615 = vadd.f32 %v3614, 1.0
  %v3616 = vmul.f32 %v3615, %v3600
  %vm3617 = vweird.f32 %v1624
  %v3618 = vand.u32 %v3601, 3
  %vm3619 = vcmp.lt.s32.totalorder %v3618, 2
  %vm3620 = vcmp.eq.s32.totalorder %v3618, 0
  %v3621 = vxor.u32 %v3616, 2147483648
  %v3622 = vsel %vm3620, %v3608, %v3621
  %vm3623 = vcmp.eq.s32.totalorder %v3618, 2
  %v3624 = vxor.u32 %v3608, 2147483648
  %v3625 = vsel %vm3623, %v3624, %v3616
  %v3626 = vsel %vm3619, %v3622, %v3625
  %v3627 = vsel %vm3617, nan, %v3626
  %v3628 = vand.u32 2147483647, %v1625
  %vm3629 = vcmp.le.f32.partialorder %v3628, 0.7853982
  %vm3630 = vcmp.lt.s32.totalorder %v1625, 0
  %v3631 = vand.u32 %v1625, 2139095040
  %v3632 = vshrl.u32 %v3631, 23
  %v3633 = vsub.s32 %v3632, 127
  %v3634 = vand.u32 2147483647, %v1625
  %v3635 = vand.u32 %v3634, 8388607
  %v3636 = vor.u32 %v3635, 8388608
  %v3637 = vsub.s32 0, %v3636
  %v3638 = vadd.s32 %v3633, 1
  %vm3639 = vcmp.gt.s32.totalorder %v3638, 0
  %v3640 = vsel %vm3639, %v3638, 0
  %v3641 = vshrl.u32 %v3640, 5
  %v3642 = vand.u32 %v3640, 31
  %v3643 = vsub.s32 32, %v3642
  %v3644 = vshrl.u32 683565275, %v3643
  %v3645 = vshll.u32 683565275, %v3642
  %v3646 = vshrl.u32 2475754826, %v3643
  %v3647 = vor.u32 %v3645, %v3646
  %v3648 = vshll.u32 2475754826, %v3642
  %v3649 = vshrl.u32 2131351028, %v3643
  %v3650 = vor.u32 %v3648, %v3649
  %v3651 = vshll.u32 2131351028, %v3642
  %v3652 = vshrl.u32 2102212464, %v3643
  %v3653 = vor.u32 %v3651, %v3652
  %v3654 = vshll.u32 2102212464, %v3642
  %v3655 = vshrl.u32 920167782, %v3643
  %v3656 = vor.u32 %v3654, %v3655
  %v3657 = vshll.u32 920167782, %v3642
  %v3658 = vshrl.u32 1326507024, %v3643
  %v3659 = vor.u32 %v3657, %v3658
  %vm3660 = vcmp.lt.s32.totalorder %v3641, 1
  %vm3661 = vcmp.lt.s32.totalorder %v3641, 2
  %vm3662 = vcmp.lt.s32.totalorder %v3641, 3
  %vm3663 = vcmp.lt.s32.totalorder %v3641, 4
  %v3664 = vsel %vm3660, %v3644, %v3647
  %v3665 = vsel %vm3663, %v3653, 2102212464
  %v3666 = vsel %vm3662, %v3650, %v3665
  %v3667 = vsel %vm3661, %v3664, %v3666
  %v3668 = vsel %vm3660, %v3647, %v3650
  %v3669 = vsel %vm3663, %v3656, 920167782
  %v3670 = vsel %vm3662, %v3653, %v3669
  %v3671 = vsel %vm3661, %v3668, %v3670
  %v3672 = vsel %vm3660, %v3650, %v3653
  %v3673 = vsel %vm3663, %v3659, 1326507024
  %v3674 = vsel %vm3662, %v3656, %v3673
  %v3675 = vsel %vm3661, %v3672, %v3674
  %v3676 = vshll.u32 %v3636, 8
  %v3677 = vand.u32 %v3676, 65535
  %v3678 = vshrl.u32 %v3676, 16
  %v3679 = vand.u32 %v3675, 65535
  %v3680 = vshrl.u32 %v3675, 16
  %v3681 = vmul.u32 %v3677, %v3679
  %v3682 = vmul.u32 %v3677, %v3680
  %v3683 = vmul.u32 %v3678, %v3679
  %v3684 = vmul.u32 %v3678, %v3680
  %v3685 = vshll.u32 %v3682, 16
  %v3686 = vshrl.u32 %v3682, 16
  %v3687 = vshll.u32 %v3683, 16
  %v3688 = vshrl.u32 %v3683, 16
  %vm3689 = vc.u32 %v3681, %v3685
  %v3690 = vsel %vm3689, 1, 0
  %v3691 = vadd.s32 %v3681, %v3685
  %v3692 = vadd.s32 %v3684, %v3690
  %vm3693 = vc.u32 %v3691, %v3687
  %v3694 = vsel %vm3693, 1, 0
  %v3695 = vadd.s32 %v3691, %v3687
  %v3696 = vadd.s32 %v3692, %v3694
  %v3697 = vadd.s32 %v3696, %v3686
  %v3698 = vadd.s32 %v3697, %v3688
  %v3699 = vand.u32 %v3676, 65535
  %v3700 = vshrl.u32 %v3676, 16
  %v3701 = vand.u32 %v3671, 65535
  %v3702 = vshrl.u32 %v3671, 16
  %v3703 = vmul.u32 %v3699, %v3701
  %v3704 = vmul.u32 %v3699, %v3702
  %v3705 = vmul.u32 %v3700, %v3701
  %v3706 = vmul.u32 %v3700, %v3702
  %v3707 = vshll.u32 %v3704, 16
  %v3708 = vshrl.u32 %v3704, 16
  %v3709 = vshll.u32 %v3705, 16
  %v3710 = vshrl.u32 %v3705, 16
  %vm3711 = vc.u32 %v3703, %v3707
  %v3712 = vsel %vm3711, 1, 0
  %v3713 = vadd.s32 %v3703, %v3707
  %v3714 = vadd.s32 %v3706, %v3712
  %vm3715 = vc.u32 %v3713, %v3709
  %v3716 = vsel %vm3715, 1, 0
  %v3717 = vadd.s32 %v3713, %v3709
  %v3718 = vadd.s32 %v3714, %v3716
  %v3719 = vadd.s32 %v3718, %v3708
  %v3720 = vadd.s32 %v3719, %v3710
  %v3721 = vmul.u32 %v3676, %v3667
  %v3722 = vadd.s32 %v3698, %v3717
  %vm3723 = vc.u32 %v3698, %v3717
  %v3724 = vadd.s32 %v3720, 1
  %v3725 = vsel %vm3723, %v3724, %v3720
  %v3726 = vadd.s32 %v3721, %v3725
  %v3727 = vadd.s32 %v3726, 536870912
  %v3728 = vshrl.u32 %v3727, 30
  %v3729 = vshll.u32 %v3728, 30
  %v3730 = vsub.s32 %v3726, %v3729
  %vm3731 = vcmp.lt.s32.totalorder %v3730, 0
  %v3732 = vsub.s32 0, %v3730
  %v3733 = vsel %vm3731, %v3732, %v3730
  %v3734 = vclz %v3733
  %v3735 = vsub.s32 %v3734, 2
  %vm3736 = vcmp.gt.s32.totalorder 0, %v3735
  %v3737 = vsel %vm3736, 0, %v3735
  %v3738 = vsub.s32 32, %v3737
  %v3739 = vshll.u32 %v3730, %v3737
  %v3740 = vshrl.u32 %v3722, %v3738
  %v3741 = vor.u32 %v3739, %v3740
  %v3742 = vsub.s32 4294967266, %v3737
  %v3743 = vadd.s32 %v3742, 127
  %v3744 = vshll.u32 %v3743, 23
  %v3745 = vor.u32 4788187, %v3744
  %v3746 = vand.u32 2147483647, %v3745
  %v3748 = vcvt.s32.f32 %v3741
  %v3749 = vmul.f32 %v3748, %v3746
  %v3750 = vxor.u32 %v3749, 2147483648
  %v3751 = vsel %vm3630, %v3750, %v3749
  %v3752 = vsub.s32 4, %v3728
  %v3753 = vsel %vm3630, %v3752, %v3728
  %v3754 = vsel %vm3629, %v1625, %v3751
  %v3755 = vsel %vm3629, 0, %v3753
  %v3756 = vmul.f32 %v3754, %v3754
  %v3757 = vmul.f32 %v3756, -0.001358992
  %v3758 = vadd.f32 %v3757, 0.041655596
  %v3759 = vmul.f32 %v3756, %v3758
  %v3760 = vadd.f32 %v3759, -0.4999988
  %v3761 = vmul.f32 %v3756, %v3760
  %v3762 = vadd.f32 1.0, %v3761
  %v3763 = vmul.f32 %v3754, %v3754
  %v3764 = vmul.f32 %v3763, -0.00019511016
  %v3765 = vadd.f32 %v3764, 0.008332121
  %v3766 = vmul.f32 %v3763, %v3765
  %v3767 = vadd.f32 %v3766, -0.16666654
  %v3768 = vmul.f32 %v3763, %v3767
  %v3769 = vadd.f32 %v3768, 1.0
  %v3770 = vmul.f32 %v3769, %v3754
  %vm3771 = vweird.f32 %v1625
  %v3772 = vand.u32 %v3755, 3
  %vm3773 = vcmp.lt.s32.totalorder %v3772, 2
  %vm3774 = vcmp.eq.s32.totalorder %v3772, 0
  %v3775 = vxor.u32 %v3770, 2147483648
  %v3776 = vsel %vm3774, %v3762, %v3775
  %vm3777 = vcmp.eq.s32.totalorder %v3772, 2
  %v3778 = vxor.u32 %v3762, 2147483648
  %v3779 = vsel %vm3777, %v3778, %v3770
  %v3780 = vsel %vm3773, %v3776, %v3779
  %v3781 = vsel %vm3771, nan, %v3780
  %v3782 = vadd.f32 %v1779, 1.0
  %v3783 = vadd.f32 %v1933, 1.0
  %v3784 = vadd.f32 %v2087, 1.0
  %v3785 = vadd.f32 %v2241, 1.0
  %v3786 = vadd.f32 %v2395, 1.0
  %v3787 = vadd.f32 %v2549, 1.0
  %v3788 = vadd.f32 %v2703, 1.0
  %v3789 = vadd.f32 %v2857, 1.0
  %v3790 = vadd.f32 %v3011, 1.0
  %v3791 = vadd.f32 %v3165, 1.0
  %v3792 = vadd.f32 %v3319, 1.0
  %v3793 = vadd.f32 %v3473, 1.0
  %v3794 = vadd.f32 %v3627, 1.0
  %v3795 = vadd.f32 %v3781, 1.0
  %v3796 = vmul.f32 %v3782, 0.5
  %v3797 = vmul.f32 %v3783, 0.5
  %v3798 = vmul.f32 %v3784, 0.5
  %v3799 = vmul.f32 %v3785, 0.5
  %v3800 = vmul.f32 %v3786, 0.5
  %v3801 = vmul.f32 %v3787, 0.5
  %v3802 = vmul.f32 %v3788, 0.5
  %v3803 = vmul.f32 %v3789, 0.5
  %v3804 = vmul.f32 %v3790, 0.5
  %v3805 = vmul.f32 %v3791, 0.5
  %v3806 = vmul.f32 %v3792, 0.5
  %v3807 = vmul.f32 %v3793, 0.5
  %v3808 = vmul.f32 %v3794, 0.5
  %v3809 = vmul.f32 %v3795, 0.5
  %vm3810 = vcmp.lt.f32.partialorder %v1598, 10.0
  %vm3811 = vcmp.lt.f32.partialorder %v1599, 10.0
  %vm3812 = vcmp.lt.f32.partialorder %v1600, 10.0
  %vm3813 = vcmp.lt.f32.partialorder %v1601, 10.0
  %vm3814 = vcmp.lt.f32.partialorder %v1602, 10.0
  %vm3815 = vcmp.lt.f32.partialorder %v1603, 10.0
  %vm3816 = vcmp.lt.f32.partialorder %v1604, 10.0
  %vm3817 = vcmp.lt.f32.partialorder %v1605, 10.0
  %vm3818 = vcmp.lt.f32.partialorder %v1606, 10.0
  %vm3819 = vcmp.lt.f32.partialorder %v1607, 10.0
  %vm3820 = vcmp.lt.f32.partialorder %v1608, 10.0
  %vm3821 = vcmp.lt.f32.partialorder %v1609, 10.0
  %vm3822 = vcmp.lt.f32.partialorder %v1610, 10.0
  %vm3823 = vcmp.lt.f32.partialorder %v1611, 10.0
  %v3824 = vsel %vm3810, 1, 0
  %v3825 = vsel %vm3811, 1, 0
  %v3826 = vsel %vm3812, 1, 0
  %v3827 = vsel %vm3813, 1, 0
  %v3828 = vsel %vm3814, 1, 0
  %v3829 = vsel %vm3815, 1, 0
  %v3830 = vsel %vm3816, 1, 0
  %v3831 = vsel %vm3817, 1, 0
  %v3832 = vsel %vm3818, 1, 0
  %v3833 = vsel %vm3819, 1, 0
  %v3834 = vsel %vm3820, 1, 0
  %v3835 = vsel %vm3821, 1, 0
  %v3836 = vsel %vm3822, 1, 0
  %v3837 = vsel %vm3823, 1, 0
  %v3838 = vcvt.s32.f32 %v3824
  %v3839 = vcvt.s32.f32 %v3825
  %v3840 = vcvt.s32.f32 %v3826
  %v3841 = vcvt.s32.f32 %v3827
  %v3842 = vcvt.s32.f32 %v3828
  %v3843 = vcvt.s32.f32 %v3829
  %v3844 = vcvt.s32.f32 %v3830
  %v3845 = vcvt.s32.f32 %v3831
  %v3846 = vcvt.s32.f32 %v3832
  %v3847 = vcvt.s32.f32 %v3833
  %v3848 = vcvt.s32.f32 %v3834
  %v3849 = vcvt.s32.f32 %v3835
  %v3850 = vcvt.s32.f32 %v3836
  %v3851 = vcvt.s32.f32 %v3837
  %v3852 = vmul.f32 %v3796, %v3838
  %v3853 = vmul.f32 %v3797, %v3839
  %v3854 = vmul.f32 %v3798, %v3840
  %v3855 = vmul.f32 %v3799, %v3841
  %v3856 = vmul.f32 %v3800, %v3842
  %v3857 = vmul.f32 %v3801, %v3843
  %v3858 = vmul.f32 %v3802, %v3844
  %v3859 = vmul.f32 %v3803, %v3845
  %v3860 = vmul.f32 %v3804, %v3846
  %v3861 = vmul.f32 %v3805, %v3847
  %v3862 = vmul.f32 %v3806, %v3848
  %v3863 = vmul.f32 %v3807, %v3849
  %v3864 = vmul.f32 %v3808, %v3850
  %v3865 = vmul.f32 %v3809, %v3851
  %3867 = vset.pattern.permute.xlu0 0
  %3868 = vperm.xlu0 %3867, %v3852
  %v3869 = vpop.permute.xlu0 %3868
  %3872 = vset.pattern.permute.xlu0 0
  %3873 = vperm.xlu0 %3872, %v3853
  %v3874 = vpop.permute.xlu0 %3873
  %3877 = vset.pattern.permute.xlu0 0
  %3878 = vperm.xlu0 %3877, %v3854
  %v3879 = vpop.permute.xlu0 %3878
  %3882 = vset.pattern.permute.xlu0 0
  %3883 = vperm.xlu0 %3882, %v3855
  %v3884 = vpop.permute.xlu0 %3883
  %3887 = vset.pattern.permute.xlu0 0
  %3888 = vperm.xlu0 %3887, %v3856
  %v3889 = vpop.permute.xlu0 %3888
  %3892 = vset.pattern.permute.xlu0 0
  %3893 = vperm.xlu0 %3892, %v3857
  %v3894 = vpop.permute.xlu0 %3893
  %3897 = vset.pattern.permute.xlu0 0
  %3898 = vperm.xlu0 %3897, %v3858
  %v3899 = vpop.permute.xlu0 %3898
  %3902 = vset.pattern.permute.xlu0 0
  %3903 = vperm.xlu0 %3902, %v3859
  %v3904 = vpop.permute.xlu0 %3903
  %3907 = vset.pattern.permute.xlu0 0
  %3908 = vperm.xlu0 %3907, %v3860
  %v3909 = vpop.permute.xlu0 %3908
  %3912 = vset.pattern.permute.xlu0 0
  %3913 = vperm.xlu0 %3912, %v3861
  %v3914 = vpop.permute.xlu0 %3913
  %3917 = vset.pattern.permute.xlu0 0
  %3918 = vperm.xlu0 %3917, %v3862
  %v3919 = vpop.permute.xlu0 %3918
  %3922 = vset.pattern.permute.xlu0 0
  %3923 = vperm.xlu0 %3922, %v3863
  %v3924 = vpop.permute.xlu0 %3923
  %3927 = vset.pattern.permute.xlu0 0
  %3928 = vperm.xlu0 %3927, %v3864
  %v3929 = vpop.permute.xlu0 %3928
  %3932 = vset.pattern.permute.xlu0 0
  %3933 = vperm.xlu0 %3932, %v3865
  %v3934 = vpop.permute.xlu0 %3933
  %v3936 = vmul.f32 %v1584, %v3869
  %v3937 = vmul.f32 %v1585, %v3874
  %v3938 = vmul.f32 %v1586, %v3879
  %v3939 = vmul.f32 %v1587, %v3884
  %v3940 = vmul.f32 %v1588, %v3889
  %v3941 = vmul.f32 %v1589, %v3894
  %v3942 = vmul.f32 %v1590, %v3899
  %v3943 = vmul.f32 %v1591, %v3904
  %v3944 = vmul.f32 %v1592, %v3909
  %v3945 = vmul.f32 %v1593, %v3914
  %v3946 = vmul.f32 %v1594, %v3919
  %v3947 = vmul.f32 %v1595, %v3924
  %v3948 = vmul.f32 %v1596, %v3929
  %v3949 = vmul.f32 %v1597, %v3934
  %v3950 = vmul.f32 %v970, %v859
  %v3951 = vmul.f32 %v973, %v860
  %v3952 = vmul.f32 %v976, %v861
  %v3953 = vmul.f32 %v979, %v862
  %v3954 = vmul.f32 %v982, %v863
  %v3955 = vmul.f32 %v985, %v864
  %v3956 = vmul.f32 %v988, %v865
  %v3957 = vmul.f32 %v991, %v866
  %v3958 = vmul.f32 %v994, %v867
  %v3959 = vmul.f32 %v997, %v868
  %v3960 = vmul.f32 %v1000, %v869
  %v3961 = vmul.f32 %v1003, %v870
  %v3962 = vmul.f32 %v1006, %v871
  %v3963 = vmul.f32 %v1009, %v872
  %3978 = vrot.lane.b32.xlu0 %v3936, 32
  %v3979 = vpop.permute.xlu0 %3978
  %3980 = vrot.lane.b32.xlu0 %v3937, 32
  %v3981 = vpop.permute.xlu0 %3980
  %3982 = vrot.lane.b32.xlu0 %v3938, 32
  %v3983 = vpop.permute.xlu0 %3982
  %3984 = vrot.lane.b32.xlu0 %v3939, 32
  %v3985 = vpop.permute.xlu0 %3984
  %3986 = vrot.lane.b32.xlu0 %v3940, 32
  %v3987 = vpop.permute.xlu0 %3986
  %3988 = vrot.lane.b32.xlu0 %v3941, 32
  %v3989 = vpop.permute.xlu0 %3988
  %3990 = vrot.lane.b32.xlu0 %v3942, 32
  %v3991 = vpop.permute.xlu0 %3990
  %3992 = vrot.lane.b32.xlu0 %v3943, 32
  %v3993 = vpop.permute.xlu0 %3992
  %3994 = vrot.lane.b32.xlu0 %v3944, 32
  %v3995 = vpop.permute.xlu0 %3994
  %3996 = vrot.lane.b32.xlu0 %v3945, 32
  %v3997 = vpop.permute.xlu0 %3996
  %3998 = vrot.lane.b32.xlu0 %v3946, 32
  %v3999 = vpop.permute.xlu0 %3998
  %4000 = vrot.lane.b32.xlu0 %v3947, 32
  %v4001 = vpop.permute.xlu0 %4000
  %4002 = vrot.lane.b32.xlu0 %v3948, 32
  %v4003 = vpop.permute.xlu0 %4002
  %4004 = vrot.lane.b32.xlu0 %v3949, 32
  %v4005 = vpop.permute.xlu0 %4004
  %v4020 = vmul.f32 %v3950, %v3979
  %v4021 = vmul.f32 %v3951, %v3981
  %v4022 = vmul.f32 %v3952, %v3983
  %v4023 = vmul.f32 %v3953, %v3985
  %v4024 = vmul.f32 %v3954, %v3987
  %v4025 = vmul.f32 %v3955, %v3989
  %v4026 = vmul.f32 %v3956, %v3991
  %v4027 = vmul.f32 %v3957, %v3993
  %v4028 = vmul.f32 %v3958, %v3995
  %v4029 = vmul.f32 %v3959, %v3997
  %v4030 = vmul.f32 %v3960, %v3999
  %v4031 = vmul.f32 %v3961, %v4001
  %v4032 = vmul.f32 %v3962, %v4003
  %v4033 = vmul.f32 %v3963, %v4005
  %v4034 = vld [vmem:[%s3] sm:$0xff]
  %v4035 = vld [vmem:[%s3 + $0x8] sm:$0xff]
  %v4036 = vld [vmem:[%s3 + $0x10] sm:$0xff]
  %v4037 = vld [vmem:[%s3 + $0x18] sm:$0xff]
  %v4038 = vld [vmem:[%s3 + $0x20] sm:$0xff]
  %v4039 = vld [vmem:[%s3 + $0x28] sm:$0xff]
  %v4040 = vld [vmem:[%s3 + $0x30] sm:$0xff]
  %v4041 = vld [vmem:[%s3 + $0x38] sm:$0xff]
  %v4042 = vld [vmem:[%s3 + $0x40] sm:$0xff]
  %v4043 = vld [vmem:[%s3 + $0x48] sm:$0xff]
  %v4044 = vld [vmem:[%s3 + $0x50] sm:$0xff]
  %v4045 = vld [vmem:[%s3 + $0x58] sm:$0xff]
  %v4046 = vld [vmem:[%s3 + $0x60] sm:$0xff]
  %v4047 = vld [vmem:[%s3 + $0x68] sm:$0xff]
  %4062 = vrot.lane.b32.xlu0 %v3950, 64
  %v4063 = vpop.permute.xlu0 %4062
  %4064 = vrot.lane.b32.xlu0 %v3951, 64
  %v4065 = vpop.permute.xlu0 %4064
  %4066 = vrot.lane.b32.xlu0 %v3952, 64
  %v4067 = vpop.permute.xlu0 %4066
  %4068 = vrot.lane.b32.xlu0 %v3953, 64
  %v4069 = vpop.permute.xlu0 %4068
  %4070 = vrot.lane.b32.xlu0 %v3954, 64
  %v4071 = vpop.permute.xlu0 %4070
  %4072 = vrot.lane.b32.xlu0 %v3955, 64
  %v4073 = vpop.permute.xlu0 %4072
  %4074 = vrot.lane.b32.xlu0 %v3956, 64
  %v4075 = vpop.permute.xlu0 %4074
  %4076 = vrot.lane.b32.xlu0 %v3957, 64
  %v4077 = vpop.permute.xlu0 %4076
  %4078 = vrot.lane.b32.xlu0 %v3958, 64
  %v4079 = vpop.permute.xlu0 %4078
  %4080 = vrot.lane.b32.xlu0 %v3959, 64
  %v4081 = vpop.permute.xlu0 %4080
  %4082 = vrot.lane.b32.xlu0 %v3960, 64
  %v4083 = vpop.permute.xlu0 %4082
  %4084 = vrot.lane.b32.xlu0 %v3961, 64
  %v4085 = vpop.permute.xlu0 %4084
  %4086 = vrot.lane.b32.xlu0 %v3962, 64
  %v4087 = vpop.permute.xlu0 %4086
  %4088 = vrot.lane.b32.xlu0 %v3963, 64
  %v4089 = vpop.permute.xlu0 %4088
  %v4104 = vmul.f32 %v1029, %v4063
  %v4105 = vmul.f32 %v1032, %v4065
  %v4106 = vmul.f32 %v1035, %v4067
  %v4107 = vmul.f32 %v1038, %v4069
  %v4108 = vmul.f32 %v1041, %v4071
  %v4109 = vmul.f32 %v1044, %v4073
  %v4110 = vmul.f32 %v1047, %v4075
  %v4111 = vmul.f32 %v1050, %v4077
  %v4112 = vmul.f32 %v1053, %v4079
  %v4113 = vmul.f32 %v1056, %v4081
  %v4114 = vmul.f32 %v1059, %v4083
  %v4115 = vmul.f32 %v1062, %v4085
  %v4116 = vmul.f32 %v1065, %v4087
  %v4117 = vmul.f32 %v1068, %v4089
  %4119 = vset.pattern.permute.xlu0 0
  %4120 = vperm.xlu0 %4119, %v4034
  %v4121 = vpop.permute.xlu0 %4120
  %4124 = vset.pattern.permute.xlu0 0
  %4125 = vperm.xlu0 %4124, %v4035
  %v4126 = vpop.permute.xlu0 %4125
  %4129 = vset.pattern.permute.xlu0 0
  %4130 = vperm.xlu0 %4129, %v4036
  %v4131 = vpop.permute.xlu0 %4130
  %4134 = vset.pattern.permute.xlu0 0
  %4135 = vperm.xlu0 %4134, %v4037
  %v4136 = vpop.permute.xlu0 %4135
  %4139 = vset.pattern.permute.xlu0 0
  %4140 = vperm.xlu0 %4139, %v4038
  %v4141 = vpop.permute.xlu0 %4140
  %4144 = vset.pattern.permute.xlu0 0
  %4145 = vperm.xlu0 %4144, %v4039
  %v4146 = vpop.permute.xlu0 %4145
  %4149 = vset.pattern.permute.xlu0 0
  %4150 = vperm.xlu0 %4149, %v4040
  %v4151 = vpop.permute.xlu0 %4150
  %4154 = vset.pattern.permute.xlu0 0
  %4155 = vperm.xlu0 %4154, %v4041
  %v4156 = vpop.permute.xlu0 %4155
  %4159 = vset.pattern.permute.xlu0 0
  %4160 = vperm.xlu0 %4159, %v4042
  %v4161 = vpop.permute.xlu0 %4160
  %4164 = vset.pattern.permute.xlu0 0
  %4165 = vperm.xlu0 %4164, %v4043
  %v4166 = vpop.permute.xlu0 %4165
  %4169 = vset.pattern.permute.xlu0 0
  %4170 = vperm.xlu0 %4169, %v4044
  %v4171 = vpop.permute.xlu0 %4170
  %4174 = vset.pattern.permute.xlu0 0
  %4175 = vperm.xlu0 %4174, %v4045
  %v4176 = vpop.permute.xlu0 %4175
  %4179 = vset.pattern.permute.xlu0 0
  %4180 = vperm.xlu0 %4179, %v4046
  %v4181 = vpop.permute.xlu0 %4180
  %4184 = vset.pattern.permute.xlu0 0
  %4185 = vperm.xlu0 %4184, %v4047
  %v4186 = vpop.permute.xlu0 %4185
  %v4188 = vmul.f32 %v3950, %v4121
  %v4189 = vmul.f32 %v3951, %v4126
  %v4190 = vmul.f32 %v3952, %v4131
  %v4191 = vmul.f32 %v3953, %v4136
  %v4192 = vmul.f32 %v3954, %v4141
  %v4193 = vmul.f32 %v3955, %v4146
  %v4194 = vmul.f32 %v3956, %v4151
  %v4195 = vmul.f32 %v3957, %v4156
  %v4196 = vmul.f32 %v3958, %v4161
  %v4197 = vmul.f32 %v3959, %v4166
  %v4198 = vmul.f32 %v3960, %v4171
  %v4199 = vmul.f32 %v3961, %v4176
  %v4200 = vmul.f32 %v3962, %v4181
  %v4201 = vmul.f32 %v3963, %v4186
  %4216 = vrot.lane.b32.xlu0 %v4188, 32
  %v4217 = vpop.permute.xlu0 %4216
  %4218 = vrot.lane.b32.xlu0 %v4189, 32
  %v4219 = vpop.permute.xlu0 %4218
  %4220 = vrot.lane.b32.xlu0 %v4190, 32
  %v4221 = vpop.permute.xlu0 %4220
  %4222 = vrot.lane.b32.xlu0 %v4191, 32
  %v4223 = vpop.permute.xlu0 %4222
  %4224 = vrot.lane.b32.xlu0 %v4192, 32
  %v4225 = vpop.permute.xlu0 %4224
  %4226 = vrot.lane.b32.xlu0 %v4193, 32
  %v4227 = vpop.permute.xlu0 %4226
  %4228 = vrot.lane.b32.xlu0 %v4194, 32
  %v4229 = vpop.permute.xlu0 %4228
  %4230 = vrot.lane.b32.xlu0 %v4195, 32
  %v4231 = vpop.permute.xlu0 %4230
  %4232 = vrot.lane.b32.xlu0 %v4196, 32
  %v4233 = vpop.permute.xlu0 %4232
  %4234 = vrot.lane.b32.xlu0 %v4197, 32
  %v4235 = vpop.permute.xlu0 %4234
  %4236 = vrot.lane.b32.xlu0 %v4198, 32
  %v4237 = vpop.permute.xlu0 %4236
  %4238 = vrot.lane.b32.xlu0 %v4199, 32
  %v4239 = vpop.permute.xlu0 %4238
  %4240 = vrot.lane.b32.xlu0 %v4200, 32
  %v4241 = vpop.permute.xlu0 %4240
  %4242 = vrot.lane.b32.xlu0 %v4201, 32
  %v4243 = vpop.permute.xlu0 %4242
  %v4258 = vadd.f32 %v4104, %v4217
  %v4259 = vadd.f32 %v4105, %v4219
  %v4260 = vadd.f32 %v4106, %v4221
  %v4261 = vadd.f32 %v4107, %v4223
  %v4262 = vadd.f32 %v4108, %v4225
  %v4263 = vadd.f32 %v4109, %v4227
  %v4264 = vadd.f32 %v4110, %v4229
  %v4265 = vadd.f32 %v4111, %v4231
  %v4266 = vadd.f32 %v4112, %v4233
  %v4267 = vadd.f32 %v4113, %v4235
  %v4268 = vadd.f32 %v4114, %v4237
  %v4269 = vadd.f32 %v4115, %v4239
  %v4270 = vadd.f32 %v4116, %v4241
  %v4271 = vadd.f32 %v4117, %v4243
  %4272 = vrot.lane.b32.xlu0 %v3950, 96
  %v4273 = vpop.permute.xlu0 %4272
  %4274 = vrot.lane.b32.xlu0 %v3951, 96
  %v4275 = vpop.permute.xlu0 %4274
  %4276 = vrot.lane.b32.xlu0 %v3952, 96
  %v4277 = vpop.permute.xlu0 %4276
  %4278 = vrot.lane.b32.xlu0 %v3953, 96
  %v4279 = vpop.permute.xlu0 %4278
  %4280 = vrot.lane.b32.xlu0 %v3954, 96
  %v4281 = vpop.permute.xlu0 %4280
  %4282 = vrot.lane.b32.xlu0 %v3955, 96
  %v4283 = vpop.permute.xlu0 %4282
  %4284 = vrot.lane.b32.xlu0 %v3956, 96
  %v4285 = vpop.permute.xlu0 %4284
  %4286 = vrot.lane.b32.xlu0 %v3957, 96
  %v4287 = vpop.permute.xlu0 %4286
  %4288 = vrot.lane.b32.xlu0 %v3958, 96
  %v4289 = vpop.permute.xlu0 %4288
  %4290 = vrot.lane.b32.xlu0 %v3959, 96
  %v4291 = vpop.permute.xlu0 %4290
  %4292 = vrot.lane.b32.xlu0 %v3960, 96
  %v4293 = vpop.permute.xlu0 %4292
  %4294 = vrot.lane.b32.xlu0 %v3961, 96
  %v4295 = vpop.permute.xlu0 %4294
  %4296 = vrot.lane.b32.xlu0 %v3962, 96
  %v4297 = vpop.permute.xlu0 %4296
  %4298 = vrot.lane.b32.xlu0 %v3963, 96
  %v4299 = vpop.permute.xlu0 %4298
  %v4314 = vmul.f32 %v1029, %v4273
  %v4315 = vmul.f32 %v1032, %v4275
  %v4316 = vmul.f32 %v1035, %v4277
  %v4317 = vmul.f32 %v1038, %v4279
  %v4318 = vmul.f32 %v1041, %v4281
  %v4319 = vmul.f32 %v1044, %v4283
  %v4320 = vmul.f32 %v1047, %v4285
  %v4321 = vmul.f32 %v1050, %v4287
  %v4322 = vmul.f32 %v1053, %v4289
  %v4323 = vmul.f32 %v1056, %v4291
  %v4324 = vmul.f32 %v1059, %v4293
  %v4325 = vmul.f32 %v1062, %v4295
  %v4326 = vmul.f32 %v1065, %v4297
  %v4327 = vmul.f32 %v1068, %v4299
  %4328 = vset.pattern.permute.xlu0 1
  %4329 = vperm.xlu0 %4328, %v4034
  %v4330 = vpop.permute.xlu0 %4329
  %4332 = vset.pattern.permute.xlu0 1
  %4333 = vperm.xlu0 %4332, %v4035
  %v4334 = vpop.permute.xlu0 %4333
  %4336 = vset.pattern.permute.xlu0 1
  %4337 = vperm.xlu0 %4336, %v4036
  %v4338 = vpop.permute.xlu0 %4337
  %4340 = vset.pattern.permute.xlu0 1
  %4341 = vperm.xlu0 %4340, %v4037
  %v4342 = vpop.permute.xlu0 %4341
  %4344 = vset.pattern.permute.xlu0 1
  %4345 = vperm.xlu0 %4344, %v4038
  %v4346 = vpop.permute.xlu0 %4345
  %4348 = vset.pattern.permute.xlu0 1
  %4349 = vperm.xlu0 %4348, %v4039
  %v4350 = vpop.permute.xlu0 %4349
  %4352 = vset.pattern.permute.xlu0 1
  %4353 = vperm.xlu0 %4352, %v4040
  %v4354 = vpop.permute.xlu0 %4353
  %4356 = vset.pattern.permute.xlu0 1
  %4357 = vperm.xlu0 %4356, %v4041
  %v4358 = vpop.permute.xlu0 %4357
  %4360 = vset.pattern.permute.xlu0 1
  %4361 = vperm.xlu0 %4360, %v4042
  %v4362 = vpop.permute.xlu0 %4361
  %4364 = vset.pattern.permute.xlu0 1
  %4365 = vperm.xlu0 %4364, %v4043
  %v4366 = vpop.permute.xlu0 %4365
  %4368 = vset.pattern.permute.xlu0 1
  %4369 = vperm.xlu0 %4368, %v4044
  %v4370 = vpop.permute.xlu0 %4369
  %4372 = vset.pattern.permute.xlu0 1
  %4373 = vperm.xlu0 %4372, %v4045
  %v4374 = vpop.permute.xlu0 %4373
  %4376 = vset.pattern.permute.xlu0 1
  %4377 = vperm.xlu0 %4376, %v4046
  %v4378 = vpop.permute.xlu0 %4377
  %4380 = vset.pattern.permute.xlu0 1
  %4381 = vperm.xlu0 %4380, %v4047
  %v4382 = vpop.permute.xlu0 %4381
  %v4384 = vmul.f32 %v3950, %v4330
  %v4385 = vmul.f32 %v3951, %v4334
  %v4386 = vmul.f32 %v3952, %v4338
  %v4387 = vmul.f32 %v3953, %v4342
  %v4388 = vmul.f32 %v3954, %v4346
  %v4389 = vmul.f32 %v3955, %v4350
  %v4390 = vmul.f32 %v3956, %v4354
  %v4391 = vmul.f32 %v3957, %v4358
  %v4392 = vmul.f32 %v3958, %v4362
  %v4393 = vmul.f32 %v3959, %v4366
  %v4394 = vmul.f32 %v3960, %v4370
  %v4395 = vmul.f32 %v3961, %v4374
  %v4396 = vmul.f32 %v3962, %v4378
  %v4397 = vmul.f32 %v3963, %v4382
  %4412 = vrot.lane.b32.xlu0 %v4384, 64
  %v4413 = vpop.permute.xlu0 %4412
  %4414 = vrot.lane.b32.xlu0 %v4385, 64
  %v4415 = vpop.permute.xlu0 %4414
  %4416 = vrot.lane.b32.xlu0 %v4386, 64
  %v4417 = vpop.permute.xlu0 %4416
  %4418 = vrot.lane.b32.xlu0 %v4387, 64
  %v4419 = vpop.permute.xlu0 %4418
  %4420 = vrot.lane.b32.xlu0 %v4388, 64
  %v4421 = vpop.permute.xlu0 %4420
  %4422 = vrot.lane.b32.xlu0 %v4389, 64
  %v4423 = vpop.permute.xlu0 %4422
  %4424 = vrot.lane.b32.xlu0 %v4390, 64
  %v4425 = vpop.permute.xlu0 %4424
  %4426 = vrot.lane.b32.xlu0 %v4391, 64
  %v4427 = vpop.permute.xlu0 %4426
  %4428 = vrot.lane.b32.xlu0 %v4392, 64
  %v4429 = vpop.permute.xlu0 %4428
  %4430 = vrot.lane.b32.xlu0 %v4393, 64
  %v4431 = vpop.permute.xlu0 %4430
  %4432 = vrot.lane.b32.xlu0 %v4394, 64
  %v4433 = vpop.permute.xlu0 %4432
  %4434 = vrot.lane.b32.xlu0 %v4395, 64
  %v4435 = vpop.permute.xlu0 %4434
  %4436 = vrot.lane.b32.xlu0 %v4396, 64
  %v4437 = vpop.permute.xlu0 %4436
  %4438 = vrot.lane.b32.xlu0 %v4397, 64
  %v4439 = vpop.permute.xlu0 %4438
  %v4454 = vadd.f32 %v4314, %v4413
  %v4455 = vadd.f32 %v4315, %v4415
  %v4456 = vadd.f32 %v4316, %v4417
  %v4457 = vadd.f32 %v4317, %v4419
  %v4458 = vadd.f32 %v4318, %v4421
  %v4459 = vadd.f32 %v4319, %v4423
  %v4460 = vadd.f32 %v4320, %v4425
  %v4461 = vadd.f32 %v4321, %v4427
  %v4462 = vadd.f32 %v4322, %v4429
  %v4463 = vadd.f32 %v4323, %v4431
  %v4464 = vadd.f32 %v4324, %v4433
  %v4465 = vadd.f32 %v4325, %v4435
  %v4466 = vadd.f32 %v4326, %v4437
  %v4467 = vadd.f32 %v4327, %v4439
  %v4468 = vmul.f32 %v1029, %v3950
  %v4469 = vmul.f32 %v1032, %v3951
  %v4470 = vmul.f32 %v1035, %v3952
  %v4471 = vmul.f32 %v1038, %v3953
  %v4472 = vmul.f32 %v1041, %v3954
  %v4473 = vmul.f32 %v1044, %v3955
  %v4474 = vmul.f32 %v1047, %v3956
  %v4475 = vmul.f32 %v1050, %v3957
  %v4476 = vmul.f32 %v1053, %v3958
  %v4477 = vmul.f32 %v1056, %v3959
  %v4478 = vmul.f32 %v1059, %v3960
  %v4479 = vmul.f32 %v1062, %v3961
  %v4480 = vmul.f32 %v1065, %v3962
  %v4481 = vmul.f32 %v1068, %v3963
  %4482 = vset.pattern.permute.xlu0 2
  %4483 = vperm.xlu0 %4482, %v4034
  %v4484 = vpop.permute.xlu0 %4483
  %4486 = vset.pattern.permute.xlu0 2
  %4487 = vperm.xlu0 %4486, %v4035
  %v4488 = vpop.permute.xlu0 %4487
  %4490 = vset.pattern.permute.xlu0 2
  %4491 = vperm.xlu0 %4490, %v4036
  %v4492 = vpop.permute.xlu0 %4491
  %4494 = vset.pattern.permute.xlu0 2
  %4495 = vperm.xlu0 %4494, %v4037
  %v4496 = vpop.permute.xlu0 %4495
  %4498 = vset.pattern.permute.xlu0 2
  %4499 = vperm.xlu0 %4498, %v4038
  %v4500 = vpop.permute.xlu0 %4499
  %4502 = vset.pattern.permute.xlu0 2
  %4503 = vperm.xlu0 %4502, %v4039
  %v4504 = vpop.permute.xlu0 %4503
  %4506 = vset.pattern.permute.xlu0 2
  %4507 = vperm.xlu0 %4506, %v4040
  %v4508 = vpop.permute.xlu0 %4507
  %4510 = vset.pattern.permute.xlu0 2
  %4511 = vperm.xlu0 %4510, %v4041
  %v4512 = vpop.permute.xlu0 %4511
  %4514 = vset.pattern.permute.xlu0 2
  %4515 = vperm.xlu0 %4514, %v4042
  %v4516 = vpop.permute.xlu0 %4515
  %4518 = vset.pattern.permute.xlu0 2
  %4519 = vperm.xlu0 %4518, %v4043
  %v4520 = vpop.permute.xlu0 %4519
  %4522 = vset.pattern.permute.xlu0 2
  %4523 = vperm.xlu0 %4522, %v4044
  %v4524 = vpop.permute.xlu0 %4523
  %4526 = vset.pattern.permute.xlu0 2
  %4527 = vperm.xlu0 %4526, %v4045
  %v4528 = vpop.permute.xlu0 %4527
  %4530 = vset.pattern.permute.xlu0 2
  %4531 = vperm.xlu0 %4530, %v4046
  %v4532 = vpop.permute.xlu0 %4531
  %4534 = vset.pattern.permute.xlu0 2
  %4535 = vperm.xlu0 %4534, %v4047
  %v4536 = vpop.permute.xlu0 %4535
  %v4538 = vmul.f32 %v3950, %v4484
  %v4539 = vmul.f32 %v3951, %v4488
  %v4540 = vmul.f32 %v3952, %v4492
  %v4541 = vmul.f32 %v3953, %v4496
  %v4542 = vmul.f32 %v3954, %v4500
  %v4543 = vmul.f32 %v3955, %v4504
  %v4544 = vmul.f32 %v3956, %v4508
  %v4545 = vmul.f32 %v3957, %v4512
  %v4546 = vmul.f32 %v3958, %v4516
  %v4547 = vmul.f32 %v3959, %v4520
  %v4548 = vmul.f32 %v3960, %v4524
  %v4549 = vmul.f32 %v3961, %v4528
  %v4550 = vmul.f32 %v3962, %v4532
  %v4551 = vmul.f32 %v3963, %v4536
  %4566 = vrot.lane.b32.xlu0 %v4538, 96
  %v4567 = vpop.permute.xlu0 %4566
  %4568 = vrot.lane.b32.xlu0 %v4539, 96
  %v4569 = vpop.permute.xlu0 %4568
  %4570 = vrot.lane.b32.xlu0 %v4540, 96
  %v4571 = vpop.permute.xlu0 %4570
  %4572 = vrot.lane.b32.xlu0 %v4541, 96
  %v4573 = vpop.permute.xlu0 %4572
  %4574 = vrot.lane.b32.xlu0 %v4542, 96
  %v4575 = vpop.permute.xlu0 %4574
  %4576 = vrot.lane.b32.xlu0 %v4543, 96
  %v4577 = vpop.permute.xlu0 %4576
  %4578 = vrot.lane.b32.xlu0 %v4544, 96
  %v4579 = vpop.permute.xlu0 %4578
  %4580 = vrot.lane.b32.xlu0 %v4545, 96
  %v4581 = vpop.permute.xlu0 %4580
  %4582 = vrot.lane.b32.xlu0 %v4546, 96
  %v4583 = vpop.permute.xlu0 %4582
  %4584 = vrot.lane.b32.xlu0 %v4547, 96
  %v4585 = vpop.permute.xlu0 %4584
  %4586 = vrot.lane.b32.xlu0 %v4548, 96
  %v4587 = vpop.permute.xlu0 %4586
  %4588 = vrot.lane.b32.xlu0 %v4549, 96
  %v4589 = vpop.permute.xlu0 %4588
  %4590 = vrot.lane.b32.xlu0 %v4550, 96
  %v4591 = vpop.permute.xlu0 %4590
  %4592 = vrot.lane.b32.xlu0 %v4551, 96
  %v4593 = vpop.permute.xlu0 %4592
  %v4608 = vadd.f32 %v4468, %v4567
  %v4609 = vadd.f32 %v4469, %v4569
  %v4610 = vadd.f32 %v4470, %v4571
  %v4611 = vadd.f32 %v4471, %v4573
  %v4612 = vadd.f32 %v4472, %v4575
  %v4613 = vadd.f32 %v4473, %v4577
  %v4614 = vadd.f32 %v4474, %v4579
  %v4615 = vadd.f32 %v4475, %v4581
  %v4616 = vadd.f32 %v4476, %v4583
  %v4617 = vadd.f32 %v4477, %v4585
  %v4618 = vadd.f32 %v4478, %v4587
  %v4619 = vadd.f32 %v4479, %v4589
  %v4620 = vadd.f32 %v4480, %v4591
  %v4621 = vadd.f32 %v4481, %v4593
  %4636 = vrot.lane.b32.xlu0 %v4020, 96
  %v4637 = vpop.permute.xlu0 %4636
  %4638 = vrot.lane.b32.xlu0 %v4021, 96
  %v4639 = vpop.permute.xlu0 %4638
  %4640 = vrot.lane.b32.xlu0 %v4022, 96
  %v4641 = vpop.permute.xlu0 %4640
  %4642 = vrot.lane.b32.xlu0 %v4023, 96
  %v4643 = vpop.permute.xlu0 %4642
  %4644 = vrot.lane.b32.xlu0 %v4024, 96
  %v4645 = vpop.permute.xlu0 %4644
  %4646 = vrot.lane.b32.xlu0 %v4025, 96
  %v4647 = vpop.permute.xlu0 %4646
  %4648 = vrot.lane.b32.xlu0 %v4026, 96
  %v4649 = vpop.permute.xlu0 %4648
  %4650 = vrot.lane.b32.xlu0 %v4027, 96
  %v4651 = vpop.permute.xlu0 %4650
  %4652 = vrot.lane.b32.xlu0 %v4028, 96
  %v4653 = vpop.permute.xlu0 %4652
  %4654 = vrot.lane.b32.xlu0 %v4029, 96
  %v4655 = vpop.permute.xlu0 %4654
  %4656 = vrot.lane.b32.xlu0 %v4030, 96
  %v4657 = vpop.permute.xlu0 %4656
  %4658 = vrot.lane.b32.xlu0 %v4031, 96
  %v4659 = vpop.permute.xlu0 %4658
  %4660 = vrot.lane.b32.xlu0 %v4032, 96
  %v4661 = vpop.permute.xlu0 %4660
  %4662 = vrot.lane.b32.xlu0 %v4033, 96
  %v4663 = vpop.permute.xlu0 %4662
  %4692 = vrot.lane.b32.xlu0 %v4258, 32
  %v4693 = vpop.permute.xlu0 %4692
  %4694 = vrot.lane.b32.xlu0 %v4259, 32
  %v4695 = vpop.permute.xlu0 %4694
  %4696 = vrot.lane.b32.xlu0 %v4260, 32
  %v4697 = vpop.permute.xlu0 %4696
  %4698 = vrot.lane.b32.xlu0 %v4261, 32
  %v4699 = vpop.permute.xlu0 %4698
  %4700 = vrot.lane.b32.xlu0 %v4262, 32
  %v4701 = vpop.permute.xlu0 %4700
  %4702 = vrot.lane.b32.xlu0 %v4263, 32
  %v4703 = vpop.permute.xlu0 %4702
  %4704 = vrot.lane.b32.xlu0 %v4264, 32
  %v4705 = vpop.permute.xlu0 %4704
  %4706 = vrot.lane.b32.xlu0 %v4265, 32
  %v4707 = vpop.permute.xlu0 %4706
  %4708 = vrot.lane.b32.xlu0 %v4266, 32
  %v4709 = vpop.permute.xlu0 %4708
  %4710 = vrot.lane.b32.xlu0 %v4267, 32
  %v4711 = vpop.permute.xlu0 %4710
  %4712 = vrot.lane.b32.xlu0 %v4268, 32
  %v4713 = vpop.permute.xlu0 %4712
  %4714 = vrot.lane.b32.xlu0 %v4269, 32
  %v4715 = vpop.permute.xlu0 %4714
  %4716 = vrot.lane.b32.xlu0 %v4270, 32
  %v4717 = vpop.permute.xlu0 %4716
  %4718 = vrot.lane.b32.xlu0 %v4271, 32
  %v4719 = vpop.permute.xlu0 %4718
  %4748 = vrot.lane.b32.xlu0 %v4454, 32
  %v4749 = vpop.permute.xlu0 %4748
  %4750 = vrot.lane.b32.xlu0 %v4455, 32
  %v4751 = vpop.permute.xlu0 %4750
  %4752 = vrot.lane.b32.xlu0 %v4456, 32
  %v4753 = vpop.permute.xlu0 %4752
  %4754 = vrot.lane.b32.xlu0 %v4457, 32
  %v4755 = vpop.permute.xlu0 %4754
  %4756 = vrot.lane.b32.xlu0 %v4458, 32
  %v4757 = vpop.permute.xlu0 %4756
  %4758 = vrot.lane.b32.xlu0 %v4459, 32
  %v4759 = vpop.permute.xlu0 %4758
  %4760 = vrot.lane.b32.xlu0 %v4460, 32
  %v4761 = vpop.permute.xlu0 %4760
  %4762 = vrot.lane.b32.xlu0 %v4461, 32
  %v4763 = vpop.permute.xlu0 %4762
  %4764 = vrot.lane.b32.xlu0 %v4462, 32
  %v4765 = vpop.permute.xlu0 %4764
  %4766 = vrot.lane.b32.xlu0 %v4463, 32
  %v4767 = vpop.permute.xlu0 %4766
  %4768 = vrot.lane.b32.xlu0 %v4464, 32
  %v4769 = vpop.permute.xlu0 %4768
  %4770 = vrot.lane.b32.xlu0 %v4465, 32
  %v4771 = vpop.permute.xlu0 %4770
  %4772 = vrot.lane.b32.xlu0 %v4466, 32
  %v4773 = vpop.permute.xlu0 %4772
  %4774 = vrot.lane.b32.xlu0 %v4467, 32
  %v4775 = vpop.permute.xlu0 %4774
  %4804 = vrot.lane.b32.xlu0 %v4608, 32
  %v4805 = vpop.permute.xlu0 %4804
  %4806 = vrot.lane.b32.xlu0 %v4609, 32
  %v4807 = vpop.permute.xlu0 %4806
  %4808 = vrot.lane.b32.xlu0 %v4610, 32
  %v4809 = vpop.permute.xlu0 %4808
  %4810 = vrot.lane.b32.xlu0 %v4611, 32
  %v4811 = vpop.permute.xlu0 %4810
  %4812 = vrot.lane.b32.xlu0 %v4612, 32
  %v4813 = vpop.permute.xlu0 %4812
  %4814 = vrot.lane.b32.xlu0 %v4613, 32
  %v4815 = vpop.permute.xlu0 %4814
  %4816 = vrot.lane.b32.xlu0 %v4614, 32
  %v4817 = vpop.permute.xlu0 %4816
  %4818 = vrot.lane.b32.xlu0 %v4615, 32
  %v4819 = vpop.permute.xlu0 %4818
  %4820 = vrot.lane.b32.xlu0 %v4616, 32
  %v4821 = vpop.permute.xlu0 %4820
  %4822 = vrot.lane.b32.xlu0 %v4617, 32
  %v4823 = vpop.permute.xlu0 %4822
  %4824 = vrot.lane.b32.xlu0 %v4618, 32
  %v4825 = vpop.permute.xlu0 %4824
  %4826 = vrot.lane.b32.xlu0 %v4619, 32
  %v4827 = vpop.permute.xlu0 %4826
  %4828 = vrot.lane.b32.xlu0 %v4620, 32
  %v4829 = vpop.permute.xlu0 %4828
  %4830 = vrot.lane.b32.xlu0 %v4621, 32
  %v4831 = vpop.permute.xlu0 %4830
  %v4846 = vsel %vm98, %v4637, %v4693
  %v4847 = vsel %vm98, %v4639, %v4695
  %v4848 = vsel %vm98, %v4641, %v4697
  %v4849 = vsel %vm98, %v4643, %v4699
  %v4850 = vsel %vm98, %v4645, %v4701
  %v4851 = vsel %vm98, %v4647, %v4703
  %v4852 = vsel %vm98, %v4649, %v4705
  %v4853 = vsel %vm98, %v4651, %v4707
  %v4854 = vsel %vm98, %v4653, %v4709
  %v4855 = vsel %vm98, %v4655, %v4711
  %v4856 = vsel %vm98, %v4657, %v4713
  %v4857 = vsel %vm98, %v4659, %v4715
  %v4858 = vsel %vm98, %v4661, %v4717
  %v4859 = vsel %vm98, %v4663, %v4719
  %vm4860 = vcmask 523264
  %v4861 = vsel %vm4860, %v4846, %v4749
  %v4862 = vsel %vm4860, %v4847, %v4751
  %v4863 = vsel %vm4860, %v4848, %v4753
  %v4864 = vsel %vm4860, %v4849, %v4755
  %v4865 = vsel %vm4860, %v4850, %v4757
  %v4866 = vsel %vm4860, %v4851, %v4759
  %v4867 = vsel %vm4860, %v4852, %v4761
  %v4868 = vsel %vm4860, %v4853, %v4763
  %v4869 = vsel %vm4860, %v4854, %v4765
  %v4870 = vsel %vm4860, %v4855, %v4767
  %v4871 = vsel %vm4860, %v4856, %v4769
  %v4872 = vsel %vm4860, %v4857, %v4771
  %v4873 = vsel %vm4860, %v4858, %v4773
  %v4874 = vsel %vm4860, %v4859, %v4775
  %v4875 = vsel %vm887, %v4861, %v4805
  %v4876 = vsel %vm887, %v4862, %v4807
  %v4877 = vsel %vm887, %v4863, %v4809
  %v4878 = vsel %vm887, %v4864, %v4811
  %v4879 = vsel %vm887, %v4865, %v4813
  %v4880 = vsel %vm887, %v4866, %v4815
  %v4881 = vsel %vm887, %v4867, %v4817
  %v4882 = vsel %vm887, %v4868, %v4819
  %v4883 = vsel %vm887, %v4869, %v4821
  %v4884 = vsel %vm887, %v4870, %v4823
  %v4885 = vsel %vm887, %v4871, %v4825
  %v4886 = vsel %vm887, %v4872, %v4827
  %v4887 = vsel %vm887, %v4873, %v4829
  %v4888 = vsel %vm887, %v4874, %v4831
  %v4889 = vld [vmem:[%s7] sm:$0xff]
  %v4890 = vld [vmem:[%s7 + $0x8] sm:$0xff]
  %vm4891 = vcmask 916480
  %v4893 = vsel %vm4891, %v4889, 0
  %v4896 = vsel %vm4891, %v4890, 0
  %4898 = vmatpush.msra.mxu0 0.0
  %4899 = vmatpush.msra.mxu0 0.0
  %4900 = vmatpush.msra.mxu0 %v4888
  %4901 = vmatpush.msra.mxu0 %v4887
  %4902 = vmatpush.msra.mxu0 %v4886
  %4903 = vmatpush.msra.mxu0 %v4885
  %4904 = vmatpush.msra.mxu0 %v4884
  %4905 = vmatpush.msra.mxu0 %v4883
  %4906 = vmatpush.msra.mxu0 %v4882
  %4907 = vmatpush.msra.mxu0 %v4881
  %4908 = vmatpush.msra.mxu0 %v4880
  %4909 = vmatpush.msra.mxu0 %v4879
  %4910 = vmatpush.msra.mxu0 %v4878
  %4911 = vmatpush.msra.mxu0 %v4877
  %4912 = vmatpush.msra.mxu0 %v4876
  %4913 = vmatpush.msra.mxu0 %v4875
  %4914 = vmatmul.f32.gmra.mxu0 %v4893
  %v4915 = vpop.f32.mrf.mxu0
  %v4916 = vadd.f32 0.0, %v4915
  %4917 = vmatmul.f32.gmra.mxu0 %v4896
  %v4918 = vpop.f32.mrf.mxu0
  %v4919 = vadd.f32 0.0, %v4918
  %4920 = vdwg.mxu0
  %v4921 = vld [vmem:[%s21] sm:$0xff]
  %v4922 = vld [vmem:[%s21 + $0x8] sm:$0xff]
  %v4923 = vld [vmem:[%s21 + $0x10] sm:$0xff]
  %v4924 = vld [vmem:[%s21 + $0x18] sm:$0xff]
  %v4925 = vld [vmem:[%s22] sm:$0x1]
  %v4927 = vperm.slane %v4925, 0
  %v4930 = vsel %vm98, %v4916, 0
  %v4933 = vsel %vm98, %v4919, 0
  %4935 = vmatpush.msra.mxu0 0.0
  %4936 = vmatpush.msra.mxu0 0.0
  %4937 = vmatpush.msra.mxu0 0.0
  %4938 = vmatpush.msra.mxu0 0.0
  %4939 = vmatpush.msra.mxu0 0.0
  %4940 = vmatpush.msra.mxu0 0.0
  %4941 = vmatpush.msra.mxu0 0.0
  %4942 = vmatpush.msra.mxu0 0.0
  %4943 = vmatpush.msra.mxu0 0.0
  %4944 = vmatpush.msra.mxu0 0.0
  %4945 = vmatpush.msra.mxu0 0.0
  %4946 = vmatpush.msra.mxu0 0.0
  %4947 = vmatpush.msra.mxu0 %v4924
  %4948 = vmatpush.msra.mxu0 %v4923
  %4949 = vmatpush.msra.mxu0 %v4922
  %4950 = vmatpush.msra.mxu0 %v4921
  %4951 = vmatmul.f32.gmra.mxu0 %v4930
  %v4952 = vpop.f32.mrf.mxu0
  %v4953 = vadd.f32 %v4927, %v4952
  %4954 = vmatmul.f32.gmra.mxu0 %v4933
  %v4955 = vpop.f32.mrf.mxu0
  %v4956 = vadd.f32 %v4927, %v4955
  %4957 = vdwg.mxu0
  %4960 = vrot.lane.b32.xlu0 %v4953, 96
  %v4961 = vpop.permute.xlu0 %4960
  %4962 = vrot.lane.b32.xlu0 %v4956, 96
  %v4963 = vpop.permute.xlu0 %4962
  %v4966 = vmul.f32 %v469, %v4961
  %v4967 = vmul.f32 %v470, %v4963
  %4968 = vrot.lane.b32.xlu0 %v4953, 64
  %v4969 = vpop.permute.xlu0 %4968
  %4970 = vrot.lane.b32.xlu0 %v4956, 64
  %v4971 = vpop.permute.xlu0 %4970
  %v4974 = vadd.f32 %v4966, %v4969
  %v4975 = vadd.f32 %v4967, %v4971
  %v4976 = vadd.f32 %v74, %v4974
  %v4977 = vadd.f32 %v75, %v4975
  %v4978 = vmul.f32 %v370, %v4969
  %v4979 = vmul.f32 %v373, %v4971
  %4980 = vrot.lane.b32.xlu0 %v4916, 32
  %v4981 = vpop.permute.xlu0 %4980
  %4982 = vrot.lane.b32.xlu0 %v4919, 32
  %v4983 = vpop.permute.xlu0 %4982
  %v4986 = vadd.f32 %v4978, %v4981
  %v4987 = vadd.f32 %v4979, %v4983
  %4990 = vrot.lane.b32.xlu0 %v4986, 96
  %v4991 = vpop.permute.xlu0 %4990
  %4992 = vrot.lane.b32.xlu0 %v4987, 96
  %v4993 = vpop.permute.xlu0 %4992
  %v4996 = vadd.f32 %v74, %v4991
  %v4997 = vadd.f32 %v75, %v4993
  %v4998 = vmul.f32 %v401, %v4969
  %v4999 = vmul.f32 %v404, %v4971
  %v5000 = vadd.f32 %v4998, %v4916
  %v5001 = vadd.f32 %v4999, %v4919
  %v5002 = vadd.f32 %v74, %v5000
  %v5003 = vadd.f32 %v75, %v5001
  %v5004 = vmul.f32 %v432, %v4969
  %v5005 = vmul.f32 %v435, %v4971
  %5006 = vrot.lane.b32.xlu0 %v4916, 96
  %v5007 = vpop.permute.xlu0 %5006
  %5008 = vrot.lane.b32.xlu0 %v4919, 96
  %v5009 = vpop.permute.xlu0 %5008
  %v5012 = vadd.f32 %v5004, %v5007
  %v5013 = vadd.f32 %v5005, %v5009
  %5016 = vrot.lane.b32.xlu0 %v5012, 32
  %v5017 = vpop.permute.xlu0 %5016
  %5018 = vrot.lane.b32.xlu0 %v5013, 32
  %v5019 = vpop.permute.xlu0 %5018
  %v5022 = vadd.f32 %v74, %v5017
  %v5023 = vadd.f32 %v75, %v5019
  %v5024 = vsel %vm98, %v4976, %v4996
  %v5025 = vsel %vm98, %v4977, %v4997
  %v5026 = vsel %vm4860, %v5024, %v5002
  %v5027 = vsel %vm4860, %v5025, %v5003
  %v5028 = vsel %vm887, %v5026, %v5022
  %v5029 = vsel %vm887, %v5027, %v5023
  %5030 = vst [vmem:[%s23] sm:$0xff] %v5028
  %5031 = vst [vmem:[%s23 + $0x8] sm:$0xff] %v5029
  // Predicated region
  $region94: #{torchmd_dynamics_forward.5} parent=0 // pred_check
    _
  $region95: #{torchmd_dynamics_forward.5} parent=0 // pred_check_branch
    %5033 = sbr.rel (0) target = $region97
  $region96: #{torchmd_dynamics_forward.5} parent=0 // pred_region
    _
  $region97: #{torchmd_dynamics_forward.5} parent=0 // pred_fallthru
    _
  // Predicated region
  $region98: #{torchmd_dynamics_forward.5} parent=0 // pred_check
    _
  $region99: #{torchmd_dynamics_forward.5} parent=0 // pred_check_branch
    %5035 = sbr.rel (0) target = $region101
  $region100: #{torchmd_dynamics_forward.5} parent=0 // pred_region
    _
  $region101: #{torchmd_dynamics_forward.5} parent=0 // pred_fallthru
    _

</llo_original>
